<compile_context>
chip_gen: v5e
topology: v5e:2x2
jax: 0.10.0
libtpu: 0.0.40
codegen_flags: <defaults>
</compile_context>

<pallas_src>
import functools

import numpy as np
import jax
import jax.numpy as jnp
from jax import lax
from jax.experimental import pallas as pl
from jax.experimental.pallas import tpu as pltpu

TB_MAX = 32  # preferred batch tile: conv1 M = 7*32 = 224, conv2 M = 5*32 = 160


# ---------------------------------------------------------------------------
# Fused kernel: conv1+relu+pool1 -> conv2+relu+pool2 -> fc1 -> fc2 -> fc3
# The whole batch tile is processed with batch folded into the matmul M dim.
# ---------------------------------------------------------------------------
def _medium_net_kernel(tb, x_ref, m1_ref, b1_ref, m2_ref, b2_ref,
                       wf1_ref, bf1_ref, wf2_ref, bf2_ref, wf3_ref, bf3_ref,
                       o_ref):
    f32 = jnp.float32
    bf16 = jnp.bfloat16

    # Hoisted bias reads (reused across all tap/corner iterations).
    b1v = b1_ref[...]     # [1, 128] f32
    b2v = b2_ref[...]     # [1, 128] f32
    bf1v = bf1_ref[...]   # [1, 128] f32
    bf2v = bf2_ref[...]   # [1, 128] f32
    bf3v = bf3_ref[...]   # [1, 128] f32

    # Pre-slice the 8 distinct conv1 input-row slabs.
    # For absolute input row y = 4*m + a (m = 0..6), slab index a = 2e+dy+kh:
    # parity a%4, row group a//4.  [7, tb, 128] -> [7*tb, 128] merges
    # contiguous leading/sublane dims (batch is adjacent to the row dim), so
    # the reshape is layout-free; row index in the slab is m*tb + b.
    rows = []
    for a in range(8):
        sl = x_ref[a % 4, (a // 4):(a // 4) + 7, :, :]        # [7, tb, 128]
        rows.append(sl.reshape(7 * tb, 128))                  # bf16

    # ---- conv1 + ReLU + 2x2 max-pool ------------------------------------
    # pooled1[e][m*tb + b, j*8 + c1] = P1[b, c1, i=2m+e, j]
    pooled1 = []
    for e in (0, 1):
        best = None
        for dy in (0, 1):
            for dx in (0, 1):
                acc = None
                for kh in range(5):
                    a = 2 * e + dy + kh
                    t = jnp.dot(rows[a], m1_ref[dx, kh],
                                preferred_element_type=f32)   # [7*tb, 128]
                    acc = t if acc is None else acc + t
                slab = jnp.maximum(acc + b1v, 0.0)
                best = slab if best is None else jnp.maximum(best, slab)
        pooled1.append(best.astype(bf16))                     # cast once/slab

    # ---- conv2 + ReLU + 2x2 max-pool ------------------------------------
    # p2[s*tb + b, t*16 + c2] = P2[b, c2, s, t]
    p2 = None
    for eu in (0, 1):
        for ev in (0, 1):
            acc = None
            for kh in range(5):
                a = eu + kh
                lhs = pooled1[a % 2][(a // 2) * tb:(a // 2 + 5) * tb, :]
                t = jnp.dot(lhs, m2_ref[ev, kh],
                            preferred_element_type=f32)       # [5*tb, 128]
                acc = t if acc is None else acc + t
            slab = jnp.maximum(acc + b2v, 0.0)
            p2 = slab if p2 is None else jnp.maximum(p2, slab)

    # ---- MLP head: fc1 accumulated per spatial row (no staging scratch) --
    p2b = p2.astype(bf16)
    h1 = None
    for s in range(5):
        t = jnp.dot(p2b[s * tb:(s + 1) * tb, :], wf1_ref[s],
                    preferred_element_type=f32)               # [tb, 128]
        h1 = t if h1 is None else h1 + t
    h1 = jnp.maximum(h1 + bf1v, 0.0)
    h2 = jnp.maximum(jnp.dot(h1.astype(bf16), wf2_ref[...],
                             preferred_element_type=f32) + bf2v, 0.0)
    out = jnp.dot(h2.astype(bf16), wf3_ref[...],
                  preferred_element_type=f32) + bf3v
    o_ref[...] = out                                          # [tb, 128] f32


# ---------------------------------------------------------------------------
# One-time host-side weight folding / padding (pure layout plumbing)
# ---------------------------------------------------------------------------
def prepare_params(params):
    w1 = np.asarray(params["conv1_w"], np.float32)   # [6, 3, 5, 5]
    b1 = np.asarray(params["conv1_b"], np.float32)
    w2 = np.asarray(params["conv2_w"], np.float32)   # [16, 6, 5, 5]
    b2 = np.asarray(params["conv2_b"], np.float32)
    fw1 = np.asarray(params["fc1_w"], np.float32)    # [120, 400]
    fb1 = np.asarray(params["fc1_b"], np.float32)
    fw2 = np.asarray(params["fc2_w"], np.float32)    # [84, 120]
    fb2 = np.asarray(params["fc2_b"], np.float32)
    fw3 = np.asarray(params["fc3_w"], np.float32)    # [10, 84]
    fb3 = np.asarray(params["fc3_b"], np.float32)

    # conv1 folded matrices, N lane-padded to 128:
    #   lane-in = x*4 + cin (128), lane-out = j*8 + cout (112 used),
    #   nonzero iff x == 2j + dx + kw  (dx = pool column parity).
    m1 = np.zeros((2, 5, 32, 4, 16, 8), np.float32)
    for dx in range(2):
        for kh in range(5):
            for kw in range(5):
                for j in range(14):
                    m1[dx, kh, 2 * j + dx + kw, :3, j, :6] = w1[:, :, kh, kw].T
    m1 = m1.reshape(2, 5, 128, 128)
    b1t = np.zeros((1, 128), np.float32)
    b1t[0, :112] = np.tile(np.pad(b1, (0, 2)), 14)

    # conv2 folded matrices, K and N lane-padded to 128:
    #   lane-in = j*8 + c1 (112 used), lane-out = t*16 + c2 (80 used),
    #   nonzero iff j == 2t + ev + kw  (ev = pool column parity).
    m2 = np.zeros((2, 5, 16, 8, 8, 16), np.float32)
    for ev in range(2):
        for kh in range(5):
            for kw in range(5):
                for t in range(5):
                    m2[ev, kh, 2 * t + ev + kw, :6, t, :] = w2[:, :, kh, kw].T
    m2 = m2.reshape(2, 5, 128, 128)
    b2t = np.zeros((1, 128), np.float32)
    b2t[0, :80] = np.tile(b2, 5)

    # fc1 split into 5 per-spatial-row slabs [s, t*16 + c2, out] so the kernel
    # accumulates h1 directly from the conv2/pool2 slabs (torch flatten order
    # is (c2, s, t)); out dims padded 120/84/10 -> 128 lanes (exact thru ReLU).
    a = fw1.T.reshape(16, 5, 5, 120).transpose(1, 2, 0, 3).reshape(5, 80, 120)
    wf1 = np.zeros((5, 128, 128), np.float32); wf1[:, :80, :120] = a
    bf1 = np.zeros((1, 128), np.float32);      bf1[0, :120] = fb1
    wf2 = np.zeros((128, 128), np.float32);    wf2[:120, :84] = fw2.T
    bf2 = np.zeros((1, 128), np.float32);      bf2[0, :84] = fb2
    wf3 = np.zeros((128, 128), np.float32);    wf3[:84, :10] = fw3.T
    bf3 = np.zeros((1, 128), np.float32);      bf3[0, :10] = fb3

    bcast = lambda v: jnp.asarray(v, jnp.bfloat16)   # MXU operands
    fcast = lambda v: jnp.asarray(v, jnp.float32)    # biases (f32 accumulators)
    return dict(m1=bcast(m1), b1=fcast(b1t), m2=bcast(m2), b2=fcast(b2t),
                wf1=bcast(wf1), bf1=fcast(bf1), wf2=bcast(wf2), bf2=fcast(bf2),
                wf3=bcast(wf3), bf3=fcast(bf3))


# ---------------------------------------------------------------------------
# Forward pass: one pallas_call, grid over batch tiles
# ---------------------------------------------------------------------------
def _choose_tb(batch):
    # Multiples of 16 keep the bf16 sublane tiling clean; cap at TB_MAX.
    return min(TB_MAX, max(16, ((batch + 15) // 16) * 16))


@jax.jit
def medium_net_forward(prep, x):
    B = x.shape[0]
    tb = _choose_tb(B)
    Bp = ((B + tb - 1) // tb) * tb

    # NCHW -> [y%4, y//4, batch, x*4+c], channels padded 3->4, bf16.
    xp = jnp.transpose(x, (0, 2, 3, 1))                       # [B,32,32,3]
    xp = jnp.pad(xp, ((0, Bp - B), (0, 0), (0, 0), (0, 1)))   # [Bp,32,32,4]
    xp = xp.reshape(Bp, 8, 4, 128).transpose(2, 1, 0, 3)      # [4,8,Bp,128]
    xp = xp.astype(jnp.bfloat16)

    c2 = lambda i: (0, 0)
    c3 = lambda i: (0, 0, 0)
    c4 = lambda i: (0, 0, 0, 0)
    out = pl.pallas_call(
        functools.partial(_medium_net_kernel, tb),
        out_shape=jax.ShapeDtypeStruct((Bp, 128), jnp.float32),
        grid=(Bp // tb,),
        in_specs=[
            pl.BlockSpec((4, 8, tb, 128), lambda i: (0, 0, i, 0)),  # input tile
            pl.BlockSpec((2, 5, 128, 128), c4),                     # conv1 fold
            pl.BlockSpec((1, 128), c2),                             # conv1 bias
            pl.BlockSpec((2, 5, 128, 128), c4),                     # conv2 fold
            pl.BlockSpec((1, 128), c2),                             # conv2 bias
            pl.BlockSpec((5, 128, 128), c3),                        # fc1 slabs
            pl.BlockSpec((1, 128), c2),                             # fc1 b
            pl.BlockSpec((128, 128), c2),                           # fc2 w
            pl.BlockSpec((1, 128), c2),                             # fc2 b
            pl.BlockSpec((128, 128), c2),                           # fc3 w
            pl.BlockSpec((1, 128), c2),                             # fc3 b
        ],
        out_specs=pl.BlockSpec((tb, 128), lambda i: (i, 0)),        # lane-dense
        compiler_params=pltpu.CompilerParams(
            dimension_semantics=("parallel",),
            vmem_limit_bytes=32 * 1024 * 1024),
    )(xp, prep["m1"], prep["b1"], prep["m2"], prep["b2"],
      prep["wf1"], prep["bf1"], prep["wf2"], prep["bf2"],
      prep["wf3"], prep["bf3"])
    return out[:B, :10]


# ---------------------------------------------------------------------------
# Plain-JAX reference (mirrors the PyTorch module) + params
# ---------------------------------------------------------------------------
def init_params(key):
    ks = jax.random.split(key, 10)

    def u(k, shape, fan_in):
        b = 1.0 / float(np.sqrt(fan_in))
        return jax.random.uniform(k, shape, jnp.float32, -b, b)

    return {
        "conv1_w": u(ks[0], (6, 3, 5, 5), 3 * 25),
        "conv1_b": u(ks[1], (6,), 3 * 25),
        "conv2_w": u(ks[2], (16, 6, 5, 5), 6 * 25),
        "conv2_b": u(ks[3], (16,), 6 * 25),
        "fc1_w": u(ks[4], (120, 400), 400),
        "fc1_b": u(ks[5], (120,), 400),
        "fc2_w": u(ks[6], (84, 120), 120),
        "fc2_b": u(ks[7], (84,), 120),
        "fc3_w": u(ks[8], (10, 84), 84),
        "fc3_b": u(ks[9], (10,), 84),
    }


@jax.jit
def reference_forward(params, x):
    dn = ("NCHW", "OIHW", "NCHW")
    y = lax.conv_general_dilated(x, params["conv1_w"], (1, 1), "VALID",
                                 dimension_numbers=dn)
    y = jax.nn.relu(y + params["conv1_b"][None, :, None, None])
    y = lax.reduce_window(y, -jnp.inf, lax.max, (1, 1, 2, 2), (1, 1, 2, 2),
                          "VALID")
    y = lax.conv_general_dilated(y, params["conv2_w"], (1, 1), "VALID",
                                 dimension_numbers=dn)
    y = jax.nn.relu(y + params["conv2_b"][None, :, None, None])
    y = lax.reduce_window(y, -jnp.inf, lax.max, (1, 1, 2, 2), (1, 1, 2, 2),
                          "VALID")
    f = y.reshape(y.shape[0], -1)
    h = jax.nn.relu(f @ params["fc1_w"].T + params["fc1_b"])
    h = jax.nn.relu(h @ params["fc2_w"].T + params["fc2_b"])
    return h @ params["fc3_w"].T + params["fc3_b"]


if __name__ == "__main__":
    key = jax.random.PRNGKey(0)
    pkey, xkey = jax.random.split(key)
    params = init_params(pkey)
    prep = prepare_params(params)

    # 32x32x3 input is mandated by the module (fc1 expects 16*5*5 features);
    # batch 64 -> TB=32, grid=2 (exercises the batched-M tiling & the grid).
    x = jax.random.normal(xkey, (64, 3, 32, 32), dtype=jnp.float32)
    out = jax.block_until_ready(medium_net_forward(prep, x))
    assert out.shape == (64, 10), out.shape

    ref = jax.block_until_ready(reference_forward(params, x))
    max_err = float(jnp.max(jnp.abs(out - ref)))
    # bf16 MXU operands (input image + weights) with f32 accumulation ->
    # small, intentional numerical difference vs the f32 reference.
    assert max_err < 1e-1, f"kernel/reference mismatch: max abs err = {max_err}"

    print("KERNEL_OK")
</pallas_src>

<mosaic_0001>
module attributes {stable_mosaic.version = 11 : i64} {
  func.func @_medium_net_kernel(%arg0: i32, %arg1: memref<4x8x32x128xbf16, #tpu.memory_space<vmem>>, %arg2: memref<2x5x128x128xbf16, #tpu.memory_space<vmem>>, %arg3: memref<1x128xf32, #tpu.memory_space<vmem>>, %arg4: memref<2x5x128x128xbf16, #tpu.memory_space<vmem>>, %arg5: memref<1x128xf32, #tpu.memory_space<vmem>>, %arg6: memref<5x128x128xbf16, #tpu.memory_space<vmem>>, %arg7: memref<1x128xf32, #tpu.memory_space<vmem>>, %arg8: memref<128x128xbf16, #tpu.memory_space<vmem>>, %arg9: memref<1x128xf32, #tpu.memory_space<vmem>>, %arg10: memref<128x128xbf16, #tpu.memory_space<vmem>>, %arg11: memref<1x128xf32, #tpu.memory_space<vmem>>, %arg12: memref<32x128xf32, #tpu.memory_space<vmem>>) attributes {dimension_semantics = [#tpu.dimension_semantics<parallel>], iteration_bounds = array<i64: 2>, scalar_prefetch = 0 : i64, scratch_operands = 0 : i64, tpu.core_type = #tpu.core_type<tc>, window_params = [{transform_indices = @transform_0, window_bounds = array<i64: 4, 8, 32, 128>}, {pipeline_mode = #tpu.pipeline_mode<synchronous>, transform_indices = @transform_1, window_bounds = array<i64: 2, 5, 128, 128>}, {pipeline_mode = #tpu.pipeline_mode<synchronous>, transform_indices = @transform_2, window_bounds = array<i64: 1, 128>}, {pipeline_mode = #tpu.pipeline_mode<synchronous>, transform_indices = @transform_3, window_bounds = array<i64: 2, 5, 128, 128>}, {pipeline_mode = #tpu.pipeline_mode<synchronous>, transform_indices = @transform_4, window_bounds = array<i64: 1, 128>}, {pipeline_mode = #tpu.pipeline_mode<synchronous>, transform_indices = @transform_5, window_bounds = array<i64: 5, 128, 128>}, {pipeline_mode = #tpu.pipeline_mode<synchronous>, transform_indices = @transform_6, window_bounds = array<i64: 1, 128>}, {pipeline_mode = #tpu.pipeline_mode<synchronous>, transform_indices = @transform_7, window_bounds = array<i64: 128, 128>}, {pipeline_mode = #tpu.pipeline_mode<synchronous>, transform_indices = @transform_8, window_bounds = array<i64: 1, 128>}, {pipeline_mode = #tpu.pipeline_mode<synchronous>, transform_indices = @transform_9, window_bounds = array<i64: 128, 128>}, {pipeline_mode = #tpu.pipeline_mode<synchronous>, transform_indices = @transform_10, window_bounds = array<i64: 1, 128>}, {transform_indices = @transform_11, window_bounds = array<i64: 32, 128>}]} {
    %c0 = arith.constant 0 : index
    %c0_0 = arith.constant 0 : index
    %0 = vector.load %arg3[%c0, %c0_0] : memref<1x128xf32, #tpu.memory_space<vmem>>, vector<1x128xf32>
    %c0_1 = arith.constant 0 : index
    %c0_2 = arith.constant 0 : index
    %1 = vector.load %arg5[%c0_1, %c0_2] : memref<1x128xf32, #tpu.memory_space<vmem>>, vector<1x128xf32>
    %c0_3 = arith.constant 0 : index
    %c0_4 = arith.constant 0 : index
    %2 = vector.load %arg7[%c0_3, %c0_4] : memref<1x128xf32, #tpu.memory_space<vmem>>, vector<1x128xf32>
    %c0_5 = arith.constant 0 : index
    %c0_6 = arith.constant 0 : index
    %3 = vector.load %arg9[%c0_5, %c0_6] : memref<1x128xf32, #tpu.memory_space<vmem>>, vector<1x128xf32>
    %c0_7 = arith.constant 0 : index
    %c0_8 = arith.constant 0 : index
    %4 = vector.load %arg11[%c0_7, %c0_8] : memref<1x128xf32, #tpu.memory_space<vmem>>, vector<1x128xf32>
    %c0_9 = arith.constant 0 : index
    %c0_10 = arith.constant 0 : index
    %c0_11 = arith.constant 0 : index
    %c0_12 = arith.constant 0 : index
    %5 = vector.load %arg1[%c0_9, %c0_10, %c0_11, %c0_12] : memref<4x8x32x128xbf16, #tpu.memory_space<vmem>>, vector<1x7x32x128xbf16>
    %6 = vector.shape_cast %5 : vector<1x7x32x128xbf16> to vector<7x32x128xbf16>
    %7 = vector.shape_cast %6 : vector<7x32x128xbf16> to vector<224x128xbf16>
    %c1 = arith.constant 1 : index
    %c0_13 = arith.constant 0 : index
    %c0_14 = arith.constant 0 : index
    %c0_15 = arith.constant 0 : index
    %8 = vector.load %arg1[%c1, %c0_13, %c0_14, %c0_15] : memref<4x8x32x128xbf16, #tpu.memory_space<vmem>>, vector<1x7x32x128xbf16>
    %9 = vector.shape_cast %8 : vector<1x7x32x128xbf16> to vector<7x32x128xbf16>
    %10 = vector.shape_cast %9 : vector<7x32x128xbf16> to vector<224x128xbf16>
    %c2 = arith.constant 2 : index
    %c0_16 = arith.constant 0 : index
    %c0_17 = arith.constant 0 : index
    %c0_18 = arith.constant 0 : index
    %11 = vector.load %arg1[%c2, %c0_16, %c0_17, %c0_18] : memref<4x8x32x128xbf16, #tpu.memory_space<vmem>>, vector<1x7x32x128xbf16>
    %12 = vector.shape_cast %11 : vector<1x7x32x128xbf16> to vector<7x32x128xbf16>
    %13 = vector.shape_cast %12 : vector<7x32x128xbf16> to vector<224x128xbf16>
    %c3 = arith.constant 3 : index
    %c0_19 = arith.constant 0 : index
    %c0_20 = arith.constant 0 : index
    %c0_21 = arith.constant 0 : index
    %14 = vector.load %arg1[%c3, %c0_19, %c0_20, %c0_21] : memref<4x8x32x128xbf16, #tpu.memory_space<vmem>>, vector<1x7x32x128xbf16>
    %15 = vector.shape_cast %14 : vector<1x7x32x128xbf16> to vector<7x32x128xbf16>
    %16 = vector.shape_cast %15 : vector<7x32x128xbf16> to vector<224x128xbf16>
    %c0_22 = arith.constant 0 : index
    %c1_23 = arith.constant 1 : index
    %c0_24 = arith.constant 0 : index
    %c0_25 = arith.constant 0 : index
    %17 = vector.load %arg1[%c0_22, %c1_23, %c0_24, %c0_25] : memref<4x8x32x128xbf16, #tpu.memory_space<vmem>>, vector<1x7x32x128xbf16>
    %18 = vector.shape_cast %17 : vector<1x7x32x128xbf16> to vector<7x32x128xbf16>
    %19 = vector.shape_cast %18 : vector<7x32x128xbf16> to vector<224x128xbf16>
    %c1_26 = arith.constant 1 : index
    %c1_27 = arith.constant 1 : index
    %c0_28 = arith.constant 0 : index
    %c0_29 = arith.constant 0 : index
    %20 = vector.load %arg1[%c1_26, %c1_27, %c0_28, %c0_29] : memref<4x8x32x128xbf16, #tpu.memory_space<vmem>>, vector<1x7x32x128xbf16>
    %21 = vector.shape_cast %20 : vector<1x7x32x128xbf16> to vector<7x32x128xbf16>
    %22 = vector.shape_cast %21 : vector<7x32x128xbf16> to vector<224x128xbf16>
    %c2_30 = arith.constant 2 : index
    %c1_31 = arith.constant 1 : index
    %c0_32 = arith.constant 0 : index
    %c0_33 = arith.constant 0 : index
    %23 = vector.load %arg1[%c2_30, %c1_31, %c0_32, %c0_33] : memref<4x8x32x128xbf16, #tpu.memory_space<vmem>>, vector<1x7x32x128xbf16>
    %24 = vector.shape_cast %23 : vector<1x7x32x128xbf16> to vector<7x32x128xbf16>
    %25 = vector.shape_cast %24 : vector<7x32x128xbf16> to vector<224x128xbf16>
    %c3_34 = arith.constant 3 : index
    %c1_35 = arith.constant 1 : index
    %c0_36 = arith.constant 0 : index
    %c0_37 = arith.constant 0 : index
    %26 = vector.load %arg1[%c3_34, %c1_35, %c0_36, %c0_37] : memref<4x8x32x128xbf16, #tpu.memory_space<vmem>>, vector<1x7x32x128xbf16>
    %27 = vector.shape_cast %26 : vector<1x7x32x128xbf16> to vector<7x32x128xbf16>
    %28 = vector.shape_cast %27 : vector<7x32x128xbf16> to vector<224x128xbf16>
    %c0_38 = arith.constant 0 : index
    %c0_39 = arith.constant 0 : index
    %c0_40 = arith.constant 0 : index
    %c0_41 = arith.constant 0 : index
    %29 = vector.load %arg2[%c0_38, %c0_39, %c0_40, %c0_41] : memref<2x5x128x128xbf16, #tpu.memory_space<vmem>>, vector<1x1x128x128xbf16>
    %30 = vector.shape_cast %29 : vector<1x1x128x128xbf16> to vector<128x128xbf16>
    %cst = arith.constant dense<0.000000e+00> : vector<224x128xf32>
    %31 = tpu.matmul %7, %30, %cst {dimension_numbers = #tpu.dot_dimension_numbers<[1], [0], [0], [1], [0, 0, 1, 1], [], []>} : vector<224x128xbf16>, vector<128x128xbf16>, vector<224x128xf32> -> vector<224x128xf32>
    %c0_42 = arith.constant 0 : index
    %c1_43 = arith.constant 1 : index
    %c0_44 = arith.constant 0 : index
    %c0_45 = arith.constant 0 : index
    %32 = vector.load %arg2[%c0_42, %c1_43, %c0_44, %c0_45] : memref<2x5x128x128xbf16, #tpu.memory_space<vmem>>, vector<1x1x128x128xbf16>
    %33 = vector.shape_cast %32 : vector<1x1x128x128xbf16> to vector<128x128xbf16>
    %cst_46 = arith.constant dense<0.000000e+00> : vector<224x128xf32>
    %34 = tpu.matmul %10, %33, %cst_46 {dimension_numbers = #tpu.dot_dimension_numbers<[1], [0], [0], [1], [0, 0, 1, 1], [], []>} : vector<224x128xbf16>, vector<128x128xbf16>, vector<224x128xf32> -> vector<224x128xf32>
    %35 = arith.addf %31, %34 : vector<224x128xf32>
    %c0_47 = arith.constant 0 : index
    %c2_48 = arith.constant 2 : index
    %c0_49 = arith.constant 0 : index
    %c0_50 = arith.constant 0 : index
    %36 = vector.load %arg2[%c0_47, %c2_48, %c0_49, %c0_50] : memref<2x5x128x128xbf16, #tpu.memory_space<vmem>>, vector<1x1x128x128xbf16>
    %37 = vector.shape_cast %36 : vector<1x1x128x128xbf16> to vector<128x128xbf16>
    %cst_51 = arith.constant dense<0.000000e+00> : vector<224x128xf32>
    %38 = tpu.matmul %13, %37, %cst_51 {dimension_numbers = #tpu.dot_dimension_numbers<[1], [0], [0], [1], [0, 0, 1, 1], [], []>} : vector<224x128xbf16>, vector<128x128xbf16>, vector<224x128xf32> -> vector<224x128xf32>
    %39 = arith.addf %35, %38 : vector<224x128xf32>
    %c0_52 = arith.constant 0 : index
    %c3_53 = arith.constant 3 : index
    %c0_54 = arith.constant 0 : index
    %c0_55 = arith.constant 0 : index
    %40 = vector.load %arg2[%c0_52, %c3_53, %c0_54, %c0_55] : memref<2x5x128x128xbf16, #tpu.memory_space<vmem>>, vector<1x1x128x128xbf16>
    %41 = vector.shape_cast %40 : vector<1x1x128x128xbf16> to vector<128x128xbf16>
    %cst_56 = arith.constant dense<0.000000e+00> : vector<224x128xf32>
    %42 = tpu.matmul %16, %41, %cst_56 {dimension_numbers = #tpu.dot_dimension_numbers<[1], [0], [0], [1], [0, 0, 1, 1], [], []>} : vector<224x128xbf16>, vector<128x128xbf16>, vector<224x128xf32> -> vector<224x128xf32>
    %43 = arith.addf %39, %42 : vector<224x128xf32>
    %c0_57 = arith.constant 0 : index
    %c4 = arith.constant 4 : index
    %c0_58 = arith.constant 0 : index
    %c0_59 = arith.constant 0 : index
    %44 = vector.load %arg2[%c0_57, %c4, %c0_58, %c0_59] : memref<2x5x128x128xbf16, #tpu.memory_space<vmem>>, vector<1x1x128x128xbf16>
    %45 = vector.shape_cast %44 : vector<1x1x128x128xbf16> to vector<128x128xbf16>
    %cst_60 = arith.constant dense<0.000000e+00> : vector<224x128xf32>
    %46 = tpu.matmul %19, %45, %cst_60 {dimension_numbers = #tpu.dot_dimension_numbers<[1], [0], [0], [1], [0, 0, 1, 1], [], []>} : vector<224x128xbf16>, vector<128x128xbf16>, vector<224x128xf32> -> vector<224x128xf32>
    %47 = arith.addf %43, %46 : vector<224x128xf32>
    %48 = vector.broadcast %0 : vector<1x128xf32> to vector<224x128xf32>
    %49 = arith.addf %47, %48 : vector<224x128xf32>
    %cst_61 = arith.constant 0.000000e+00 : f32
    %50 = vector.broadcast %cst_61 : f32 to vector<224x128xf32>
    %51 = arith.maximumf %49, %50 : vector<224x128xf32>
    %c1_62 = arith.constant 1 : index
    %c0_63 = arith.constant 0 : index
    %c0_64 = arith.constant 0 : index
    %c0_65 = arith.constant 0 : index
    %52 = vector.load %arg2[%c1_62, %c0_63, %c0_64, %c0_65] : memref<2x5x128x128xbf16, #tpu.memory_space<vmem>>, vector<1x1x128x128xbf16>
    %53 = vector.shape_cast %52 : vector<1x1x128x128xbf16> to vector<128x128xbf16>
    %cst_66 = arith.constant dense<0.000000e+00> : vector<224x128xf32>
    %54 = tpu.matmul %7, %53, %cst_66 {dimension_numbers = #tpu.dot_dimension_numbers<[1], [0], [0], [1], [0, 0, 1, 1], [], []>} : vector<224x128xbf16>, vector<128x128xbf16>, vector<224x128xf32> -> vector<224x128xf32>
    %c1_67 = arith.constant 1 : index
    %c1_68 = arith.constant 1 : index
    %c0_69 = arith.constant 0 : index
    %c0_70 = arith.constant 0 : index
    %55 = vector.load %arg2[%c1_67, %c1_68, %c0_69, %c0_70] : memref<2x5x128x128xbf16, #tpu.memory_space<vmem>>, vector<1x1x128x128xbf16>
    %56 = vector.shape_cast %55 : vector<1x1x128x128xbf16> to vector<128x128xbf16>
    %cst_71 = arith.constant dense<0.000000e+00> : vector<224x128xf32>
    %57 = tpu.matmul %10, %56, %cst_71 {dimension_numbers = #tpu.dot_dimension_numbers<[1], [0], [0], [1], [0, 0, 1, 1], [], []>} : vector<224x128xbf16>, vector<128x128xbf16>, vector<224x128xf32> -> vector<224x128xf32>
    %58 = arith.addf %54, %57 : vector<224x128xf32>
    %c1_72 = arith.constant 1 : index
    %c2_73 = arith.constant 2 : index
    %c0_74 = arith.constant 0 : index
    %c0_75 = arith.constant 0 : index
    %59 = vector.load %arg2[%c1_72, %c2_73, %c0_74, %c0_75] : memref<2x5x128x128xbf16, #tpu.memory_space<vmem>>, vector<1x1x128x128xbf16>
    %60 = vector.shape_cast %59 : vector<1x1x128x128xbf16> to vector<128x128xbf16>
    %cst_76 = arith.constant dense<0.000000e+00> : vector<224x128xf32>
    %61 = tpu.matmul %13, %60, %cst_76 {dimension_numbers = #tpu.dot_dimension_numbers<[1], [0], [0], [1], [0, 0, 1, 1], [], []>} : vector<224x128xbf16>, vector<128x128xbf16>, vector<224x128xf32> -> vector<224x128xf32>
    %62 = arith.addf %58, %61 : vector<224x128xf32>
    %c1_77 = arith.constant 1 : index
    %c3_78 = arith.constant 3 : index
    %c0_79 = arith.constant 0 : index
    %c0_80 = arith.constant 0 : index
    %63 = vector.load %arg2[%c1_77, %c3_78, %c0_79, %c0_80] : memref<2x5x128x128xbf16, #tpu.memory_space<vmem>>, vector<1x1x128x128xbf16>
    %64 = vector.shape_cast %63 : vector<1x1x128x128xbf16> to vector<128x128xbf16>
    %cst_81 = arith.constant dense<0.000000e+00> : vector<224x128xf32>
    %65 = tpu.matmul %16, %64, %cst_81 {dimension_numbers = #tpu.dot_dimension_numbers<[1], [0], [0], [1], [0, 0, 1, 1], [], []>} : vector<224x128xbf16>, vector<128x128xbf16>, vector<224x128xf32> -> vector<224x128xf32>
    %66 = arith.addf %62, %65 : vector<224x128xf32>
    %c1_82 = arith.constant 1 : index
    %c4_83 = arith.constant 4 : index
    %c0_84 = arith.constant 0 : index
    %c0_85 = arith.constant 0 : index
    %67 = vector.load %arg2[%c1_82, %c4_83, %c0_84, %c0_85] : memref<2x5x128x128xbf16, #tpu.memory_space<vmem>>, vector<1x1x128x128xbf16>
    %68 = vector.shape_cast %67 : vector<1x1x128x128xbf16> to vector<128x128xbf16>
    %cst_86 = arith.constant dense<0.000000e+00> : vector<224x128xf32>
    %69 = tpu.matmul %19, %68, %cst_86 {dimension_numbers = #tpu.dot_dimension_numbers<[1], [0], [0], [1], [0, 0, 1, 1], [], []>} : vector<224x128xbf16>, vector<128x128xbf16>, vector<224x128xf32> -> vector<224x128xf32>
    %70 = arith.addf %66, %69 : vector<224x128xf32>
    %71 = vector.broadcast %0 : vector<1x128xf32> to vector<224x128xf32>
    %72 = arith.addf %70, %71 : vector<224x128xf32>
    %cst_87 = arith.constant 0.000000e+00 : f32
    %73 = vector.broadcast %cst_87 : f32 to vector<224x128xf32>
    %74 = arith.maximumf %72, %73 : vector<224x128xf32>
    %75 = arith.maximumf %51, %74 : vector<224x128xf32>
    %c0_88 = arith.constant 0 : index
    %c0_89 = arith.constant 0 : index
    %c0_90 = arith.constant 0 : index
    %c0_91 = arith.constant 0 : index
    %76 = vector.load %arg2[%c0_88, %c0_89, %c0_90, %c0_91] : memref<2x5x128x128xbf16, #tpu.memory_space<vmem>>, vector<1x1x128x128xbf16>
    %77 = vector.shape_cast %76 : vector<1x1x128x128xbf16> to vector<128x128xbf16>
    %cst_92 = arith.constant dense<0.000000e+00> : vector<224x128xf32>
    %78 = tpu.matmul %10, %77, %cst_92 {dimension_numbers = #tpu.dot_dimension_numbers<[1], [0], [0], [1], [0, 0, 1, 1], [], []>} : vector<224x128xbf16>, vector<128x128xbf16>, vector<224x128xf32> -> vector<224x128xf32>
    %c0_93 = arith.constant 0 : index
    %c1_94 = arith.constant 1 : index
    %c0_95 = arith.constant 0 : index
    %c0_96 = arith.constant 0 : index
    %79 = vector.load %arg2[%c0_93, %c1_94, %c0_95, %c0_96] : memref<2x5x128x128xbf16, #tpu.memory_space<vmem>>, vector<1x1x128x128xbf16>
    %80 = vector.shape_cast %79 : vector<1x1x128x128xbf16> to vector<128x128xbf16>
    %cst_97 = arith.constant dense<0.000000e+00> : vector<224x128xf32>
    %81 = tpu.matmul %13, %80, %cst_97 {dimension_numbers = #tpu.dot_dimension_numbers<[1], [0], [0], [1], [0, 0, 1, 1], [], []>} : vector<224x128xbf16>, vector<128x128xbf16>, vector<224x128xf32> -> vector<224x128xf32>
    %82 = arith.addf %78, %81 : vector<224x128xf32>
    %c0_98 = arith.constant 0 : index
    %c2_99 = arith.constant 2 : index
    %c0_100 = arith.constant 0 : index
    %c0_101 = arith.constant 0 : index
    %83 = vector.load %arg2[%c0_98, %c2_99, %c0_100, %c0_101] : memref<2x5x128x128xbf16, #tpu.memory_space<vmem>>, vector<1x1x128x128xbf16>
    %84 = vector.shape_cast %83 : vector<1x1x128x128xbf16> to vector<128x128xbf16>
    %cst_102 = arith.constant dense<0.000000e+00> : vector<224x128xf32>
    %85 = tpu.matmul %16, %84, %cst_102 {dimension_numbers = #tpu.dot_dimension_numbers<[1], [0], [0], [1], [0, 0, 1, 1], [], []>} : vector<224x128xbf16>, vector<128x128xbf16>, vector<224x128xf32> -> vector<224x128xf32>
    %86 = arith.addf %82, %85 : vector<224x128xf32>
    %c0_103 = arith.constant 0 : index
    %c3_104 = arith.constant 3 : index
    %c0_105 = arith.constant 0 : index
    %c0_106 = arith.constant 0 : index
    %87 = vector.load %arg2[%c0_103, %c3_104, %c0_105, %c0_106] : memref<2x5x128x128xbf16, #tpu.memory_space<vmem>>, vector<1x1x128x128xbf16>
    %88 = vector.shape_cast %87 : vector<1x1x128x128xbf16> to vector<128x128xbf16>
    %cst_107 = arith.constant dense<0.000000e+00> : vector<224x128xf32>
    %89 = tpu.matmul %19, %88, %cst_107 {dimension_numbers = #tpu.dot_dimension_numbers<[1], [0], [0], [1], [0, 0, 1, 1], [], []>} : vector<224x128xbf16>, vector<128x128xbf16>, vector<224x128xf32> -> vector<224x128xf32>
    %90 = arith.addf %86, %89 : vector<224x128xf32>
    %c0_108 = arith.constant 0 : index
    %c4_109 = arith.constant 4 : index
    %c0_110 = arith.constant 0 : index
    %c0_111 = arith.constant 0 : index
    %91 = vector.load %arg2[%c0_108, %c4_109, %c0_110, %c0_111] : memref<2x5x128x128xbf16, #tpu.memory_space<vmem>>, vector<1x1x128x128xbf16>
    %92 = vector.shape_cast %91 : vector<1x1x128x128xbf16> to vector<128x128xbf16>
    %cst_112 = arith.constant dense<0.000000e+00> : vector<224x128xf32>
    %93 = tpu.matmul %22, %92, %cst_112 {dimension_numbers = #tpu.dot_dimension_numbers<[1], [0], [0], [1], [0, 0, 1, 1], [], []>} : vector<224x128xbf16>, vector<128x128xbf16>, vector<224x128xf32> -> vector<224x128xf32>
    %94 = arith.addf %90, %93 : vector<224x128xf32>
    %95 = vector.broadcast %0 : vector<1x128xf32> to vector<224x128xf32>
    %96 = arith.addf %94, %95 : vector<224x128xf32>
    %cst_113 = arith.constant 0.000000e+00 : f32
    %97 = vector.broadcast %cst_113 : f32 to vector<224x128xf32>
    %98 = arith.maximumf %96, %97 : vector<224x128xf32>
    %99 = arith.maximumf %75, %98 : vector<224x128xf32>
    %c1_114 = arith.constant 1 : index
    %c0_115 = arith.constant 0 : index
    %c0_116 = arith.constant 0 : index
    %c0_117 = arith.constant 0 : index
    %100 = vector.load %arg2[%c1_114, %c0_115, %c0_116, %c0_117] : memref<2x5x128x128xbf16, #tpu.memory_space<vmem>>, vector<1x1x128x128xbf16>
    %101 = vector.shape_cast %100 : vector<1x1x128x128xbf16> to vector<128x128xbf16>
    %cst_118 = arith.constant dense<0.000000e+00> : vector<224x128xf32>
    %102 = tpu.matmul %10, %101, %cst_118 {dimension_numbers = #tpu.dot_dimension_numbers<[1], [0], [0], [1], [0, 0, 1, 1], [], []>} : vector<224x128xbf16>, vector<128x128xbf16>, vector<224x128xf32> -> vector<224x128xf32>
    %c1_119 = arith.constant 1 : index
    %c1_120 = arith.constant 1 : index
    %c0_121 = arith.constant 0 : index
    %c0_122 = arith.constant 0 : index
    %103 = vector.load %arg2[%c1_119, %c1_120, %c0_121, %c0_122] : memref<2x5x128x128xbf16, #tpu.memory_space<vmem>>, vector<1x1x128x128xbf16>
    %104 = vector.shape_cast %103 : vector<1x1x128x128xbf16> to vector<128x128xbf16>
    %cst_123 = arith.constant dense<0.000000e+00> : vector<224x128xf32>
    %105 = tpu.matmul %13, %104, %cst_123 {dimension_numbers = #tpu.dot_dimension_numbers<[1], [0], [0], [1], [0, 0, 1, 1], [], []>} : vector<224x128xbf16>, vector<128x128xbf16>, vector<224x128xf32> -> vector<224x128xf32>
    %106 = arith.addf %102, %105 : vector<224x128xf32>
    %c1_124 = arith.constant 1 : index
    %c2_125 = arith.constant 2 : index
    %c0_126 = arith.constant 0 : index
    %c0_127 = arith.constant 0 : index
    %107 = vector.load %arg2[%c1_124, %c2_125, %c0_126, %c0_127] : memref<2x5x128x128xbf16, #tpu.memory_space<vmem>>, vector<1x1x128x128xbf16>
    %108 = vector.shape_cast %107 : vector<1x1x128x128xbf16> to vector<128x128xbf16>
    %cst_128 = arith.constant dense<0.000000e+00> : vector<224x128xf32>
    %109 = tpu.matmul %16, %108, %cst_128 {dimension_numbers = #tpu.dot_dimension_numbers<[1], [0], [0], [1], [0, 0, 1, 1], [], []>} : vector<224x128xbf16>, vector<128x128xbf16>, vector<224x128xf32> -> vector<224x128xf32>
    %110 = arith.addf %106, %109 : vector<224x128xf32>
    %c1_129 = arith.constant 1 : index
    %c3_130 = arith.constant 3 : index
    %c0_131 = arith.constant 0 : index
    %c0_132 = arith.constant 0 : index
    %111 = vector.load %arg2[%c1_129, %c3_130, %c0_131, %c0_132] : memref<2x5x128x128xbf16, #tpu.memory_space<vmem>>, vector<1x1x128x128xbf16>
    %112 = vector.shape_cast %111 : vector<1x1x128x128xbf16> to vector<128x128xbf16>
    %cst_133 = arith.constant dense<0.000000e+00> : vector<224x128xf32>
    %113 = tpu.matmul %19, %112, %cst_133 {dimension_numbers = #tpu.dot_dimension_numbers<[1], [0], [0], [1], [0, 0, 1, 1], [], []>} : vector<224x128xbf16>, vector<128x128xbf16>, vector<224x128xf32> -> vector<224x128xf32>
    %114 = arith.addf %110, %113 : vector<224x128xf32>
    %c1_134 = arith.constant 1 : index
    %c4_135 = arith.constant 4 : index
    %c0_136 = arith.constant 0 : index
    %c0_137 = arith.constant 0 : index
    %115 = vector.load %arg2[%c1_134, %c4_135, %c0_136, %c0_137] : memref<2x5x128x128xbf16, #tpu.memory_space<vmem>>, vector<1x1x128x128xbf16>
    %116 = vector.shape_cast %115 : vector<1x1x128x128xbf16> to vector<128x128xbf16>
    %cst_138 = arith.constant dense<0.000000e+00> : vector<224x128xf32>
    %117 = tpu.matmul %22, %116, %cst_138 {dimension_numbers = #tpu.dot_dimension_numbers<[1], [0], [0], [1], [0, 0, 1, 1], [], []>} : vector<224x128xbf16>, vector<128x128xbf16>, vector<224x128xf32> -> vector<224x128xf32>
    %118 = arith.addf %114, %117 : vector<224x128xf32>
    %119 = vector.broadcast %0 : vector<1x128xf32> to vector<224x128xf32>
    %120 = arith.addf %118, %119 : vector<224x128xf32>
    %cst_139 = arith.constant 0.000000e+00 : f32
    %121 = vector.broadcast %cst_139 : f32 to vector<224x128xf32>
    %122 = arith.maximumf %120, %121 : vector<224x128xf32>
    %123 = arith.maximumf %99, %122 : vector<224x128xf32>
    %124 = arith.truncf %123 : vector<224x128xf32> to vector<224x128xbf16>
    %c0_140 = arith.constant 0 : index
    %c0_141 = arith.constant 0 : index
    %c0_142 = arith.constant 0 : index
    %c0_143 = arith.constant 0 : index
    %125 = vector.load %arg2[%c0_140, %c0_141, %c0_142, %c0_143] : memref<2x5x128x128xbf16, #tpu.memory_space<vmem>>, vector<1x1x128x128xbf16>
    %126 = vector.shape_cast %125 : vector<1x1x128x128xbf16> to vector<128x128xbf16>
    %cst_144 = arith.constant dense<0.000000e+00> : vector<224x128xf32>
    %127 = tpu.matmul %13, %126, %cst_144 {dimension_numbers = #tpu.dot_dimension_numbers<[1], [0], [0], [1], [0, 0, 1, 1], [], []>} : vector<224x128xbf16>, vector<128x128xbf16>, vector<224x128xf32> -> vector<224x128xf32>
    %c0_145 = arith.constant 0 : index
    %c1_146 = arith.constant 1 : index
    %c0_147 = arith.constant 0 : index
    %c0_148 = arith.constant 0 : index
    %128 = vector.load %arg2[%c0_145, %c1_146, %c0_147, %c0_148] : memref<2x5x128x128xbf16, #tpu.memory_space<vmem>>, vector<1x1x128x128xbf16>
    %129 = vector.shape_cast %128 : vector<1x1x128x128xbf16> to vector<128x128xbf16>
    %cst_149 = arith.constant dense<0.000000e+00> : vector<224x128xf32>
    %130 = tpu.matmul %16, %129, %cst_149 {dimension_numbers = #tpu.dot_dimension_numbers<[1], [0], [0], [1], [0, 0, 1, 1], [], []>} : vector<224x128xbf16>, vector<128x128xbf16>, vector<224x128xf32> -> vector<224x128xf32>
    %131 = arith.addf %127, %130 : vector<224x128xf32>
    %c0_150 = arith.constant 0 : index
    %c2_151 = arith.constant 2 : index
    %c0_152 = arith.constant 0 : index
    %c0_153 = arith.constant 0 : index
    %132 = vector.load %arg2[%c0_150, %c2_151, %c0_152, %c0_153] : memref<2x5x128x128xbf16, #tpu.memory_space<vmem>>, vector<1x1x128x128xbf16>
    %133 = vector.shape_cast %132 : vector<1x1x128x128xbf16> to vector<128x128xbf16>
    %cst_154 = arith.constant dense<0.000000e+00> : vector<224x128xf32>
    %134 = tpu.matmul %19, %133, %cst_154 {dimension_numbers = #tpu.dot_dimension_numbers<[1], [0], [0], [1], [0, 0, 1, 1], [], []>} : vector<224x128xbf16>, vector<128x128xbf16>, vector<224x128xf32> -> vector<224x128xf32>
    %135 = arith.addf %131, %134 : vector<224x128xf32>
    %c0_155 = arith.constant 0 : index
    %c3_156 = arith.constant 3 : index
    %c0_157 = arith.constant 0 : index
    %c0_158 = arith.constant 0 : index
    %136 = vector.load %arg2[%c0_155, %c3_156, %c0_157, %c0_158] : memref<2x5x128x128xbf16, #tpu.memory_space<vmem>>, vector<1x1x128x128xbf16>
    %137 = vector.shape_cast %136 : vector<1x1x128x128xbf16> to vector<128x128xbf16>
    %cst_159 = arith.constant dense<0.000000e+00> : vector<224x128xf32>
    %138 = tpu.matmul %22, %137, %cst_159 {dimension_numbers = #tpu.dot_dimension_numbers<[1], [0], [0], [1], [0, 0, 1, 1], [], []>} : vector<224x128xbf16>, vector<128x128xbf16>, vector<224x128xf32> -> vector<224x128xf32>
    %139 = arith.addf %135, %138 : vector<224x128xf32>
    %c0_160 = arith.constant 0 : index
    %c4_161 = arith.constant 4 : index
    %c0_162 = arith.constant 0 : index
    %c0_163 = arith.constant 0 : index
    %140 = vector.load %arg2[%c0_160, %c4_161, %c0_162, %c0_163] : memref<2x5x128x128xbf16, #tpu.memory_space<vmem>>, vector<1x1x128x128xbf16>
    %141 = vector.shape_cast %140 : vector<1x1x128x128xbf16> to vector<128x128xbf16>
    %cst_164 = arith.constant dense<0.000000e+00> : vector<224x128xf32>
    %142 = tpu.matmul %25, %141, %cst_164 {dimension_numbers = #tpu.dot_dimension_numbers<[1], [0], [0], [1], [0, 0, 1, 1], [], []>} : vector<224x128xbf16>, vector<128x128xbf16>, vector<224x128xf32> -> vector<224x128xf32>
    %143 = arith.addf %139, %142 : vector<224x128xf32>
    %144 = vector.broadcast %0 : vector<1x128xf32> to vector<224x128xf32>
    %145 = arith.addf %143, %144 : vector<224x128xf32>
    %cst_165 = arith.constant 0.000000e+00 : f32
    %146 = vector.broadcast %cst_165 : f32 to vector<224x128xf32>
    %147 = arith.maximumf %145, %146 : vector<224x128xf32>
    %c1_166 = arith.constant 1 : index
    %c0_167 = arith.constant 0 : index
    %c0_168 = arith.constant 0 : index
    %c0_169 = arith.constant 0 : index
    %148 = vector.load %arg2[%c1_166, %c0_167, %c0_168, %c0_169] : memref<2x5x128x128xbf16, #tpu.memory_space<vmem>>, vector<1x1x128x128xbf16>
    %149 = vector.shape_cast %148 : vector<1x1x128x128xbf16> to vector<128x128xbf16>
    %cst_170 = arith.constant dense<0.000000e+00> : vector<224x128xf32>
    %150 = tpu.matmul %13, %149, %cst_170 {dimension_numbers = #tpu.dot_dimension_numbers<[1], [0], [0], [1], [0, 0, 1, 1], [], []>} : vector<224x128xbf16>, vector<128x128xbf16>, vector<224x128xf32> -> vector<224x128xf32>
    %c1_171 = arith.constant 1 : index
    %c1_172 = arith.constant 1 : index
    %c0_173 = arith.constant 0 : index
    %c0_174 = arith.constant 0 : index
    %151 = vector.load %arg2[%c1_171, %c1_172, %c0_173, %c0_174] : memref<2x5x128x128xbf16, #tpu.memory_space<vmem>>, vector<1x1x128x128xbf16>
    %152 = vector.shape_cast %151 : vector<1x1x128x128xbf16> to vector<128x128xbf16>
    %cst_175 = arith.constant dense<0.000000e+00> : vector<224x128xf32>
    %153 = tpu.matmul %16, %152, %cst_175 {dimension_numbers = #tpu.dot_dimension_numbers<[1], [0], [0], [1], [0, 0, 1, 1], [], []>} : vector<224x128xbf16>, vector<128x128xbf16>, vector<224x128xf32> -> vector<224x128xf32>
    %154 = arith.addf %150, %153 : vector<224x128xf32>
    %c1_176 = arith.constant 1 : index
    %c2_177 = arith.constant 2 : index
    %c0_178 = arith.constant 0 : index
    %c0_179 = arith.constant 0 : index
    %155 = vector.load %arg2[%c1_176, %c2_177, %c0_178, %c0_179] : memref<2x5x128x128xbf16, #tpu.memory_space<vmem>>, vector<1x1x128x128xbf16>
    %156 = vector.shape_cast %155 : vector<1x1x128x128xbf16> to vector<128x128xbf16>
    %cst_180 = arith.constant dense<0.000000e+00> : vector<224x128xf32>
    %157 = tpu.matmul %19, %156, %cst_180 {dimension_numbers = #tpu.dot_dimension_numbers<[1], [0], [0], [1], [0, 0, 1, 1], [], []>} : vector<224x128xbf16>, vector<128x128xbf16>, vector<224x128xf32> -> vector<224x128xf32>
    %158 = arith.addf %154, %157 : vector<224x128xf32>
    %c1_181 = arith.constant 1 : index
    %c3_182 = arith.constant 3 : index
    %c0_183 = arith.constant 0 : index
    %c0_184 = arith.constant 0 : index
    %159 = vector.load %arg2[%c1_181, %c3_182, %c0_183, %c0_184] : memref<2x5x128x128xbf16, #tpu.memory_space<vmem>>, vector<1x1x128x128xbf16>
    %160 = vector.shape_cast %159 : vector<1x1x128x128xbf16> to vector<128x128xbf16>
    %cst_185 = arith.constant dense<0.000000e+00> : vector<224x128xf32>
    %161 = tpu.matmul %22, %160, %cst_185 {dimension_numbers = #tpu.dot_dimension_numbers<[1], [0], [0], [1], [0, 0, 1, 1], [], []>} : vector<224x128xbf16>, vector<128x128xbf16>, vector<224x128xf32> -> vector<224x128xf32>
    %162 = arith.addf %158, %161 : vector<224x128xf32>
    %c1_186 = arith.constant 1 : index
    %c4_187 = arith.constant 4 : index
    %c0_188 = arith.constant 0 : index
    %c0_189 = arith.constant 0 : index
    %163 = vector.load %arg2[%c1_186, %c4_187, %c0_188, %c0_189] : memref<2x5x128x128xbf16, #tpu.memory_space<vmem>>, vector<1x1x128x128xbf16>
    %164 = vector.shape_cast %163 : vector<1x1x128x128xbf16> to vector<128x128xbf16>
    %cst_190 = arith.constant dense<0.000000e+00> : vector<224x128xf32>
    %165 = tpu.matmul %25, %164, %cst_190 {dimension_numbers = #tpu.dot_dimension_numbers<[1], [0], [0], [1], [0, 0, 1, 1], [], []>} : vector<224x128xbf16>, vector<128x128xbf16>, vector<224x128xf32> -> vector<224x128xf32>
    %166 = arith.addf %162, %165 : vector<224x128xf32>
    %167 = vector.broadcast %0 : vector<1x128xf32> to vector<224x128xf32>
    %168 = arith.addf %166, %167 : vector<224x128xf32>
    %cst_191 = arith.constant 0.000000e+00 : f32
    %169 = vector.broadcast %cst_191 : f32 to vector<224x128xf32>
    %170 = arith.maximumf %168, %169 : vector<224x128xf32>
    %171 = arith.maximumf %147, %170 : vector<224x128xf32>
    %c0_192 = arith.constant 0 : index
    %c0_193 = arith.constant 0 : index
    %c0_194 = arith.constant 0 : index
    %c0_195 = arith.constant 0 : index
    %172 = vector.load %arg2[%c0_192, %c0_193, %c0_194, %c0_195] : memref<2x5x128x128xbf16, #tpu.memory_space<vmem>>, vector<1x1x128x128xbf16>
    %173 = vector.shape_cast %172 : vector<1x1x128x128xbf16> to vector<128x128xbf16>
    %cst_196 = arith.constant dense<0.000000e+00> : vector<224x128xf32>
    %174 = tpu.matmul %16, %173, %cst_196 {dimension_numbers = #tpu.dot_dimension_numbers<[1], [0], [0], [1], [0, 0, 1, 1], [], []>} : vector<224x128xbf16>, vector<128x128xbf16>, vector<224x128xf32> -> vector<224x128xf32>
    %c0_197 = arith.constant 0 : index
    %c1_198 = arith.constant 1 : index
    %c0_199 = arith.constant 0 : index
    %c0_200 = arith.constant 0 : index
    %175 = vector.load %arg2[%c0_197, %c1_198, %c0_199, %c0_200] : memref<2x5x128x128xbf16, #tpu.memory_space<vmem>>, vector<1x1x128x128xbf16>
    %176 = vector.shape_cast %175 : vector<1x1x128x128xbf16> to vector<128x128xbf16>
    %cst_201 = arith.constant dense<0.000000e+00> : vector<224x128xf32>
    %177 = tpu.matmul %19, %176, %cst_201 {dimension_numbers = #tpu.dot_dimension_numbers<[1], [0], [0], [1], [0, 0, 1, 1], [], []>} : vector<224x128xbf16>, vector<128x128xbf16>, vector<224x128xf32> -> vector<224x128xf32>
    %178 = arith.addf %174, %177 : vector<224x128xf32>
    %c0_202 = arith.constant 0 : index
    %c2_203 = arith.constant 2 : index
    %c0_204 = arith.constant 0 : index
    %c0_205 = arith.constant 0 : index
    %179 = vector.load %arg2[%c0_202, %c2_203, %c0_204, %c0_205] : memref<2x5x128x128xbf16, #tpu.memory_space<vmem>>, vector<1x1x128x128xbf16>
    %180 = vector.shape_cast %179 : vector<1x1x128x128xbf16> to vector<128x128xbf16>
    %cst_206 = arith.constant dense<0.000000e+00> : vector<224x128xf32>
    %181 = tpu.matmul %22, %180, %cst_206 {dimension_numbers = #tpu.dot_dimension_numbers<[1], [0], [0], [1], [0, 0, 1, 1], [], []>} : vector<224x128xbf16>, vector<128x128xbf16>, vector<224x128xf32> -> vector<224x128xf32>
    %182 = arith.addf %178, %181 : vector<224x128xf32>
    %c0_207 = arith.constant 0 : index
    %c3_208 = arith.constant 3 : index
    %c0_209 = arith.constant 0 : index
    %c0_210 = arith.constant 0 : index
    %183 = vector.load %arg2[%c0_207, %c3_208, %c0_209, %c0_210] : memref<2x5x128x128xbf16, #tpu.memory_space<vmem>>, vector<1x1x128x128xbf16>
    %184 = vector.shape_cast %183 : vector<1x1x128x128xbf16> to vector<128x128xbf16>
    %cst_211 = arith.constant dense<0.000000e+00> : vector<224x128xf32>
    %185 = tpu.matmul %25, %184, %cst_211 {dimension_numbers = #tpu.dot_dimension_numbers<[1], [0], [0], [1], [0, 0, 1, 1], [], []>} : vector<224x128xbf16>, vector<128x128xbf16>, vector<224x128xf32> -> vector<224x128xf32>
    %186 = arith.addf %182, %185 : vector<224x128xf32>
    %c0_212 = arith.constant 0 : index
    %c4_213 = arith.constant 4 : index
    %c0_214 = arith.constant 0 : index
    %c0_215 = arith.constant 0 : index
    %187 = vector.load %arg2[%c0_212, %c4_213, %c0_214, %c0_215] : memref<2x5x128x128xbf16, #tpu.memory_space<vmem>>, vector<1x1x128x128xbf16>
    %188 = vector.shape_cast %187 : vector<1x1x128x128xbf16> to vector<128x128xbf16>
    %cst_216 = arith.constant dense<0.000000e+00> : vector<224x128xf32>
    %189 = tpu.matmul %28, %188, %cst_216 {dimension_numbers = #tpu.dot_dimension_numbers<[1], [0], [0], [1], [0, 0, 1, 1], [], []>} : vector<224x128xbf16>, vector<128x128xbf16>, vector<224x128xf32> -> vector<224x128xf32>
    %190 = arith.addf %186, %189 : vector<224x128xf32>
    %191 = vector.broadcast %0 : vector<1x128xf32> to vector<224x128xf32>
    %192 = arith.addf %190, %191 : vector<224x128xf32>
    %cst_217 = arith.constant 0.000000e+00 : f32
    %193 = vector.broadcast %cst_217 : f32 to vector<224x128xf32>
    %194 = arith.maximumf %192, %193 : vector<224x128xf32>
    %195 = arith.maximumf %171, %194 : vector<224x128xf32>
    %c1_218 = arith.constant 1 : index
    %c0_219 = arith.constant 0 : index
    %c0_220 = arith.constant 0 : index
    %c0_221 = arith.constant 0 : index
    %196 = vector.load %arg2[%c1_218, %c0_219, %c0_220, %c0_221] : memref<2x5x128x128xbf16, #tpu.memory_space<vmem>>, vector<1x1x128x128xbf16>
    %197 = vector.shape_cast %196 : vector<1x1x128x128xbf16> to vector<128x128xbf16>
    %cst_222 = arith.constant dense<0.000000e+00> : vector<224x128xf32>
    %198 = tpu.matmul %16, %197, %cst_222 {dimension_numbers = #tpu.dot_dimension_numbers<[1], [0], [0], [1], [0, 0, 1, 1], [], []>} : vector<224x128xbf16>, vector<128x128xbf16>, vector<224x128xf32> -> vector<224x128xf32>
    %c1_223 = arith.constant 1 : index
    %c1_224 = arith.constant 1 : index
    %c0_225 = arith.constant 0 : index
    %c0_226 = arith.constant 0 : index
    %199 = vector.load %arg2[%c1_223, %c1_224, %c0_225, %c0_226] : memref<2x5x128x128xbf16, #tpu.memory_space<vmem>>, vector<1x1x128x128xbf16>
    %200 = vector.shape_cast %199 : vector<1x1x128x128xbf16> to vector<128x128xbf16>
    %cst_227 = arith.constant dense<0.000000e+00> : vector<224x128xf32>
    %201 = tpu.matmul %19, %200, %cst_227 {dimension_numbers = #tpu.dot_dimension_numbers<[1], [0], [0], [1], [0, 0, 1, 1], [], []>} : vector<224x128xbf16>, vector<128x128xbf16>, vector<224x128xf32> -> vector<224x128xf32>
    %202 = arith.addf %198, %201 : vector<224x128xf32>
    %c1_228 = arith.constant 1 : index
    %c2_229 = arith.constant 2 : index
    %c0_230 = arith.constant 0 : index
    %c0_231 = arith.constant 0 : index
    %203 = vector.load %arg2[%c1_228, %c2_229, %c0_230, %c0_231] : memref<2x5x128x128xbf16, #tpu.memory_space<vmem>>, vector<1x1x128x128xbf16>
    %204 = vector.shape_cast %203 : vector<1x1x128x128xbf16> to vector<128x128xbf16>
    %cst_232 = arith.constant dense<0.000000e+00> : vector<224x128xf32>
    %205 = tpu.matmul %22, %204, %cst_232 {dimension_numbers = #tpu.dot_dimension_numbers<[1], [0], [0], [1], [0, 0, 1, 1], [], []>} : vector<224x128xbf16>, vector<128x128xbf16>, vector<224x128xf32> -> vector<224x128xf32>
    %206 = arith.addf %202, %205 : vector<224x128xf32>
    %c1_233 = arith.constant 1 : index
    %c3_234 = arith.constant 3 : index
    %c0_235 = arith.constant 0 : index
    %c0_236 = arith.constant 0 : index
    %207 = vector.load %arg2[%c1_233, %c3_234, %c0_235, %c0_236] : memref<2x5x128x128xbf16, #tpu.memory_space<vmem>>, vector<1x1x128x128xbf16>
    %208 = vector.shape_cast %207 : vector<1x1x128x128xbf16> to vector<128x128xbf16>
    %cst_237 = arith.constant dense<0.000000e+00> : vector<224x128xf32>
    %209 = tpu.matmul %25, %208, %cst_237 {dimension_numbers = #tpu.dot_dimension_numbers<[1], [0], [0], [1], [0, 0, 1, 1], [], []>} : vector<224x128xbf16>, vector<128x128xbf16>, vector<224x128xf32> -> vector<224x128xf32>
    %210 = arith.addf %206, %209 : vector<224x128xf32>
    %c1_238 = arith.constant 1 : index
    %c4_239 = arith.constant 4 : index
    %c0_240 = arith.constant 0 : index
    %c0_241 = arith.constant 0 : index
    %211 = vector.load %arg2[%c1_238, %c4_239, %c0_240, %c0_241] : memref<2x5x128x128xbf16, #tpu.memory_space<vmem>>, vector<1x1x128x128xbf16>
    %212 = vector.shape_cast %211 : vector<1x1x128x128xbf16> to vector<128x128xbf16>
    %cst_242 = arith.constant dense<0.000000e+00> : vector<224x128xf32>
    %213 = tpu.matmul %28, %212, %cst_242 {dimension_numbers = #tpu.dot_dimension_numbers<[1], [0], [0], [1], [0, 0, 1, 1], [], []>} : vector<224x128xbf16>, vector<128x128xbf16>, vector<224x128xf32> -> vector<224x128xf32>
    %214 = arith.addf %210, %213 : vector<224x128xf32>
    %215 = vector.broadcast %0 : vector<1x128xf32> to vector<224x128xf32>
    %216 = arith.addf %214, %215 : vector<224x128xf32>
    %cst_243 = arith.constant 0.000000e+00 : f32
    %217 = vector.broadcast %cst_243 : f32 to vector<224x128xf32>
    %218 = arith.maximumf %216, %217 : vector<224x128xf32>
    %219 = arith.maximumf %195, %218 : vector<224x128xf32>
    %220 = arith.truncf %219 : vector<224x128xf32> to vector<224x128xbf16>
    %221 = vector.extract_strided_slice %124 {offsets = [0, 0], sizes = [160, 128], strides = [1, 1]} : vector<224x128xbf16> to vector<160x128xbf16>
    %c0_244 = arith.constant 0 : index
    %c0_245 = arith.constant 0 : index
    %c0_246 = arith.constant 0 : index
    %c0_247 = arith.constant 0 : index
    %222 = vector.load %arg4[%c0_244, %c0_245, %c0_246, %c0_247] : memref<2x5x128x128xbf16, #tpu.memory_space<vmem>>, vector<1x1x128x128xbf16>
    %223 = vector.shape_cast %222 : vector<1x1x128x128xbf16> to vector<128x128xbf16>
    %cst_248 = arith.constant dense<0.000000e+00> : vector<160x128xf32>
    %224 = tpu.matmul %221, %223, %cst_248 {dimension_numbers = #tpu.dot_dimension_numbers<[1], [0], [0], [1], [0, 0, 1, 1], [], []>} : vector<160x128xbf16>, vector<128x128xbf16>, vector<160x128xf32> -> vector<160x128xf32>
    %225 = vector.extract_strided_slice %220 {offsets = [0, 0], sizes = [160, 128], strides = [1, 1]} : vector<224x128xbf16> to vector<160x128xbf16>
    %c0_249 = arith.constant 0 : index
    %c1_250 = arith.constant 1 : index
    %c0_251 = arith.constant 0 : index
    %c0_252 = arith.constant 0 : index
    %226 = vector.load %arg4[%c0_249, %c1_250, %c0_251, %c0_252] : memref<2x5x128x128xbf16, #tpu.memory_space<vmem>>, vector<1x1x128x128xbf16>
    %227 = vector.shape_cast %226 : vector<1x1x128x128xbf16> to vector<128x128xbf16>
    %cst_253 = arith.constant dense<0.000000e+00> : vector<160x128xf32>
    %228 = tpu.matmul %225, %227, %cst_253 {dimension_numbers = #tpu.dot_dimension_numbers<[1], [0], [0], [1], [0, 0, 1, 1], [], []>} : vector<160x128xbf16>, vector<128x128xbf16>, vector<160x128xf32> -> vector<160x128xf32>
    %229 = arith.addf %224, %228 : vector<160x128xf32>
    %230 = vector.extract_strided_slice %124 {offsets = [32, 0], sizes = [160, 128], strides = [1, 1]} : vector<224x128xbf16> to vector<160x128xbf16>
    %c0_254 = arith.constant 0 : index
    %c2_255 = arith.constant 2 : index
    %c0_256 = arith.constant 0 : index
    %c0_257 = arith.constant 0 : index
    %231 = vector.load %arg4[%c0_254, %c2_255, %c0_256, %c0_257] : memref<2x5x128x128xbf16, #tpu.memory_space<vmem>>, vector<1x1x128x128xbf16>
    %232 = vector.shape_cast %231 : vector<1x1x128x128xbf16> to vector<128x128xbf16>
    %cst_258 = arith.constant dense<0.000000e+00> : vector<160x128xf32>
    %233 = tpu.matmul %230, %232, %cst_258 {dimension_numbers = #tpu.dot_dimension_numbers<[1], [0], [0], [1], [0, 0, 1, 1], [], []>} : vector<160x128xbf16>, vector<128x128xbf16>, vector<160x128xf32> -> vector<160x128xf32>
    %234 = arith.addf %229, %233 : vector<160x128xf32>
    %235 = vector.extract_strided_slice %220 {offsets = [32, 0], sizes = [160, 128], strides = [1, 1]} : vector<224x128xbf16> to vector<160x128xbf16>
    %c0_259 = arith.constant 0 : index
    %c3_260 = arith.constant 3 : index
    %c0_261 = arith.constant 0 : index
    %c0_262 = arith.constant 0 : index
    %236 = vector.load %arg4[%c0_259, %c3_260, %c0_261, %c0_262] : memref<2x5x128x128xbf16, #tpu.memory_space<vmem>>, vector<1x1x128x128xbf16>
    %237 = vector.shape_cast %236 : vector<1x1x128x128xbf16> to vector<128x128xbf16>
    %cst_263 = arith.constant dense<0.000000e+00> : vector<160x128xf32>
    %238 = tpu.matmul %235, %237, %cst_263 {dimension_numbers = #tpu.dot_dimension_numbers<[1], [0], [0], [1], [0, 0, 1, 1], [], []>} : vector<160x128xbf16>, vector<128x128xbf16>, vector<160x128xf32> -> vector<160x128xf32>
    %239 = arith.addf %234, %238 : vector<160x128xf32>
    %240 = vector.extract_strided_slice %124 {offsets = [64, 0], sizes = [160, 128], strides = [1, 1]} : vector<224x128xbf16> to vector<160x128xbf16>
    %c0_264 = arith.constant 0 : index
    %c4_265 = arith.constant 4 : index
    %c0_266 = arith.constant 0 : index
    %c0_267 = arith.constant 0 : index
    %241 = vector.load %arg4[%c0_264, %c4_265, %c0_266, %c0_267] : memref<2x5x128x128xbf16, #tpu.memory_space<vmem>>, vector<1x1x128x128xbf16>
    %242 = vector.shape_cast %241 : vector<1x1x128x128xbf16> to vector<128x128xbf16>
    %cst_268 = arith.constant dense<0.000000e+00> : vector<160x128xf32>
    %243 = tpu.matmul %240, %242, %cst_268 {dimension_numbers = #tpu.dot_dimension_numbers<[1], [0], [0], [1], [0, 0, 1, 1], [], []>} : vector<160x128xbf16>, vector<128x128xbf16>, vector<160x128xf32> -> vector<160x128xf32>
    %244 = arith.addf %239, %243 : vector<160x128xf32>
    %245 = vector.broadcast %1 : vector<1x128xf32> to vector<160x128xf32>
    %246 = arith.addf %244, %245 : vector<160x128xf32>
    %cst_269 = arith.constant 0.000000e+00 : f32
    %247 = vector.broadcast %cst_269 : f32 to vector<160x128xf32>
    %248 = arith.maximumf %246, %247 : vector<160x128xf32>
    %249 = vector.extract_strided_slice %124 {offsets = [0, 0], sizes = [160, 128], strides = [1, 1]} : vector<224x128xbf16> to vector<160x128xbf16>
    %c1_270 = arith.constant 1 : index
    %c0_271 = arith.constant 0 : index
    %c0_272 = arith.constant 0 : index
    %c0_273 = arith.constant 0 : index
    %250 = vector.load %arg4[%c1_270, %c0_271, %c0_272, %c0_273] : memref<2x5x128x128xbf16, #tpu.memory_space<vmem>>, vector<1x1x128x128xbf16>
    %251 = vector.shape_cast %250 : vector<1x1x128x128xbf16> to vector<128x128xbf16>
    %cst_274 = arith.constant dense<0.000000e+00> : vector<160x128xf32>
    %252 = tpu.matmul %249, %251, %cst_274 {dimension_numbers = #tpu.dot_dimension_numbers<[1], [0], [0], [1], [0, 0, 1, 1], [], []>} : vector<160x128xbf16>, vector<128x128xbf16>, vector<160x128xf32> -> vector<160x128xf32>
    %253 = vector.extract_strided_slice %220 {offsets = [0, 0], sizes = [160, 128], strides = [1, 1]} : vector<224x128xbf16> to vector<160x128xbf16>
    %c1_275 = arith.constant 1 : index
    %c1_276 = arith.constant 1 : index
    %c0_277 = arith.constant 0 : index
    %c0_278 = arith.constant 0 : index
    %254 = vector.load %arg4[%c1_275, %c1_276, %c0_277, %c0_278] : memref<2x5x128x128xbf16, #tpu.memory_space<vmem>>, vector<1x1x128x128xbf16>
    %255 = vector.shape_cast %254 : vector<1x1x128x128xbf16> to vector<128x128xbf16>
    %cst_279 = arith.constant dense<0.000000e+00> : vector<160x128xf32>
    %256 = tpu.matmul %253, %255, %cst_279 {dimension_numbers = #tpu.dot_dimension_numbers<[1], [0], [0], [1], [0, 0, 1, 1], [], []>} : vector<160x128xbf16>, vector<128x128xbf16>, vector<160x128xf32> -> vector<160x128xf32>
    %257 = arith.addf %252, %256 : vector<160x128xf32>
    %258 = vector.extract_strided_slice %124 {offsets = [32, 0], sizes = [160, 128], strides = [1, 1]} : vector<224x128xbf16> to vector<160x128xbf16>
    %c1_280 = arith.constant 1 : index
    %c2_281 = arith.constant 2 : index
    %c0_282 = arith.constant 0 : index
    %c0_283 = arith.constant 0 : index
    %259 = vector.load %arg4[%c1_280, %c2_281, %c0_282, %c0_283] : memref<2x5x128x128xbf16, #tpu.memory_space<vmem>>, vector<1x1x128x128xbf16>
    %260 = vector.shape_cast %259 : vector<1x1x128x128xbf16> to vector<128x128xbf16>
    %cst_284 = arith.constant dense<0.000000e+00> : vector<160x128xf32>
    %261 = tpu.matmul %258, %260, %cst_284 {dimension_numbers = #tpu.dot_dimension_numbers<[1], [0], [0], [1], [0, 0, 1, 1], [], []>} : vector<160x128xbf16>, vector<128x128xbf16>, vector<160x128xf32> -> vector<160x128xf32>
    %262 = arith.addf %257, %261 : vector<160x128xf32>
    %263 = vector.extract_strided_slice %220 {offsets = [32, 0], sizes = [160, 128], strides = [1, 1]} : vector<224x128xbf16> to vector<160x128xbf16>
    %c1_285 = arith.constant 1 : index
    %c3_286 = arith.constant 3 : index
    %c0_287 = arith.constant 0 : index
    %c0_288 = arith.constant 0 : index
    %264 = vector.load %arg4[%c1_285, %c3_286, %c0_287, %c0_288] : memref<2x5x128x128xbf16, #tpu.memory_space<vmem>>, vector<1x1x128x128xbf16>
    %265 = vector.shape_cast %264 : vector<1x1x128x128xbf16> to vector<128x128xbf16>
    %cst_289 = arith.constant dense<0.000000e+00> : vector<160x128xf32>
    %266 = tpu.matmul %263, %265, %cst_289 {dimension_numbers = #tpu.dot_dimension_numbers<[1], [0], [0], [1], [0, 0, 1, 1], [], []>} : vector<160x128xbf16>, vector<128x128xbf16>, vector<160x128xf32> -> vector<160x128xf32>
    %267 = arith.addf %262, %266 : vector<160x128xf32>
    %268 = vector.extract_strided_slice %124 {offsets = [64, 0], sizes = [160, 128], strides = [1, 1]} : vector<224x128xbf16> to vector<160x128xbf16>
    %c1_290 = arith.constant 1 : index
    %c4_291 = arith.constant 4 : index
    %c0_292 = arith.constant 0 : index
    %c0_293 = arith.constant 0 : index
    %269 = vector.load %arg4[%c1_290, %c4_291, %c0_292, %c0_293] : memref<2x5x128x128xbf16, #tpu.memory_space<vmem>>, vector<1x1x128x128xbf16>
    %270 = vector.shape_cast %269 : vector<1x1x128x128xbf16> to vector<128x128xbf16>
    %cst_294 = arith.constant dense<0.000000e+00> : vector<160x128xf32>
    %271 = tpu.matmul %268, %270, %cst_294 {dimension_numbers = #tpu.dot_dimension_numbers<[1], [0], [0], [1], [0, 0, 1, 1], [], []>} : vector<160x128xbf16>, vector<128x128xbf16>, vector<160x128xf32> -> vector<160x128xf32>
    %272 = arith.addf %267, %271 : vector<160x128xf32>
    %273 = vector.broadcast %1 : vector<1x128xf32> to vector<160x128xf32>
    %274 = arith.addf %272, %273 : vector<160x128xf32>
    %cst_295 = arith.constant 0.000000e+00 : f32
    %275 = vector.broadcast %cst_295 : f32 to vector<160x128xf32>
    %276 = arith.maximumf %274, %275 : vector<160x128xf32>
    %277 = arith.maximumf %248, %276 : vector<160x128xf32>
    %278 = vector.extract_strided_slice %220 {offsets = [0, 0], sizes = [160, 128], strides = [1, 1]} : vector<224x128xbf16> to vector<160x128xbf16>
    %c0_296 = arith.constant 0 : index
    %c0_297 = arith.constant 0 : index
    %c0_298 = arith.constant 0 : index
    %c0_299 = arith.constant 0 : index
    %279 = vector.load %arg4[%c0_296, %c0_297, %c0_298, %c0_299] : memref<2x5x128x128xbf16, #tpu.memory_space<vmem>>, vector<1x1x128x128xbf16>
    %280 = vector.shape_cast %279 : vector<1x1x128x128xbf16> to vector<128x128xbf16>
    %cst_300 = arith.constant dense<0.000000e+00> : vector<160x128xf32>
    %281 = tpu.matmul %278, %280, %cst_300 {dimension_numbers = #tpu.dot_dimension_numbers<[1], [0], [0], [1], [0, 0, 1, 1], [], []>} : vector<160x128xbf16>, vector<128x128xbf16>, vector<160x128xf32> -> vector<160x128xf32>
    %282 = vector.extract_strided_slice %124 {offsets = [32, 0], sizes = [160, 128], strides = [1, 1]} : vector<224x128xbf16> to vector<160x128xbf16>
    %c0_301 = arith.constant 0 : index
    %c1_302 = arith.constant 1 : index
    %c0_303 = arith.constant 0 : index
    %c0_304 = arith.constant 0 : index
    %283 = vector.load %arg4[%c0_301, %c1_302, %c0_303, %c0_304] : memref<2x5x128x128xbf16, #tpu.memory_space<vmem>>, vector<1x1x128x128xbf16>
    %284 = vector.shape_cast %283 : vector<1x1x128x128xbf16> to vector<128x128xbf16>
    %cst_305 = arith.constant dense<0.000000e+00> : vector<160x128xf32>
    %285 = tpu.matmul %282, %284, %cst_305 {dimension_numbers = #tpu.dot_dimension_numbers<[1], [0], [0], [1], [0, 0, 1, 1], [], []>} : vector<160x128xbf16>, vector<128x128xbf16>, vector<160x128xf32> -> vector<160x128xf32>
    %286 = arith.addf %281, %285 : vector<160x128xf32>
    %287 = vector.extract_strided_slice %220 {offsets = [32, 0], sizes = [160, 128], strides = [1, 1]} : vector<224x128xbf16> to vector<160x128xbf16>
    %c0_306 = arith.constant 0 : index
    %c2_307 = arith.constant 2 : index
    %c0_308 = arith.constant 0 : index
    %c0_309 = arith.constant 0 : index
    %288 = vector.load %arg4[%c0_306, %c2_307, %c0_308, %c0_309] : memref<2x5x128x128xbf16, #tpu.memory_space<vmem>>, vector<1x1x128x128xbf16>
    %289 = vector.shape_cast %288 : vector<1x1x128x128xbf16> to vector<128x128xbf16>
    %cst_310 = arith.constant dense<0.000000e+00> : vector<160x128xf32>
    %290 = tpu.matmul %287, %289, %cst_310 {dimension_numbers = #tpu.dot_dimension_numbers<[1], [0], [0], [1], [0, 0, 1, 1], [], []>} : vector<160x128xbf16>, vector<128x128xbf16>, vector<160x128xf32> -> vector<160x128xf32>
    %291 = arith.addf %286, %290 : vector<160x128xf32>
    %292 = vector.extract_strided_slice %124 {offsets = [64, 0], sizes = [160, 128], strides = [1, 1]} : vector<224x128xbf16> to vector<160x128xbf16>
    %c0_311 = arith.constant 0 : index
    %c3_312 = arith.constant 3 : index
    %c0_313 = arith.constant 0 : index
    %c0_314 = arith.constant 0 : index
    %293 = vector.load %arg4[%c0_311, %c3_312, %c0_313, %c0_314] : memref<2x5x128x128xbf16, #tpu.memory_space<vmem>>, vector<1x1x128x128xbf16>
    %294 = vector.shape_cast %293 : vector<1x1x128x128xbf16> to vector<128x128xbf16>
    %cst_315 = arith.constant dense<0.000000e+00> : vector<160x128xf32>
    %295 = tpu.matmul %292, %294, %cst_315 {dimension_numbers = #tpu.dot_dimension_numbers<[1], [0], [0], [1], [0, 0, 1, 1], [], []>} : vector<160x128xbf16>, vector<128x128xbf16>, vector<160x128xf32> -> vector<160x128xf32>
    %296 = arith.addf %291, %295 : vector<160x128xf32>
    %297 = vector.extract_strided_slice %220 {offsets = [64, 0], sizes = [160, 128], strides = [1, 1]} : vector<224x128xbf16> to vector<160x128xbf16>
    %c0_316 = arith.constant 0 : index
    %c4_317 = arith.constant 4 : index
    %c0_318 = arith.constant 0 : index
    %c0_319 = arith.constant 0 : index
    %298 = vector.load %arg4[%c0_316, %c4_317, %c0_318, %c0_319] : memref<2x5x128x128xbf16, #tpu.memory_space<vmem>>, vector<1x1x128x128xbf16>
    %299 = vector.shape_cast %298 : vector<1x1x128x128xbf16> to vector<128x128xbf16>
    %cst_320 = arith.constant dense<0.000000e+00> : vector<160x128xf32>
    %300 = tpu.matmul %297, %299, %cst_320 {dimension_numbers = #tpu.dot_dimension_numbers<[1], [0], [0], [1], [0, 0, 1, 1], [], []>} : vector<160x128xbf16>, vector<128x128xbf16>, vector<160x128xf32> -> vector<160x128xf32>
    %301 = arith.addf %296, %300 : vector<160x128xf32>
    %302 = vector.broadcast %1 : vector<1x128xf32> to vector<160x128xf32>
    %303 = arith.addf %301, %302 : vector<160x128xf32>
    %cst_321 = arith.constant 0.000000e+00 : f32
    %304 = vector.broadcast %cst_321 : f32 to vector<160x128xf32>
    %305 = arith.maximumf %303, %304 : vector<160x128xf32>
    %306 = arith.maximumf %277, %305 : vector<160x128xf32>
    %307 = vector.extract_strided_slice %220 {offsets = [0, 0], sizes = [160, 128], strides = [1, 1]} : vector<224x128xbf16> to vector<160x128xbf16>
    %c1_322 = arith.constant 1 : index
    %c0_323 = arith.constant 0 : index
    %c0_324 = arith.constant 0 : index
    %c0_325 = arith.constant 0 : index
    %308 = vector.load %arg4[%c1_322, %c0_323, %c0_324, %c0_325] : memref<2x5x128x128xbf16, #tpu.memory_space<vmem>>, vector<1x1x128x128xbf16>
    %309 = vector.shape_cast %308 : vector<1x1x128x128xbf16> to vector<128x128xbf16>
    %cst_326 = arith.constant dense<0.000000e+00> : vector<160x128xf32>
    %310 = tpu.matmul %307, %309, %cst_326 {dimension_numbers = #tpu.dot_dimension_numbers<[1], [0], [0], [1], [0, 0, 1, 1], [], []>} : vector<160x128xbf16>, vector<128x128xbf16>, vector<160x128xf32> -> vector<160x128xf32>
    %311 = vector.extract_strided_slice %124 {offsets = [32, 0], sizes = [160, 128], strides = [1, 1]} : vector<224x128xbf16> to vector<160x128xbf16>
    %c1_327 = arith.constant 1 : index
    %c1_328 = arith.constant 1 : index
    %c0_329 = arith.constant 0 : index
    %c0_330 = arith.constant 0 : index
    %312 = vector.load %arg4[%c1_327, %c1_328, %c0_329, %c0_330] : memref<2x5x128x128xbf16, #tpu.memory_space<vmem>>, vector<1x1x128x128xbf16>
    %313 = vector.shape_cast %312 : vector<1x1x128x128xbf16> to vector<128x128xbf16>
    %cst_331 = arith.constant dense<0.000000e+00> : vector<160x128xf32>
    %314 = tpu.matmul %311, %313, %cst_331 {dimension_numbers = #tpu.dot_dimension_numbers<[1], [0], [0], [1], [0, 0, 1, 1], [], []>} : vector<160x128xbf16>, vector<128x128xbf16>, vector<160x128xf32> -> vector<160x128xf32>
    %315 = arith.addf %310, %314 : vector<160x128xf32>
    %316 = vector.extract_strided_slice %220 {offsets = [32, 0], sizes = [160, 128], strides = [1, 1]} : vector<224x128xbf16> to vector<160x128xbf16>
    %c1_332 = arith.constant 1 : index
    %c2_333 = arith.constant 2 : index
    %c0_334 = arith.constant 0 : index
    %c0_335 = arith.constant 0 : index
    %317 = vector.load %arg4[%c1_332, %c2_333, %c0_334, %c0_335] : memref<2x5x128x128xbf16, #tpu.memory_space<vmem>>, vector<1x1x128x128xbf16>
    %318 = vector.shape_cast %317 : vector<1x1x128x128xbf16> to vector<128x128xbf16>
    %cst_336 = arith.constant dense<0.000000e+00> : vector<160x128xf32>
    %319 = tpu.matmul %316, %318, %cst_336 {dimension_numbers = #tpu.dot_dimension_numbers<[1], [0], [0], [1], [0, 0, 1, 1], [], []>} : vector<160x128xbf16>, vector<128x128xbf16>, vector<160x128xf32> -> vector<160x128xf32>
    %320 = arith.addf %315, %319 : vector<160x128xf32>
    %321 = vector.extract_strided_slice %124 {offsets = [64, 0], sizes = [160, 128], strides = [1, 1]} : vector<224x128xbf16> to vector<160x128xbf16>
    %c1_337 = arith.constant 1 : index
    %c3_338 = arith.constant 3 : index
    %c0_339 = arith.constant 0 : index
    %c0_340 = arith.constant 0 : index
    %322 = vector.load %arg4[%c1_337, %c3_338, %c0_339, %c0_340] : memref<2x5x128x128xbf16, #tpu.memory_space<vmem>>, vector<1x1x128x128xbf16>
    %323 = vector.shape_cast %322 : vector<1x1x128x128xbf16> to vector<128x128xbf16>
    %cst_341 = arith.constant dense<0.000000e+00> : vector<160x128xf32>
    %324 = tpu.matmul %321, %323, %cst_341 {dimension_numbers = #tpu.dot_dimension_numbers<[1], [0], [0], [1], [0, 0, 1, 1], [], []>} : vector<160x128xbf16>, vector<128x128xbf16>, vector<160x128xf32> -> vector<160x128xf32>
    %325 = arith.addf %320, %324 : vector<160x128xf32>
    %326 = vector.extract_strided_slice %220 {offsets = [64, 0], sizes = [160, 128], strides = [1, 1]} : vector<224x128xbf16> to vector<160x128xbf16>
    %c1_342 = arith.constant 1 : index
    %c4_343 = arith.constant 4 : index
    %c0_344 = arith.constant 0 : index
    %c0_345 = arith.constant 0 : index
    %327 = vector.load %arg4[%c1_342, %c4_343, %c0_344, %c0_345] : memref<2x5x128x128xbf16, #tpu.memory_space<vmem>>, vector<1x1x128x128xbf16>
    %328 = vector.shape_cast %327 : vector<1x1x128x128xbf16> to vector<128x128xbf16>
    %cst_346 = arith.constant dense<0.000000e+00> : vector<160x128xf32>
    %329 = tpu.matmul %326, %328, %cst_346 {dimension_numbers = #tpu.dot_dimension_numbers<[1], [0], [0], [1], [0, 0, 1, 1], [], []>} : vector<160x128xbf16>, vector<128x128xbf16>, vector<160x128xf32> -> vector<160x128xf32>
    %330 = arith.addf %325, %329 : vector<160x128xf32>
    %331 = vector.broadcast %1 : vector<1x128xf32> to vector<160x128xf32>
    %332 = arith.addf %330, %331 : vector<160x128xf32>
    %cst_347 = arith.constant 0.000000e+00 : f32
    %333 = vector.broadcast %cst_347 : f32 to vector<160x128xf32>
    %334 = arith.maximumf %332, %333 : vector<160x128xf32>
    %335 = arith.maximumf %306, %334 : vector<160x128xf32>
    %336 = arith.truncf %335 : vector<160x128xf32> to vector<160x128xbf16>
    %337 = vector.extract_strided_slice %336 {offsets = [0, 0], sizes = [32, 128], strides = [1, 1]} : vector<160x128xbf16> to vector<32x128xbf16>
    %c0_348 = arith.constant 0 : index
    %c0_349 = arith.constant 0 : index
    %c0_350 = arith.constant 0 : index
    %338 = vector.load %arg6[%c0_348, %c0_349, %c0_350] : memref<5x128x128xbf16, #tpu.memory_space<vmem>>, vector<1x128x128xbf16>
    %339 = vector.shape_cast %338 : vector<1x128x128xbf16> to vector<128x128xbf16>
    %cst_351 = arith.constant dense<0.000000e+00> : vector<32x128xf32>
    %340 = tpu.matmul %337, %339, %cst_351 {dimension_numbers = #tpu.dot_dimension_numbers<[1], [0], [0], [1], [0, 0, 1, 1], [], []>} : vector<32x128xbf16>, vector<128x128xbf16>, vector<32x128xf32> -> vector<32x128xf32>
    %341 = vector.extract_strided_slice %336 {offsets = [32, 0], sizes = [32, 128], strides = [1, 1]} : vector<160x128xbf16> to vector<32x128xbf16>
    %c1_352 = arith.constant 1 : index
    %c0_353 = arith.constant 0 : index
    %c0_354 = arith.constant 0 : index
    %342 = vector.load %arg6[%c1_352, %c0_353, %c0_354] : memref<5x128x128xbf16, #tpu.memory_space<vmem>>, vector<1x128x128xbf16>
    %343 = vector.shape_cast %342 : vector<1x128x128xbf16> to vector<128x128xbf16>
    %cst_355 = arith.constant dense<0.000000e+00> : vector<32x128xf32>
    %344 = tpu.matmul %341, %343, %cst_355 {dimension_numbers = #tpu.dot_dimension_numbers<[1], [0], [0], [1], [0, 0, 1, 1], [], []>} : vector<32x128xbf16>, vector<128x128xbf16>, vector<32x128xf32> -> vector<32x128xf32>
    %345 = arith.addf %340, %344 : vector<32x128xf32>
    %346 = vector.extract_strided_slice %336 {offsets = [64, 0], sizes = [32, 128], strides = [1, 1]} : vector<160x128xbf16> to vector<32x128xbf16>
    %c2_356 = arith.constant 2 : index
    %c0_357 = arith.constant 0 : index
    %c0_358 = arith.constant 0 : index
    %347 = vector.load %arg6[%c2_356, %c0_357, %c0_358] : memref<5x128x128xbf16, #tpu.memory_space<vmem>>, vector<1x128x128xbf16>
    %348 = vector.shape_cast %347 : vector<1x128x128xbf16> to vector<128x128xbf16>
    %cst_359 = arith.constant dense<0.000000e+00> : vector<32x128xf32>
    %349 = tpu.matmul %346, %348, %cst_359 {dimension_numbers = #tpu.dot_dimension_numbers<[1], [0], [0], [1], [0, 0, 1, 1], [], []>} : vector<32x128xbf16>, vector<128x128xbf16>, vector<32x128xf32> -> vector<32x128xf32>
    %350 = arith.addf %345, %349 : vector<32x128xf32>
    %351 = vector.extract_strided_slice %336 {offsets = [96, 0], sizes = [32, 128], strides = [1, 1]} : vector<160x128xbf16> to vector<32x128xbf16>
    %c3_360 = arith.constant 3 : index
    %c0_361 = arith.constant 0 : index
    %c0_362 = arith.constant 0 : index
    %352 = vector.load %arg6[%c3_360, %c0_361, %c0_362] : memref<5x128x128xbf16, #tpu.memory_space<vmem>>, vector<1x128x128xbf16>
    %353 = vector.shape_cast %352 : vector<1x128x128xbf16> to vector<128x128xbf16>
    %cst_363 = arith.constant dense<0.000000e+00> : vector<32x128xf32>
    %354 = tpu.matmul %351, %353, %cst_363 {dimension_numbers = #tpu.dot_dimension_numbers<[1], [0], [0], [1], [0, 0, 1, 1], [], []>} : vector<32x128xbf16>, vector<128x128xbf16>, vector<32x128xf32> -> vector<32x128xf32>
    %355 = arith.addf %350, %354 : vector<32x128xf32>
    %356 = vector.extract_strided_slice %336 {offsets = [128, 0], sizes = [32, 128], strides = [1, 1]} : vector<160x128xbf16> to vector<32x128xbf16>
    %c4_364 = arith.constant 4 : index
    %c0_365 = arith.constant 0 : index
    %c0_366 = arith.constant 0 : index
    %357 = vector.load %arg6[%c4_364, %c0_365, %c0_366] : memref<5x128x128xbf16, #tpu.memory_space<vmem>>, vector<1x128x128xbf16>
    %358 = vector.shape_cast %357 : vector<1x128x128xbf16> to vector<128x128xbf16>
    %cst_367 = arith.constant dense<0.000000e+00> : vector<32x128xf32>
    %359 = tpu.matmul %356, %358, %cst_367 {dimension_numbers = #tpu.dot_dimension_numbers<[1], [0], [0], [1], [0, 0, 1, 1], [], []>} : vector<32x128xbf16>, vector<128x128xbf16>, vector<32x128xf32> -> vector<32x128xf32>
    %360 = arith.addf %355, %359 : vector<32x128xf32>
    %361 = vector.broadcast %2 : vector<1x128xf32> to vector<32x128xf32>
    %362 = arith.addf %360, %361 : vector<32x128xf32>
    %cst_368 = arith.constant 0.000000e+00 : f32
    %363 = vector.broadcast %cst_368 : f32 to vector<32x128xf32>
    %364 = arith.maximumf %362, %363 : vector<32x128xf32>
    %365 = arith.truncf %364 : vector<32x128xf32> to vector<32x128xbf16>
    %c0_369 = arith.constant 0 : index
    %c0_370 = arith.constant 0 : index
    %366 = vector.load %arg8[%c0_369, %c0_370] : memref<128x128xbf16, #tpu.memory_space<vmem>>, vector<128x128xbf16>
    %cst_371 = arith.constant dense<0.000000e+00> : vector<32x128xf32>
    %367 = tpu.matmul %365, %366, %cst_371 {dimension_numbers = #tpu.dot_dimension_numbers<[1], [0], [0], [1], [0, 0, 1, 1], [], []>} : vector<32x128xbf16>, vector<128x128xbf16>, vector<32x128xf32> -> vector<32x128xf32>
    %368 = vector.broadcast %3 : vector<1x128xf32> to vector<32x128xf32>
    %369 = arith.addf %367, %368 : vector<32x128xf32>
    %cst_372 = arith.constant 0.000000e+00 : f32
    %370 = vector.broadcast %cst_372 : f32 to vector<32x128xf32>
    %371 = arith.maximumf %369, %370 : vector<32x128xf32>
    %372 = arith.truncf %371 : vector<32x128xf32> to vector<32x128xbf16>
    %c0_373 = arith.constant 0 : index
    %c0_374 = arith.constant 0 : index
    %373 = vector.load %arg10[%c0_373, %c0_374] : memref<128x128xbf16, #tpu.memory_space<vmem>>, vector<128x128xbf16>
    %cst_375 = arith.constant dense<0.000000e+00> : vector<32x128xf32>
    %374 = tpu.matmul %372, %373, %cst_375 {dimension_numbers = #tpu.dot_dimension_numbers<[1], [0], [0], [1], [0, 0, 1, 1], [], []>} : vector<32x128xbf16>, vector<128x128xbf16>, vector<32x128xf32> -> vector<32x128xf32>
    %375 = vector.broadcast %4 : vector<1x128xf32> to vector<32x128xf32>
    %376 = arith.addf %374, %375 : vector<32x128xf32>
    %c0_376 = arith.constant 0 : index
    %c0_377 = arith.constant 0 : index
    %377 = vector.load %arg12[%c0_376, %c0_377] : memref<32x128xf32, #tpu.memory_space<vmem>>, vector<32x128xf32>
    tpu.vector_store %arg12[%c0_376, %c0_377], %376 {strides = array<i32>} : memref<32x128xf32, #tpu.memory_space<vmem>>, vector<32x128xf32>,
    return
  }
  func.func @transform_0(%arg0: i32) -> (i32, i32, i32, i32) {
    %c0_i32 = arith.constant 0 : i32
    %c0_i32_0 = arith.constant 0 : i32
    %c0_i32_1 = arith.constant 0 : i32
    %c0_i32_2 = arith.constant 0 : i32
    return %c0_i32, %c0_i32_0, %arg0, %c0_i32_1 : i32, i32, i32, i32
  }
  func.func @transform_1(%arg0: i32) -> (i32, i32, i32, i32) {
    %c0_i32 = arith.constant 0 : i32
    %c0_i32_0 = arith.constant 0 : i32
    %c0_i32_1 = arith.constant 0 : i32
    %c0_i32_2 = arith.constant 0 : i32
    %c0_i32_3 = arith.constant 0 : i32
    return %c0_i32, %c0_i32_0, %c0_i32_1, %c0_i32_2 : i32, i32, i32, i32
  }
  func.func @transform_2(%arg0: i32) -> (i32, i32) {
    %c0_i32 = arith.constant 0 : i32
    %c0_i32_0 = arith.constant 0 : i32
    %c0_i32_1 = arith.constant 0 : i32
    return %c0_i32, %c0_i32_0 : i32, i32
  }
  func.func @transform_3(%arg0: i32) -> (i32, i32, i32, i32) {
    %c0_i32 = arith.constant 0 : i32
    %c0_i32_0 = arith.constant 0 : i32
    %c0_i32_1 = arith.constant 0 : i32
    %c0_i32_2 = arith.constant 0 : i32
    %c0_i32_3 = arith.constant 0 : i32
    return %c0_i32, %c0_i32_0, %c0_i32_1, %c0_i32_2 : i32, i32, i32, i32
  }
  func.func @transform_4(%arg0: i32) -> (i32, i32) {
    %c0_i32 = arith.constant 0 : i32
    %c0_i32_0 = arith.constant 0 : i32
    %c0_i32_1 = arith.constant 0 : i32
    return %c0_i32, %c0_i32_0 : i32, i32
  }
  func.func @transform_5(%arg0: i32) -> (i32, i32, i32) {
    %c0_i32 = arith.constant 0 : i32
    %c0_i32_0 = arith.constant 0 : i32
    %c0_i32_1 = arith.constant 0 : i32
    %c0_i32_2 = arith.constant 0 : i32
    return %c0_i32, %c0_i32_0, %c0_i32_1 : i32, i32, i32
  }
  func.func @transform_6(%arg0: i32) -> (i32, i32) {
    %c0_i32 = arith.constant 0 : i32
    %c0_i32_0 = arith.constant 0 : i32
    %c0_i32_1 = arith.constant 0 : i32
    return %c0_i32, %c0_i32_0 : i32, i32
  }
  func.func @transform_7(%arg0: i32) -> (i32, i32) {
    %c0_i32 = arith.constant 0 : i32
    %c0_i32_0 = arith.constant 0 : i32
    %c0_i32_1 = arith.constant 0 : i32
    return %c0_i32, %c0_i32_0 : i32, i32
  }
  func.func @transform_8(%arg0: i32) -> (i32, i32) {
    %c0_i32 = arith.constant 0 : i32
    %c0_i32_0 = arith.constant 0 : i32
    %c0_i32_1 = arith.constant 0 : i32
    return %c0_i32, %c0_i32_0 : i32, i32
  }
  func.func @transform_9(%arg0: i32) -> (i32, i32) {
    %c0_i32 = arith.constant 0 : i32
    %c0_i32_0 = arith.constant 0 : i32
    %c0_i32_1 = arith.constant 0 : i32
    return %c0_i32, %c0_i32_0 : i32, i32
  }
  func.func @transform_10(%arg0: i32) -> (i32, i32) {
    %c0_i32 = arith.constant 0 : i32
    %c0_i32_0 = arith.constant 0 : i32
    %c0_i32_1 = arith.constant 0 : i32
    return %c0_i32, %c0_i32_0 : i32, i32
  }
  func.func @transform_11(%arg0: i32) -> (i32, i32) {
    %c0_i32 = arith.constant 0 : i32
    %c0_i32_0 = arith.constant 0 : i32
    return %arg0, %c0_i32 : i32, i32
  }
}

</mosaic_0001>

<llo_original>
// kernel: medium_net_forward.1
$region0: #{medium_net_forward.1}
  #allocation0 [shape = 'u32[]', space=smem, size = 0x4, offset = 0x4, fixed_abs, tag = 'smem constant byte address 0x4 - core index']
  #allocation1 [shape = 'u32[72,128]{1,0:T(1,128)}', space=vmem, size = 0x9000, scoped, tag = 'internal scratch']
  %s0 = inlined_call_operand.vmem [shape: bf16[4,8,64,128], index: 0, kind: input, shape index: {}]
  %s1 = inlined_call_operand.vmem [shape: bf16[2,5,128,128], index: 1, kind: input, shape index: {}]
  %s2 = inlined_call_operand.vmem [shape: f32[1,128], index: 2, kind: input, shape index: {}]
  %s3 = inlined_call_operand.vmem [shape: bf16[2,5,128,128], index: 3, kind: input, shape index: {}]
  %s4 = inlined_call_operand.vmem [shape: f32[1,128], index: 4, kind: input, shape index: {}]
  %s5 = inlined_call_operand.vmem [shape: bf16[5,128,128], index: 5, kind: input, shape index: {}]
  %s6 = inlined_call_operand.vmem [shape: f32[1,128], index: 6, kind: input, shape index: {}]
  %s7 = inlined_call_operand.vmem [shape: bf16[128,128], index: 7, kind: input, shape index: {}]
  %s8 = inlined_call_operand.vmem [shape: f32[1,128], index: 8, kind: input, shape index: {}]
  %s9 = inlined_call_operand.vmem [shape: bf16[128,128], index: 9, kind: input, shape index: {}]
  %s10 = inlined_call_operand.vmem [shape: f32[1,128], index: 10, kind: input, shape index: {}]
  %s11 = inlined_call_operand.vmem [shape: f32[64,128], index: 11, kind: output, shape index: {}]
  %s12 = sld [smem:[#allocation0]]
  $region118: #{medium_net_forward.1} parent=0
    _
  %s14 = ssub.s32 1, %s12
  %s15 = scalar_select 0, %s14, %s12
  $region1: #{medium_net_forward.1} parent=0
    #allocation2 [shape = 'u8[524288]{0}', space=vmem, size = 0x80000, scoped, tag = 'input window, operand 0']
    loop: start=0, step=1, limit=4
    $region2: #{medium_net_forward.1} parent=1 // loop_pre_header
      _
    $region3: #{medium_net_forward.1} parent=1 // loop_header
      %s17 = sphi 0, %s21
      %p18 = scmp.ge.s32.totalorder %s17, 4
      %s27 = sphi 0, %s29
      %s30 = sphi 0, %s27
      %s31 = sphi 0, %s30
      %s47 = sphi 0, %s31
      %s51 = sphi 0, %s51
      %s53 = sphi 0, %s51
      %s54 = sphi 0, %s53
      %s68 = sphi 0, %s54
      %s72 = sphi 0, %s72
      %s74 = sphi 0, %s72
      %s75 = sphi 0, %s74
      %s89 = sphi 0, %s75
      %s93 = sphi 0, %s93
      %s95 = sphi 0, %s93
      %s96 = sphi 0, %s95
      %s110 = sphi 0, %s96
      %s114 = sphi 0, %s114
      %s116 = sphi 0, %s114
      %s117 = sphi 0, %s116
      %s131 = sphi 0, %s117
      %s135 = sphi 0, %s135
      %s137 = sphi 0, %s135
      %s138 = sphi 0, %s137
      %s152 = sphi 0, %s138
      %s156 = sphi 0, %s156
      %s158 = sphi 0, %s156
      %s159 = sphi 0, %s158
      %s173 = sphi 0, %s159
      %s177 = sphi 0, %s177
      %s179 = sphi 0, %s177
      %s180 = sphi 0, %s179
      %s194 = sphi 0, %s180
      %s198 = sphi 0, %s198
      %s200 = sphi 0, %s198
      %s201 = sphi 0, %s200
      %s215 = sphi 0, %s201
      %s219 = sphi 0, %s219
      %s221 = sphi 0, %s219
      %s222 = sphi 0, %s221
      %s236 = sphi 0, %s222
      %s240 = sphi 0, %s240
      %s242 = sphi 0, %s240
      %s243 = sphi 0, %s242
      %s257 = sphi 0, %s243
      %s263 = sphi 0, %s265
      %s266 = sphi 0, %s263
      %s267 = sphi 0, %s266
      %s283 = sphi 0, %s267
    $region4: #{medium_net_forward.1} parent=1 // loop_header_branch
      %20 = sbr.rel (%p18) target = $region8
    $region5: #{medium_net_forward.1} parent=1 // loop_body
      %s22 = ssub.s32 %s17, 1
      %s23 = ssub.s32 %s17, 2
      %s24 = sadd.s32 %s17, 1
      %s25 = ssub.s32 %s17, %s24
      %p26 = scmp.eq.s32.totalorder %s25, 0
      %s28 = sadd.s32 %s27, 1
      %s29 = scalar_select %p26, %s27, %s28
      %p32 = pneg %p26
      %p33 = scmp.eq.s32.totalorder %s17, 1
      %p34 = por %p32, %p33
      %p35 = scmp.ne.s32.totalorder %s27, %s30
      %p36 = scmp.eq.s32.totalorder %s17, 0
      %p37 = por %p35, %p36
      %p38 = scmp.ne.s32.totalorder %s27, %s30
      %p39 = scmp.eq.s32.totalorder %s22, 1
      %p40 = por %p38, %p39
      %p41 = scmp.ne.s32.totalorder %s30, %s31
      %p42 = scmp.eq.s32.totalorder %s22, 0
      %p43 = por %p41, %p42
      %p44 = scmp.ne.s32.totalorder %s30, %s31
      %p45 = scmp.eq.s32.totalorder %s23, 1
      %p46 = por %p44, %p45
      %p48 = scmp.ne.s32.totalorder %s31, %s47
      %p49 = scmp.eq.s32.totalorder %s23, 0
      %p50 = por %p48, %p49
      %s52 = sadd.s32 %s51, 1
      %p55 = scmp.eq.s32.totalorder %s17, 1
      %p56 = scmp.ne.s32.totalorder %s51, %s53
      %p57 = scmp.eq.s32.totalorder %s17, 0
      %p58 = por %p56, %p57
      %p59 = scmp.ne.s32.totalorder %s51, %s53
      %p60 = scmp.eq.s32.totalorder %s22, 1
      %p61 = por %p59, %p60
      %p62 = scmp.ne.s32.totalorder %s53, %s54
      %p63 = scmp.eq.s32.totalorder %s22, 0
      %p64 = por %p62, %p63
      %p65 = scmp.ne.s32.totalorder %s53, %s54
      %p66 = scmp.eq.s32.totalorder %s23, 1
      %p67 = por %p65, %p66
      %p69 = scmp.ne.s32.totalorder %s54, %s68
      %p70 = scmp.eq.s32.totalorder %s23, 0
      %p71 = por %p69, %p70
      %s73 = sadd.s32 %s72, 1
      %p76 = scmp.eq.s32.totalorder %s17, 1
      %p77 = scmp.ne.s32.totalorder %s72, %s74
      %p78 = scmp.eq.s32.totalorder %s17, 0
      %p79 = por %p77, %p78
      %p80 = scmp.ne.s32.totalorder %s72, %s74
      %p81 = scmp.eq.s32.totalorder %s22, 1
      %p82 = por %p80, %p81
      %p83 = scmp.ne.s32.totalorder %s74, %s75
      %p84 = scmp.eq.s32.totalorder %s22, 0
      %p85 = por %p83, %p84
      %p86 = scmp.ne.s32.totalorder %s74, %s75
      %p87 = scmp.eq.s32.totalorder %s23, 1
      %p88 = por %p86, %p87
      %p90 = scmp.ne.s32.totalorder %s75, %s89
      %p91 = scmp.eq.s32.totalorder %s23, 0
      %p92 = por %p90, %p91
      %s94 = sadd.s32 %s93, 1
      %p97 = scmp.eq.s32.totalorder %s17, 1
      %p98 = scmp.ne.s32.totalorder %s93, %s95
      %p99 = scmp.eq.s32.totalorder %s17, 0
      %p100 = por %p98, %p99
      %p101 = scmp.ne.s32.totalorder %s93, %s95
      %p102 = scmp.eq.s32.totalorder %s22, 1
      %p103 = por %p101, %p102
      %p104 = scmp.ne.s32.totalorder %s95, %s96
      %p105 = scmp.eq.s32.totalorder %s22, 0
      %p106 = por %p104, %p105
      %p107 = scmp.ne.s32.totalorder %s95, %s96
      %p108 = scmp.eq.s32.totalorder %s23, 1
      %p109 = por %p107, %p108
      %p111 = scmp.ne.s32.totalorder %s96, %s110
      %p112 = scmp.eq.s32.totalorder %s23, 0
      %p113 = por %p111, %p112
      %s115 = sadd.s32 %s114, 1
      %p118 = scmp.eq.s32.totalorder %s17, 1
      %p119 = scmp.ne.s32.totalorder %s114, %s116
      %p120 = scmp.eq.s32.totalorder %s17, 0
      %p121 = por %p119, %p120
      %p122 = scmp.ne.s32.totalorder %s114, %s116
      %p123 = scmp.eq.s32.totalorder %s22, 1
      %p124 = por %p122, %p123
      %p125 = scmp.ne.s32.totalorder %s116, %s117
      %p126 = scmp.eq.s32.totalorder %s22, 0
      %p127 = por %p125, %p126
      %p128 = scmp.ne.s32.totalorder %s116, %s117
      %p129 = scmp.eq.s32.totalorder %s23, 1
      %p130 = por %p128, %p129
      %p132 = scmp.ne.s32.totalorder %s117, %s131
      %p133 = scmp.eq.s32.totalorder %s23, 0
      %p134 = por %p132, %p133
      %s136 = sadd.s32 %s135, 1
      %p139 = scmp.eq.s32.totalorder %s17, 1
      %p140 = scmp.ne.s32.totalorder %s135, %s137
      %p141 = scmp.eq.s32.totalorder %s17, 0
      %p142 = por %p140, %p141
      %p143 = scmp.ne.s32.totalorder %s135, %s137
      %p144 = scmp.eq.s32.totalorder %s22, 1
      %p145 = por %p143, %p144
      %p146 = scmp.ne.s32.totalorder %s137, %s138
      %p147 = scmp.eq.s32.totalorder %s22, 0
      %p148 = por %p146, %p147
      %p149 = scmp.ne.s32.totalorder %s137, %s138
      %p150 = scmp.eq.s32.totalorder %s23, 1
      %p151 = por %p149, %p150
      %p153 = scmp.ne.s32.totalorder %s138, %s152
      %p154 = scmp.eq.s32.totalorder %s23, 0
      %p155 = por %p153, %p154
      %s157 = sadd.s32 %s156, 1
      %p160 = scmp.eq.s32.totalorder %s17, 1
      %p161 = scmp.ne.s32.totalorder %s156, %s158
      %p162 = scmp.eq.s32.totalorder %s17, 0
      %p163 = por %p161, %p162
      %p164 = scmp.ne.s32.totalorder %s156, %s158
      %p165 = scmp.eq.s32.totalorder %s22, 1
      %p166 = por %p164, %p165
      %p167 = scmp.ne.s32.totalorder %s158, %s159
      %p168 = scmp.eq.s32.totalorder %s22, 0
      %p169 = por %p167, %p168
      %p170 = scmp.ne.s32.totalorder %s158, %s159
      %p171 = scmp.eq.s32.totalorder %s23, 1
      %p172 = por %p170, %p171
      %p174 = scmp.ne.s32.totalorder %s159, %s173
      %p175 = scmp.eq.s32.totalorder %s23, 0
      %p176 = por %p174, %p175
      %s178 = sadd.s32 %s177, 1
      %p181 = scmp.eq.s32.totalorder %s17, 1
      %p182 = scmp.ne.s32.totalorder %s177, %s179
      %p183 = scmp.eq.s32.totalorder %s17, 0
      %p184 = por %p182, %p183
      %p185 = scmp.ne.s32.totalorder %s177, %s179
      %p186 = scmp.eq.s32.totalorder %s22, 1
      %p187 = por %p185, %p186
      %p188 = scmp.ne.s32.totalorder %s179, %s180
      %p189 = scmp.eq.s32.totalorder %s22, 0
      %p190 = por %p188, %p189
      %p191 = scmp.ne.s32.totalorder %s179, %s180
      %p192 = scmp.eq.s32.totalorder %s23, 1
      %p193 = por %p191, %p192
      %p195 = scmp.ne.s32.totalorder %s180, %s194
      %p196 = scmp.eq.s32.totalorder %s23, 0
      %p197 = por %p195, %p196
      %s199 = sadd.s32 %s198, 1
      %p202 = scmp.eq.s32.totalorder %s17, 1
      %p203 = scmp.ne.s32.totalorder %s198, %s200
      %p204 = scmp.eq.s32.totalorder %s17, 0
      %p205 = por %p203, %p204
      %p206 = scmp.ne.s32.totalorder %s198, %s200
      %p207 = scmp.eq.s32.totalorder %s22, 1
      %p208 = por %p206, %p207
      %p209 = scmp.ne.s32.totalorder %s200, %s201
      %p210 = scmp.eq.s32.totalorder %s22, 0
      %p211 = por %p209, %p210
      %p212 = scmp.ne.s32.totalorder %s200, %s201
      %p213 = scmp.eq.s32.totalorder %s23, 1
      %p214 = por %p212, %p213
      %p216 = scmp.ne.s32.totalorder %s201, %s215
      %p217 = scmp.eq.s32.totalorder %s23, 0
      %p218 = por %p216, %p217
      %s220 = sadd.s32 %s219, 1
      %p223 = scmp.eq.s32.totalorder %s17, 1
      %p224 = scmp.ne.s32.totalorder %s219, %s221
      %p225 = scmp.eq.s32.totalorder %s17, 0
      %p226 = por %p224, %p225
      %p227 = scmp.ne.s32.totalorder %s219, %s221
      %p228 = scmp.eq.s32.totalorder %s22, 1
      %p229 = por %p227, %p228
      %p230 = scmp.ne.s32.totalorder %s221, %s222
      %p231 = scmp.eq.s32.totalorder %s22, 0
      %p232 = por %p230, %p231
      %p233 = scmp.ne.s32.totalorder %s221, %s222
      %p234 = scmp.eq.s32.totalorder %s23, 1
      %p235 = por %p233, %p234
      %p237 = scmp.ne.s32.totalorder %s222, %s236
      %p238 = scmp.eq.s32.totalorder %s23, 0
      %p239 = por %p237, %p238
      %s241 = sadd.s32 %s240, 1
      %p244 = scmp.eq.s32.totalorder %s17, 1
      %p245 = scmp.ne.s32.totalorder %s240, %s242
      %p246 = scmp.eq.s32.totalorder %s17, 0
      %p247 = por %p245, %p246
      %p248 = scmp.ne.s32.totalorder %s240, %s242
      %p249 = scmp.eq.s32.totalorder %s22, 1
      %p250 = por %p248, %p249
      %p251 = scmp.ne.s32.totalorder %s242, %s243
      %p252 = scmp.eq.s32.totalorder %s22, 0
      %p253 = por %p251, %p252
      %p254 = scmp.ne.s32.totalorder %s242, %s243
      %p255 = scmp.eq.s32.totalorder %s23, 1
      %p256 = por %p254, %p255
      %p258 = scmp.ne.s32.totalorder %s243, %s257
      %p259 = scmp.eq.s32.totalorder %s23, 0
      %p260 = por %p258, %p259
      %s261 = ssub.s32 %s17, %s24
      %p262 = scmp.eq.s32.totalorder %s261, 0
      %s264 = sadd.s32 %s263, 1
      %s265 = scalar_select %p262, %s263, %s264
      %p268 = pneg %p262
      %p269 = scmp.eq.s32.totalorder %s17, 1
      %p270 = por %p268, %p269
      %p271 = scmp.ne.s32.totalorder %s263, %s266
      %p272 = scmp.eq.s32.totalorder %s17, 0
      %p273 = por %p271, %p272
      %p274 = scmp.ne.s32.totalorder %s263, %s266
      %p275 = scmp.eq.s32.totalorder %s22, 1
      %p276 = por %p274, %p275
      %p277 = scmp.ne.s32.totalorder %s266, %s267
      %p278 = scmp.eq.s32.totalorder %s22, 0
      %p279 = por %p277, %p278
      %p280 = scmp.ne.s32.totalorder %s266, %s267
      %p281 = scmp.eq.s32.totalorder %s23, 1
      %p282 = por %p280, %p281
      %p284 = scmp.ne.s32.totalorder %s267, %s283
      %p285 = scmp.eq.s32.totalorder %s23, 0
      %p286 = por %p284, %p285
      %p287 = scmp.le.s32.totalorder 1, %s17
      %p288 = scmp.lt.s32.totalorder %s17, 3
      %p289 = pnand %p287, %p288
      %p290 = pneg %p289
      // Predicated region
      $region9: #{medium_net_forward.1} parent=5 // pred_check
        _
      $region10: #{medium_net_forward.1} parent=5 // pred_check_branch
        %292 = sbr.rel (%p289) target = $region12
      $region11: #{medium_net_forward.1} parent=5 // pred_region
        %s293 = ssub.s32 %s17, 1
        // Predicated region
        $region13: #{medium_net_forward.1} parent=11 // pred_check
          %p294 = pneg %p64
        $region14: #{medium_net_forward.1} parent=11 // pred_check_branch
          %296 = sbr.rel (%p294) target = $region16
        $region15: #{medium_net_forward.1} parent=11 // pred_region
          _
        $region16: #{medium_net_forward.1} parent=11 // pred_fallthru
          _
        // Predicated region
        $region17: #{medium_net_forward.1} parent=11 // pred_check
          %p297 = pneg %p85
        $region18: #{medium_net_forward.1} parent=11 // pred_check_branch
          %299 = sbr.rel (%p297) target = $region20
        $region19: #{medium_net_forward.1} parent=11 // pred_region
          _
        $region20: #{medium_net_forward.1} parent=11 // pred_fallthru
          _
        // Predicated region
        $region21: #{medium_net_forward.1} parent=11 // pred_check
          %p300 = pneg %p106
        $region22: #{medium_net_forward.1} parent=11 // pred_check_branch
          %302 = sbr.rel (%p300) target = $region24
        $region23: #{medium_net_forward.1} parent=11 // pred_region
          _
        $region24: #{medium_net_forward.1} parent=11 // pred_fallthru
          _
        // Predicated region
        $region25: #{medium_net_forward.1} parent=11 // pred_check
          %p303 = pneg %p127
        $region26: #{medium_net_forward.1} parent=11 // pred_check_branch
          %305 = sbr.rel (%p303) target = $region28
        $region27: #{medium_net_forward.1} parent=11 // pred_region
          _
        $region28: #{medium_net_forward.1} parent=11 // pred_fallthru
          _
        // Predicated region
        $region29: #{medium_net_forward.1} parent=11 // pred_check
          %p306 = pneg %p148
        $region30: #{medium_net_forward.1} parent=11 // pred_check_branch
          %308 = sbr.rel (%p306) target = $region32
        $region31: #{medium_net_forward.1} parent=11 // pred_region
          _
        $region32: #{medium_net_forward.1} parent=11 // pred_fallthru
          _
        // Predicated region
        $region33: #{medium_net_forward.1} parent=11 // pred_check
          %p309 = pneg %p169
        $region34: #{medium_net_forward.1} parent=11 // pred_check_branch
          %311 = sbr.rel (%p309) target = $region36
        $region35: #{medium_net_forward.1} parent=11 // pred_region
          _
        $region36: #{medium_net_forward.1} parent=11 // pred_fallthru
          _
        // Predicated region
        $region37: #{medium_net_forward.1} parent=11 // pred_check
          %p312 = pneg %p190
        $region38: #{medium_net_forward.1} parent=11 // pred_check_branch
          %314 = sbr.rel (%p312) target = $region40
        $region39: #{medium_net_forward.1} parent=11 // pred_region
          _
        $region40: #{medium_net_forward.1} parent=11 // pred_fallthru
          _
        // Predicated region
        $region41: #{medium_net_forward.1} parent=11 // pred_check
          %p315 = pneg %p211
        $region42: #{medium_net_forward.1} parent=11 // pred_check_branch
          %317 = sbr.rel (%p315) target = $region44
        $region43: #{medium_net_forward.1} parent=11 // pred_region
          _
        $region44: #{medium_net_forward.1} parent=11 // pred_fallthru
          _
        // Predicated region
        $region45: #{medium_net_forward.1} parent=11 // pred_check
          %p318 = pneg %p232
        $region46: #{medium_net_forward.1} parent=11 // pred_check_branch
          %320 = sbr.rel (%p318) target = $region48
        $region47: #{medium_net_forward.1} parent=11 // pred_region
          _
        $region48: #{medium_net_forward.1} parent=11 // pred_fallthru
          _
        // Predicated region
        $region49: #{medium_net_forward.1} parent=11 // pred_check
          %p321 = pneg %p253
        $region50: #{medium_net_forward.1} parent=11 // pred_check_branch
          %323 = sbr.rel (%p321) target = $region52
        $region51: #{medium_net_forward.1} parent=11 // pred_region
          _
        $region52: #{medium_net_forward.1} parent=11 // pred_fallthru
          _
      $region12: #{medium_net_forward.1} parent=5 // pred_fallthru
        _
      %p324 = scmp.lt.s32.totalorder %s17, 2
      // Predicated region
      $region53: #{medium_net_forward.1} parent=5 // pred_check
        %p325 = pneg %p324
      $region54: #{medium_net_forward.1} parent=5 // pred_check_branch
        %327 = sbr.rel (%p325) target = $region56
      $region55: #{medium_net_forward.1} parent=5 // pred_region
        // Predicated region
        $region57: #{medium_net_forward.1} parent=55 // pred_check
          %p328 = pneg %p37
        $region58: #{medium_net_forward.1} parent=55 // pred_check_branch
          %330 = sbr.rel (%p328) target = $region60
        $region59: #{medium_net_forward.1} parent=55 // pred_region
          %s331 = sand.u32 %s27, 1
          %s332 = sand.u32 %s27, 1
          %s333 = smul.addr %s332, 512
          %s334 = scalar_lea.vmem [#allocation2], %s333
          %s335 = smul.u32 4, %s17
          %s336 = smul.addr %s335, 4
          %s337 = scalar_lea.vmem %s0, %s336
          // Predicated region
          $region61: #{medium_net_forward.1} parent=59 // pred_check
            _
          $region62: #{medium_net_forward.1} parent=59 // pred_check_branch
            %339 = sbr.rel (0) target = $region64
          $region63: #{medium_net_forward.1} parent=59 // pred_region
            // Predicated region
            $region65: #{medium_net_forward.1} parent=63 // pred_check
              _
            $region66: #{medium_net_forward.1} parent=63 // pred_check_branch
              %341 = sbr.rel target = $region68
            $region67: #{medium_net_forward.1} parent=63 // pred_region
              // Predicated region
              $region80: #{medium_net_forward.1} parent=67 // pred_check
                _
              $region81: #{medium_net_forward.1} parent=67 // pred_check_branch
                %611 = sbr.rel (0) target = $region83
              $region82: #{medium_net_forward.1} parent=67 // pred_region
                loop: start=0, step=1, limit=1
                $region84: #{medium_net_forward.1} parent=82 // loop_pre_header
                  _
                $region85: #{medium_net_forward.1} parent=82 // loop_header
                  %s613 = sphi 0, %s617
                  %p614 = scmp.ge.s32.totalorder %s613, 1
                  %s618 = sphi %s337, %s337
                  %s619 = sphi %s334, %s334
                $region86: #{medium_net_forward.1} parent=82 // loop_header_branch
                  %616 = sbr.rel (%p614) target = $region90
                $region87: #{medium_net_forward.1} parent=82 // loop_body
                  _
                $region88: #{medium_net_forward.1} parent=82 // loop_footer
                  %s617 = sadd.s32 1, %s613
                $region89: #{medium_net_forward.1} parent=82 // loop_footer_branch
                  %612 = sbr.rel target = $region85
                $region90: #{medium_net_forward.1} parent=82 // loop_exit
                  _
                %s621 = ssub.s32 16, 1
                loop: start=0, step=1, limit=1
                $region91: #{medium_net_forward.1} parent=82 // loop_pre_header
                  _
                $region92: #{medium_net_forward.1} parent=82 // loop_header
                  %s623 = sphi 0, %s627
                  %p624 = scmp.ge.s32.totalorder %s623, 1
                  %s628 = sphi %s337, %s337
                  %s629 = sphi %s334, %s334
                $region93: #{medium_net_forward.1} parent=82 // loop_header_branch
                  %626 = sbr.rel (%p624) target = $region97
                $region94: #{medium_net_forward.1} parent=82 // loop_body
                  %v630 = vld [vmem:[%s628] sm:%s621]
                  %631 = vst [vmem:[%s629] sm:%s621] %v630
                  %v632 = vld [vmem:[%s628 + $0x4] sm:%s621]
                  %633 = vst [vmem:[%s629 + $0x4] sm:%s621] %v632
                  %v634 = vld [vmem:[%s628 + $0x8] sm:%s621]
                  %635 = vst [vmem:[%s629 + $0x8] sm:%s621] %v634
                  %v636 = vld [vmem:[%s628 + $0xc] sm:%s621]
                  %637 = vst [vmem:[%s629 + $0xc] sm:%s621] %v636
                  %v638 = vld [vmem:[%s628 + $0x20] sm:%s621]
                  %639 = vst [vmem:[%s629 + $0x10] sm:%s621] %v638
                  %v640 = vld [vmem:[%s628 + $0x24] sm:%s621]
                  %641 = vst [vmem:[%s629 + $0x14] sm:%s621] %v640
                  %v642 = vld [vmem:[%s628 + $0x28] sm:%s621]
                  %643 = vst [vmem:[%s629 + $0x18] sm:%s621] %v642
                  %v644 = vld [vmem:[%s628 + $0x2c] sm:%s621]
                  %645 = vst [vmem:[%s629 + $0x1c] sm:%s621] %v644
                  %v646 = vld [vmem:[%s628 + $0x40] sm:%s621]
                  %647 = vst [vmem:[%s629 + $0x20] sm:%s621] %v646
                  %v648 = vld [vmem:[%s628 + $0x44] sm:%s621]
                  %649 = vst [vmem:[%s629 + $0x24] sm:%s621] %v648
                  %v650 = vld [vmem:[%s628 + $0x48] sm:%s621]
                  %651 = vst [vmem:[%s629 + $0x28] sm:%s621] %v650
                  %v652 = vld [vmem:[%s628 + $0x4c] sm:%s621]
                  %653 = vst [vmem:[%s629 + $0x2c] sm:%s621] %v652
                  %v654 = vld [vmem:[%s628 + $0x60] sm:%s621]
                  %655 = vst [vmem:[%s629 + $0x30] sm:%s621] %v654
                  %v656 = vld [vmem:[%s628 + $0x64] sm:%s621]
                  %657 = vst [vmem:[%s629 + $0x34] sm:%s621] %v656
                  %v658 = vld [vmem:[%s628 + $0x68] sm:%s621]
                  %659 = vst [vmem:[%s629 + $0x38] sm:%s621] %v658
                  %v660 = vld [vmem:[%s628 + $0x6c] sm:%s621]
                  %661 = vst [vmem:[%s629 + $0x3c] sm:%s621] %v660
                  %v662 = vld [vmem:[%s628 + $0x80] sm:%s621]
                  %663 = vst [vmem:[%s629 + $0x40] sm:%s621] %v662
                  %v664 = vld [vmem:[%s628 + $0x84] sm:%s621]
                  %665 = vst [vmem:[%s629 + $0x44] sm:%s621] %v664
                  %v666 = vld [vmem:[%s628 + $0x88] sm:%s621]
                  %667 = vst [vmem:[%s629 + $0x48] sm:%s621] %v666
                  %v668 = vld [vmem:[%s628 + $0x8c] sm:%s621]
                  %669 = vst [vmem:[%s629 + $0x4c] sm:%s621] %v668
                  %v670 = vld [vmem:[%s628 + $0xa0] sm:%s621]
                  %671 = vst [vmem:[%s629 + $0x50] sm:%s621] %v670
                  %v672 = vld [vmem:[%s628 + $0xa4] sm:%s621]
                  %673 = vst [vmem:[%s629 + $0x54] sm:%s621] %v672
                  %v674 = vld [vmem:[%s628 + $0xa8] sm:%s621]
                  %675 = vst [vmem:[%s629 + $0x58] sm:%s621] %v674
                  %v676 = vld [vmem:[%s628 + $0xac] sm:%s621]
                  %677 = vst [vmem:[%s629 + $0x5c] sm:%s621] %v676
                  %v678 = vld [vmem:[%s628 + $0xc0] sm:%s621]
                  %679 = vst [vmem:[%s629 + $0x60] sm:%s621] %v678
                  %v680 = vld [vmem:[%s628 + $0xc4] sm:%s621]
                  %681 = vst [vmem:[%s629 + $0x64] sm:%s621] %v680
                  %v682 = vld [vmem:[%s628 + $0xc8] sm:%s621]
                  %683 = vst [vmem:[%s629 + $0x68] sm:%s621] %v682
                  %v684 = vld [vmem:[%s628 + $0xcc] sm:%s621]
                  %685 = vst [vmem:[%s629 + $0x6c] sm:%s621] %v684
                  %v686 = vld [vmem:[%s628 + $0xe0] sm:%s621]
                  %687 = vst [vmem:[%s629 + $0x70] sm:%s621] %v686
                  %v688 = vld [vmem:[%s628 + $0xe4] sm:%s621]
                  %689 = vst [vmem:[%s629 + $0x74] sm:%s621] %v688
                  %v690 = vld [vmem:[%s628 + $0xe8] sm:%s621]
                  %691 = vst [vmem:[%s629 + $0x78] sm:%s621] %v690
                  %v692 = vld [vmem:[%s628 + $0xec] sm:%s621]
                  %693 = vst [vmem:[%s629 + $0x7c] sm:%s621] %v692
                  %v694 = vld [vmem:[%s628 + $0x100] sm:%s621]
                  %695 = vst [vmem:[%s629 + $0x80] sm:%s621] %v694
                  %v696 = vld [vmem:[%s628 + $0x104] sm:%s621]
                  %697 = vst [vmem:[%s629 + $0x84] sm:%s621] %v696
                  %v698 = vld [vmem:[%s628 + $0x108] sm:%s621]
                  %699 = vst [vmem:[%s629 + $0x88] sm:%s621] %v698
                  %v700 = vld [vmem:[%s628 + $0x10c] sm:%s621]
                  %701 = vst [vmem:[%s629 + $0x8c] sm:%s621] %v700
                  %v702 = vld [vmem:[%s628 + $0x120] sm:%s621]
                  %703 = vst [vmem:[%s629 + $0x90] sm:%s621] %v702
                  %v704 = vld [vmem:[%s628 + $0x124] sm:%s621]
                  %705 = vst [vmem:[%s629 + $0x94] sm:%s621] %v704
                  %v706 = vld [vmem:[%s628 + $0x128] sm:%s621]
                  %707 = vst [vmem:[%s629 + $0x98] sm:%s621] %v706
                  %v708 = vld [vmem:[%s628 + $0x12c] sm:%s621]
                  %709 = vst [vmem:[%s629 + $0x9c] sm:%s621] %v708
                  %v710 = vld [vmem:[%s628 + $0x140] sm:%s621]
                  %711 = vst [vmem:[%s629 + $0xa0] sm:%s621] %v710
                  %v712 = vld [vmem:[%s628 + $0x144] sm:%s621]
                  %713 = vst [vmem:[%s629 + $0xa4] sm:%s621] %v712
                  %v714 = vld [vmem:[%s628 + $0x148] sm:%s621]
                  %715 = vst [vmem:[%s629 + $0xa8] sm:%s621] %v714
                  %v716 = vld [vmem:[%s628 + $0x14c] sm:%s621]
                  %717 = vst [vmem:[%s629 + $0xac] sm:%s621] %v716
                  %v718 = vld [vmem:[%s628 + $0x160] sm:%s621]
                  %719 = vst [vmem:[%s629 + $0xb0] sm:%s621] %v718
                  %v720 = vld [vmem:[%s628 + $0x164] sm:%s621]
                  %721 = vst [vmem:[%s629 + $0xb4] sm:%s621] %v720
                  %v722 = vld [vmem:[%s628 + $0x168] sm:%s621]
                  %723 = vst [vmem:[%s629 + $0xb8] sm:%s621] %v722
                  %v724 = vld [vmem:[%s628 + $0x16c] sm:%s621]
                  %725 = vst [vmem:[%s629 + $0xbc] sm:%s621] %v724
                  %v726 = vld [vmem:[%s628 + $0x180] sm:%s621]
                  %727 = vst [vmem:[%s629 + $0xc0] sm:%s621] %v726
                  %v728 = vld [vmem:[%s628 + $0x184] sm:%s621]
                  %729 = vst [vmem:[%s629 + $0xc4] sm:%s621] %v728
                  %v730 = vld [vmem:[%s628 + $0x188] sm:%s621]
                  %731 = vst [vmem:[%s629 + $0xc8] sm:%s621] %v730
                  %v732 = vld [vmem:[%s628 + $0x18c] sm:%s621]
                  %733 = vst [vmem:[%s629 + $0xcc] sm:%s621] %v732
                  %v734 = vld [vmem:[%s628 + $0x1a0] sm:%s621]
                  %735 = vst [vmem:[%s629 + $0xd0] sm:%s621] %v734
                  %v736 = vld [vmem:[%s628 + $0x1a4] sm:%s621]
                  %737 = vst [vmem:[%s629 + $0xd4] sm:%s621] %v736
                  %v738 = vld [vmem:[%s628 + $0x1a8] sm:%s621]
                  %739 = vst [vmem:[%s629 + $0xd8] sm:%s621] %v738
                  %v740 = vld [vmem:[%s628 + $0x1ac] sm:%s621]
                  %741 = vst [vmem:[%s629 + $0xdc] sm:%s621] %v740
                  %v742 = vld [vmem:[%s628 + $0x1c0] sm:%s621]
                  %743 = vst [vmem:[%s629 + $0xe0] sm:%s621] %v742
                  %v744 = vld [vmem:[%s628 + $0x1c4] sm:%s621]
                  %745 = vst [vmem:[%s629 + $0xe4] sm:%s621] %v744
                  %v746 = vld [vmem:[%s628 + $0x1c8] sm:%s621]
                  %747 = vst [vmem:[%s629 + $0xe8] sm:%s621] %v746
                  %v748 = vld [vmem:[%s628 + $0x1cc] sm:%s621]
                  %749 = vst [vmem:[%s629 + $0xec] sm:%s621] %v748
                  %v750 = vld [vmem:[%s628 + $0x1e0] sm:%s621]
                  %751 = vst [vmem:[%s629 + $0xf0] sm:%s621] %v750
                  %v752 = vld [vmem:[%s628 + $0x1e4] sm:%s621]
                  %753 = vst [vmem:[%s629 + $0xf4] sm:%s621] %v752
                  %v754 = vld [vmem:[%s628 + $0x1e8] sm:%s621]
                  %755 = vst [vmem:[%s629 + $0xf8] sm:%s621] %v754
                  %v756 = vld [vmem:[%s628 + $0x1ec] sm:%s621]
                  %757 = vst [vmem:[%s629 + $0xfc] sm:%s621] %v756
                  %v758 = vld [vmem:[%s628 + $0x200] sm:%s621]
                  %759 = vst [vmem:[%s629 + $0x100] sm:%s621] %v758
                  %v760 = vld [vmem:[%s628 + $0x204] sm:%s621]
                  %761 = vst [vmem:[%s629 + $0x104] sm:%s621] %v760
                  %v762 = vld [vmem:[%s628 + $0x208] sm:%s621]
                  %763 = vst [vmem:[%s629 + $0x108] sm:%s621] %v762
                  %v764 = vld [vmem:[%s628 + $0x20c] sm:%s621]
                  %765 = vst [vmem:[%s629 + $0x10c] sm:%s621] %v764
                  %v766 = vld [vmem:[%s628 + $0x220] sm:%s621]
                  %767 = vst [vmem:[%s629 + $0x110] sm:%s621] %v766
                  %v768 = vld [vmem:[%s628 + $0x224] sm:%s621]
                  %769 = vst [vmem:[%s629 + $0x114] sm:%s621] %v768
                  %v770 = vld [vmem:[%s628 + $0x228] sm:%s621]
                  %771 = vst [vmem:[%s629 + $0x118] sm:%s621] %v770
                  %v772 = vld [vmem:[%s628 + $0x22c] sm:%s621]
                  %773 = vst [vmem:[%s629 + $0x11c] sm:%s621] %v772
                  %v774 = vld [vmem:[%s628 + $0x240] sm:%s621]
                  %775 = vst [vmem:[%s629 + $0x120] sm:%s621] %v774
                  %v776 = vld [vmem:[%s628 + $0x244] sm:%s621]
                  %777 = vst [vmem:[%s629 + $0x124] sm:%s621] %v776
                  %v778 = vld [vmem:[%s628 + $0x248] sm:%s621]
                  %779 = vst [vmem:[%s629 + $0x128] sm:%s621] %v778
                  %v780 = vld [vmem:[%s628 + $0x24c] sm:%s621]
                  %781 = vst [vmem:[%s629 + $0x12c] sm:%s621] %v780
                  %v782 = vld [vmem:[%s628 + $0x260] sm:%s621]
                  %783 = vst [vmem:[%s629 + $0x130] sm:%s621] %v782
                  %v784 = vld [vmem:[%s628 + $0x264] sm:%s621]
                  %785 = vst [vmem:[%s629 + $0x134] sm:%s621] %v784
                  %v786 = vld [vmem:[%s628 + $0x268] sm:%s621]
                  %787 = vst [vmem:[%s629 + $0x138] sm:%s621] %v786
                  %v788 = vld [vmem:[%s628 + $0x26c] sm:%s621]
                  %789 = vst [vmem:[%s629 + $0x13c] sm:%s621] %v788
                  %v790 = vld [vmem:[%s628 + $0x280] sm:%s621]
                  %791 = vst [vmem:[%s629 + $0x140] sm:%s621] %v790
                  %v792 = vld [vmem:[%s628 + $0x284] sm:%s621]
                  %793 = vst [vmem:[%s629 + $0x144] sm:%s621] %v792
                  %v794 = vld [vmem:[%s628 + $0x288] sm:%s621]
                  %795 = vst [vmem:[%s629 + $0x148] sm:%s621] %v794
                  %v796 = vld [vmem:[%s628 + $0x28c] sm:%s621]
                  %797 = vst [vmem:[%s629 + $0x14c] sm:%s621] %v796
                  %v798 = vld [vmem:[%s628 + $0x2a0] sm:%s621]
                  %799 = vst [vmem:[%s629 + $0x150] sm:%s621] %v798
                  %v800 = vld [vmem:[%s628 + $0x2a4] sm:%s621]
                  %801 = vst [vmem:[%s629 + $0x154] sm:%s621] %v800
                  %v802 = vld [vmem:[%s628 + $0x2a8] sm:%s621]
                  %803 = vst [vmem:[%s629 + $0x158] sm:%s621] %v802
                  %v804 = vld [vmem:[%s628 + $0x2ac] sm:%s621]
                  %805 = vst [vmem:[%s629 + $0x15c] sm:%s621] %v804
                  %v806 = vld [vmem:[%s628 + $0x2c0] sm:%s621]
                  %807 = vst [vmem:[%s629 + $0x160] sm:%s621] %v806
                  %v808 = vld [vmem:[%s628 + $0x2c4] sm:%s621]
                  %809 = vst [vmem:[%s629 + $0x164] sm:%s621] %v808
                  %v810 = vld [vmem:[%s628 + $0x2c8] sm:%s621]
                  %811 = vst [vmem:[%s629 + $0x168] sm:%s621] %v810
                  %v812 = vld [vmem:[%s628 + $0x2cc] sm:%s621]
                  %813 = vst [vmem:[%s629 + $0x16c] sm:%s621] %v812
                  %v814 = vld [vmem:[%s628 + $0x2e0] sm:%s621]
                  %815 = vst [vmem:[%s629 + $0x170] sm:%s621] %v814
                  %v816 = vld [vmem:[%s628 + $0x2e4] sm:%s621]
                  %817 = vst [vmem:[%s629 + $0x174] sm:%s621] %v816
                  %v818 = vld [vmem:[%s628 + $0x2e8] sm:%s621]
                  %819 = vst [vmem:[%s629 + $0x178] sm:%s621] %v818
                  %v820 = vld [vmem:[%s628 + $0x2ec] sm:%s621]
                  %821 = vst [vmem:[%s629 + $0x17c] sm:%s621] %v820
                  %v822 = vld [vmem:[%s628 + $0x300] sm:%s621]
                  %823 = vst [vmem:[%s629 + $0x180] sm:%s621] %v822
                  %v824 = vld [vmem:[%s628 + $0x304] sm:%s621]
                  %825 = vst [vmem:[%s629 + $0x184] sm:%s621] %v824
                  %v826 = vld [vmem:[%s628 + $0x308] sm:%s621]
                  %827 = vst [vmem:[%s629 + $0x188] sm:%s621] %v826
                  %v828 = vld [vmem:[%s628 + $0x30c] sm:%s621]
                  %829 = vst [vmem:[%s629 + $0x18c] sm:%s621] %v828
                  %v830 = vld [vmem:[%s628 + $0x320] sm:%s621]
                  %831 = vst [vmem:[%s629 + $0x190] sm:%s621] %v830
                  %v832 = vld [vmem:[%s628 + $0x324] sm:%s621]
                  %833 = vst [vmem:[%s629 + $0x194] sm:%s621] %v832
                  %v834 = vld [vmem:[%s628 + $0x328] sm:%s621]
                  %835 = vst [vmem:[%s629 + $0x198] sm:%s621] %v834
                  %v836 = vld [vmem:[%s628 + $0x32c] sm:%s621]
                  %837 = vst [vmem:[%s629 + $0x19c] sm:%s621] %v836
                  %v838 = vld [vmem:[%s628 + $0x340] sm:%s621]
                  %839 = vst [vmem:[%s629 + $0x1a0] sm:%s621] %v838
                  %v840 = vld [vmem:[%s628 + $0x344] sm:%s621]
                  %841 = vst [vmem:[%s629 + $0x1a4] sm:%s621] %v840
                  %v842 = vld [vmem:[%s628 + $0x348] sm:%s621]
                  %843 = vst [vmem:[%s629 + $0x1a8] sm:%s621] %v842
                  %v844 = vld [vmem:[%s628 + $0x34c] sm:%s621]
                  %845 = vst [vmem:[%s629 + $0x1ac] sm:%s621] %v844
                  %v846 = vld [vmem:[%s628 + $0x360] sm:%s621]
                  %847 = vst [vmem:[%s629 + $0x1b0] sm:%s621] %v846
                  %v848 = vld [vmem:[%s628 + $0x364] sm:%s621]
                  %849 = vst [vmem:[%s629 + $0x1b4] sm:%s621] %v848
                  %v850 = vld [vmem:[%s628 + $0x368] sm:%s621]
                  %851 = vst [vmem:[%s629 + $0x1b8] sm:%s621] %v850
                  %v852 = vld [vmem:[%s628 + $0x36c] sm:%s621]
                  %853 = vst [vmem:[%s629 + $0x1bc] sm:%s621] %v852
                  %v854 = vld [vmem:[%s628 + $0x380] sm:%s621]
                  %855 = vst [vmem:[%s629 + $0x1c0] sm:%s621] %v854
                  %v856 = vld [vmem:[%s628 + $0x384] sm:%s621]
                  %857 = vst [vmem:[%s629 + $0x1c4] sm:%s621] %v856
                  %v858 = vld [vmem:[%s628 + $0x388] sm:%s621]
                  %859 = vst [vmem:[%s629 + $0x1c8] sm:%s621] %v858
                  %v860 = vld [vmem:[%s628 + $0x38c] sm:%s621]
                  %861 = vst [vmem:[%s629 + $0x1cc] sm:%s621] %v860
                  %v862 = vld [vmem:[%s628 + $0x3a0] sm:%s621]
                  %863 = vst [vmem:[%s629 + $0x1d0] sm:%s621] %v862
                  %v864 = vld [vmem:[%s628 + $0x3a4] sm:%s621]
                  %865 = vst [vmem:[%s629 + $0x1d4] sm:%s621] %v864
                  %v866 = vld [vmem:[%s628 + $0x3a8] sm:%s621]
                  %867 = vst [vmem:[%s629 + $0x1d8] sm:%s621] %v866
                  %v868 = vld [vmem:[%s628 + $0x3ac] sm:%s621]
                  %869 = vst [vmem:[%s629 + $0x1dc] sm:%s621] %v868
                  %v870 = vld [vmem:[%s628 + $0x3c0] sm:%s621]
                  %871 = vst [vmem:[%s629 + $0x1e0] sm:%s621] %v870
                  %v872 = vld [vmem:[%s628 + $0x3c4] sm:%s621]
                  %873 = vst [vmem:[%s629 + $0x1e4] sm:%s621] %v872
                  %v874 = vld [vmem:[%s628 + $0x3c8] sm:%s621]
                  %875 = vst [vmem:[%s629 + $0x1e8] sm:%s621] %v874
                  %v876 = vld [vmem:[%s628 + $0x3cc] sm:%s621]
                  %877 = vst [vmem:[%s629 + $0x1ec] sm:%s621] %v876
                  %v878 = vld [vmem:[%s628 + $0x3e0] sm:%s621]
                  %879 = vst [vmem:[%s629 + $0x1f0] sm:%s621] %v878
                  %v880 = vld [vmem:[%s628 + $0x3e4] sm:%s621]
                  %881 = vst [vmem:[%s629 + $0x1f4] sm:%s621] %v880
                  %v882 = vld [vmem:[%s628 + $0x3e8] sm:%s621]
                  %883 = vst [vmem:[%s629 + $0x1f8] sm:%s621] %v882
                  %v884 = vld [vmem:[%s628 + $0x3ec] sm:%s621]
                  %885 = vst [vmem:[%s629 + $0x1fc] sm:%s621] %v884
                $region95: #{medium_net_forward.1} parent=82 // loop_footer
                  %s627 = sadd.s32 1, %s623
                $region96: #{medium_net_forward.1} parent=82 // loop_footer_branch
                  %622 = sbr.rel target = $region92
                $region97: #{medium_net_forward.1} parent=82 // loop_exit
                  _
              $region83: #{medium_net_forward.1} parent=67 // pred_fallthru
                _
            $region68: #{medium_net_forward.1} parent=63 // pred_fallthru
              _
            // Predicated region
            $region69: #{medium_net_forward.1} parent=63 // pred_check
              _
            $region70: #{medium_net_forward.1} parent=63 // pred_check_branch
              %343 = sbr.rel (0) target = $region72
            $region71: #{medium_net_forward.1} parent=63 // pred_region
              %s345 = ssub.s32 16, 1
              loop: start=0, step=1, limit=1
              $region73: #{medium_net_forward.1} parent=71 // loop_pre_header
                _
              $region74: #{medium_net_forward.1} parent=71 // loop_header
                %s347 = sphi 0, %s351
                %p348 = scmp.ge.s32.totalorder %s347, 1
                %s352 = sphi %s337, %s337
                %s353 = sphi %s334, %s334
              $region75: #{medium_net_forward.1} parent=71 // loop_header_branch
                %350 = sbr.rel (%p348) target = $region79
              $region76: #{medium_net_forward.1} parent=71 // loop_body
                %v354 = vld [vmem:[%s352] sm:%s345]
                %355 = vst [vmem:[%s353] sm:%s345] %v354
                %v356 = vld [vmem:[%s352 + $0x4] sm:%s345]
                %357 = vst [vmem:[%s353 + $0x4] sm:%s345] %v356
                %v358 = vld [vmem:[%s352 + $0x8] sm:%s345]
                %359 = vst [vmem:[%s353 + $0x8] sm:%s345] %v358
                %v360 = vld [vmem:[%s352 + $0xc] sm:%s345]
                %361 = vst [vmem:[%s353 + $0xc] sm:%s345] %v360
                %v362 = vld [vmem:[%s352 + $0x20] sm:%s345]
                %363 = vst [vmem:[%s353 + $0x10] sm:%s345] %v362
                %v364 = vld [vmem:[%s352 + $0x24] sm:%s345]
                %365 = vst [vmem:[%s353 + $0x14] sm:%s345] %v364
                %v366 = vld [vmem:[%s352 + $0x28] sm:%s345]
                %367 = vst [vmem:[%s353 + $0x18] sm:%s345] %v366
                %v368 = vld [vmem:[%s352 + $0x2c] sm:%s345]
                %369 = vst [vmem:[%s353 + $0x1c] sm:%s345] %v368
                %v370 = vld [vmem:[%s352 + $0x40] sm:%s345]
                %371 = vst [vmem:[%s353 + $0x20] sm:%s345] %v370
                %v372 = vld [vmem:[%s352 + $0x44] sm:%s345]
                %373 = vst [vmem:[%s353 + $0x24] sm:%s345] %v372
                %v374 = vld [vmem:[%s352 + $0x48] sm:%s345]
                %375 = vst [vmem:[%s353 + $0x28] sm:%s345] %v374
                %v376 = vld [vmem:[%s352 + $0x4c] sm:%s345]
                %377 = vst [vmem:[%s353 + $0x2c] sm:%s345] %v376
                %v378 = vld [vmem:[%s352 + $0x60] sm:%s345]
                %379 = vst [vmem:[%s353 + $0x30] sm:%s345] %v378
                %v380 = vld [vmem:[%s352 + $0x64] sm:%s345]
                %381 = vst [vmem:[%s353 + $0x34] sm:%s345] %v380
                %v382 = vld [vmem:[%s352 + $0x68] sm:%s345]
                %383 = vst [vmem:[%s353 + $0x38] sm:%s345] %v382
                %v384 = vld [vmem:[%s352 + $0x6c] sm:%s345]
                %385 = vst [vmem:[%s353 + $0x3c] sm:%s345] %v384
                %v386 = vld [vmem:[%s352 + $0x80] sm:%s345]
                %387 = vst [vmem:[%s353 + $0x40] sm:%s345] %v386
                %v388 = vld [vmem:[%s352 + $0x84] sm:%s345]
                %389 = vst [vmem:[%s353 + $0x44] sm:%s345] %v388
                %v390 = vld [vmem:[%s352 + $0x88] sm:%s345]
                %391 = vst [vmem:[%s353 + $0x48] sm:%s345] %v390
                %v392 = vld [vmem:[%s352 + $0x8c] sm:%s345]
                %393 = vst [vmem:[%s353 + $0x4c] sm:%s345] %v392
                %v394 = vld [vmem:[%s352 + $0xa0] sm:%s345]
                %395 = vst [vmem:[%s353 + $0x50] sm:%s345] %v394
                %v396 = vld [vmem:[%s352 + $0xa4] sm:%s345]
                %397 = vst [vmem:[%s353 + $0x54] sm:%s345] %v396
                %v398 = vld [vmem:[%s352 + $0xa8] sm:%s345]
                %399 = vst [vmem:[%s353 + $0x58] sm:%s345] %v398
                %v400 = vld [vmem:[%s352 + $0xac] sm:%s345]
                %401 = vst [vmem:[%s353 + $0x5c] sm:%s345] %v400
                %v402 = vld [vmem:[%s352 + $0xc0] sm:%s345]
                %403 = vst [vmem:[%s353 + $0x60] sm:%s345] %v402
                %v404 = vld [vmem:[%s352 + $0xc4] sm:%s345]
                %405 = vst [vmem:[%s353 + $0x64] sm:%s345] %v404
                %v406 = vld [vmem:[%s352 + $0xc8] sm:%s345]
                %407 = vst [vmem:[%s353 + $0x68] sm:%s345] %v406
                %v408 = vld [vmem:[%s352 + $0xcc] sm:%s345]
                %409 = vst [vmem:[%s353 + $0x6c] sm:%s345] %v408
                %v410 = vld [vmem:[%s352 + $0xe0] sm:%s345]
                %411 = vst [vmem:[%s353 + $0x70] sm:%s345] %v410
                %v412 = vld [vmem:[%s352 + $0xe4] sm:%s345]
                %413 = vst [vmem:[%s353 + $0x74] sm:%s345] %v412
                %v414 = vld [vmem:[%s352 + $0xe8] sm:%s345]
                %415 = vst [vmem:[%s353 + $0x78] sm:%s345] %v414
                %v416 = vld [vmem:[%s352 + $0xec] sm:%s345]
                %417 = vst [vmem:[%s353 + $0x7c] sm:%s345] %v416
                %v418 = vld [vmem:[%s352 + $0x100] sm:%s345]
                %419 = vst [vmem:[%s353 + $0x80] sm:%s345] %v418
                %v420 = vld [vmem:[%s352 + $0x104] sm:%s345]
                %421 = vst [vmem:[%s353 + $0x84] sm:%s345] %v420
                %v422 = vld [vmem:[%s352 + $0x108] sm:%s345]
                %423 = vst [vmem:[%s353 + $0x88] sm:%s345] %v422
                %v424 = vld [vmem:[%s352 + $0x10c] sm:%s345]
                %425 = vst [vmem:[%s353 + $0x8c] sm:%s345] %v424
                %v426 = vld [vmem:[%s352 + $0x120] sm:%s345]
                %427 = vst [vmem:[%s353 + $0x90] sm:%s345] %v426
                %v428 = vld [vmem:[%s352 + $0x124] sm:%s345]
                %429 = vst [vmem:[%s353 + $0x94] sm:%s345] %v428
                %v430 = vld [vmem:[%s352 + $0x128] sm:%s345]
                %431 = vst [vmem:[%s353 + $0x98] sm:%s345] %v430
                %v432 = vld [vmem:[%s352 + $0x12c] sm:%s345]
                %433 = vst [vmem:[%s353 + $0x9c] sm:%s345] %v432
                %v434 = vld [vmem:[%s352 + $0x140] sm:%s345]
                %435 = vst [vmem:[%s353 + $0xa0] sm:%s345] %v434
                %v436 = vld [vmem:[%s352 + $0x144] sm:%s345]
                %437 = vst [vmem:[%s353 + $0xa4] sm:%s345] %v436
                %v438 = vld [vmem:[%s352 + $0x148] sm:%s345]
                %439 = vst [vmem:[%s353 + $0xa8] sm:%s345] %v438
                %v440 = vld [vmem:[%s352 + $0x14c] sm:%s345]
                %441 = vst [vmem:[%s353 + $0xac] sm:%s345] %v440
                %v442 = vld [vmem:[%s352 + $0x160] sm:%s345]
                %443 = vst [vmem:[%s353 + $0xb0] sm:%s345] %v442
                %v444 = vld [vmem:[%s352 + $0x164] sm:%s345]
                %445 = vst [vmem:[%s353 + $0xb4] sm:%s345] %v444
                %v446 = vld [vmem:[%s352 + $0x168] sm:%s345]
                %447 = vst [vmem:[%s353 + $0xb8] sm:%s345] %v446
                %v448 = vld [vmem:[%s352 + $0x16c] sm:%s345]
                %449 = vst [vmem:[%s353 + $0xbc] sm:%s345] %v448
                %v450 = vld [vmem:[%s352 + $0x180] sm:%s345]
                %451 = vst [vmem:[%s353 + $0xc0] sm:%s345] %v450
                %v452 = vld [vmem:[%s352 + $0x184] sm:%s345]
                %453 = vst [vmem:[%s353 + $0xc4] sm:%s345] %v452
                %v454 = vld [vmem:[%s352 + $0x188] sm:%s345]
                %455 = vst [vmem:[%s353 + $0xc8] sm:%s345] %v454
                %v456 = vld [vmem:[%s352 + $0x18c] sm:%s345]
                %457 = vst [vmem:[%s353 + $0xcc] sm:%s345] %v456
                %v458 = vld [vmem:[%s352 + $0x1a0] sm:%s345]
                %459 = vst [vmem:[%s353 + $0xd0] sm:%s345] %v458
                %v460 = vld [vmem:[%s352 + $0x1a4] sm:%s345]
                %461 = vst [vmem:[%s353 + $0xd4] sm:%s345] %v460
                %v462 = vld [vmem:[%s352 + $0x1a8] sm:%s345]
                %463 = vst [vmem:[%s353 + $0xd8] sm:%s345] %v462
                %v464 = vld [vmem:[%s352 + $0x1ac] sm:%s345]
                %465 = vst [vmem:[%s353 + $0xdc] sm:%s345] %v464
                %v466 = vld [vmem:[%s352 + $0x1c0] sm:%s345]
                %467 = vst [vmem:[%s353 + $0xe0] sm:%s345] %v466
                %v468 = vld [vmem:[%s352 + $0x1c4] sm:%s345]
                %469 = vst [vmem:[%s353 + $0xe4] sm:%s345] %v468
                %v470 = vld [vmem:[%s352 + $0x1c8] sm:%s345]
                %471 = vst [vmem:[%s353 + $0xe8] sm:%s345] %v470
                %v472 = vld [vmem:[%s352 + $0x1cc] sm:%s345]
                %473 = vst [vmem:[%s353 + $0xec] sm:%s345] %v472
                %v474 = vld [vmem:[%s352 + $0x1e0] sm:%s345]
                %475 = vst [vmem:[%s353 + $0xf0] sm:%s345] %v474
                %v476 = vld [vmem:[%s352 + $0x1e4] sm:%s345]
                %477 = vst [vmem:[%s353 + $0xf4] sm:%s345] %v476
                %v478 = vld [vmem:[%s352 + $0x1e8] sm:%s345]
                %479 = vst [vmem:[%s353 + $0xf8] sm:%s345] %v478
                %v480 = vld [vmem:[%s352 + $0x1ec] sm:%s345]
                %481 = vst [vmem:[%s353 + $0xfc] sm:%s345] %v480
                %v482 = vld [vmem:[%s352 + $0x200] sm:%s345]
                %483 = vst [vmem:[%s353 + $0x100] sm:%s345] %v482
                %v484 = vld [vmem:[%s352 + $0x204] sm:%s345]
                %485 = vst [vmem:[%s353 + $0x104] sm:%s345] %v484
                %v486 = vld [vmem:[%s352 + $0x208] sm:%s345]
                %487 = vst [vmem:[%s353 + $0x108] sm:%s345] %v486
                %v488 = vld [vmem:[%s352 + $0x20c] sm:%s345]
                %489 = vst [vmem:[%s353 + $0x10c] sm:%s345] %v488
                %v490 = vld [vmem:[%s352 + $0x220] sm:%s345]
                %491 = vst [vmem:[%s353 + $0x110] sm:%s345] %v490
                %v492 = vld [vmem:[%s352 + $0x224] sm:%s345]
                %493 = vst [vmem:[%s353 + $0x114] sm:%s345] %v492
                %v494 = vld [vmem:[%s352 + $0x228] sm:%s345]
                %495 = vst [vmem:[%s353 + $0x118] sm:%s345] %v494
                %v496 = vld [vmem:[%s352 + $0x22c] sm:%s345]
                %497 = vst [vmem:[%s353 + $0x11c] sm:%s345] %v496
                %v498 = vld [vmem:[%s352 + $0x240] sm:%s345]
                %499 = vst [vmem:[%s353 + $0x120] sm:%s345] %v498
                %v500 = vld [vmem:[%s352 + $0x244] sm:%s345]
                %501 = vst [vmem:[%s353 + $0x124] sm:%s345] %v500
                %v502 = vld [vmem:[%s352 + $0x248] sm:%s345]
                %503 = vst [vmem:[%s353 + $0x128] sm:%s345] %v502
                %v504 = vld [vmem:[%s352 + $0x24c] sm:%s345]
                %505 = vst [vmem:[%s353 + $0x12c] sm:%s345] %v504
                %v506 = vld [vmem:[%s352 + $0x260] sm:%s345]
                %507 = vst [vmem:[%s353 + $0x130] sm:%s345] %v506
                %v508 = vld [vmem:[%s352 + $0x264] sm:%s345]
                %509 = vst [vmem:[%s353 + $0x134] sm:%s345] %v508
                %v510 = vld [vmem:[%s352 + $0x268] sm:%s345]
                %511 = vst [vmem:[%s353 + $0x138] sm:%s345] %v510
                %v512 = vld [vmem:[%s352 + $0x26c] sm:%s345]
                %513 = vst [vmem:[%s353 + $0x13c] sm:%s345] %v512
                %v514 = vld [vmem:[%s352 + $0x280] sm:%s345]
                %515 = vst [vmem:[%s353 + $0x140] sm:%s345] %v514
                %v516 = vld [vmem:[%s352 + $0x284] sm:%s345]
                %517 = vst [vmem:[%s353 + $0x144] sm:%s345] %v516
                %v518 = vld [vmem:[%s352 + $0x288] sm:%s345]
                %519 = vst [vmem:[%s353 + $0x148] sm:%s345] %v518
                %v520 = vld [vmem:[%s352 + $0x28c] sm:%s345]
                %521 = vst [vmem:[%s353 + $0x14c] sm:%s345] %v520
                %v522 = vld [vmem:[%s352 + $0x2a0] sm:%s345]
                %523 = vst [vmem:[%s353 + $0x150] sm:%s345] %v522
                %v524 = vld [vmem:[%s352 + $0x2a4] sm:%s345]
                %525 = vst [vmem:[%s353 + $0x154] sm:%s345] %v524
                %v526 = vld [vmem:[%s352 + $0x2a8] sm:%s345]
                %527 = vst [vmem:[%s353 + $0x158] sm:%s345] %v526
                %v528 = vld [vmem:[%s352 + $0x2ac] sm:%s345]
                %529 = vst [vmem:[%s353 + $0x15c] sm:%s345] %v528
                %v530 = vld [vmem:[%s352 + $0x2c0] sm:%s345]
                %531 = vst [vmem:[%s353 + $0x160] sm:%s345] %v530
                %v532 = vld [vmem:[%s352 + $0x2c4] sm:%s345]
                %533 = vst [vmem:[%s353 + $0x164] sm:%s345] %v532
                %v534 = vld [vmem:[%s352 + $0x2c8] sm:%s345]
                %535 = vst [vmem:[%s353 + $0x168] sm:%s345] %v534
                %v536 = vld [vmem:[%s352 + $0x2cc] sm:%s345]
                %537 = vst [vmem:[%s353 + $0x16c] sm:%s345] %v536
                %v538 = vld [vmem:[%s352 + $0x2e0] sm:%s345]
                %539 = vst [vmem:[%s353 + $0x170] sm:%s345] %v538
                %v540 = vld [vmem:[%s352 + $0x2e4] sm:%s345]
                %541 = vst [vmem:[%s353 + $0x174] sm:%s345] %v540
                %v542 = vld [vmem:[%s352 + $0x2e8] sm:%s345]
                %543 = vst [vmem:[%s353 + $0x178] sm:%s345] %v542
                %v544 = vld [vmem:[%s352 + $0x2ec] sm:%s345]
                %545 = vst [vmem:[%s353 + $0x17c] sm:%s345] %v544
                %v546 = vld [vmem:[%s352 + $0x300] sm:%s345]
                %547 = vst [vmem:[%s353 + $0x180] sm:%s345] %v546
                %v548 = vld [vmem:[%s352 + $0x304] sm:%s345]
                %549 = vst [vmem:[%s353 + $0x184] sm:%s345] %v548
                %v550 = vld [vmem:[%s352 + $0x308] sm:%s345]
                %551 = vst [vmem:[%s353 + $0x188] sm:%s345] %v550
                %v552 = vld [vmem:[%s352 + $0x30c] sm:%s345]
                %553 = vst [vmem:[%s353 + $0x18c] sm:%s345] %v552
                %v554 = vld [vmem:[%s352 + $0x320] sm:%s345]
                %555 = vst [vmem:[%s353 + $0x190] sm:%s345] %v554
                %v556 = vld [vmem:[%s352 + $0x324] sm:%s345]
                %557 = vst [vmem:[%s353 + $0x194] sm:%s345] %v556
                %v558 = vld [vmem:[%s352 + $0x328] sm:%s345]
                %559 = vst [vmem:[%s353 + $0x198] sm:%s345] %v558
                %v560 = vld [vmem:[%s352 + $0x32c] sm:%s345]
                %561 = vst [vmem:[%s353 + $0x19c] sm:%s345] %v560
                %v562 = vld [vmem:[%s352 + $0x340] sm:%s345]
                %563 = vst [vmem:[%s353 + $0x1a0] sm:%s345] %v562
                %v564 = vld [vmem:[%s352 + $0x344] sm:%s345]
                %565 = vst [vmem:[%s353 + $0x1a4] sm:%s345] %v564
                %v566 = vld [vmem:[%s352 + $0x348] sm:%s345]
                %567 = vst [vmem:[%s353 + $0x1a8] sm:%s345] %v566
                %v568 = vld [vmem:[%s352 + $0x34c] sm:%s345]
                %569 = vst [vmem:[%s353 + $0x1ac] sm:%s345] %v568
                %v570 = vld [vmem:[%s352 + $0x360] sm:%s345]
                %571 = vst [vmem:[%s353 + $0x1b0] sm:%s345] %v570
                %v572 = vld [vmem:[%s352 + $0x364] sm:%s345]
                %573 = vst [vmem:[%s353 + $0x1b4] sm:%s345] %v572
                %v574 = vld [vmem:[%s352 + $0x368] sm:%s345]
                %575 = vst [vmem:[%s353 + $0x1b8] sm:%s345] %v574
                %v576 = vld [vmem:[%s352 + $0x36c] sm:%s345]
                %577 = vst [vmem:[%s353 + $0x1bc] sm:%s345] %v576
                %v578 = vld [vmem:[%s352 + $0x380] sm:%s345]
                %579 = vst [vmem:[%s353 + $0x1c0] sm:%s345] %v578
                %v580 = vld [vmem:[%s352 + $0x384] sm:%s345]
                %581 = vst [vmem:[%s353 + $0x1c4] sm:%s345] %v580
                %v582 = vld [vmem:[%s352 + $0x388] sm:%s345]
                %583 = vst [vmem:[%s353 + $0x1c8] sm:%s345] %v582
                %v584 = vld [vmem:[%s352 + $0x38c] sm:%s345]
                %585 = vst [vmem:[%s353 + $0x1cc] sm:%s345] %v584
                %v586 = vld [vmem:[%s352 + $0x3a0] sm:%s345]
                %587 = vst [vmem:[%s353 + $0x1d0] sm:%s345] %v586
                %v588 = vld [vmem:[%s352 + $0x3a4] sm:%s345]
                %589 = vst [vmem:[%s353 + $0x1d4] sm:%s345] %v588
                %v590 = vld [vmem:[%s352 + $0x3a8] sm:%s345]
                %591 = vst [vmem:[%s353 + $0x1d8] sm:%s345] %v590
                %v592 = vld [vmem:[%s352 + $0x3ac] sm:%s345]
                %593 = vst [vmem:[%s353 + $0x1dc] sm:%s345] %v592
                %v594 = vld [vmem:[%s352 + $0x3c0] sm:%s345]
                %595 = vst [vmem:[%s353 + $0x1e0] sm:%s345] %v594
                %v596 = vld [vmem:[%s352 + $0x3c4] sm:%s345]
                %597 = vst [vmem:[%s353 + $0x1e4] sm:%s345] %v596
                %v598 = vld [vmem:[%s352 + $0x3c8] sm:%s345]
                %599 = vst [vmem:[%s353 + $0x1e8] sm:%s345] %v598
                %v600 = vld [vmem:[%s352 + $0x3cc] sm:%s345]
                %601 = vst [vmem:[%s353 + $0x1ec] sm:%s345] %v600
                %v602 = vld [vmem:[%s352 + $0x3e0] sm:%s345]
                %603 = vst [vmem:[%s353 + $0x1f0] sm:%s345] %v602
                %v604 = vld [vmem:[%s352 + $0x3e4] sm:%s345]
                %605 = vst [vmem:[%s353 + $0x1f4] sm:%s345] %v604
                %v606 = vld [vmem:[%s352 + $0x3e8] sm:%s345]
                %607 = vst [vmem:[%s353 + $0x1f8] sm:%s345] %v606
                %v608 = vld [vmem:[%s352 + $0x3ec] sm:%s345]
                %609 = vst [vmem:[%s353 + $0x1fc] sm:%s345] %v608
              $region77: #{medium_net_forward.1} parent=71 // loop_footer
                %s351 = sadd.s32 1, %s347
              $region78: #{medium_net_forward.1} parent=71 // loop_footer_branch
                %346 = sbr.rel target = $region74
              $region79: #{medium_net_forward.1} parent=71 // loop_exit
                _
            $region72: #{medium_net_forward.1} parent=63 // pred_fallthru
              _
          $region64: #{medium_net_forward.1} parent=59 // pred_fallthru
            _
          %886 = vnop
        $region60: #{medium_net_forward.1} parent=55 // pred_fallthru
          _
      $region56: #{medium_net_forward.1} parent=5 // pred_fallthru
        _
      %p887 = scmp.le.s32.totalorder 1, %s17
      %p888 = scmp.lt.s32.totalorder %s17, 3
      %p889 = pnand %p887, %p888
      %p890 = pneg %p889
      // Predicated region
      $region98: #{medium_net_forward.1} parent=5 // pred_check
        _
      $region99: #{medium_net_forward.1} parent=5 // pred_check_branch
        %892 = sbr.rel (%p889) target = $region101
      $region100: #{medium_net_forward.1} parent=5 // pred_region
        %s893 = ssub.s32 %s17, 1
        %s894 = sand.u32 %s30, 1
        %s895 = sand.u32 %s30, 1
        %s896 = smul.addr %s895, 512
        %s897 = scalar_lea.vmem [#allocation2], %s896
        // Predicated region
        $region102: #{medium_net_forward.1} parent=100 // pred_check
          %p898 = pneg %p43
        $region103: #{medium_net_forward.1} parent=100 // pred_check_branch
          %900 = sbr.rel (%p898) target = $region105
        $region104: #{medium_net_forward.1} parent=100 // pred_region
          _
        $region105: #{medium_net_forward.1} parent=100 // pred_fallthru
          _
        %s901 = sand.u32 %s30, 1
        %s902 = sand.u32 %s30, 1
        %s903 = smul.addr %s902, 512
        %s904 = scalar_lea.vmem [#allocation2], %s903
        %p905 = pneg %p43
        %p906 = pneg %p40
        %p907 = pneg %p64
        %p908 = pneg %p61
        %p909 = pneg %p85
        %p910 = pneg %p82
        %p911 = pneg %p106
        %p912 = pneg %p103
        %p913 = pneg %p127
        %p914 = pneg %p124
        %p915 = pneg %p148
        %p916 = pneg %p145
        %p917 = pneg %p169
        %p918 = pneg %p166
        %p919 = pneg %p190
        %p920 = pneg %p187
        %p921 = pneg %p211
        %p922 = pneg %p208
        %p923 = pneg %p232
        %p924 = pneg %p229
        %p925 = pneg %p253
        %p926 = pneg %p250
        %p927 = pneg %p279
        %p928 = pneg %p276
        %s929 = smul.u32 4, %s22
        %p930 = scmp.lt.s32.totalorder %s929, 7
        %s931 = scalar_select %p930, %s929, 7
        %s932 = smul.addr %s931, 8
        %s933 = scalar_lea.vmem %s11, %s932
        %s934 = smul.u32 4, %s22
        %s935 = smul.u32 4, %s22
        %p936 = scmp.lt.s32.totalorder %s935, 7
        %s937 = scalar_select %p936, %s935, 7
        %s938 = smul.addr %s937, 8
        %s939 = scalar_lea.vmem %s11, %s938
        %s940 = smul.u32 4, %s22
        %v941 = vld [vmem:[%s2] sm:$0x1]
        %v942 = vld [vmem:[%s4] sm:$0x1]
        %v943 = vld [vmem:[%s6] sm:$0x1]
        %v944 = vld [vmem:[%s8] sm:$0x1]
        %v945 = vld [vmem:[%s10] sm:$0x1]
        %v946 = vld [vmem:[%s897] sm:$0xf]
        %v947 = vld [vmem:[%s897 + $0x4] sm:$0xf]
        %v948 = vld [vmem:[%s897 + $0x8] sm:$0xf]
        %v949 = vld [vmem:[%s897 + $0xc] sm:$0xf]
        %v950 = vld [vmem:[%s897 + $0x10] sm:$0xf]
        %v951 = vld [vmem:[%s897 + $0x14] sm:$0xf]
        %v952 = vld [vmem:[%s897 + $0x18] sm:$0xf]
        %v953 = vld [vmem:[%s897 + $0x1c] sm:$0xf]
        %v954 = vld [vmem:[%s897 + $0x20] sm:$0xf]
        %v955 = vld [vmem:[%s897 + $0x24] sm:$0xf]
        %v956 = vld [vmem:[%s897 + $0x28] sm:$0xf]
        %v957 = vld [vmem:[%s897 + $0x2c] sm:$0xf]
        %v958 = vld [vmem:[%s897 + $0x30] sm:$0xf]
        %v959 = vld [vmem:[%s897 + $0x34] sm:$0xf]
        %v960 = vld [vmem:[%s897 + $0x38] sm:$0xf]
        %v961 = vld [vmem:[%s897 + $0x3c] sm:$0xf]
        %v962 = vld [vmem:[%s897 + $0x40] sm:$0xf]
        %v963 = vld [vmem:[%s897 + $0x44] sm:$0xf]
        %v964 = vld [vmem:[%s897 + $0x48] sm:$0xf]
        %v965 = vld [vmem:[%s897 + $0x4c] sm:$0xf]
        %v966 = vld [vmem:[%s897 + $0x50] sm:$0xf]
        %v967 = vld [vmem:[%s897 + $0x54] sm:$0xf]
        %v968 = vld [vmem:[%s897 + $0x58] sm:$0xf]
        %v969 = vld [vmem:[%s897 + $0x5c] sm:$0xf]
        %v970 = vld [vmem:[%s897 + $0x60] sm:$0xf]
        %v971 = vld [vmem:[%s897 + $0x64] sm:$0xf]
        %v972 = vld [vmem:[%s897 + $0x68] sm:$0xf]
        %v973 = vld [vmem:[%s897 + $0x6c] sm:$0xf]
        %s974 = scalar_lea.vmem %s897, 128 [#allocation2]
        %v975 = vld [vmem:[%s974] sm:$0xf]
        %v976 = vld [vmem:[%s974 + $0x4] sm:$0xf]
        %v977 = vld [vmem:[%s974 + $0x8] sm:$0xf]
        %v978 = vld [vmem:[%s974 + $0xc] sm:$0xf]
        %v979 = vld [vmem:[%s974 + $0x10] sm:$0xf]
        %v980 = vld [vmem:[%s974 + $0x14] sm:$0xf]
        %v981 = vld [vmem:[%s974 + $0x18] sm:$0xf]
        %v982 = vld [vmem:[%s974 + $0x1c] sm:$0xf]
        %v983 = vld [vmem:[%s974 + $0x20] sm:$0xf]
        %v984 = vld [vmem:[%s974 + $0x24] sm:$0xf]
        %v985 = vld [vmem:[%s974 + $0x28] sm:$0xf]
        %v986 = vld [vmem:[%s974 + $0x2c] sm:$0xf]
        %v987 = vld [vmem:[%s974 + $0x30] sm:$0xf]
        %v988 = vld [vmem:[%s974 + $0x34] sm:$0xf]
        %v989 = vld [vmem:[%s974 + $0x38] sm:$0xf]
        %v990 = vld [vmem:[%s974 + $0x3c] sm:$0xf]
        %v991 = vld [vmem:[%s974 + $0x40] sm:$0xf]
        %v992 = vld [vmem:[%s974 + $0x44] sm:$0xf]
        %v993 = vld [vmem:[%s974 + $0x48] sm:$0xf]
        %v994 = vld [vmem:[%s974 + $0x4c] sm:$0xf]
        %v995 = vld [vmem:[%s974 + $0x50] sm:$0xf]
        %v996 = vld [vmem:[%s974 + $0x54] sm:$0xf]
        %v997 = vld [vmem:[%s974 + $0x58] sm:$0xf]
        %v998 = vld [vmem:[%s974 + $0x5c] sm:$0xf]
        %v999 = vld [vmem:[%s974 + $0x60] sm:$0xf]
        %v1000 = vld [vmem:[%s974 + $0x64] sm:$0xf]
        %v1001 = vld [vmem:[%s974 + $0x68] sm:$0xf]
        %v1002 = vld [vmem:[%s974 + $0x6c] sm:$0xf]
        %s1003 = scalar_lea.vmem %s897, 256 [#allocation2]
        %v1004 = vld [vmem:[%s1003] sm:$0xf]
        %v1005 = vld [vmem:[%s1003 + $0x4] sm:$0xf]
        %v1006 = vld [vmem:[%s1003 + $0x8] sm:$0xf]
        %v1007 = vld [vmem:[%s1003 + $0xc] sm:$0xf]
        %v1008 = vld [vmem:[%s1003 + $0x10] sm:$0xf]
        %v1009 = vld [vmem:[%s1003 + $0x14] sm:$0xf]
        %v1010 = vld [vmem:[%s1003 + $0x18] sm:$0xf]
        %v1011 = vld [vmem:[%s1003 + $0x1c] sm:$0xf]
        %v1012 = vld [vmem:[%s1003 + $0x20] sm:$0xf]
        %v1013 = vld [vmem:[%s1003 + $0x24] sm:$0xf]
        %v1014 = vld [vmem:[%s1003 + $0x28] sm:$0xf]
        %v1015 = vld [vmem:[%s1003 + $0x2c] sm:$0xf]
        %v1016 = vld [vmem:[%s1003 + $0x30] sm:$0xf]
        %v1017 = vld [vmem:[%s1003 + $0x34] sm:$0xf]
        %v1018 = vld [vmem:[%s1003 + $0x38] sm:$0xf]
        %v1019 = vld [vmem:[%s1003 + $0x3c] sm:$0xf]
        %v1020 = vld [vmem:[%s1003 + $0x40] sm:$0xf]
        %v1021 = vld [vmem:[%s1003 + $0x44] sm:$0xf]
        %v1022 = vld [vmem:[%s1003 + $0x48] sm:$0xf]
        %v1023 = vld [vmem:[%s1003 + $0x4c] sm:$0xf]
        %v1024 = vld [vmem:[%s1003 + $0x50] sm:$0xf]
        %v1025 = vld [vmem:[%s1003 + $0x54] sm:$0xf]
        %v1026 = vld [vmem:[%s1003 + $0x58] sm:$0xf]
        %v1027 = vld [vmem:[%s1003 + $0x5c] sm:$0xf]
        %v1028 = vld [vmem:[%s1003 + $0x60] sm:$0xf]
        %v1029 = vld [vmem:[%s1003 + $0x64] sm:$0xf]
        %v1030 = vld [vmem:[%s1003 + $0x68] sm:$0xf]
        %v1031 = vld [vmem:[%s1003 + $0x6c] sm:$0xf]
        %s1032 = scalar_lea.vmem %s897, 384 [#allocation2]
        %v1033 = vld [vmem:[%s1032] sm:$0xf]
        %v1034 = vld [vmem:[%s1032 + $0x4] sm:$0xf]
        %v1035 = vld [vmem:[%s1032 + $0x8] sm:$0xf]
        %v1036 = vld [vmem:[%s1032 + $0xc] sm:$0xf]
        %v1037 = vld [vmem:[%s1032 + $0x10] sm:$0xf]
        %v1038 = vld [vmem:[%s1032 + $0x14] sm:$0xf]
        %v1039 = vld [vmem:[%s1032 + $0x18] sm:$0xf]
        %v1040 = vld [vmem:[%s1032 + $0x1c] sm:$0xf]
        %v1041 = vld [vmem:[%s1032 + $0x20] sm:$0xf]
        %v1042 = vld [vmem:[%s1032 + $0x24] sm:$0xf]
        %v1043 = vld [vmem:[%s1032 + $0x28] sm:$0xf]
        %v1044 = vld [vmem:[%s1032 + $0x2c] sm:$0xf]
        %v1045 = vld [vmem:[%s1032 + $0x30] sm:$0xf]
        %v1046 = vld [vmem:[%s1032 + $0x34] sm:$0xf]
        %v1047 = vld [vmem:[%s1032 + $0x38] sm:$0xf]
        %v1048 = vld [vmem:[%s1032 + $0x3c] sm:$0xf]
        %v1049 = vld [vmem:[%s1032 + $0x40] sm:$0xf]
        %v1050 = vld [vmem:[%s1032 + $0x44] sm:$0xf]
        %v1051 = vld [vmem:[%s1032 + $0x48] sm:$0xf]
        %v1052 = vld [vmem:[%s1032 + $0x4c] sm:$0xf]
        %v1053 = vld [vmem:[%s1032 + $0x50] sm:$0xf]
        %v1054 = vld [vmem:[%s1032 + $0x54] sm:$0xf]
        %v1055 = vld [vmem:[%s1032 + $0x58] sm:$0xf]
        %v1056 = vld [vmem:[%s1032 + $0x5c] sm:$0xf]
        %v1057 = vld [vmem:[%s1032 + $0x60] sm:$0xf]
        %v1058 = vld [vmem:[%s1032 + $0x64] sm:$0xf]
        %v1059 = vld [vmem:[%s1032 + $0x68] sm:$0xf]
        %v1060 = vld [vmem:[%s1032 + $0x6c] sm:$0xf]
        %s1061 = scalar_lea.vmem %s897, 16 [#allocation2]
        %v1062 = vld [vmem:[%s1061] sm:$0xf]
        %v1063 = vld [vmem:[%s1061 + $0x4] sm:$0xf]
        %v1064 = vld [vmem:[%s1061 + $0x8] sm:$0xf]
        %v1065 = vld [vmem:[%s1061 + $0xc] sm:$0xf]
        %v1066 = vld [vmem:[%s1061 + $0x10] sm:$0xf]
        %v1067 = vld [vmem:[%s1061 + $0x14] sm:$0xf]
        %v1068 = vld [vmem:[%s1061 + $0x18] sm:$0xf]
        %v1069 = vld [vmem:[%s1061 + $0x1c] sm:$0xf]
        %v1070 = vld [vmem:[%s1061 + $0x20] sm:$0xf]
        %v1071 = vld [vmem:[%s1061 + $0x24] sm:$0xf]
        %v1072 = vld [vmem:[%s1061 + $0x28] sm:$0xf]
        %v1073 = vld [vmem:[%s1061 + $0x2c] sm:$0xf]
        %v1074 = vld [vmem:[%s1061 + $0x30] sm:$0xf]
        %v1075 = vld [vmem:[%s1061 + $0x34] sm:$0xf]
        %v1076 = vld [vmem:[%s1061 + $0x38] sm:$0xf]
        %v1077 = vld [vmem:[%s1061 + $0x3c] sm:$0xf]
        %v1078 = vld [vmem:[%s1061 + $0x40] sm:$0xf]
        %v1079 = vld [vmem:[%s1061 + $0x44] sm:$0xf]
        %v1080 = vld [vmem:[%s1061 + $0x48] sm:$0xf]
        %v1081 = vld [vmem:[%s1061 + $0x4c] sm:$0xf]
        %v1082 = vld [vmem:[%s1061 + $0x50] sm:$0xf]
        %v1083 = vld [vmem:[%s1061 + $0x54] sm:$0xf]
        %v1084 = vld [vmem:[%s1061 + $0x58] sm:$0xf]
        %v1085 = vld [vmem:[%s1061 + $0x5c] sm:$0xf]
        %v1086 = vld [vmem:[%s1061 + $0x60] sm:$0xf]
        %v1087 = vld [vmem:[%s1061 + $0x64] sm:$0xf]
        %v1088 = vld [vmem:[%s1061 + $0x68] sm:$0xf]
        %v1089 = vld [vmem:[%s1061 + $0x6c] sm:$0xf]
        %s1090 = scalar_lea.vmem %s897, 144 [#allocation2]
        %v1091 = vld [vmem:[%s1090] sm:$0xf]
        %v1092 = vld [vmem:[%s1090 + $0x4] sm:$0xf]
        %v1093 = vld [vmem:[%s1090 + $0x8] sm:$0xf]
        %v1094 = vld [vmem:[%s1090 + $0xc] sm:$0xf]
        %v1095 = vld [vmem:[%s1090 + $0x10] sm:$0xf]
        %v1096 = vld [vmem:[%s1090 + $0x14] sm:$0xf]
        %v1097 = vld [vmem:[%s1090 + $0x18] sm:$0xf]
        %v1098 = vld [vmem:[%s1090 + $0x1c] sm:$0xf]
        %v1099 = vld [vmem:[%s1090 + $0x20] sm:$0xf]
        %v1100 = vld [vmem:[%s1090 + $0x24] sm:$0xf]
        %v1101 = vld [vmem:[%s1090 + $0x28] sm:$0xf]
        %v1102 = vld [vmem:[%s1090 + $0x2c] sm:$0xf]
        %v1103 = vld [vmem:[%s1090 + $0x30] sm:$0xf]
        %v1104 = vld [vmem:[%s1090 + $0x34] sm:$0xf]
        %v1105 = vld [vmem:[%s1090 + $0x38] sm:$0xf]
        %v1106 = vld [vmem:[%s1090 + $0x3c] sm:$0xf]
        %v1107 = vld [vmem:[%s1090 + $0x40] sm:$0xf]
        %v1108 = vld [vmem:[%s1090 + $0x44] sm:$0xf]
        %v1109 = vld [vmem:[%s1090 + $0x48] sm:$0xf]
        %v1110 = vld [vmem:[%s1090 + $0x4c] sm:$0xf]
        %v1111 = vld [vmem:[%s1090 + $0x50] sm:$0xf]
        %v1112 = vld [vmem:[%s1090 + $0x54] sm:$0xf]
        %v1113 = vld [vmem:[%s1090 + $0x58] sm:$0xf]
        %v1114 = vld [vmem:[%s1090 + $0x5c] sm:$0xf]
        %v1115 = vld [vmem:[%s1090 + $0x60] sm:$0xf]
        %v1116 = vld [vmem:[%s1090 + $0x64] sm:$0xf]
        %v1117 = vld [vmem:[%s1090 + $0x68] sm:$0xf]
        %v1118 = vld [vmem:[%s1090 + $0x6c] sm:$0xf]
        %s1119 = scalar_lea.vmem %s897, 272 [#allocation2]
        %v1120 = vld [vmem:[%s1119] sm:$0xf]
        %v1121 = vld [vmem:[%s1119 + $0x4] sm:$0xf]
        %v1122 = vld [vmem:[%s1119 + $0x8] sm:$0xf]
        %v1123 = vld [vmem:[%s1119 + $0xc] sm:$0xf]
        %v1124 = vld [vmem:[%s1119 + $0x10] sm:$0xf]
        %v1125 = vld [vmem:[%s1119 + $0x14] sm:$0xf]
        %v1126 = vld [vmem:[%s1119 + $0x18] sm:$0xf]
        %v1127 = vld [vmem:[%s1119 + $0x1c] sm:$0xf]
        %v1128 = vld [vmem:[%s1119 + $0x20] sm:$0xf]
        %v1129 = vld [vmem:[%s1119 + $0x24] sm:$0xf]
        %v1130 = vld [vmem:[%s1119 + $0x28] sm:$0xf]
        %v1131 = vld [vmem:[%s1119 + $0x2c] sm:$0xf]
        %v1132 = vld [vmem:[%s1119 + $0x30] sm:$0xf]
        %v1133 = vld [vmem:[%s1119 + $0x34] sm:$0xf]
        %v1134 = vld [vmem:[%s1119 + $0x38] sm:$0xf]
        %v1135 = vld [vmem:[%s1119 + $0x3c] sm:$0xf]
        %v1136 = vld [vmem:[%s1119 + $0x40] sm:$0xf]
        %v1137 = vld [vmem:[%s1119 + $0x44] sm:$0xf]
        %v1138 = vld [vmem:[%s1119 + $0x48] sm:$0xf]
        %v1139 = vld [vmem:[%s1119 + $0x4c] sm:$0xf]
        %v1140 = vld [vmem:[%s1119 + $0x50] sm:$0xf]
        %v1141 = vld [vmem:[%s1119 + $0x54] sm:$0xf]
        %v1142 = vld [vmem:[%s1119 + $0x58] sm:$0xf]
        %v1143 = vld [vmem:[%s1119 + $0x5c] sm:$0xf]
        %v1144 = vld [vmem:[%s1119 + $0x60] sm:$0xf]
        %v1145 = vld [vmem:[%s1119 + $0x64] sm:$0xf]
        %v1146 = vld [vmem:[%s1119 + $0x68] sm:$0xf]
        %v1147 = vld [vmem:[%s1119 + $0x6c] sm:$0xf]
        %s1148 = scalar_lea.vmem %s897, 400 [#allocation2]
        %v1149 = vld [vmem:[%s1148] sm:$0xf]
        %v1150 = vld [vmem:[%s1148 + $0x4] sm:$0xf]
        %v1151 = vld [vmem:[%s1148 + $0x8] sm:$0xf]
        %v1152 = vld [vmem:[%s1148 + $0xc] sm:$0xf]
        %v1153 = vld [vmem:[%s1148 + $0x10] sm:$0xf]
        %v1154 = vld [vmem:[%s1148 + $0x14] sm:$0xf]
        %v1155 = vld [vmem:[%s1148 + $0x18] sm:$0xf]
        %v1156 = vld [vmem:[%s1148 + $0x1c] sm:$0xf]
        %v1157 = vld [vmem:[%s1148 + $0x20] sm:$0xf]
        %v1158 = vld [vmem:[%s1148 + $0x24] sm:$0xf]
        %v1159 = vld [vmem:[%s1148 + $0x28] sm:$0xf]
        %v1160 = vld [vmem:[%s1148 + $0x2c] sm:$0xf]
        %v1161 = vld [vmem:[%s1148 + $0x30] sm:$0xf]
        %v1162 = vld [vmem:[%s1148 + $0x34] sm:$0xf]
        %v1163 = vld [vmem:[%s1148 + $0x38] sm:$0xf]
        %v1164 = vld [vmem:[%s1148 + $0x3c] sm:$0xf]
        %v1165 = vld [vmem:[%s1148 + $0x40] sm:$0xf]
        %v1166 = vld [vmem:[%s1148 + $0x44] sm:$0xf]
        %v1167 = vld [vmem:[%s1148 + $0x48] sm:$0xf]
        %v1168 = vld [vmem:[%s1148 + $0x4c] sm:$0xf]
        %v1169 = vld [vmem:[%s1148 + $0x50] sm:$0xf]
        %v1170 = vld [vmem:[%s1148 + $0x54] sm:$0xf]
        %v1171 = vld [vmem:[%s1148 + $0x58] sm:$0xf]
        %v1172 = vld [vmem:[%s1148 + $0x5c] sm:$0xf]
        %v1173 = vld [vmem:[%s1148 + $0x60] sm:$0xf]
        %v1174 = vld [vmem:[%s1148 + $0x64] sm:$0xf]
        %v1175 = vld [vmem:[%s1148 + $0x68] sm:$0xf]
        %v1176 = vld [vmem:[%s1148 + $0x6c] sm:$0xf]
        %v1177 = vld [vmem:[%s1] sm:$0xf]
        %v1178 = vld [vmem:[%s1 + $0x4] sm:$0xf]
        %v1179 = vld [vmem:[%s1 + $0x8] sm:$0xf]
        %v1180 = vld [vmem:[%s1 + $0xc] sm:$0xf]
        %v1181 = vld [vmem:[%s1 + $0x10] sm:$0xf]
        %v1182 = vld [vmem:[%s1 + $0x14] sm:$0xf]
        %v1183 = vld [vmem:[%s1 + $0x18] sm:$0xf]
        %v1184 = vld [vmem:[%s1 + $0x1c] sm:$0xf]
        %v1185 = vld [vmem:[%s1 + $0x20] sm:$0xf]
        %v1186 = vld [vmem:[%s1 + $0x24] sm:$0xf]
        %v1187 = vld [vmem:[%s1 + $0x28] sm:$0xf]
        %v1188 = vld [vmem:[%s1 + $0x2c] sm:$0xf]
        %v1189 = vld [vmem:[%s1 + $0x30] sm:$0xf]
        %v1190 = vld [vmem:[%s1 + $0x34] sm:$0xf]
        %v1191 = vld [vmem:[%s1 + $0x38] sm:$0xf]
        %v1192 = vld [vmem:[%s1 + $0x3c] sm:$0xf]
        %s1193 = scalar_lea.vmem %s1, 64
        %v1194 = vld [vmem:[%s1193] sm:$0xf]
        %v1195 = vld [vmem:[%s1193 + $0x4] sm:$0xf]
        %v1196 = vld [vmem:[%s1193 + $0x8] sm:$0xf]
        %v1197 = vld [vmem:[%s1193 + $0xc] sm:$0xf]
        %v1198 = vld [vmem:[%s1193 + $0x10] sm:$0xf]
        %v1199 = vld [vmem:[%s1193 + $0x14] sm:$0xf]
        %v1200 = vld [vmem:[%s1193 + $0x18] sm:$0xf]
        %v1201 = vld [vmem:[%s1193 + $0x1c] sm:$0xf]
        %v1202 = vld [vmem:[%s1193 + $0x20] sm:$0xf]
        %v1203 = vld [vmem:[%s1193 + $0x24] sm:$0xf]
        %v1204 = vld [vmem:[%s1193 + $0x28] sm:$0xf]
        %v1205 = vld [vmem:[%s1193 + $0x2c] sm:$0xf]
        %v1206 = vld [vmem:[%s1193 + $0x30] sm:$0xf]
        %v1207 = vld [vmem:[%s1193 + $0x34] sm:$0xf]
        %v1208 = vld [vmem:[%s1193 + $0x38] sm:$0xf]
        %v1209 = vld [vmem:[%s1193 + $0x3c] sm:$0xf]
        %v1238 = vunpack.c.l.b16 %v975
        %v1239 = vunpack.c.l.b16 %v976
        %v1240 = vunpack.c.l.b16 %v977
        %v1241 = vunpack.c.l.b16 %v978
        %v1242 = vunpack.c.l.b16 %v979
        %v1243 = vunpack.c.l.b16 %v980
        %v1244 = vunpack.c.l.b16 %v981
        %v1245 = vunpack.c.l.b16 %v982
        %v1246 = vunpack.c.l.b16 %v983
        %v1247 = vunpack.c.l.b16 %v984
        %v1248 = vunpack.c.l.b16 %v985
        %v1249 = vunpack.c.l.b16 %v986
        %v1250 = vunpack.c.l.b16 %v987
        %v1251 = vunpack.c.l.b16 %v988
        %v1252 = vunpack.c.l.b16 %v989
        %v1253 = vunpack.c.l.b16 %v990
        %v1254 = vunpack.c.l.b16 %v991
        %v1255 = vunpack.c.l.b16 %v992
        %v1256 = vunpack.c.l.b16 %v993
        %v1257 = vunpack.c.l.b16 %v994
        %v1258 = vunpack.c.l.b16 %v995
        %v1259 = vunpack.c.l.b16 %v996
        %v1260 = vunpack.c.l.b16 %v997
        %v1261 = vunpack.c.l.b16 %v998
        %v1262 = vunpack.c.l.b16 %v999
        %v1263 = vunpack.c.l.b16 %v1000
        %v1264 = vunpack.c.l.b16 %v1001
        %v1265 = vunpack.c.l.b16 %v1002
        %v1266 = vpack.c.b16 %v1239, %v1238
        %v1267 = vpack.c.b16 %v1241, %v1240
        %v1268 = vpack.c.b16 %v1243, %v1242
        %v1269 = vpack.c.b16 %v1245, %v1244
        %v1270 = vpack.c.b16 %v1247, %v1246
        %v1271 = vpack.c.b16 %v1249, %v1248
        %v1272 = vpack.c.b16 %v1251, %v1250
        %v1273 = vpack.c.b16 %v1253, %v1252
        %v1274 = vpack.c.b16 %v1255, %v1254
        %v1275 = vpack.c.b16 %v1257, %v1256
        %v1276 = vpack.c.b16 %v1259, %v1258
        %v1277 = vpack.c.b16 %v1261, %v1260
        %v1278 = vpack.c.b16 %v1263, %v1262
        %v1279 = vpack.c.b16 %v1265, %v1264
        %v1310 = vunpack.c.l.b16 %v1194
        %v1311 = vunpack.c.l.b16 %v1195
        %v1312 = vunpack.c.l.b16 %v1196
        %v1313 = vunpack.c.l.b16 %v1197
        %v1314 = vunpack.c.l.b16 %v1198
        %v1315 = vunpack.c.l.b16 %v1199
        %v1316 = vunpack.c.l.b16 %v1200
        %v1317 = vunpack.c.l.b16 %v1201
        %v1318 = vunpack.c.l.b16 %v1202
        %v1319 = vunpack.c.l.b16 %v1203
        %v1320 = vunpack.c.l.b16 %v1204
        %v1321 = vunpack.c.l.b16 %v1205
        %v1322 = vunpack.c.l.b16 %v1206
        %v1323 = vunpack.c.l.b16 %v1207
        %v1324 = vunpack.c.l.b16 %v1208
        %v1325 = vunpack.c.l.b16 %v1209
        %v1326 = vpack.c.b16 %v1311, %v1310
        %v1327 = vpack.c.b16 %v1313, %v1312
        %v1328 = vpack.c.b16 %v1315, %v1314
        %v1329 = vpack.c.b16 %v1317, %v1316
        %v1330 = vpack.c.b16 %v1319, %v1318
        %v1331 = vpack.c.b16 %v1321, %v1320
        %v1332 = vpack.c.b16 %v1323, %v1322
        %v1333 = vpack.c.b16 %v1325, %v1324
        %1342 = vmatpush.bf16.msra.mxu0 %v1333
        %1343 = vmatpush.bf16.msra.mxu0 %v1332
        %1344 = vmatpush.bf16.msra.mxu0 %v1331
        %1345 = vmatpush.bf16.msra.mxu0 %v1330
        %1346 = vmatpush.bf16.msra.mxu0 %v1329
        %1347 = vmatpush.bf16.msra.mxu0 %v1328
        %1348 = vmatpush.bf16.msra.mxu0 %v1327
        %1349 = vmatpush.bf16.msra.mxu0 %v1326
        %1350 = vmatmul.bf16.gmra.mxu0 %v1266
        %v1351 = vpop.f32.mrf.mxu0
        %v1352 = vadd.f32 0.0, %v1351
        %v1353 = vpop.f32.mrf.mxu0
        %v1354 = vadd.f32 0.0, %v1353
        %1355 = vmatmul.bf16.gmra.mxu0 %v1267
        %v1356 = vpop.f32.mrf.mxu0
        %v1357 = vadd.f32 0.0, %v1356
        %v1358 = vpop.f32.mrf.mxu0
        %v1359 = vadd.f32 0.0, %v1358
        %1360 = vmatmul.bf16.gmra.mxu0 %v1268
        %v1361 = vpop.f32.mrf.mxu0
        %v1362 = vadd.f32 0.0, %v1361
        %v1363 = vpop.f32.mrf.mxu0
        %v1364 = vadd.f32 0.0, %v1363
        %1365 = vmatmul.bf16.gmra.mxu0 %v1269
        %v1366 = vpop.f32.mrf.mxu0
        %v1367 = vadd.f32 0.0, %v1366
        %v1368 = vpop.f32.mrf.mxu0
        %v1369 = vadd.f32 0.0, %v1368
        %1370 = vmatmul.bf16.gmra.mxu0 %v1270
        %v1371 = vpop.f32.mrf.mxu0
        %v1372 = vadd.f32 0.0, %v1371
        %v1373 = vpop.f32.mrf.mxu0
        %v1374 = vadd.f32 0.0, %v1373
        %1375 = vmatmul.bf16.gmra.mxu0 %v1271
        %v1376 = vpop.f32.mrf.mxu0
        %v1377 = vadd.f32 0.0, %v1376
        %v1378 = vpop.f32.mrf.mxu0
        %v1379 = vadd.f32 0.0, %v1378
        %1380 = vmatmul.bf16.gmra.mxu0 %v1272
        %v1381 = vpop.f32.mrf.mxu0
        %v1382 = vadd.f32 0.0, %v1381
        %v1383 = vpop.f32.mrf.mxu0
        %v1384 = vadd.f32 0.0, %v1383
        %1385 = vmatmul.bf16.gmra.mxu0 %v1273
        %v1386 = vpop.f32.mrf.mxu0
        %v1387 = vadd.f32 0.0, %v1386
        %v1388 = vpop.f32.mrf.mxu0
        %v1389 = vadd.f32 0.0, %v1388
        %1390 = vmatmul.bf16.gmra.mxu0 %v1274
        %v1391 = vpop.f32.mrf.mxu0
        %v1392 = vadd.f32 0.0, %v1391
        %v1393 = vpop.f32.mrf.mxu0
        %v1394 = vadd.f32 0.0, %v1393
        %1395 = vmatmul.bf16.gmra.mxu0 %v1275
        %v1396 = vpop.f32.mrf.mxu0
        %v1397 = vadd.f32 0.0, %v1396
        %v1398 = vpop.f32.mrf.mxu0
        %v1399 = vadd.f32 0.0, %v1398
        %1400 = vmatmul.bf16.gmra.mxu0 %v1276
        %v1401 = vpop.f32.mrf.mxu0
        %v1402 = vadd.f32 0.0, %v1401
        %v1403 = vpop.f32.mrf.mxu0
        %v1404 = vadd.f32 0.0, %v1403
        %1405 = vmatmul.bf16.gmra.mxu0 %v1277
        %v1406 = vpop.f32.mrf.mxu0
        %v1407 = vadd.f32 0.0, %v1406
        %v1408 = vpop.f32.mrf.mxu0
        %v1409 = vadd.f32 0.0, %v1408
        %1410 = vmatmul.bf16.gmra.mxu0 %v1278
        %v1411 = vpop.f32.mrf.mxu0
        %v1412 = vadd.f32 0.0, %v1411
        %v1413 = vpop.f32.mrf.mxu0
        %v1414 = vadd.f32 0.0, %v1413
        %1415 = vmatmul.bf16.gmra.mxu0 %v1279
        %v1416 = vpop.f32.mrf.mxu0
        %v1417 = vadd.f32 0.0, %v1416
        %v1418 = vpop.f32.mrf.mxu0
        %v1419 = vadd.f32 0.0, %v1418
        %1420 = vdwg.mxu0
        %v1449 = vunpack.c.l.b16 %v946
        %v1450 = vunpack.c.l.b16 %v947
        %v1451 = vunpack.c.l.b16 %v948
        %v1452 = vunpack.c.l.b16 %v949
        %v1453 = vunpack.c.l.b16 %v950
        %v1454 = vunpack.c.l.b16 %v951
        %v1455 = vunpack.c.l.b16 %v952
        %v1456 = vunpack.c.l.b16 %v953
        %v1457 = vunpack.c.l.b16 %v954
        %v1458 = vunpack.c.l.b16 %v955
        %v1459 = vunpack.c.l.b16 %v956
        %v1460 = vunpack.c.l.b16 %v957
        %v1461 = vunpack.c.l.b16 %v958
        %v1462 = vunpack.c.l.b16 %v959
        %v1463 = vunpack.c.l.b16 %v960
        %v1464 = vunpack.c.l.b16 %v961
        %v1465 = vunpack.c.l.b16 %v962
        %v1466 = vunpack.c.l.b16 %v963
        %v1467 = vunpack.c.l.b16 %v964
        %v1468 = vunpack.c.l.b16 %v965
        %v1469 = vunpack.c.l.b16 %v966
        %v1470 = vunpack.c.l.b16 %v967
        %v1471 = vunpack.c.l.b16 %v968
        %v1472 = vunpack.c.l.b16 %v969
        %v1473 = vunpack.c.l.b16 %v970
        %v1474 = vunpack.c.l.b16 %v971
        %v1475 = vunpack.c.l.b16 %v972
        %v1476 = vunpack.c.l.b16 %v973
        %v1477 = vpack.c.b16 %v1450, %v1449
        %v1478 = vpack.c.b16 %v1452, %v1451
        %v1479 = vpack.c.b16 %v1454, %v1453
        %v1480 = vpack.c.b16 %v1456, %v1455
        %v1481 = vpack.c.b16 %v1458, %v1457
        %v1482 = vpack.c.b16 %v1460, %v1459
        %v1483 = vpack.c.b16 %v1462, %v1461
        %v1484 = vpack.c.b16 %v1464, %v1463
        %v1485 = vpack.c.b16 %v1466, %v1465
        %v1486 = vpack.c.b16 %v1468, %v1467
        %v1487 = vpack.c.b16 %v1470, %v1469
        %v1488 = vpack.c.b16 %v1472, %v1471
        %v1489 = vpack.c.b16 %v1474, %v1473
        %v1490 = vpack.c.b16 %v1476, %v1475
        %v1521 = vunpack.c.l.b16 %v1177
        %v1522 = vunpack.c.l.b16 %v1178
        %v1523 = vunpack.c.l.b16 %v1179
        %v1524 = vunpack.c.l.b16 %v1180
        %v1525 = vunpack.c.l.b16 %v1181
        %v1526 = vunpack.c.l.b16 %v1182
        %v1527 = vunpack.c.l.b16 %v1183
        %v1528 = vunpack.c.l.b16 %v1184
        %v1529 = vunpack.c.l.b16 %v1185
        %v1530 = vunpack.c.l.b16 %v1186
        %v1531 = vunpack.c.l.b16 %v1187
        %v1532 = vunpack.c.l.b16 %v1188
        %v1533 = vunpack.c.l.b16 %v1189
        %v1534 = vunpack.c.l.b16 %v1190
        %v1535 = vunpack.c.l.b16 %v1191
        %v1536 = vunpack.c.l.b16 %v1192
        %v1537 = vpack.c.b16 %v1522, %v1521
        %v1538 = vpack.c.b16 %v1524, %v1523
        %v1539 = vpack.c.b16 %v1526, %v1525
        %v1540 = vpack.c.b16 %v1528, %v1527
        %v1541 = vpack.c.b16 %v1530, %v1529
        %v1542 = vpack.c.b16 %v1532, %v1531
        %v1543 = vpack.c.b16 %v1534, %v1533
        %v1544 = vpack.c.b16 %v1536, %v1535
        %1553 = vmatpush.bf16.msra.mxu0 %v1544
        %1554 = vmatpush.bf16.msra.mxu0 %v1543
        %1555 = vmatpush.bf16.msra.mxu0 %v1542
        %1556 = vmatpush.bf16.msra.mxu0 %v1541
        %1557 = vmatpush.bf16.msra.mxu0 %v1540
        %1558 = vmatpush.bf16.msra.mxu0 %v1539
        %1559 = vmatpush.bf16.msra.mxu0 %v1538
        %1560 = vmatpush.bf16.msra.mxu0 %v1537
        %1561 = vmatmul.bf16.gmra.mxu0 %v1477
        %v1562 = vpop.f32.mrf.mxu0
        %v1563 = vadd.f32 %v1352, %v1562
        %v1564 = vpop.f32.mrf.mxu0
        %v1565 = vadd.f32 %v1354, %v1564
        %1566 = vmatmul.bf16.gmra.mxu0 %v1478
        %v1567 = vpop.f32.mrf.mxu0
        %v1568 = vadd.f32 %v1357, %v1567
        %v1569 = vpop.f32.mrf.mxu0
        %v1570 = vadd.f32 %v1359, %v1569
        %1571 = vmatmul.bf16.gmra.mxu0 %v1479
        %v1572 = vpop.f32.mrf.mxu0
        %v1573 = vadd.f32 %v1362, %v1572
        %v1574 = vpop.f32.mrf.mxu0
        %v1575 = vadd.f32 %v1364, %v1574
        %1576 = vmatmul.bf16.gmra.mxu0 %v1480
        %v1577 = vpop.f32.mrf.mxu0
        %v1578 = vadd.f32 %v1367, %v1577
        %v1579 = vpop.f32.mrf.mxu0
        %v1580 = vadd.f32 %v1369, %v1579
        %1581 = vmatmul.bf16.gmra.mxu0 %v1481
        %v1582 = vpop.f32.mrf.mxu0
        %v1583 = vadd.f32 %v1372, %v1582
        %v1584 = vpop.f32.mrf.mxu0
        %v1585 = vadd.f32 %v1374, %v1584
        %1586 = vmatmul.bf16.gmra.mxu0 %v1482
        %v1587 = vpop.f32.mrf.mxu0
        %v1588 = vadd.f32 %v1377, %v1587
        %v1589 = vpop.f32.mrf.mxu0
        %v1590 = vadd.f32 %v1379, %v1589
        %1591 = vmatmul.bf16.gmra.mxu0 %v1483
        %v1592 = vpop.f32.mrf.mxu0
        %v1593 = vadd.f32 %v1382, %v1592
        %v1594 = vpop.f32.mrf.mxu0
        %v1595 = vadd.f32 %v1384, %v1594
        %1596 = vmatmul.bf16.gmra.mxu0 %v1484
        %v1597 = vpop.f32.mrf.mxu0
        %v1598 = vadd.f32 %v1387, %v1597
        %v1599 = vpop.f32.mrf.mxu0
        %v1600 = vadd.f32 %v1389, %v1599
        %1601 = vmatmul.bf16.gmra.mxu0 %v1485
        %v1602 = vpop.f32.mrf.mxu0
        %v1603 = vadd.f32 %v1392, %v1602
        %v1604 = vpop.f32.mrf.mxu0
        %v1605 = vadd.f32 %v1394, %v1604
        %1606 = vmatmul.bf16.gmra.mxu0 %v1486
        %v1607 = vpop.f32.mrf.mxu0
        %v1608 = vadd.f32 %v1397, %v1607
        %v1609 = vpop.f32.mrf.mxu0
        %v1610 = vadd.f32 %v1399, %v1609
        %1611 = vmatmul.bf16.gmra.mxu0 %v1487
        %v1612 = vpop.f32.mrf.mxu0
        %v1613 = vadd.f32 %v1402, %v1612
        %v1614 = vpop.f32.mrf.mxu0
        %v1615 = vadd.f32 %v1404, %v1614
        %1616 = vmatmul.bf16.gmra.mxu0 %v1488
        %v1617 = vpop.f32.mrf.mxu0
        %v1618 = vadd.f32 %v1407, %v1617
        %v1619 = vpop.f32.mrf.mxu0
        %v1620 = vadd.f32 %v1409, %v1619
        %1621 = vmatmul.bf16.gmra.mxu0 %v1489
        %v1622 = vpop.f32.mrf.mxu0
        %v1623 = vadd.f32 %v1412, %v1622
        %v1624 = vpop.f32.mrf.mxu0
        %v1625 = vadd.f32 %v1414, %v1624
        %1626 = vmatmul.bf16.gmra.mxu0 %v1490
        %v1627 = vpop.f32.mrf.mxu0
        %v1628 = vadd.f32 %v1417, %v1627
        %v1629 = vpop.f32.mrf.mxu0
        %v1630 = vadd.f32 %v1419, %v1629
        %1631 = vdwg.mxu0
        %s1632 = scalar_lea.vmem %s1, 128
        %v1633 = vld [vmem:[%s1632] sm:$0xf]
        %v1634 = vld [vmem:[%s1632 + $0x4] sm:$0xf]
        %v1635 = vld [vmem:[%s1632 + $0x8] sm:$0xf]
        %v1636 = vld [vmem:[%s1632 + $0xc] sm:$0xf]
        %v1637 = vld [vmem:[%s1632 + $0x10] sm:$0xf]
        %v1638 = vld [vmem:[%s1632 + $0x14] sm:$0xf]
        %v1639 = vld [vmem:[%s1632 + $0x18] sm:$0xf]
        %v1640 = vld [vmem:[%s1632 + $0x1c] sm:$0xf]
        %v1641 = vld [vmem:[%s1632 + $0x20] sm:$0xf]
        %v1642 = vld [vmem:[%s1632 + $0x24] sm:$0xf]
        %v1643 = vld [vmem:[%s1632 + $0x28] sm:$0xf]
        %v1644 = vld [vmem:[%s1632 + $0x2c] sm:$0xf]
        %v1645 = vld [vmem:[%s1632 + $0x30] sm:$0xf]
        %v1646 = vld [vmem:[%s1632 + $0x34] sm:$0xf]
        %v1647 = vld [vmem:[%s1632 + $0x38] sm:$0xf]
        %v1648 = vld [vmem:[%s1632 + $0x3c] sm:$0xf]
        %v1677 = vunpack.c.l.b16 %v1004
        %v1678 = vunpack.c.l.b16 %v1005
        %v1679 = vunpack.c.l.b16 %v1006
        %v1680 = vunpack.c.l.b16 %v1007
        %v1681 = vunpack.c.l.b16 %v1008
        %v1682 = vunpack.c.l.b16 %v1009
        %v1683 = vunpack.c.l.b16 %v1010
        %v1684 = vunpack.c.l.b16 %v1011
        %v1685 = vunpack.c.l.b16 %v1012
        %v1686 = vunpack.c.l.b16 %v1013
        %v1687 = vunpack.c.l.b16 %v1014
        %v1688 = vunpack.c.l.b16 %v1015
        %v1689 = vunpack.c.l.b16 %v1016
        %v1690 = vunpack.c.l.b16 %v1017
        %v1691 = vunpack.c.l.b16 %v1018
        %v1692 = vunpack.c.l.b16 %v1019
        %v1693 = vunpack.c.l.b16 %v1020
        %v1694 = vunpack.c.l.b16 %v1021
        %v1695 = vunpack.c.l.b16 %v1022
        %v1696 = vunpack.c.l.b16 %v1023
        %v1697 = vunpack.c.l.b16 %v1024
        %v1698 = vunpack.c.l.b16 %v1025
        %v1699 = vunpack.c.l.b16 %v1026
        %v1700 = vunpack.c.l.b16 %v1027
        %v1701 = vunpack.c.l.b16 %v1028
        %v1702 = vunpack.c.l.b16 %v1029
        %v1703 = vunpack.c.l.b16 %v1030
        %v1704 = vunpack.c.l.b16 %v1031
        %v1705 = vpack.c.b16 %v1678, %v1677
        %v1706 = vpack.c.b16 %v1680, %v1679
        %v1707 = vpack.c.b16 %v1682, %v1681
        %v1708 = vpack.c.b16 %v1684, %v1683
        %v1709 = vpack.c.b16 %v1686, %v1685
        %v1710 = vpack.c.b16 %v1688, %v1687
        %v1711 = vpack.c.b16 %v1690, %v1689
        %v1712 = vpack.c.b16 %v1692, %v1691
        %v1713 = vpack.c.b16 %v1694, %v1693
        %v1714 = vpack.c.b16 %v1696, %v1695
        %v1715 = vpack.c.b16 %v1698, %v1697
        %v1716 = vpack.c.b16 %v1700, %v1699
        %v1717 = vpack.c.b16 %v1702, %v1701
        %v1718 = vpack.c.b16 %v1704, %v1703
        %v1749 = vunpack.c.l.b16 %v1633
        %v1750 = vunpack.c.l.b16 %v1634
        %v1751 = vunpack.c.l.b16 %v1635
        %v1752 = vunpack.c.l.b16 %v1636
        %v1753 = vunpack.c.l.b16 %v1637
        %v1754 = vunpack.c.l.b16 %v1638
        %v1755 = vunpack.c.l.b16 %v1639
        %v1756 = vunpack.c.l.b16 %v1640
        %v1757 = vunpack.c.l.b16 %v1641
        %v1758 = vunpack.c.l.b16 %v1642
        %v1759 = vunpack.c.l.b16 %v1643
        %v1760 = vunpack.c.l.b16 %v1644
        %v1761 = vunpack.c.l.b16 %v1645
        %v1762 = vunpack.c.l.b16 %v1646
        %v1763 = vunpack.c.l.b16 %v1647
        %v1764 = vunpack.c.l.b16 %v1648
        %v1765 = vpack.c.b16 %v1750, %v1749
        %v1766 = vpack.c.b16 %v1752, %v1751
        %v1767 = vpack.c.b16 %v1754, %v1753
        %v1768 = vpack.c.b16 %v1756, %v1755
        %v1769 = vpack.c.b16 %v1758, %v1757
        %v1770 = vpack.c.b16 %v1760, %v1759
        %v1771 = vpack.c.b16 %v1762, %v1761
        %v1772 = vpack.c.b16 %v1764, %v1763
        %1781 = vmatpush.bf16.msra.mxu0 %v1772
        %1782 = vmatpush.bf16.msra.mxu0 %v1771
        %1783 = vmatpush.bf16.msra.mxu0 %v1770
        %1784 = vmatpush.bf16.msra.mxu0 %v1769
        %1785 = vmatpush.bf16.msra.mxu0 %v1768
        %1786 = vmatpush.bf16.msra.mxu0 %v1767
        %1787 = vmatpush.bf16.msra.mxu0 %v1766
        %1788 = vmatpush.bf16.msra.mxu0 %v1765
        %1789 = vmatmul.bf16.gmra.mxu0 %v1705
        %v1790 = vpop.f32.mrf.mxu0
        %v1791 = vadd.f32 0.0, %v1790
        %v1792 = vpop.f32.mrf.mxu0
        %v1793 = vadd.f32 0.0, %v1792
        %1794 = vmatmul.bf16.gmra.mxu0 %v1706
        %v1795 = vpop.f32.mrf.mxu0
        %v1796 = vadd.f32 0.0, %v1795
        %v1797 = vpop.f32.mrf.mxu0
        %v1798 = vadd.f32 0.0, %v1797
        %1799 = vmatmul.bf16.gmra.mxu0 %v1707
        %v1800 = vpop.f32.mrf.mxu0
        %v1801 = vadd.f32 0.0, %v1800
        %v1802 = vpop.f32.mrf.mxu0
        %v1803 = vadd.f32 0.0, %v1802
        %1804 = vmatmul.bf16.gmra.mxu0 %v1708
        %v1805 = vpop.f32.mrf.mxu0
        %v1806 = vadd.f32 0.0, %v1805
        %v1807 = vpop.f32.mrf.mxu0
        %v1808 = vadd.f32 0.0, %v1807
        %1809 = vmatmul.bf16.gmra.mxu0 %v1709
        %v1810 = vpop.f32.mrf.mxu0
        %v1811 = vadd.f32 0.0, %v1810
        %v1812 = vpop.f32.mrf.mxu0
        %v1813 = vadd.f32 0.0, %v1812
        %1814 = vmatmul.bf16.gmra.mxu0 %v1710
        %v1815 = vpop.f32.mrf.mxu0
        %v1816 = vadd.f32 0.0, %v1815
        %v1817 = vpop.f32.mrf.mxu0
        %v1818 = vadd.f32 0.0, %v1817
        %1819 = vmatmul.bf16.gmra.mxu0 %v1711
        %v1820 = vpop.f32.mrf.mxu0
        %v1821 = vadd.f32 0.0, %v1820
        %v1822 = vpop.f32.mrf.mxu0
        %v1823 = vadd.f32 0.0, %v1822
        %1824 = vmatmul.bf16.gmra.mxu0 %v1712
        %v1825 = vpop.f32.mrf.mxu0
        %v1826 = vadd.f32 0.0, %v1825
        %v1827 = vpop.f32.mrf.mxu0
        %v1828 = vadd.f32 0.0, %v1827
        %1829 = vmatmul.bf16.gmra.mxu0 %v1713
        %v1830 = vpop.f32.mrf.mxu0
        %v1831 = vadd.f32 0.0, %v1830
        %v1832 = vpop.f32.mrf.mxu0
        %v1833 = vadd.f32 0.0, %v1832
        %1834 = vmatmul.bf16.gmra.mxu0 %v1714
        %v1835 = vpop.f32.mrf.mxu0
        %v1836 = vadd.f32 0.0, %v1835
        %v1837 = vpop.f32.mrf.mxu0
        %v1838 = vadd.f32 0.0, %v1837
        %1839 = vmatmul.bf16.gmra.mxu0 %v1715
        %v1840 = vpop.f32.mrf.mxu0
        %v1841 = vadd.f32 0.0, %v1840
        %v1842 = vpop.f32.mrf.mxu0
        %v1843 = vadd.f32 0.0, %v1842
        %1844 = vmatmul.bf16.gmra.mxu0 %v1716
        %v1845 = vpop.f32.mrf.mxu0
        %v1846 = vadd.f32 0.0, %v1845
        %v1847 = vpop.f32.mrf.mxu0
        %v1848 = vadd.f32 0.0, %v1847
        %1849 = vmatmul.bf16.gmra.mxu0 %v1717
        %v1850 = vpop.f32.mrf.mxu0
        %v1851 = vadd.f32 0.0, %v1850
        %v1852 = vpop.f32.mrf.mxu0
        %v1853 = vadd.f32 0.0, %v1852
        %1854 = vmatmul.bf16.gmra.mxu0 %v1718
        %v1855 = vpop.f32.mrf.mxu0
        %v1856 = vadd.f32 0.0, %v1855
        %v1857 = vpop.f32.mrf.mxu0
        %v1858 = vadd.f32 0.0, %v1857
        %1859 = vdwg.mxu0
        %v1860 = vadd.f32 %v1563, %v1791
        %v1861 = vadd.f32 %v1565, %v1793
        %v1862 = vadd.f32 %v1568, %v1796
        %v1863 = vadd.f32 %v1570, %v1798
        %v1864 = vadd.f32 %v1573, %v1801
        %v1865 = vadd.f32 %v1575, %v1803
        %v1866 = vadd.f32 %v1578, %v1806
        %v1867 = vadd.f32 %v1580, %v1808
        %v1868 = vadd.f32 %v1583, %v1811
        %v1869 = vadd.f32 %v1585, %v1813
        %v1870 = vadd.f32 %v1588, %v1816
        %v1871 = vadd.f32 %v1590, %v1818
        %v1872 = vadd.f32 %v1593, %v1821
        %v1873 = vadd.f32 %v1595, %v1823
        %v1874 = vadd.f32 %v1598, %v1826
        %v1875 = vadd.f32 %v1600, %v1828
        %v1876 = vadd.f32 %v1603, %v1831
        %v1877 = vadd.f32 %v1605, %v1833
        %v1878 = vadd.f32 %v1608, %v1836
        %v1879 = vadd.f32 %v1610, %v1838
        %v1880 = vadd.f32 %v1613, %v1841
        %v1881 = vadd.f32 %v1615, %v1843
        %v1882 = vadd.f32 %v1618, %v1846
        %v1883 = vadd.f32 %v1620, %v1848
        %v1884 = vadd.f32 %v1623, %v1851
        %v1885 = vadd.f32 %v1625, %v1853
        %v1886 = vadd.f32 %v1628, %v1856
        %v1887 = vadd.f32 %v1630, %v1858
        %s1888 = scalar_lea.vmem %s1, 192
        %v1889 = vld [vmem:[%s1888] sm:$0xf]
        %v1890 = vld [vmem:[%s1888 + $0x4] sm:$0xf]
        %v1891 = vld [vmem:[%s1888 + $0x8] sm:$0xf]
        %v1892 = vld [vmem:[%s1888 + $0xc] sm:$0xf]
        %v1893 = vld [vmem:[%s1888 + $0x10] sm:$0xf]
        %v1894 = vld [vmem:[%s1888 + $0x14] sm:$0xf]
        %v1895 = vld [vmem:[%s1888 + $0x18] sm:$0xf]
        %v1896 = vld [vmem:[%s1888 + $0x1c] sm:$0xf]
        %v1897 = vld [vmem:[%s1888 + $0x20] sm:$0xf]
        %v1898 = vld [vmem:[%s1888 + $0x24] sm:$0xf]
        %v1899 = vld [vmem:[%s1888 + $0x28] sm:$0xf]
        %v1900 = vld [vmem:[%s1888 + $0x2c] sm:$0xf]
        %v1901 = vld [vmem:[%s1888 + $0x30] sm:$0xf]
        %v1902 = vld [vmem:[%s1888 + $0x34] sm:$0xf]
        %v1903 = vld [vmem:[%s1888 + $0x38] sm:$0xf]
        %v1904 = vld [vmem:[%s1888 + $0x3c] sm:$0xf]
        %v1933 = vunpack.c.l.b16 %v1033
        %v1934 = vunpack.c.l.b16 %v1034
        %v1935 = vunpack.c.l.b16 %v1035
        %v1936 = vunpack.c.l.b16 %v1036
        %v1937 = vunpack.c.l.b16 %v1037
        %v1938 = vunpack.c.l.b16 %v1038
        %v1939 = vunpack.c.l.b16 %v1039
        %v1940 = vunpack.c.l.b16 %v1040
        %v1941 = vunpack.c.l.b16 %v1041
        %v1942 = vunpack.c.l.b16 %v1042
        %v1943 = vunpack.c.l.b16 %v1043
        %v1944 = vunpack.c.l.b16 %v1044
        %v1945 = vunpack.c.l.b16 %v1045
        %v1946 = vunpack.c.l.b16 %v1046
        %v1947 = vunpack.c.l.b16 %v1047
        %v1948 = vunpack.c.l.b16 %v1048
        %v1949 = vunpack.c.l.b16 %v1049
        %v1950 = vunpack.c.l.b16 %v1050
        %v1951 = vunpack.c.l.b16 %v1051
        %v1952 = vunpack.c.l.b16 %v1052
        %v1953 = vunpack.c.l.b16 %v1053
        %v1954 = vunpack.c.l.b16 %v1054
        %v1955 = vunpack.c.l.b16 %v1055
        %v1956 = vunpack.c.l.b16 %v1056
        %v1957 = vunpack.c.l.b16 %v1057
        %v1958 = vunpack.c.l.b16 %v1058
        %v1959 = vunpack.c.l.b16 %v1059
        %v1960 = vunpack.c.l.b16 %v1060
        %v1961 = vpack.c.b16 %v1934, %v1933
        %v1962 = vpack.c.b16 %v1936, %v1935
        %v1963 = vpack.c.b16 %v1938, %v1937
        %v1964 = vpack.c.b16 %v1940, %v1939
        %v1965 = vpack.c.b16 %v1942, %v1941
        %v1966 = vpack.c.b16 %v1944, %v1943
        %v1967 = vpack.c.b16 %v1946, %v1945
        %v1968 = vpack.c.b16 %v1948, %v1947
        %v1969 = vpack.c.b16 %v1950, %v1949
        %v1970 = vpack.c.b16 %v1952, %v1951
        %v1971 = vpack.c.b16 %v1954, %v1953
        %v1972 = vpack.c.b16 %v1956, %v1955
        %v1973 = vpack.c.b16 %v1958, %v1957
        %v1974 = vpack.c.b16 %v1960, %v1959
        %v2005 = vunpack.c.l.b16 %v1889
        %v2006 = vunpack.c.l.b16 %v1890
        %v2007 = vunpack.c.l.b16 %v1891
        %v2008 = vunpack.c.l.b16 %v1892
        %v2009 = vunpack.c.l.b16 %v1893
        %v2010 = vunpack.c.l.b16 %v1894
        %v2011 = vunpack.c.l.b16 %v1895
        %v2012 = vunpack.c.l.b16 %v1896
        %v2013 = vunpack.c.l.b16 %v1897
        %v2014 = vunpack.c.l.b16 %v1898
        %v2015 = vunpack.c.l.b16 %v1899
        %v2016 = vunpack.c.l.b16 %v1900
        %v2017 = vunpack.c.l.b16 %v1901
        %v2018 = vunpack.c.l.b16 %v1902
        %v2019 = vunpack.c.l.b16 %v1903
        %v2020 = vunpack.c.l.b16 %v1904
        %v2021 = vpack.c.b16 %v2006, %v2005
        %v2022 = vpack.c.b16 %v2008, %v2007
        %v2023 = vpack.c.b16 %v2010, %v2009
        %v2024 = vpack.c.b16 %v2012, %v2011
        %v2025 = vpack.c.b16 %v2014, %v2013
        %v2026 = vpack.c.b16 %v2016, %v2015
        %v2027 = vpack.c.b16 %v2018, %v2017
        %v2028 = vpack.c.b16 %v2020, %v2019
        %2037 = vmatpush.bf16.msra.mxu0 %v2028
        %2038 = vmatpush.bf16.msra.mxu0 %v2027
        %2039 = vmatpush.bf16.msra.mxu0 %v2026
        %2040 = vmatpush.bf16.msra.mxu0 %v2025
        %2041 = vmatpush.bf16.msra.mxu0 %v2024
        %2042 = vmatpush.bf16.msra.mxu0 %v2023
        %2043 = vmatpush.bf16.msra.mxu0 %v2022
        %2044 = vmatpush.bf16.msra.mxu0 %v2021
        %2045 = vmatmul.bf16.gmra.mxu0 %v1961
        %v2046 = vpop.f32.mrf.mxu0
        %v2047 = vadd.f32 0.0, %v2046
        %v2048 = vpop.f32.mrf.mxu0
        %v2049 = vadd.f32 0.0, %v2048
        %2050 = vmatmul.bf16.gmra.mxu0 %v1962
        %v2051 = vpop.f32.mrf.mxu0
        %v2052 = vadd.f32 0.0, %v2051
        %v2053 = vpop.f32.mrf.mxu0
        %v2054 = vadd.f32 0.0, %v2053
        %2055 = vmatmul.bf16.gmra.mxu0 %v1963
        %v2056 = vpop.f32.mrf.mxu0
        %v2057 = vadd.f32 0.0, %v2056
        %v2058 = vpop.f32.mrf.mxu0
        %v2059 = vadd.f32 0.0, %v2058
        %2060 = vmatmul.bf16.gmra.mxu0 %v1964
        %v2061 = vpop.f32.mrf.mxu0
        %v2062 = vadd.f32 0.0, %v2061
        %v2063 = vpop.f32.mrf.mxu0
        %v2064 = vadd.f32 0.0, %v2063
        %2065 = vmatmul.bf16.gmra.mxu0 %v1965
        %v2066 = vpop.f32.mrf.mxu0
        %v2067 = vadd.f32 0.0, %v2066
        %v2068 = vpop.f32.mrf.mxu0
        %v2069 = vadd.f32 0.0, %v2068
        %2070 = vmatmul.bf16.gmra.mxu0 %v1966
        %v2071 = vpop.f32.mrf.mxu0
        %v2072 = vadd.f32 0.0, %v2071
        %v2073 = vpop.f32.mrf.mxu0
        %v2074 = vadd.f32 0.0, %v2073
        %2075 = vmatmul.bf16.gmra.mxu0 %v1967
        %v2076 = vpop.f32.mrf.mxu0
        %v2077 = vadd.f32 0.0, %v2076
        %v2078 = vpop.f32.mrf.mxu0
        %v2079 = vadd.f32 0.0, %v2078
        %2080 = vmatmul.bf16.gmra.mxu0 %v1968
        %v2081 = vpop.f32.mrf.mxu0
        %v2082 = vadd.f32 0.0, %v2081
        %v2083 = vpop.f32.mrf.mxu0
        %v2084 = vadd.f32 0.0, %v2083
        %2085 = vmatmul.bf16.gmra.mxu0 %v1969
        %v2086 = vpop.f32.mrf.mxu0
        %v2087 = vadd.f32 0.0, %v2086
        %v2088 = vpop.f32.mrf.mxu0
        %v2089 = vadd.f32 0.0, %v2088
        %2090 = vmatmul.bf16.gmra.mxu0 %v1970
        %v2091 = vpop.f32.mrf.mxu0
        %v2092 = vadd.f32 0.0, %v2091
        %v2093 = vpop.f32.mrf.mxu0
        %v2094 = vadd.f32 0.0, %v2093
        %2095 = vmatmul.bf16.gmra.mxu0 %v1971
        %v2096 = vpop.f32.mrf.mxu0
        %v2097 = vadd.f32 0.0, %v2096
        %v2098 = vpop.f32.mrf.mxu0
        %v2099 = vadd.f32 0.0, %v2098
        %2100 = vmatmul.bf16.gmra.mxu0 %v1972
        %v2101 = vpop.f32.mrf.mxu0
        %v2102 = vadd.f32 0.0, %v2101
        %v2103 = vpop.f32.mrf.mxu0
        %v2104 = vadd.f32 0.0, %v2103
        %2105 = vmatmul.bf16.gmra.mxu0 %v1973
        %v2106 = vpop.f32.mrf.mxu0
        %v2107 = vadd.f32 0.0, %v2106
        %v2108 = vpop.f32.mrf.mxu0
        %v2109 = vadd.f32 0.0, %v2108
        %2110 = vmatmul.bf16.gmra.mxu0 %v1974
        %v2111 = vpop.f32.mrf.mxu0
        %v2112 = vadd.f32 0.0, %v2111
        %v2113 = vpop.f32.mrf.mxu0
        %v2114 = vadd.f32 0.0, %v2113
        %2115 = vdwg.mxu0
        %v2116 = vadd.f32 %v1860, %v2047
        %v2117 = vadd.f32 %v1861, %v2049
        %v2118 = vadd.f32 %v1862, %v2052
        %v2119 = vadd.f32 %v1863, %v2054
        %v2120 = vadd.f32 %v1864, %v2057
        %v2121 = vadd.f32 %v1865, %v2059
        %v2122 = vadd.f32 %v1866, %v2062
        %v2123 = vadd.f32 %v1867, %v2064
        %v2124 = vadd.f32 %v1868, %v2067
        %v2125 = vadd.f32 %v1869, %v2069
        %v2126 = vadd.f32 %v1870, %v2072
        %v2127 = vadd.f32 %v1871, %v2074
        %v2128 = vadd.f32 %v1872, %v2077
        %v2129 = vadd.f32 %v1873, %v2079
        %v2130 = vadd.f32 %v1874, %v2082
        %v2131 = vadd.f32 %v1875, %v2084
        %v2132 = vadd.f32 %v1876, %v2087
        %v2133 = vadd.f32 %v1877, %v2089
        %v2134 = vadd.f32 %v1878, %v2092
        %v2135 = vadd.f32 %v1879, %v2094
        %v2136 = vadd.f32 %v1880, %v2097
        %v2137 = vadd.f32 %v1881, %v2099
        %v2138 = vadd.f32 %v1882, %v2102
        %v2139 = vadd.f32 %v1883, %v2104
        %v2140 = vadd.f32 %v1884, %v2107
        %v2141 = vadd.f32 %v1885, %v2109
        %v2142 = vadd.f32 %v1886, %v2112
        %v2143 = vadd.f32 %v1887, %v2114
        %s2144 = scalar_lea.vmem %s1, 256
        %v2145 = vld [vmem:[%s2144] sm:$0xf]
        %v2146 = vld [vmem:[%s2144 + $0x4] sm:$0xf]
        %v2147 = vld [vmem:[%s2144 + $0x8] sm:$0xf]
        %v2148 = vld [vmem:[%s2144 + $0xc] sm:$0xf]
        %v2149 = vld [vmem:[%s2144 + $0x10] sm:$0xf]
        %v2150 = vld [vmem:[%s2144 + $0x14] sm:$0xf]
        %v2151 = vld [vmem:[%s2144 + $0x18] sm:$0xf]
        %v2152 = vld [vmem:[%s2144 + $0x1c] sm:$0xf]
        %v2153 = vld [vmem:[%s2144 + $0x20] sm:$0xf]
        %v2154 = vld [vmem:[%s2144 + $0x24] sm:$0xf]
        %v2155 = vld [vmem:[%s2144 + $0x28] sm:$0xf]
        %v2156 = vld [vmem:[%s2144 + $0x2c] sm:$0xf]
        %v2157 = vld [vmem:[%s2144 + $0x30] sm:$0xf]
        %v2158 = vld [vmem:[%s2144 + $0x34] sm:$0xf]
        %v2159 = vld [vmem:[%s2144 + $0x38] sm:$0xf]
        %v2160 = vld [vmem:[%s2144 + $0x3c] sm:$0xf]
        %v2189 = vunpack.c.l.b16 %v1062
        %v2190 = vunpack.c.l.b16 %v1063
        %v2191 = vunpack.c.l.b16 %v1064
        %v2192 = vunpack.c.l.b16 %v1065
        %v2193 = vunpack.c.l.b16 %v1066
        %v2194 = vunpack.c.l.b16 %v1067
        %v2195 = vunpack.c.l.b16 %v1068
        %v2196 = vunpack.c.l.b16 %v1069
        %v2197 = vunpack.c.l.b16 %v1070
        %v2198 = vunpack.c.l.b16 %v1071
        %v2199 = vunpack.c.l.b16 %v1072
        %v2200 = vunpack.c.l.b16 %v1073
        %v2201 = vunpack.c.l.b16 %v1074
        %v2202 = vunpack.c.l.b16 %v1075
        %v2203 = vunpack.c.l.b16 %v1076
        %v2204 = vunpack.c.l.b16 %v1077
        %v2205 = vunpack.c.l.b16 %v1078
        %v2206 = vunpack.c.l.b16 %v1079
        %v2207 = vunpack.c.l.b16 %v1080
        %v2208 = vunpack.c.l.b16 %v1081
        %v2209 = vunpack.c.l.b16 %v1082
        %v2210 = vunpack.c.l.b16 %v1083
        %v2211 = vunpack.c.l.b16 %v1084
        %v2212 = vunpack.c.l.b16 %v1085
        %v2213 = vunpack.c.l.b16 %v1086
        %v2214 = vunpack.c.l.b16 %v1087
        %v2215 = vunpack.c.l.b16 %v1088
        %v2216 = vunpack.c.l.b16 %v1089
        %v2217 = vpack.c.b16 %v2190, %v2189
        %v2218 = vpack.c.b16 %v2192, %v2191
        %v2219 = vpack.c.b16 %v2194, %v2193
        %v2220 = vpack.c.b16 %v2196, %v2195
        %v2221 = vpack.c.b16 %v2198, %v2197
        %v2222 = vpack.c.b16 %v2200, %v2199
        %v2223 = vpack.c.b16 %v2202, %v2201
        %v2224 = vpack.c.b16 %v2204, %v2203
        %v2225 = vpack.c.b16 %v2206, %v2205
        %v2226 = vpack.c.b16 %v2208, %v2207
        %v2227 = vpack.c.b16 %v2210, %v2209
        %v2228 = vpack.c.b16 %v2212, %v2211
        %v2229 = vpack.c.b16 %v2214, %v2213
        %v2230 = vpack.c.b16 %v2216, %v2215
        %v2261 = vunpack.c.l.b16 %v2145
        %v2262 = vunpack.c.l.b16 %v2146
        %v2263 = vunpack.c.l.b16 %v2147
        %v2264 = vunpack.c.l.b16 %v2148
        %v2265 = vunpack.c.l.b16 %v2149
        %v2266 = vunpack.c.l.b16 %v2150
        %v2267 = vunpack.c.l.b16 %v2151
        %v2268 = vunpack.c.l.b16 %v2152
        %v2269 = vunpack.c.l.b16 %v2153
        %v2270 = vunpack.c.l.b16 %v2154
        %v2271 = vunpack.c.l.b16 %v2155
        %v2272 = vunpack.c.l.b16 %v2156
        %v2273 = vunpack.c.l.b16 %v2157
        %v2274 = vunpack.c.l.b16 %v2158
        %v2275 = vunpack.c.l.b16 %v2159
        %v2276 = vunpack.c.l.b16 %v2160
        %v2277 = vpack.c.b16 %v2262, %v2261
        %v2278 = vpack.c.b16 %v2264, %v2263
        %v2279 = vpack.c.b16 %v2266, %v2265
        %v2280 = vpack.c.b16 %v2268, %v2267
        %v2281 = vpack.c.b16 %v2270, %v2269
        %v2282 = vpack.c.b16 %v2272, %v2271
        %v2283 = vpack.c.b16 %v2274, %v2273
        %v2284 = vpack.c.b16 %v2276, %v2275
        %2293 = vmatpush.bf16.msra.mxu0 %v2284
        %2294 = vmatpush.bf16.msra.mxu0 %v2283
        %2295 = vmatpush.bf16.msra.mxu0 %v2282
        %2296 = vmatpush.bf16.msra.mxu0 %v2281
        %2297 = vmatpush.bf16.msra.mxu0 %v2280
        %2298 = vmatpush.bf16.msra.mxu0 %v2279
        %2299 = vmatpush.bf16.msra.mxu0 %v2278
        %2300 = vmatpush.bf16.msra.mxu0 %v2277
        %2301 = vmatmul.bf16.gmra.mxu0 %v2217
        %v2302 = vpop.f32.mrf.mxu0
        %v2303 = vadd.f32 0.0, %v2302
        %v2304 = vpop.f32.mrf.mxu0
        %v2305 = vadd.f32 0.0, %v2304
        %2306 = vmatmul.bf16.gmra.mxu0 %v2218
        %v2307 = vpop.f32.mrf.mxu0
        %v2308 = vadd.f32 0.0, %v2307
        %v2309 = vpop.f32.mrf.mxu0
        %v2310 = vadd.f32 0.0, %v2309
        %2311 = vmatmul.bf16.gmra.mxu0 %v2219
        %v2312 = vpop.f32.mrf.mxu0
        %v2313 = vadd.f32 0.0, %v2312
        %v2314 = vpop.f32.mrf.mxu0
        %v2315 = vadd.f32 0.0, %v2314
        %2316 = vmatmul.bf16.gmra.mxu0 %v2220
        %v2317 = vpop.f32.mrf.mxu0
        %v2318 = vadd.f32 0.0, %v2317
        %v2319 = vpop.f32.mrf.mxu0
        %v2320 = vadd.f32 0.0, %v2319
        %2321 = vmatmul.bf16.gmra.mxu0 %v2221
        %v2322 = vpop.f32.mrf.mxu0
        %v2323 = vadd.f32 0.0, %v2322
        %v2324 = vpop.f32.mrf.mxu0
        %v2325 = vadd.f32 0.0, %v2324
        %2326 = vmatmul.bf16.gmra.mxu0 %v2222
        %v2327 = vpop.f32.mrf.mxu0
        %v2328 = vadd.f32 0.0, %v2327
        %v2329 = vpop.f32.mrf.mxu0
        %v2330 = vadd.f32 0.0, %v2329
        %2331 = vmatmul.bf16.gmra.mxu0 %v2223
        %v2332 = vpop.f32.mrf.mxu0
        %v2333 = vadd.f32 0.0, %v2332
        %v2334 = vpop.f32.mrf.mxu0
        %v2335 = vadd.f32 0.0, %v2334
        %2336 = vmatmul.bf16.gmra.mxu0 %v2224
        %v2337 = vpop.f32.mrf.mxu0
        %v2338 = vadd.f32 0.0, %v2337
        %v2339 = vpop.f32.mrf.mxu0
        %v2340 = vadd.f32 0.0, %v2339
        %2341 = vmatmul.bf16.gmra.mxu0 %v2225
        %v2342 = vpop.f32.mrf.mxu0
        %v2343 = vadd.f32 0.0, %v2342
        %v2344 = vpop.f32.mrf.mxu0
        %v2345 = vadd.f32 0.0, %v2344
        %2346 = vmatmul.bf16.gmra.mxu0 %v2226
        %v2347 = vpop.f32.mrf.mxu0
        %v2348 = vadd.f32 0.0, %v2347
        %v2349 = vpop.f32.mrf.mxu0
        %v2350 = vadd.f32 0.0, %v2349
        %2351 = vmatmul.bf16.gmra.mxu0 %v2227
        %v2352 = vpop.f32.mrf.mxu0
        %v2353 = vadd.f32 0.0, %v2352
        %v2354 = vpop.f32.mrf.mxu0
        %v2355 = vadd.f32 0.0, %v2354
        %2356 = vmatmul.bf16.gmra.mxu0 %v2228
        %v2357 = vpop.f32.mrf.mxu0
        %v2358 = vadd.f32 0.0, %v2357
        %v2359 = vpop.f32.mrf.mxu0
        %v2360 = vadd.f32 0.0, %v2359
        %2361 = vmatmul.bf16.gmra.mxu0 %v2229
        %v2362 = vpop.f32.mrf.mxu0
        %v2363 = vadd.f32 0.0, %v2362
        %v2364 = vpop.f32.mrf.mxu0
        %v2365 = vadd.f32 0.0, %v2364
        %2366 = vmatmul.bf16.gmra.mxu0 %v2230
        %v2367 = vpop.f32.mrf.mxu0
        %v2368 = vadd.f32 0.0, %v2367
        %v2369 = vpop.f32.mrf.mxu0
        %v2370 = vadd.f32 0.0, %v2369
        %2371 = vdwg.mxu0
        %v2372 = vadd.f32 %v2116, %v2303
        %v2373 = vadd.f32 %v2117, %v2305
        %v2374 = vadd.f32 %v2118, %v2308
        %v2375 = vadd.f32 %v2119, %v2310
        %v2376 = vadd.f32 %v2120, %v2313
        %v2377 = vadd.f32 %v2121, %v2315
        %v2378 = vadd.f32 %v2122, %v2318
        %v2379 = vadd.f32 %v2123, %v2320
        %v2380 = vadd.f32 %v2124, %v2323
        %v2381 = vadd.f32 %v2125, %v2325
        %v2382 = vadd.f32 %v2126, %v2328
        %v2383 = vadd.f32 %v2127, %v2330
        %v2384 = vadd.f32 %v2128, %v2333
        %v2385 = vadd.f32 %v2129, %v2335
        %v2386 = vadd.f32 %v2130, %v2338
        %v2387 = vadd.f32 %v2131, %v2340
        %v2388 = vadd.f32 %v2132, %v2343
        %v2389 = vadd.f32 %v2133, %v2345
        %v2390 = vadd.f32 %v2134, %v2348
        %v2391 = vadd.f32 %v2135, %v2350
        %v2392 = vadd.f32 %v2136, %v2353
        %v2393 = vadd.f32 %v2137, %v2355
        %v2394 = vadd.f32 %v2138, %v2358
        %v2395 = vadd.f32 %v2139, %v2360
        %v2396 = vadd.f32 %v2140, %v2363
        %v2397 = vadd.f32 %v2141, %v2365
        %v2398 = vadd.f32 %v2142, %v2368
        %v2399 = vadd.f32 %v2143, %v2370
        %v2401 = vperm.slane %v941, 0
        %v2403 = vadd.f32 %v2372, %v2401
        %v2404 = vadd.f32 %v2373, %v2401
        %v2405 = vadd.f32 %v2374, %v2401
        %v2406 = vadd.f32 %v2375, %v2401
        %v2407 = vadd.f32 %v2376, %v2401
        %v2408 = vadd.f32 %v2377, %v2401
        %v2409 = vadd.f32 %v2378, %v2401
        %v2410 = vadd.f32 %v2379, %v2401
        %v2411 = vadd.f32 %v2380, %v2401
        %v2412 = vadd.f32 %v2381, %v2401
        %v2413 = vadd.f32 %v2382, %v2401
        %v2414 = vadd.f32 %v2383, %v2401
        %v2415 = vadd.f32 %v2384, %v2401
        %v2416 = vadd.f32 %v2385, %v2401
        %v2417 = vadd.f32 %v2386, %v2401
        %v2418 = vadd.f32 %v2387, %v2401
        %v2419 = vadd.f32 %v2388, %v2401
        %v2420 = vadd.f32 %v2389, %v2401
        %v2421 = vadd.f32 %v2390, %v2401
        %v2422 = vadd.f32 %v2391, %v2401
        %v2423 = vadd.f32 %v2392, %v2401
        %v2424 = vadd.f32 %v2393, %v2401
        %v2425 = vadd.f32 %v2394, %v2401
        %v2426 = vadd.f32 %v2395, %v2401
        %v2427 = vadd.f32 %v2396, %v2401
        %v2428 = vadd.f32 %v2397, %v2401
        %v2429 = vadd.f32 %v2398, %v2401
        %v2430 = vadd.f32 %v2399, %v2401
        %v2431 = vmax.f32 %v2403, 0.0
        %v2432 = vmax.f32 %v2404, 0.0
        %v2433 = vmax.f32 %v2405, 0.0
        %v2434 = vmax.f32 %v2406, 0.0
        %v2435 = vmax.f32 %v2407, 0.0
        %v2436 = vmax.f32 %v2408, 0.0
        %v2437 = vmax.f32 %v2409, 0.0
        %v2438 = vmax.f32 %v2410, 0.0
        %v2439 = vmax.f32 %v2411, 0.0
        %v2440 = vmax.f32 %v2412, 0.0
        %v2441 = vmax.f32 %v2413, 0.0
        %v2442 = vmax.f32 %v2414, 0.0
        %v2443 = vmax.f32 %v2415, 0.0
        %v2444 = vmax.f32 %v2416, 0.0
        %v2445 = vmax.f32 %v2417, 0.0
        %v2446 = vmax.f32 %v2418, 0.0
        %v2447 = vmax.f32 %v2419, 0.0
        %v2448 = vmax.f32 %v2420, 0.0
        %v2449 = vmax.f32 %v2421, 0.0
        %v2450 = vmax.f32 %v2422, 0.0
        %v2451 = vmax.f32 %v2423, 0.0
        %v2452 = vmax.f32 %v2424, 0.0
        %v2453 = vmax.f32 %v2425, 0.0
        %v2454 = vmax.f32 %v2426, 0.0
        %v2455 = vmax.f32 %v2427, 0.0
        %v2456 = vmax.f32 %v2428, 0.0
        %v2457 = vmax.f32 %v2429, 0.0
        %v2458 = vmax.f32 %v2430, 0.0
        %s2459 = scalar_lea.vmem %s1, 320
        %v2460 = vld [vmem:[%s2459] sm:$0xf]
        %v2461 = vld [vmem:[%s2459 + $0x4] sm:$0xf]
        %v2462 = vld [vmem:[%s2459 + $0x8] sm:$0xf]
        %v2463 = vld [vmem:[%s2459 + $0xc] sm:$0xf]
        %v2464 = vld [vmem:[%s2459 + $0x10] sm:$0xf]
        %v2465 = vld [vmem:[%s2459 + $0x14] sm:$0xf]
        %v2466 = vld [vmem:[%s2459 + $0x18] sm:$0xf]
        %v2467 = vld [vmem:[%s2459 + $0x1c] sm:$0xf]
        %v2468 = vld [vmem:[%s2459 + $0x20] sm:$0xf]
        %v2469 = vld [vmem:[%s2459 + $0x24] sm:$0xf]
        %v2470 = vld [vmem:[%s2459 + $0x28] sm:$0xf]
        %v2471 = vld [vmem:[%s2459 + $0x2c] sm:$0xf]
        %v2472 = vld [vmem:[%s2459 + $0x30] sm:$0xf]
        %v2473 = vld [vmem:[%s2459 + $0x34] sm:$0xf]
        %v2474 = vld [vmem:[%s2459 + $0x38] sm:$0xf]
        %v2475 = vld [vmem:[%s2459 + $0x3c] sm:$0xf]
        %s2476 = scalar_lea.vmem %s1, 384
        %v2477 = vld [vmem:[%s2476] sm:$0xf]
        %v2478 = vld [vmem:[%s2476 + $0x4] sm:$0xf]
        %v2479 = vld [vmem:[%s2476 + $0x8] sm:$0xf]
        %v2480 = vld [vmem:[%s2476 + $0xc] sm:$0xf]
        %v2481 = vld [vmem:[%s2476 + $0x10] sm:$0xf]
        %v2482 = vld [vmem:[%s2476 + $0x14] sm:$0xf]
        %v2483 = vld [vmem:[%s2476 + $0x18] sm:$0xf]
        %v2484 = vld [vmem:[%s2476 + $0x1c] sm:$0xf]
        %v2485 = vld [vmem:[%s2476 + $0x20] sm:$0xf]
        %v2486 = vld [vmem:[%s2476 + $0x24] sm:$0xf]
        %v2487 = vld [vmem:[%s2476 + $0x28] sm:$0xf]
        %v2488 = vld [vmem:[%s2476 + $0x2c] sm:$0xf]
        %v2489 = vld [vmem:[%s2476 + $0x30] sm:$0xf]
        %v2490 = vld [vmem:[%s2476 + $0x34] sm:$0xf]
        %v2491 = vld [vmem:[%s2476 + $0x38] sm:$0xf]
        %v2492 = vld [vmem:[%s2476 + $0x3c] sm:$0xf]
        %v2509 = vunpack.c.l.b16 %v2477
        %v2510 = vunpack.c.l.b16 %v2478
        %v2511 = vunpack.c.l.b16 %v2479
        %v2512 = vunpack.c.l.b16 %v2480
        %v2513 = vunpack.c.l.b16 %v2481
        %v2514 = vunpack.c.l.b16 %v2482
        %v2515 = vunpack.c.l.b16 %v2483
        %v2516 = vunpack.c.l.b16 %v2484
        %v2517 = vunpack.c.l.b16 %v2485
        %v2518 = vunpack.c.l.b16 %v2486
        %v2519 = vunpack.c.l.b16 %v2487
        %v2520 = vunpack.c.l.b16 %v2488
        %v2521 = vunpack.c.l.b16 %v2489
        %v2522 = vunpack.c.l.b16 %v2490
        %v2523 = vunpack.c.l.b16 %v2491
        %v2524 = vunpack.c.l.b16 %v2492
        %v2525 = vpack.c.b16 %v2510, %v2509
        %v2526 = vpack.c.b16 %v2512, %v2511
        %v2527 = vpack.c.b16 %v2514, %v2513
        %v2528 = vpack.c.b16 %v2516, %v2515
        %v2529 = vpack.c.b16 %v2518, %v2517
        %v2530 = vpack.c.b16 %v2520, %v2519
        %v2531 = vpack.c.b16 %v2522, %v2521
        %v2532 = vpack.c.b16 %v2524, %v2523
        %2541 = vmatpush.bf16.msra.mxu0 %v2532
        %2542 = vmatpush.bf16.msra.mxu0 %v2531
        %2543 = vmatpush.bf16.msra.mxu0 %v2530
        %2544 = vmatpush.bf16.msra.mxu0 %v2529
        %2545 = vmatpush.bf16.msra.mxu0 %v2528
        %2546 = vmatpush.bf16.msra.mxu0 %v2527
        %2547 = vmatpush.bf16.msra.mxu0 %v2526
        %2548 = vmatpush.bf16.msra.mxu0 %v2525
        %2549 = vmatmul.bf16.gmra.mxu0 %v1266
        %v2550 = vpop.f32.mrf.mxu0
        %v2551 = vadd.f32 0.0, %v2550
        %v2552 = vpop.f32.mrf.mxu0
        %v2553 = vadd.f32 0.0, %v2552
        %2554 = vmatmul.bf16.gmra.mxu0 %v1267
        %v2555 = vpop.f32.mrf.mxu0
        %v2556 = vadd.f32 0.0, %v2555
        %v2557 = vpop.f32.mrf.mxu0
        %v2558 = vadd.f32 0.0, %v2557
        %2559 = vmatmul.bf16.gmra.mxu0 %v1268
        %v2560 = vpop.f32.mrf.mxu0
        %v2561 = vadd.f32 0.0, %v2560
        %v2562 = vpop.f32.mrf.mxu0
        %v2563 = vadd.f32 0.0, %v2562
        %2564 = vmatmul.bf16.gmra.mxu0 %v1269
        %v2565 = vpop.f32.mrf.mxu0
        %v2566 = vadd.f32 0.0, %v2565
        %v2567 = vpop.f32.mrf.mxu0
        %v2568 = vadd.f32 0.0, %v2567
        %2569 = vmatmul.bf16.gmra.mxu0 %v1270
        %v2570 = vpop.f32.mrf.mxu0
        %v2571 = vadd.f32 0.0, %v2570
        %v2572 = vpop.f32.mrf.mxu0
        %v2573 = vadd.f32 0.0, %v2572
        %2574 = vmatmul.bf16.gmra.mxu0 %v1271
        %v2575 = vpop.f32.mrf.mxu0
        %v2576 = vadd.f32 0.0, %v2575
        %v2577 = vpop.f32.mrf.mxu0
        %v2578 = vadd.f32 0.0, %v2577
        %2579 = vmatmul.bf16.gmra.mxu0 %v1272
        %v2580 = vpop.f32.mrf.mxu0
        %v2581 = vadd.f32 0.0, %v2580
        %v2582 = vpop.f32.mrf.mxu0
        %v2583 = vadd.f32 0.0, %v2582
        %2584 = vmatmul.bf16.gmra.mxu0 %v1273
        %v2585 = vpop.f32.mrf.mxu0
        %v2586 = vadd.f32 0.0, %v2585
        %v2587 = vpop.f32.mrf.mxu0
        %v2588 = vadd.f32 0.0, %v2587
        %2589 = vmatmul.bf16.gmra.mxu0 %v1274
        %v2590 = vpop.f32.mrf.mxu0
        %v2591 = vadd.f32 0.0, %v2590
        %v2592 = vpop.f32.mrf.mxu0
        %v2593 = vadd.f32 0.0, %v2592
        %2594 = vmatmul.bf16.gmra.mxu0 %v1275
        %v2595 = vpop.f32.mrf.mxu0
        %v2596 = vadd.f32 0.0, %v2595
        %v2597 = vpop.f32.mrf.mxu0
        %v2598 = vadd.f32 0.0, %v2597
        %2599 = vmatmul.bf16.gmra.mxu0 %v1276
        %v2600 = vpop.f32.mrf.mxu0
        %v2601 = vadd.f32 0.0, %v2600
        %v2602 = vpop.f32.mrf.mxu0
        %v2603 = vadd.f32 0.0, %v2602
        %2604 = vmatmul.bf16.gmra.mxu0 %v1277
        %v2605 = vpop.f32.mrf.mxu0
        %v2606 = vadd.f32 0.0, %v2605
        %v2607 = vpop.f32.mrf.mxu0
        %v2608 = vadd.f32 0.0, %v2607
        %2609 = vmatmul.bf16.gmra.mxu0 %v1278
        %v2610 = vpop.f32.mrf.mxu0
        %v2611 = vadd.f32 0.0, %v2610
        %v2612 = vpop.f32.mrf.mxu0
        %v2613 = vadd.f32 0.0, %v2612
        %2614 = vmatmul.bf16.gmra.mxu0 %v1279
        %v2615 = vpop.f32.mrf.mxu0
        %v2616 = vadd.f32 0.0, %v2615
        %v2617 = vpop.f32.mrf.mxu0
        %v2618 = vadd.f32 0.0, %v2617
        %2619 = vdwg.mxu0
        %v2636 = vunpack.c.l.b16 %v2460
        %v2637 = vunpack.c.l.b16 %v2461
        %v2638 = vunpack.c.l.b16 %v2462
        %v2639 = vunpack.c.l.b16 %v2463
        %v2640 = vunpack.c.l.b16 %v2464
        %v2641 = vunpack.c.l.b16 %v2465
        %v2642 = vunpack.c.l.b16 %v2466
        %v2643 = vunpack.c.l.b16 %v2467
        %v2644 = vunpack.c.l.b16 %v2468
        %v2645 = vunpack.c.l.b16 %v2469
        %v2646 = vunpack.c.l.b16 %v2470
        %v2647 = vunpack.c.l.b16 %v2471
        %v2648 = vunpack.c.l.b16 %v2472
        %v2649 = vunpack.c.l.b16 %v2473
        %v2650 = vunpack.c.l.b16 %v2474
        %v2651 = vunpack.c.l.b16 %v2475
        %v2652 = vpack.c.b16 %v2637, %v2636
        %v2653 = vpack.c.b16 %v2639, %v2638
        %v2654 = vpack.c.b16 %v2641, %v2640
        %v2655 = vpack.c.b16 %v2643, %v2642
        %v2656 = vpack.c.b16 %v2645, %v2644
        %v2657 = vpack.c.b16 %v2647, %v2646
        %v2658 = vpack.c.b16 %v2649, %v2648
        %v2659 = vpack.c.b16 %v2651, %v2650
        %2668 = vmatpush.bf16.msra.mxu0 %v2659
        %2669 = vmatpush.bf16.msra.mxu0 %v2658
        %2670 = vmatpush.bf16.msra.mxu0 %v2657
        %2671 = vmatpush.bf16.msra.mxu0 %v2656
        %2672 = vmatpush.bf16.msra.mxu0 %v2655
        %2673 = vmatpush.bf16.msra.mxu0 %v2654
        %2674 = vmatpush.bf16.msra.mxu0 %v2653
        %2675 = vmatpush.bf16.msra.mxu0 %v2652
        %2676 = vmatmul.bf16.gmra.mxu0 %v1477
        %v2677 = vpop.f32.mrf.mxu0
        %v2678 = vadd.f32 %v2551, %v2677
        %v2679 = vpop.f32.mrf.mxu0
        %v2680 = vadd.f32 %v2553, %v2679
        %2681 = vmatmul.bf16.gmra.mxu0 %v1478
        %v2682 = vpop.f32.mrf.mxu0
        %v2683 = vadd.f32 %v2556, %v2682
        %v2684 = vpop.f32.mrf.mxu0
        %v2685 = vadd.f32 %v2558, %v2684
        %2686 = vmatmul.bf16.gmra.mxu0 %v1479
        %v2687 = vpop.f32.mrf.mxu0
        %v2688 = vadd.f32 %v2561, %v2687
        %v2689 = vpop.f32.mrf.mxu0
        %v2690 = vadd.f32 %v2563, %v2689
        %2691 = vmatmul.bf16.gmra.mxu0 %v1480
        %v2692 = vpop.f32.mrf.mxu0
        %v2693 = vadd.f32 %v2566, %v2692
        %v2694 = vpop.f32.mrf.mxu0
        %v2695 = vadd.f32 %v2568, %v2694
        %2696 = vmatmul.bf16.gmra.mxu0 %v1481
        %v2697 = vpop.f32.mrf.mxu0
        %v2698 = vadd.f32 %v2571, %v2697
        %v2699 = vpop.f32.mrf.mxu0
        %v2700 = vadd.f32 %v2573, %v2699
        %2701 = vmatmul.bf16.gmra.mxu0 %v1482
        %v2702 = vpop.f32.mrf.mxu0
        %v2703 = vadd.f32 %v2576, %v2702
        %v2704 = vpop.f32.mrf.mxu0
        %v2705 = vadd.f32 %v2578, %v2704
        %2706 = vmatmul.bf16.gmra.mxu0 %v1483
        %v2707 = vpop.f32.mrf.mxu0
        %v2708 = vadd.f32 %v2581, %v2707
        %v2709 = vpop.f32.mrf.mxu0
        %v2710 = vadd.f32 %v2583, %v2709
        %2711 = vmatmul.bf16.gmra.mxu0 %v1484
        %v2712 = vpop.f32.mrf.mxu0
        %v2713 = vadd.f32 %v2586, %v2712
        %v2714 = vpop.f32.mrf.mxu0
        %v2715 = vadd.f32 %v2588, %v2714
        %2716 = vmatmul.bf16.gmra.mxu0 %v1485
        %v2717 = vpop.f32.mrf.mxu0
        %v2718 = vadd.f32 %v2591, %v2717
        %v2719 = vpop.f32.mrf.mxu0
        %v2720 = vadd.f32 %v2593, %v2719
        %2721 = vmatmul.bf16.gmra.mxu0 %v1486
        %v2722 = vpop.f32.mrf.mxu0
        %v2723 = vadd.f32 %v2596, %v2722
        %v2724 = vpop.f32.mrf.mxu0
        %v2725 = vadd.f32 %v2598, %v2724
        %2726 = vmatmul.bf16.gmra.mxu0 %v1487
        %v2727 = vpop.f32.mrf.mxu0
        %v2728 = vadd.f32 %v2601, %v2727
        %v2729 = vpop.f32.mrf.mxu0
        %v2730 = vadd.f32 %v2603, %v2729
        %2731 = vmatmul.bf16.gmra.mxu0 %v1488
        %v2732 = vpop.f32.mrf.mxu0
        %v2733 = vadd.f32 %v2606, %v2732
        %v2734 = vpop.f32.mrf.mxu0
        %v2735 = vadd.f32 %v2608, %v2734
        %2736 = vmatmul.bf16.gmra.mxu0 %v1489
        %v2737 = vpop.f32.mrf.mxu0
        %v2738 = vadd.f32 %v2611, %v2737
        %v2739 = vpop.f32.mrf.mxu0
        %v2740 = vadd.f32 %v2613, %v2739
        %2741 = vmatmul.bf16.gmra.mxu0 %v1490
        %v2742 = vpop.f32.mrf.mxu0
        %v2743 = vadd.f32 %v2616, %v2742
        %v2744 = vpop.f32.mrf.mxu0
        %v2745 = vadd.f32 %v2618, %v2744
        %2746 = vdwg.mxu0
        %s2747 = scalar_lea.vmem %s1, 448
        %v2748 = vld [vmem:[%s2747] sm:$0xf]
        %v2749 = vld [vmem:[%s2747 + $0x4] sm:$0xf]
        %v2750 = vld [vmem:[%s2747 + $0x8] sm:$0xf]
        %v2751 = vld [vmem:[%s2747 + $0xc] sm:$0xf]
        %v2752 = vld [vmem:[%s2747 + $0x10] sm:$0xf]
        %v2753 = vld [vmem:[%s2747 + $0x14] sm:$0xf]
        %v2754 = vld [vmem:[%s2747 + $0x18] sm:$0xf]
        %v2755 = vld [vmem:[%s2747 + $0x1c] sm:$0xf]
        %v2756 = vld [vmem:[%s2747 + $0x20] sm:$0xf]
        %v2757 = vld [vmem:[%s2747 + $0x24] sm:$0xf]
        %v2758 = vld [vmem:[%s2747 + $0x28] sm:$0xf]
        %v2759 = vld [vmem:[%s2747 + $0x2c] sm:$0xf]
        %v2760 = vld [vmem:[%s2747 + $0x30] sm:$0xf]
        %v2761 = vld [vmem:[%s2747 + $0x34] sm:$0xf]
        %v2762 = vld [vmem:[%s2747 + $0x38] sm:$0xf]
        %v2763 = vld [vmem:[%s2747 + $0x3c] sm:$0xf]
        %v2780 = vunpack.c.l.b16 %v2748
        %v2781 = vunpack.c.l.b16 %v2749
        %v2782 = vunpack.c.l.b16 %v2750
        %v2783 = vunpack.c.l.b16 %v2751
        %v2784 = vunpack.c.l.b16 %v2752
        %v2785 = vunpack.c.l.b16 %v2753
        %v2786 = vunpack.c.l.b16 %v2754
        %v2787 = vunpack.c.l.b16 %v2755
        %v2788 = vunpack.c.l.b16 %v2756
        %v2789 = vunpack.c.l.b16 %v2757
        %v2790 = vunpack.c.l.b16 %v2758
        %v2791 = vunpack.c.l.b16 %v2759
        %v2792 = vunpack.c.l.b16 %v2760
        %v2793 = vunpack.c.l.b16 %v2761
        %v2794 = vunpack.c.l.b16 %v2762
        %v2795 = vunpack.c.l.b16 %v2763
        %v2796 = vpack.c.b16 %v2781, %v2780
        %v2797 = vpack.c.b16 %v2783, %v2782
        %v2798 = vpack.c.b16 %v2785, %v2784
        %v2799 = vpack.c.b16 %v2787, %v2786
        %v2800 = vpack.c.b16 %v2789, %v2788
        %v2801 = vpack.c.b16 %v2791, %v2790
        %v2802 = vpack.c.b16 %v2793, %v2792
        %v2803 = vpack.c.b16 %v2795, %v2794
        %2812 = vmatpush.bf16.msra.mxu0 %v2803
        %2813 = vmatpush.bf16.msra.mxu0 %v2802
        %2814 = vmatpush.bf16.msra.mxu0 %v2801
        %2815 = vmatpush.bf16.msra.mxu0 %v2800
        %2816 = vmatpush.bf16.msra.mxu0 %v2799
        %2817 = vmatpush.bf16.msra.mxu0 %v2798
        %2818 = vmatpush.bf16.msra.mxu0 %v2797
        %2819 = vmatpush.bf16.msra.mxu0 %v2796
        %2820 = vmatmul.bf16.gmra.mxu0 %v1705
        %v2821 = vpop.f32.mrf.mxu0
        %v2822 = vadd.f32 0.0, %v2821
        %v2823 = vpop.f32.mrf.mxu0
        %v2824 = vadd.f32 0.0, %v2823
        %2825 = vmatmul.bf16.gmra.mxu0 %v1706
        %v2826 = vpop.f32.mrf.mxu0
        %v2827 = vadd.f32 0.0, %v2826
        %v2828 = vpop.f32.mrf.mxu0
        %v2829 = vadd.f32 0.0, %v2828
        %2830 = vmatmul.bf16.gmra.mxu0 %v1707
        %v2831 = vpop.f32.mrf.mxu0
        %v2832 = vadd.f32 0.0, %v2831
        %v2833 = vpop.f32.mrf.mxu0
        %v2834 = vadd.f32 0.0, %v2833
        %2835 = vmatmul.bf16.gmra.mxu0 %v1708
        %v2836 = vpop.f32.mrf.mxu0
        %v2837 = vadd.f32 0.0, %v2836
        %v2838 = vpop.f32.mrf.mxu0
        %v2839 = vadd.f32 0.0, %v2838
        %2840 = vmatmul.bf16.gmra.mxu0 %v1709
        %v2841 = vpop.f32.mrf.mxu0
        %v2842 = vadd.f32 0.0, %v2841
        %v2843 = vpop.f32.mrf.mxu0
        %v2844 = vadd.f32 0.0, %v2843
        %2845 = vmatmul.bf16.gmra.mxu0 %v1710
        %v2846 = vpop.f32.mrf.mxu0
        %v2847 = vadd.f32 0.0, %v2846
        %v2848 = vpop.f32.mrf.mxu0
        %v2849 = vadd.f32 0.0, %v2848
        %2850 = vmatmul.bf16.gmra.mxu0 %v1711
        %v2851 = vpop.f32.mrf.mxu0
        %v2852 = vadd.f32 0.0, %v2851
        %v2853 = vpop.f32.mrf.mxu0
        %v2854 = vadd.f32 0.0, %v2853
        %2855 = vmatmul.bf16.gmra.mxu0 %v1712
        %v2856 = vpop.f32.mrf.mxu0
        %v2857 = vadd.f32 0.0, %v2856
        %v2858 = vpop.f32.mrf.mxu0
        %v2859 = vadd.f32 0.0, %v2858
        %2860 = vmatmul.bf16.gmra.mxu0 %v1713
        %v2861 = vpop.f32.mrf.mxu0
        %v2862 = vadd.f32 0.0, %v2861
        %v2863 = vpop.f32.mrf.mxu0
        %v2864 = vadd.f32 0.0, %v2863
        %2865 = vmatmul.bf16.gmra.mxu0 %v1714
        %v2866 = vpop.f32.mrf.mxu0
        %v2867 = vadd.f32 0.0, %v2866
        %v2868 = vpop.f32.mrf.mxu0
        %v2869 = vadd.f32 0.0, %v2868
        %2870 = vmatmul.bf16.gmra.mxu0 %v1715
        %v2871 = vpop.f32.mrf.mxu0
        %v2872 = vadd.f32 0.0, %v2871
        %v2873 = vpop.f32.mrf.mxu0
        %v2874 = vadd.f32 0.0, %v2873
        %2875 = vmatmul.bf16.gmra.mxu0 %v1716
        %v2876 = vpop.f32.mrf.mxu0
        %v2877 = vadd.f32 0.0, %v2876
        %v2878 = vpop.f32.mrf.mxu0
        %v2879 = vadd.f32 0.0, %v2878
        %2880 = vmatmul.bf16.gmra.mxu0 %v1717
        %v2881 = vpop.f32.mrf.mxu0
        %v2882 = vadd.f32 0.0, %v2881
        %v2883 = vpop.f32.mrf.mxu0
        %v2884 = vadd.f32 0.0, %v2883
        %2885 = vmatmul.bf16.gmra.mxu0 %v1718
        %v2886 = vpop.f32.mrf.mxu0
        %v2887 = vadd.f32 0.0, %v2886
        %v2888 = vpop.f32.mrf.mxu0
        %v2889 = vadd.f32 0.0, %v2888
        %2890 = vdwg.mxu0
        %v2891 = vadd.f32 %v2678, %v2822
        %v2892 = vadd.f32 %v2680, %v2824
        %v2893 = vadd.f32 %v2683, %v2827
        %v2894 = vadd.f32 %v2685, %v2829
        %v2895 = vadd.f32 %v2688, %v2832
        %v2896 = vadd.f32 %v2690, %v2834
        %v2897 = vadd.f32 %v2693, %v2837
        %v2898 = vadd.f32 %v2695, %v2839
        %v2899 = vadd.f32 %v2698, %v2842
        %v2900 = vadd.f32 %v2700, %v2844
        %v2901 = vadd.f32 %v2703, %v2847
        %v2902 = vadd.f32 %v2705, %v2849
        %v2903 = vadd.f32 %v2708, %v2852
        %v2904 = vadd.f32 %v2710, %v2854
        %v2905 = vadd.f32 %v2713, %v2857
        %v2906 = vadd.f32 %v2715, %v2859
        %v2907 = vadd.f32 %v2718, %v2862
        %v2908 = vadd.f32 %v2720, %v2864
        %v2909 = vadd.f32 %v2723, %v2867
        %v2910 = vadd.f32 %v2725, %v2869
        %v2911 = vadd.f32 %v2728, %v2872
        %v2912 = vadd.f32 %v2730, %v2874
        %v2913 = vadd.f32 %v2733, %v2877
        %v2914 = vadd.f32 %v2735, %v2879
        %v2915 = vadd.f32 %v2738, %v2882
        %v2916 = vadd.f32 %v2740, %v2884
        %v2917 = vadd.f32 %v2743, %v2887
        %v2918 = vadd.f32 %v2745, %v2889
        %s2919 = scalar_lea.vmem %s1, 512
        %v2920 = vld [vmem:[%s2919] sm:$0xf]
        %v2921 = vld [vmem:[%s2919 + $0x4] sm:$0xf]
        %v2922 = vld [vmem:[%s2919 + $0x8] sm:$0xf]
        %v2923 = vld [vmem:[%s2919 + $0xc] sm:$0xf]
        %v2924 = vld [vmem:[%s2919 + $0x10] sm:$0xf]
        %v2925 = vld [vmem:[%s2919 + $0x14] sm:$0xf]
        %v2926 = vld [vmem:[%s2919 + $0x18] sm:$0xf]
        %v2927 = vld [vmem:[%s2919 + $0x1c] sm:$0xf]
        %v2928 = vld [vmem:[%s2919 + $0x20] sm:$0xf]
        %v2929 = vld [vmem:[%s2919 + $0x24] sm:$0xf]
        %v2930 = vld [vmem:[%s2919 + $0x28] sm:$0xf]
        %v2931 = vld [vmem:[%s2919 + $0x2c] sm:$0xf]
        %v2932 = vld [vmem:[%s2919 + $0x30] sm:$0xf]
        %v2933 = vld [vmem:[%s2919 + $0x34] sm:$0xf]
        %v2934 = vld [vmem:[%s2919 + $0x38] sm:$0xf]
        %v2935 = vld [vmem:[%s2919 + $0x3c] sm:$0xf]
        %v2952 = vunpack.c.l.b16 %v2920
        %v2953 = vunpack.c.l.b16 %v2921
        %v2954 = vunpack.c.l.b16 %v2922
        %v2955 = vunpack.c.l.b16 %v2923
        %v2956 = vunpack.c.l.b16 %v2924
        %v2957 = vunpack.c.l.b16 %v2925
        %v2958 = vunpack.c.l.b16 %v2926
        %v2959 = vunpack.c.l.b16 %v2927
        %v2960 = vunpack.c.l.b16 %v2928
        %v2961 = vunpack.c.l.b16 %v2929
        %v2962 = vunpack.c.l.b16 %v2930
        %v2963 = vunpack.c.l.b16 %v2931
        %v2964 = vunpack.c.l.b16 %v2932
        %v2965 = vunpack.c.l.b16 %v2933
        %v2966 = vunpack.c.l.b16 %v2934
        %v2967 = vunpack.c.l.b16 %v2935
        %v2968 = vpack.c.b16 %v2953, %v2952
        %v2969 = vpack.c.b16 %v2955, %v2954
        %v2970 = vpack.c.b16 %v2957, %v2956
        %v2971 = vpack.c.b16 %v2959, %v2958
        %v2972 = vpack.c.b16 %v2961, %v2960
        %v2973 = vpack.c.b16 %v2963, %v2962
        %v2974 = vpack.c.b16 %v2965, %v2964
        %v2975 = vpack.c.b16 %v2967, %v2966
        %2984 = vmatpush.bf16.msra.mxu0 %v2975
        %2985 = vmatpush.bf16.msra.mxu0 %v2974
        %2986 = vmatpush.bf16.msra.mxu0 %v2973
        %2987 = vmatpush.bf16.msra.mxu0 %v2972
        %2988 = vmatpush.bf16.msra.mxu0 %v2971
        %2989 = vmatpush.bf16.msra.mxu0 %v2970
        %2990 = vmatpush.bf16.msra.mxu0 %v2969
        %2991 = vmatpush.bf16.msra.mxu0 %v2968
        %2992 = vmatmul.bf16.gmra.mxu0 %v1961
        %v2993 = vpop.f32.mrf.mxu0
        %v2994 = vadd.f32 0.0, %v2993
        %v2995 = vpop.f32.mrf.mxu0
        %v2996 = vadd.f32 0.0, %v2995
        %2997 = vmatmul.bf16.gmra.mxu0 %v1962
        %v2998 = vpop.f32.mrf.mxu0
        %v2999 = vadd.f32 0.0, %v2998
        %v3000 = vpop.f32.mrf.mxu0
        %v3001 = vadd.f32 0.0, %v3000
        %3002 = vmatmul.bf16.gmra.mxu0 %v1963
        %v3003 = vpop.f32.mrf.mxu0
        %v3004 = vadd.f32 0.0, %v3003
        %v3005 = vpop.f32.mrf.mxu0
        %v3006 = vadd.f32 0.0, %v3005
        %3007 = vmatmul.bf16.gmra.mxu0 %v1964
        %v3008 = vpop.f32.mrf.mxu0
        %v3009 = vadd.f32 0.0, %v3008
        %v3010 = vpop.f32.mrf.mxu0
        %v3011 = vadd.f32 0.0, %v3010
        %3012 = vmatmul.bf16.gmra.mxu0 %v1965
        %v3013 = vpop.f32.mrf.mxu0
        %v3014 = vadd.f32 0.0, %v3013
        %v3015 = vpop.f32.mrf.mxu0
        %v3016 = vadd.f32 0.0, %v3015
        %3017 = vmatmul.bf16.gmra.mxu0 %v1966
        %v3018 = vpop.f32.mrf.mxu0
        %v3019 = vadd.f32 0.0, %v3018
        %v3020 = vpop.f32.mrf.mxu0
        %v3021 = vadd.f32 0.0, %v3020
        %3022 = vmatmul.bf16.gmra.mxu0 %v1967
        %v3023 = vpop.f32.mrf.mxu0
        %v3024 = vadd.f32 0.0, %v3023
        %v3025 = vpop.f32.mrf.mxu0
        %v3026 = vadd.f32 0.0, %v3025
        %3027 = vmatmul.bf16.gmra.mxu0 %v1968
        %v3028 = vpop.f32.mrf.mxu0
        %v3029 = vadd.f32 0.0, %v3028
        %v3030 = vpop.f32.mrf.mxu0
        %v3031 = vadd.f32 0.0, %v3030
        %3032 = vmatmul.bf16.gmra.mxu0 %v1969
        %v3033 = vpop.f32.mrf.mxu0
        %v3034 = vadd.f32 0.0, %v3033
        %v3035 = vpop.f32.mrf.mxu0
        %v3036 = vadd.f32 0.0, %v3035
        %3037 = vmatmul.bf16.gmra.mxu0 %v1970
        %v3038 = vpop.f32.mrf.mxu0
        %v3039 = vadd.f32 0.0, %v3038
        %v3040 = vpop.f32.mrf.mxu0
        %v3041 = vadd.f32 0.0, %v3040
        %3042 = vmatmul.bf16.gmra.mxu0 %v1971
        %v3043 = vpop.f32.mrf.mxu0
        %v3044 = vadd.f32 0.0, %v3043
        %v3045 = vpop.f32.mrf.mxu0
        %v3046 = vadd.f32 0.0, %v3045
        %3047 = vmatmul.bf16.gmra.mxu0 %v1972
        %v3048 = vpop.f32.mrf.mxu0
        %v3049 = vadd.f32 0.0, %v3048
        %v3050 = vpop.f32.mrf.mxu0
        %v3051 = vadd.f32 0.0, %v3050
        %3052 = vmatmul.bf16.gmra.mxu0 %v1973
        %v3053 = vpop.f32.mrf.mxu0
        %v3054 = vadd.f32 0.0, %v3053
        %v3055 = vpop.f32.mrf.mxu0
        %v3056 = vadd.f32 0.0, %v3055
        %3057 = vmatmul.bf16.gmra.mxu0 %v1974
        %v3058 = vpop.f32.mrf.mxu0
        %v3059 = vadd.f32 0.0, %v3058
        %v3060 = vpop.f32.mrf.mxu0
        %v3061 = vadd.f32 0.0, %v3060
        %3062 = vdwg.mxu0
        %v3063 = vadd.f32 %v2891, %v2994
        %v3064 = vadd.f32 %v2892, %v2996
        %v3065 = vadd.f32 %v2893, %v2999
        %v3066 = vadd.f32 %v2894, %v3001
        %v3067 = vadd.f32 %v2895, %v3004
        %v3068 = vadd.f32 %v2896, %v3006
        %v3069 = vadd.f32 %v2897, %v3009
        %v3070 = vadd.f32 %v2898, %v3011
        %v3071 = vadd.f32 %v2899, %v3014
        %v3072 = vadd.f32 %v2900, %v3016
        %v3073 = vadd.f32 %v2901, %v3019
        %v3074 = vadd.f32 %v2902, %v3021
        %v3075 = vadd.f32 %v2903, %v3024
        %v3076 = vadd.f32 %v2904, %v3026
        %v3077 = vadd.f32 %v2905, %v3029
        %v3078 = vadd.f32 %v2906, %v3031
        %v3079 = vadd.f32 %v2907, %v3034
        %v3080 = vadd.f32 %v2908, %v3036
        %v3081 = vadd.f32 %v2909, %v3039
        %v3082 = vadd.f32 %v2910, %v3041
        %v3083 = vadd.f32 %v2911, %v3044
        %v3084 = vadd.f32 %v2912, %v3046
        %v3085 = vadd.f32 %v2913, %v3049
        %v3086 = vadd.f32 %v2914, %v3051
        %v3087 = vadd.f32 %v2915, %v3054
        %v3088 = vadd.f32 %v2916, %v3056
        %v3089 = vadd.f32 %v2917, %v3059
        %v3090 = vadd.f32 %v2918, %v3061
        %s3091 = scalar_lea.vmem %s1, 576
        %v3092 = vld [vmem:[%s3091] sm:$0xf]
        %v3093 = vld [vmem:[%s3091 + $0x4] sm:$0xf]
        %v3094 = vld [vmem:[%s3091 + $0x8] sm:$0xf]
        %v3095 = vld [vmem:[%s3091 + $0xc] sm:$0xf]
        %v3096 = vld [vmem:[%s3091 + $0x10] sm:$0xf]
        %v3097 = vld [vmem:[%s3091 + $0x14] sm:$0xf]
        %v3098 = vld [vmem:[%s3091 + $0x18] sm:$0xf]
        %v3099 = vld [vmem:[%s3091 + $0x1c] sm:$0xf]
        %v3100 = vld [vmem:[%s3091 + $0x20] sm:$0xf]
        %v3101 = vld [vmem:[%s3091 + $0x24] sm:$0xf]
        %v3102 = vld [vmem:[%s3091 + $0x28] sm:$0xf]
        %v3103 = vld [vmem:[%s3091 + $0x2c] sm:$0xf]
        %v3104 = vld [vmem:[%s3091 + $0x30] sm:$0xf]
        %v3105 = vld [vmem:[%s3091 + $0x34] sm:$0xf]
        %v3106 = vld [vmem:[%s3091 + $0x38] sm:$0xf]
        %v3107 = vld [vmem:[%s3091 + $0x3c] sm:$0xf]
        %v3124 = vunpack.c.l.b16 %v3092
        %v3125 = vunpack.c.l.b16 %v3093
        %v3126 = vunpack.c.l.b16 %v3094
        %v3127 = vunpack.c.l.b16 %v3095
        %v3128 = vunpack.c.l.b16 %v3096
        %v3129 = vunpack.c.l.b16 %v3097
        %v3130 = vunpack.c.l.b16 %v3098
        %v3131 = vunpack.c.l.b16 %v3099
        %v3132 = vunpack.c.l.b16 %v3100
        %v3133 = vunpack.c.l.b16 %v3101
        %v3134 = vunpack.c.l.b16 %v3102
        %v3135 = vunpack.c.l.b16 %v3103
        %v3136 = vunpack.c.l.b16 %v3104
        %v3137 = vunpack.c.l.b16 %v3105
        %v3138 = vunpack.c.l.b16 %v3106
        %v3139 = vunpack.c.l.b16 %v3107
        %v3140 = vpack.c.b16 %v3125, %v3124
        %v3141 = vpack.c.b16 %v3127, %v3126
        %v3142 = vpack.c.b16 %v3129, %v3128
        %v3143 = vpack.c.b16 %v3131, %v3130
        %v3144 = vpack.c.b16 %v3133, %v3132
        %v3145 = vpack.c.b16 %v3135, %v3134
        %v3146 = vpack.c.b16 %v3137, %v3136
        %v3147 = vpack.c.b16 %v3139, %v3138
        %3156 = vmatpush.bf16.msra.mxu0 %v3147
        %3157 = vmatpush.bf16.msra.mxu0 %v3146
        %3158 = vmatpush.bf16.msra.mxu0 %v3145
        %3159 = vmatpush.bf16.msra.mxu0 %v3144
        %3160 = vmatpush.bf16.msra.mxu0 %v3143
        %3161 = vmatpush.bf16.msra.mxu0 %v3142
        %3162 = vmatpush.bf16.msra.mxu0 %v3141
        %3163 = vmatpush.bf16.msra.mxu0 %v3140
        %3164 = vmatmul.bf16.gmra.mxu0 %v2217
        %v3165 = vpop.f32.mrf.mxu0
        %v3166 = vadd.f32 0.0, %v3165
        %v3167 = vpop.f32.mrf.mxu0
        %v3168 = vadd.f32 0.0, %v3167
        %3169 = vmatmul.bf16.gmra.mxu0 %v2218
        %v3170 = vpop.f32.mrf.mxu0
        %v3171 = vadd.f32 0.0, %v3170
        %v3172 = vpop.f32.mrf.mxu0
        %v3173 = vadd.f32 0.0, %v3172
        %3174 = vmatmul.bf16.gmra.mxu0 %v2219
        %v3175 = vpop.f32.mrf.mxu0
        %v3176 = vadd.f32 0.0, %v3175
        %v3177 = vpop.f32.mrf.mxu0
        %v3178 = vadd.f32 0.0, %v3177
        %3179 = vmatmul.bf16.gmra.mxu0 %v2220
        %v3180 = vpop.f32.mrf.mxu0
        %v3181 = vadd.f32 0.0, %v3180
        %v3182 = vpop.f32.mrf.mxu0
        %v3183 = vadd.f32 0.0, %v3182
        %3184 = vmatmul.bf16.gmra.mxu0 %v2221
        %v3185 = vpop.f32.mrf.mxu0
        %v3186 = vadd.f32 0.0, %v3185
        %v3187 = vpop.f32.mrf.mxu0
        %v3188 = vadd.f32 0.0, %v3187
        %3189 = vmatmul.bf16.gmra.mxu0 %v2222
        %v3190 = vpop.f32.mrf.mxu0
        %v3191 = vadd.f32 0.0, %v3190
        %v3192 = vpop.f32.mrf.mxu0
        %v3193 = vadd.f32 0.0, %v3192
        %3194 = vmatmul.bf16.gmra.mxu0 %v2223
        %v3195 = vpop.f32.mrf.mxu0
        %v3196 = vadd.f32 0.0, %v3195
        %v3197 = vpop.f32.mrf.mxu0
        %v3198 = vadd.f32 0.0, %v3197
        %3199 = vmatmul.bf16.gmra.mxu0 %v2224
        %v3200 = vpop.f32.mrf.mxu0
        %v3201 = vadd.f32 0.0, %v3200
        %v3202 = vpop.f32.mrf.mxu0
        %v3203 = vadd.f32 0.0, %v3202
        %3204 = vmatmul.bf16.gmra.mxu0 %v2225
        %v3205 = vpop.f32.mrf.mxu0
        %v3206 = vadd.f32 0.0, %v3205
        %v3207 = vpop.f32.mrf.mxu0
        %v3208 = vadd.f32 0.0, %v3207
        %3209 = vmatmul.bf16.gmra.mxu0 %v2226
        %v3210 = vpop.f32.mrf.mxu0
        %v3211 = vadd.f32 0.0, %v3210
        %v3212 = vpop.f32.mrf.mxu0
        %v3213 = vadd.f32 0.0, %v3212
        %3214 = vmatmul.bf16.gmra.mxu0 %v2227
        %v3215 = vpop.f32.mrf.mxu0
        %v3216 = vadd.f32 0.0, %v3215
        %v3217 = vpop.f32.mrf.mxu0
        %v3218 = vadd.f32 0.0, %v3217
        %3219 = vmatmul.bf16.gmra.mxu0 %v2228
        %v3220 = vpop.f32.mrf.mxu0
        %v3221 = vadd.f32 0.0, %v3220
        %v3222 = vpop.f32.mrf.mxu0
        %v3223 = vadd.f32 0.0, %v3222
        %3224 = vmatmul.bf16.gmra.mxu0 %v2229
        %v3225 = vpop.f32.mrf.mxu0
        %v3226 = vadd.f32 0.0, %v3225
        %v3227 = vpop.f32.mrf.mxu0
        %v3228 = vadd.f32 0.0, %v3227
        %3229 = vmatmul.bf16.gmra.mxu0 %v2230
        %v3230 = vpop.f32.mrf.mxu0
        %v3231 = vadd.f32 0.0, %v3230
        %v3232 = vpop.f32.mrf.mxu0
        %v3233 = vadd.f32 0.0, %v3232
        %3234 = vdwg.mxu0
        %v3235 = vadd.f32 %v3063, %v3166
        %v3236 = vadd.f32 %v3064, %v3168
        %v3237 = vadd.f32 %v3065, %v3171
        %v3238 = vadd.f32 %v3066, %v3173
        %v3239 = vadd.f32 %v3067, %v3176
        %v3240 = vadd.f32 %v3068, %v3178
        %v3241 = vadd.f32 %v3069, %v3181
        %v3242 = vadd.f32 %v3070, %v3183
        %v3243 = vadd.f32 %v3071, %v3186
        %v3244 = vadd.f32 %v3072, %v3188
        %v3245 = vadd.f32 %v3073, %v3191
        %v3246 = vadd.f32 %v3074, %v3193
        %v3247 = vadd.f32 %v3075, %v3196
        %v3248 = vadd.f32 %v3076, %v3198
        %v3249 = vadd.f32 %v3077, %v3201
        %v3250 = vadd.f32 %v3078, %v3203
        %v3251 = vadd.f32 %v3079, %v3206
        %v3252 = vadd.f32 %v3080, %v3208
        %v3253 = vadd.f32 %v3081, %v3211
        %v3254 = vadd.f32 %v3082, %v3213
        %v3255 = vadd.f32 %v3083, %v3216
        %v3256 = vadd.f32 %v3084, %v3218
        %v3257 = vadd.f32 %v3085, %v3221
        %v3258 = vadd.f32 %v3086, %v3223
        %v3259 = vadd.f32 %v3087, %v3226
        %v3260 = vadd.f32 %v3088, %v3228
        %v3261 = vadd.f32 %v3089, %v3231
        %v3262 = vadd.f32 %v3090, %v3233
        %v3263 = vadd.f32 %v3235, %v2401
        %v3264 = vadd.f32 %v3236, %v2401
        %v3265 = vadd.f32 %v3237, %v2401
        %v3266 = vadd.f32 %v3238, %v2401
        %v3267 = vadd.f32 %v3239, %v2401
        %v3268 = vadd.f32 %v3240, %v2401
        %v3269 = vadd.f32 %v3241, %v2401
        %v3270 = vadd.f32 %v3242, %v2401
        %v3271 = vadd.f32 %v3243, %v2401
        %v3272 = vadd.f32 %v3244, %v2401
        %v3273 = vadd.f32 %v3245, %v2401
        %v3274 = vadd.f32 %v3246, %v2401
        %v3275 = vadd.f32 %v3247, %v2401
        %v3276 = vadd.f32 %v3248, %v2401
        %v3277 = vadd.f32 %v3249, %v2401
        %v3278 = vadd.f32 %v3250, %v2401
        %v3279 = vadd.f32 %v3251, %v2401
        %v3280 = vadd.f32 %v3252, %v2401
        %v3281 = vadd.f32 %v3253, %v2401
        %v3282 = vadd.f32 %v3254, %v2401
        %v3283 = vadd.f32 %v3255, %v2401
        %v3284 = vadd.f32 %v3256, %v2401
        %v3285 = vadd.f32 %v3257, %v2401
        %v3286 = vadd.f32 %v3258, %v2401
        %v3287 = vadd.f32 %v3259, %v2401
        %v3288 = vadd.f32 %v3260, %v2401
        %v3289 = vadd.f32 %v3261, %v2401
        %v3290 = vadd.f32 %v3262, %v2401
        %v3291 = vmax.f32 %v3263, 0.0
        %v3292 = vmax.f32 %v3264, 0.0
        %v3293 = vmax.f32 %v3265, 0.0
        %v3294 = vmax.f32 %v3266, 0.0
        %v3295 = vmax.f32 %v3267, 0.0
        %v3296 = vmax.f32 %v3268, 0.0
        %v3297 = vmax.f32 %v3269, 0.0
        %v3298 = vmax.f32 %v3270, 0.0
        %v3299 = vmax.f32 %v3271, 0.0
        %v3300 = vmax.f32 %v3272, 0.0
        %v3301 = vmax.f32 %v3273, 0.0
        %v3302 = vmax.f32 %v3274, 0.0
        %v3303 = vmax.f32 %v3275, 0.0
        %v3304 = vmax.f32 %v3276, 0.0
        %v3305 = vmax.f32 %v3277, 0.0
        %v3306 = vmax.f32 %v3278, 0.0
        %v3307 = vmax.f32 %v3279, 0.0
        %v3308 = vmax.f32 %v3280, 0.0
        %v3309 = vmax.f32 %v3281, 0.0
        %v3310 = vmax.f32 %v3282, 0.0
        %v3311 = vmax.f32 %v3283, 0.0
        %v3312 = vmax.f32 %v3284, 0.0
        %v3313 = vmax.f32 %v3285, 0.0
        %v3314 = vmax.f32 %v3286, 0.0
        %v3315 = vmax.f32 %v3287, 0.0
        %v3316 = vmax.f32 %v3288, 0.0
        %v3317 = vmax.f32 %v3289, 0.0
        %v3318 = vmax.f32 %v3290, 0.0
        %v3319 = vmax.f32 %v2431, %v3291
        %v3320 = vmax.f32 %v2432, %v3292
        %v3321 = vmax.f32 %v2433, %v3293
        %v3322 = vmax.f32 %v2434, %v3294
        %v3323 = vmax.f32 %v2435, %v3295
        %v3324 = vmax.f32 %v2436, %v3296
        %v3325 = vmax.f32 %v2437, %v3297
        %v3326 = vmax.f32 %v2438, %v3298
        %v3327 = vmax.f32 %v2439, %v3299
        %v3328 = vmax.f32 %v2440, %v3300
        %v3329 = vmax.f32 %v2441, %v3301
        %v3330 = vmax.f32 %v2442, %v3302
        %v3331 = vmax.f32 %v2443, %v3303
        %v3332 = vmax.f32 %v2444, %v3304
        %v3333 = vmax.f32 %v2445, %v3305
        %v3334 = vmax.f32 %v2446, %v3306
        %v3335 = vmax.f32 %v2447, %v3307
        %v3336 = vmax.f32 %v2448, %v3308
        %v3337 = vmax.f32 %v2449, %v3309
        %v3338 = vmax.f32 %v2450, %v3310
        %v3339 = vmax.f32 %v2451, %v3311
        %v3340 = vmax.f32 %v2452, %v3312
        %v3341 = vmax.f32 %v2453, %v3313
        %v3342 = vmax.f32 %v2454, %v3314
        %v3343 = vmax.f32 %v2455, %v3315
        %v3344 = vmax.f32 %v2456, %v3316
        %v3345 = vmax.f32 %v2457, %v3317
        %v3346 = vmax.f32 %v2458, %v3318
        %3347 = vmatpush.bf16.msra.mxu0 %v1333
        %3348 = vmatpush.bf16.msra.mxu0 %v1332
        %3349 = vmatpush.bf16.msra.mxu0 %v1331
        %3350 = vmatpush.bf16.msra.mxu0 %v1330
        %3351 = vmatpush.bf16.msra.mxu0 %v1329
        %3352 = vmatpush.bf16.msra.mxu0 %v1328
        %3353 = vmatpush.bf16.msra.mxu0 %v1327
        %3354 = vmatpush.bf16.msra.mxu0 %v1326
        %3355 = vmatmul.bf16.gmra.mxu0 %v1705
        %v3356 = vpop.f32.mrf.mxu0
        %v3357 = vadd.f32 0.0, %v3356
        %v3358 = vpop.f32.mrf.mxu0
        %v3359 = vadd.f32 0.0, %v3358
        %3360 = vmatmul.bf16.gmra.mxu0 %v1706
        %v3361 = vpop.f32.mrf.mxu0
        %v3362 = vadd.f32 0.0, %v3361
        %v3363 = vpop.f32.mrf.mxu0
        %v3364 = vadd.f32 0.0, %v3363
        %3365 = vmatmul.bf16.gmra.mxu0 %v1707
        %v3366 = vpop.f32.mrf.mxu0
        %v3367 = vadd.f32 0.0, %v3366
        %v3368 = vpop.f32.mrf.mxu0
        %v3369 = vadd.f32 0.0, %v3368
        %3370 = vmatmul.bf16.gmra.mxu0 %v1708
        %v3371 = vpop.f32.mrf.mxu0
        %v3372 = vadd.f32 0.0, %v3371
        %v3373 = vpop.f32.mrf.mxu0
        %v3374 = vadd.f32 0.0, %v3373
        %3375 = vmatmul.bf16.gmra.mxu0 %v1709
        %v3376 = vpop.f32.mrf.mxu0
        %v3377 = vadd.f32 0.0, %v3376
        %v3378 = vpop.f32.mrf.mxu0
        %v3379 = vadd.f32 0.0, %v3378
        %3380 = vmatmul.bf16.gmra.mxu0 %v1710
        %v3381 = vpop.f32.mrf.mxu0
        %v3382 = vadd.f32 0.0, %v3381
        %v3383 = vpop.f32.mrf.mxu0
        %v3384 = vadd.f32 0.0, %v3383
        %3385 = vmatmul.bf16.gmra.mxu0 %v1711
        %v3386 = vpop.f32.mrf.mxu0
        %v3387 = vadd.f32 0.0, %v3386
        %v3388 = vpop.f32.mrf.mxu0
        %v3389 = vadd.f32 0.0, %v3388
        %3390 = vmatmul.bf16.gmra.mxu0 %v1712
        %v3391 = vpop.f32.mrf.mxu0
        %v3392 = vadd.f32 0.0, %v3391
        %v3393 = vpop.f32.mrf.mxu0
        %v3394 = vadd.f32 0.0, %v3393
        %3395 = vmatmul.bf16.gmra.mxu0 %v1713
        %v3396 = vpop.f32.mrf.mxu0
        %v3397 = vadd.f32 0.0, %v3396
        %v3398 = vpop.f32.mrf.mxu0
        %v3399 = vadd.f32 0.0, %v3398
        %3400 = vmatmul.bf16.gmra.mxu0 %v1714
        %v3401 = vpop.f32.mrf.mxu0
        %v3402 = vadd.f32 0.0, %v3401
        %v3403 = vpop.f32.mrf.mxu0
        %v3404 = vadd.f32 0.0, %v3403
        %3405 = vmatmul.bf16.gmra.mxu0 %v1715
        %v3406 = vpop.f32.mrf.mxu0
        %v3407 = vadd.f32 0.0, %v3406
        %v3408 = vpop.f32.mrf.mxu0
        %v3409 = vadd.f32 0.0, %v3408
        %3410 = vmatmul.bf16.gmra.mxu0 %v1716
        %v3411 = vpop.f32.mrf.mxu0
        %v3412 = vadd.f32 0.0, %v3411
        %v3413 = vpop.f32.mrf.mxu0
        %v3414 = vadd.f32 0.0, %v3413
        %3415 = vmatmul.bf16.gmra.mxu0 %v1717
        %v3416 = vpop.f32.mrf.mxu0
        %v3417 = vadd.f32 0.0, %v3416
        %v3418 = vpop.f32.mrf.mxu0
        %v3419 = vadd.f32 0.0, %v3418
        %3420 = vmatmul.bf16.gmra.mxu0 %v1718
        %v3421 = vpop.f32.mrf.mxu0
        %v3422 = vadd.f32 0.0, %v3421
        %v3423 = vpop.f32.mrf.mxu0
        %v3424 = vadd.f32 0.0, %v3423
        %3425 = vdwg.mxu0
        %3426 = vmatpush.bf16.msra.mxu0 %v1544
        %3427 = vmatpush.bf16.msra.mxu0 %v1543
        %3428 = vmatpush.bf16.msra.mxu0 %v1542
        %3429 = vmatpush.bf16.msra.mxu0 %v1541
        %3430 = vmatpush.bf16.msra.mxu0 %v1540
        %3431 = vmatpush.bf16.msra.mxu0 %v1539
        %3432 = vmatpush.bf16.msra.mxu0 %v1538
        %3433 = vmatpush.bf16.msra.mxu0 %v1537
        %3434 = vmatmul.bf16.gmra.mxu0 %v1266
        %v3435 = vpop.f32.mrf.mxu0
        %v3436 = vadd.f32 %v3357, %v3435
        %v3437 = vpop.f32.mrf.mxu0
        %v3438 = vadd.f32 %v3359, %v3437
        %3439 = vmatmul.bf16.gmra.mxu0 %v1267
        %v3440 = vpop.f32.mrf.mxu0
        %v3441 = vadd.f32 %v3362, %v3440
        %v3442 = vpop.f32.mrf.mxu0
        %v3443 = vadd.f32 %v3364, %v3442
        %3444 = vmatmul.bf16.gmra.mxu0 %v1268
        %v3445 = vpop.f32.mrf.mxu0
        %v3446 = vadd.f32 %v3367, %v3445
        %v3447 = vpop.f32.mrf.mxu0
        %v3448 = vadd.f32 %v3369, %v3447
        %3449 = vmatmul.bf16.gmra.mxu0 %v1269
        %v3450 = vpop.f32.mrf.mxu0
        %v3451 = vadd.f32 %v3372, %v3450
        %v3452 = vpop.f32.mrf.mxu0
        %v3453 = vadd.f32 %v3374, %v3452
        %3454 = vmatmul.bf16.gmra.mxu0 %v1270
        %v3455 = vpop.f32.mrf.mxu0
        %v3456 = vadd.f32 %v3377, %v3455
        %v3457 = vpop.f32.mrf.mxu0
        %v3458 = vadd.f32 %v3379, %v3457
        %3459 = vmatmul.bf16.gmra.mxu0 %v1271
        %v3460 = vpop.f32.mrf.mxu0
        %v3461 = vadd.f32 %v3382, %v3460
        %v3462 = vpop.f32.mrf.mxu0
        %v3463 = vadd.f32 %v3384, %v3462
        %3464 = vmatmul.bf16.gmra.mxu0 %v1272
        %v3465 = vpop.f32.mrf.mxu0
        %v3466 = vadd.f32 %v3387, %v3465
        %v3467 = vpop.f32.mrf.mxu0
        %v3468 = vadd.f32 %v3389, %v3467
        %3469 = vmatmul.bf16.gmra.mxu0 %v1273
        %v3470 = vpop.f32.mrf.mxu0
        %v3471 = vadd.f32 %v3392, %v3470
        %v3472 = vpop.f32.mrf.mxu0
        %v3473 = vadd.f32 %v3394, %v3472
        %3474 = vmatmul.bf16.gmra.mxu0 %v1274
        %v3475 = vpop.f32.mrf.mxu0
        %v3476 = vadd.f32 %v3397, %v3475
        %v3477 = vpop.f32.mrf.mxu0
        %v3478 = vadd.f32 %v3399, %v3477
        %3479 = vmatmul.bf16.gmra.mxu0 %v1275
        %v3480 = vpop.f32.mrf.mxu0
        %v3481 = vadd.f32 %v3402, %v3480
        %v3482 = vpop.f32.mrf.mxu0
        %v3483 = vadd.f32 %v3404, %v3482
        %3484 = vmatmul.bf16.gmra.mxu0 %v1276
        %v3485 = vpop.f32.mrf.mxu0
        %v3486 = vadd.f32 %v3407, %v3485
        %v3487 = vpop.f32.mrf.mxu0
        %v3488 = vadd.f32 %v3409, %v3487
        %3489 = vmatmul.bf16.gmra.mxu0 %v1277
        %v3490 = vpop.f32.mrf.mxu0
        %v3491 = vadd.f32 %v3412, %v3490
        %v3492 = vpop.f32.mrf.mxu0
        %v3493 = vadd.f32 %v3414, %v3492
        %3494 = vmatmul.bf16.gmra.mxu0 %v1278
        %v3495 = vpop.f32.mrf.mxu0
        %v3496 = vadd.f32 %v3417, %v3495
        %v3497 = vpop.f32.mrf.mxu0
        %v3498 = vadd.f32 %v3419, %v3497
        %3499 = vmatmul.bf16.gmra.mxu0 %v1279
        %v3500 = vpop.f32.mrf.mxu0
        %v3501 = vadd.f32 %v3422, %v3500
        %v3502 = vpop.f32.mrf.mxu0
        %v3503 = vadd.f32 %v3424, %v3502
        %3504 = vdwg.mxu0
        %3505 = vmatpush.bf16.msra.mxu0 %v1772
        %3506 = vmatpush.bf16.msra.mxu0 %v1771
        %3507 = vmatpush.bf16.msra.mxu0 %v1770
        %3508 = vmatpush.bf16.msra.mxu0 %v1769
        %3509 = vmatpush.bf16.msra.mxu0 %v1768
        %3510 = vmatpush.bf16.msra.mxu0 %v1767
        %3511 = vmatpush.bf16.msra.mxu0 %v1766
        %3512 = vmatpush.bf16.msra.mxu0 %v1765
        %3513 = vmatmul.bf16.gmra.mxu0 %v1961
        %v3514 = vpop.f32.mrf.mxu0
        %v3515 = vadd.f32 0.0, %v3514
        %v3516 = vpop.f32.mrf.mxu0
        %v3517 = vadd.f32 0.0, %v3516
        %3518 = vmatmul.bf16.gmra.mxu0 %v1962
        %v3519 = vpop.f32.mrf.mxu0
        %v3520 = vadd.f32 0.0, %v3519
        %v3521 = vpop.f32.mrf.mxu0
        %v3522 = vadd.f32 0.0, %v3521
        %3523 = vmatmul.bf16.gmra.mxu0 %v1963
        %v3524 = vpop.f32.mrf.mxu0
        %v3525 = vadd.f32 0.0, %v3524
        %v3526 = vpop.f32.mrf.mxu0
        %v3527 = vadd.f32 0.0, %v3526
        %3528 = vmatmul.bf16.gmra.mxu0 %v1964
        %v3529 = vpop.f32.mrf.mxu0
        %v3530 = vadd.f32 0.0, %v3529
        %v3531 = vpop.f32.mrf.mxu0
        %v3532 = vadd.f32 0.0, %v3531
        %3533 = vmatmul.bf16.gmra.mxu0 %v1965
        %v3534 = vpop.f32.mrf.mxu0
        %v3535 = vadd.f32 0.0, %v3534
        %v3536 = vpop.f32.mrf.mxu0
        %v3537 = vadd.f32 0.0, %v3536
        %3538 = vmatmul.bf16.gmra.mxu0 %v1966
        %v3539 = vpop.f32.mrf.mxu0
        %v3540 = vadd.f32 0.0, %v3539
        %v3541 = vpop.f32.mrf.mxu0
        %v3542 = vadd.f32 0.0, %v3541
        %3543 = vmatmul.bf16.gmra.mxu0 %v1967
        %v3544 = vpop.f32.mrf.mxu0
        %v3545 = vadd.f32 0.0, %v3544
        %v3546 = vpop.f32.mrf.mxu0
        %v3547 = vadd.f32 0.0, %v3546
        %3548 = vmatmul.bf16.gmra.mxu0 %v1968
        %v3549 = vpop.f32.mrf.mxu0
        %v3550 = vadd.f32 0.0, %v3549
        %v3551 = vpop.f32.mrf.mxu0
        %v3552 = vadd.f32 0.0, %v3551
        %3553 = vmatmul.bf16.gmra.mxu0 %v1969
        %v3554 = vpop.f32.mrf.mxu0
        %v3555 = vadd.f32 0.0, %v3554
        %v3556 = vpop.f32.mrf.mxu0
        %v3557 = vadd.f32 0.0, %v3556
        %3558 = vmatmul.bf16.gmra.mxu0 %v1970
        %v3559 = vpop.f32.mrf.mxu0
        %v3560 = vadd.f32 0.0, %v3559
        %v3561 = vpop.f32.mrf.mxu0
        %v3562 = vadd.f32 0.0, %v3561
        %3563 = vmatmul.bf16.gmra.mxu0 %v1971
        %v3564 = vpop.f32.mrf.mxu0
        %v3565 = vadd.f32 0.0, %v3564
        %v3566 = vpop.f32.mrf.mxu0
        %v3567 = vadd.f32 0.0, %v3566
        %3568 = vmatmul.bf16.gmra.mxu0 %v1972
        %v3569 = vpop.f32.mrf.mxu0
        %v3570 = vadd.f32 0.0, %v3569
        %v3571 = vpop.f32.mrf.mxu0
        %v3572 = vadd.f32 0.0, %v3571
        %3573 = vmatmul.bf16.gmra.mxu0 %v1973
        %v3574 = vpop.f32.mrf.mxu0
        %v3575 = vadd.f32 0.0, %v3574
        %v3576 = vpop.f32.mrf.mxu0
        %v3577 = vadd.f32 0.0, %v3576
        %3578 = vmatmul.bf16.gmra.mxu0 %v1974
        %v3579 = vpop.f32.mrf.mxu0
        %v3580 = vadd.f32 0.0, %v3579
        %v3581 = vpop.f32.mrf.mxu0
        %v3582 = vadd.f32 0.0, %v3581
        %3583 = vdwg.mxu0
        %v3584 = vadd.f32 %v3436, %v3515
        %v3585 = vadd.f32 %v3438, %v3517
        %v3586 = vadd.f32 %v3441, %v3520
        %v3587 = vadd.f32 %v3443, %v3522
        %v3588 = vadd.f32 %v3446, %v3525
        %v3589 = vadd.f32 %v3448, %v3527
        %v3590 = vadd.f32 %v3451, %v3530
        %v3591 = vadd.f32 %v3453, %v3532
        %v3592 = vadd.f32 %v3456, %v3535
        %v3593 = vadd.f32 %v3458, %v3537
        %v3594 = vadd.f32 %v3461, %v3540
        %v3595 = vadd.f32 %v3463, %v3542
        %v3596 = vadd.f32 %v3466, %v3545
        %v3597 = vadd.f32 %v3468, %v3547
        %v3598 = vadd.f32 %v3471, %v3550
        %v3599 = vadd.f32 %v3473, %v3552
        %v3600 = vadd.f32 %v3476, %v3555
        %v3601 = vadd.f32 %v3478, %v3557
        %v3602 = vadd.f32 %v3481, %v3560
        %v3603 = vadd.f32 %v3483, %v3562
        %v3604 = vadd.f32 %v3486, %v3565
        %v3605 = vadd.f32 %v3488, %v3567
        %v3606 = vadd.f32 %v3491, %v3570
        %v3607 = vadd.f32 %v3493, %v3572
        %v3608 = vadd.f32 %v3496, %v3575
        %v3609 = vadd.f32 %v3498, %v3577
        %v3610 = vadd.f32 %v3501, %v3580
        %v3611 = vadd.f32 %v3503, %v3582
        %3612 = vmatpush.bf16.msra.mxu0 %v2028
        %3613 = vmatpush.bf16.msra.mxu0 %v2027
        %3614 = vmatpush.bf16.msra.mxu0 %v2026
        %3615 = vmatpush.bf16.msra.mxu0 %v2025
        %3616 = vmatpush.bf16.msra.mxu0 %v2024
        %3617 = vmatpush.bf16.msra.mxu0 %v2023
        %3618 = vmatpush.bf16.msra.mxu0 %v2022
        %3619 = vmatpush.bf16.msra.mxu0 %v2021
        %3620 = vmatmul.bf16.gmra.mxu0 %v2217
        %v3621 = vpop.f32.mrf.mxu0
        %v3622 = vadd.f32 0.0, %v3621
        %v3623 = vpop.f32.mrf.mxu0
        %v3624 = vadd.f32 0.0, %v3623
        %3625 = vmatmul.bf16.gmra.mxu0 %v2218
        %v3626 = vpop.f32.mrf.mxu0
        %v3627 = vadd.f32 0.0, %v3626
        %v3628 = vpop.f32.mrf.mxu0
        %v3629 = vadd.f32 0.0, %v3628
        %3630 = vmatmul.bf16.gmra.mxu0 %v2219
        %v3631 = vpop.f32.mrf.mxu0
        %v3632 = vadd.f32 0.0, %v3631
        %v3633 = vpop.f32.mrf.mxu0
        %v3634 = vadd.f32 0.0, %v3633
        %3635 = vmatmul.bf16.gmra.mxu0 %v2220
        %v3636 = vpop.f32.mrf.mxu0
        %v3637 = vadd.f32 0.0, %v3636
        %v3638 = vpop.f32.mrf.mxu0
        %v3639 = vadd.f32 0.0, %v3638
        %3640 = vmatmul.bf16.gmra.mxu0 %v2221
        %v3641 = vpop.f32.mrf.mxu0
        %v3642 = vadd.f32 0.0, %v3641
        %v3643 = vpop.f32.mrf.mxu0
        %v3644 = vadd.f32 0.0, %v3643
        %3645 = vmatmul.bf16.gmra.mxu0 %v2222
        %v3646 = vpop.f32.mrf.mxu0
        %v3647 = vadd.f32 0.0, %v3646
        %v3648 = vpop.f32.mrf.mxu0
        %v3649 = vadd.f32 0.0, %v3648
        %3650 = vmatmul.bf16.gmra.mxu0 %v2223
        %v3651 = vpop.f32.mrf.mxu0
        %v3652 = vadd.f32 0.0, %v3651
        %v3653 = vpop.f32.mrf.mxu0
        %v3654 = vadd.f32 0.0, %v3653
        %3655 = vmatmul.bf16.gmra.mxu0 %v2224
        %v3656 = vpop.f32.mrf.mxu0
        %v3657 = vadd.f32 0.0, %v3656
        %v3658 = vpop.f32.mrf.mxu0
        %v3659 = vadd.f32 0.0, %v3658
        %3660 = vmatmul.bf16.gmra.mxu0 %v2225
        %v3661 = vpop.f32.mrf.mxu0
        %v3662 = vadd.f32 0.0, %v3661
        %v3663 = vpop.f32.mrf.mxu0
        %v3664 = vadd.f32 0.0, %v3663
        %3665 = vmatmul.bf16.gmra.mxu0 %v2226
        %v3666 = vpop.f32.mrf.mxu0
        %v3667 = vadd.f32 0.0, %v3666
        %v3668 = vpop.f32.mrf.mxu0
        %v3669 = vadd.f32 0.0, %v3668
        %3670 = vmatmul.bf16.gmra.mxu0 %v2227
        %v3671 = vpop.f32.mrf.mxu0
        %v3672 = vadd.f32 0.0, %v3671
        %v3673 = vpop.f32.mrf.mxu0
        %v3674 = vadd.f32 0.0, %v3673
        %3675 = vmatmul.bf16.gmra.mxu0 %v2228
        %v3676 = vpop.f32.mrf.mxu0
        %v3677 = vadd.f32 0.0, %v3676
        %v3678 = vpop.f32.mrf.mxu0
        %v3679 = vadd.f32 0.0, %v3678
        %3680 = vmatmul.bf16.gmra.mxu0 %v2229
        %v3681 = vpop.f32.mrf.mxu0
        %v3682 = vadd.f32 0.0, %v3681
        %v3683 = vpop.f32.mrf.mxu0
        %v3684 = vadd.f32 0.0, %v3683
        %3685 = vmatmul.bf16.gmra.mxu0 %v2230
        %v3686 = vpop.f32.mrf.mxu0
        %v3687 = vadd.f32 0.0, %v3686
        %v3688 = vpop.f32.mrf.mxu0
        %v3689 = vadd.f32 0.0, %v3688
        %3690 = vdwg.mxu0
        %v3691 = vadd.f32 %v3584, %v3622
        %v3692 = vadd.f32 %v3585, %v3624
        %v3693 = vadd.f32 %v3586, %v3627
        %v3694 = vadd.f32 %v3587, %v3629
        %v3695 = vadd.f32 %v3588, %v3632
        %v3696 = vadd.f32 %v3589, %v3634
        %v3697 = vadd.f32 %v3590, %v3637
        %v3698 = vadd.f32 %v3591, %v3639
        %v3699 = vadd.f32 %v3592, %v3642
        %v3700 = vadd.f32 %v3593, %v3644
        %v3701 = vadd.f32 %v3594, %v3647
        %v3702 = vadd.f32 %v3595, %v3649
        %v3703 = vadd.f32 %v3596, %v3652
        %v3704 = vadd.f32 %v3597, %v3654
        %v3705 = vadd.f32 %v3598, %v3657
        %v3706 = vadd.f32 %v3599, %v3659
        %v3707 = vadd.f32 %v3600, %v3662
        %v3708 = vadd.f32 %v3601, %v3664
        %v3709 = vadd.f32 %v3602, %v3667
        %v3710 = vadd.f32 %v3603, %v3669
        %v3711 = vadd.f32 %v3604, %v3672
        %v3712 = vadd.f32 %v3605, %v3674
        %v3713 = vadd.f32 %v3606, %v3677
        %v3714 = vadd.f32 %v3607, %v3679
        %v3715 = vadd.f32 %v3608, %v3682
        %v3716 = vadd.f32 %v3609, %v3684
        %v3717 = vadd.f32 %v3610, %v3687
        %v3718 = vadd.f32 %v3611, %v3689
        %v3747 = vunpack.c.l.b16 %v1091
        %v3748 = vunpack.c.l.b16 %v1092
        %v3749 = vunpack.c.l.b16 %v1093
        %v3750 = vunpack.c.l.b16 %v1094
        %v3751 = vunpack.c.l.b16 %v1095
        %v3752 = vunpack.c.l.b16 %v1096
        %v3753 = vunpack.c.l.b16 %v1097
        %v3754 = vunpack.c.l.b16 %v1098
        %v3755 = vunpack.c.l.b16 %v1099
        %v3756 = vunpack.c.l.b16 %v1100
        %v3757 = vunpack.c.l.b16 %v1101
        %v3758 = vunpack.c.l.b16 %v1102
        %v3759 = vunpack.c.l.b16 %v1103
        %v3760 = vunpack.c.l.b16 %v1104
        %v3761 = vunpack.c.l.b16 %v1105
        %v3762 = vunpack.c.l.b16 %v1106
        %v3763 = vunpack.c.l.b16 %v1107
        %v3764 = vunpack.c.l.b16 %v1108
        %v3765 = vunpack.c.l.b16 %v1109
        %v3766 = vunpack.c.l.b16 %v1110
        %v3767 = vunpack.c.l.b16 %v1111
        %v3768 = vunpack.c.l.b16 %v1112
        %v3769 = vunpack.c.l.b16 %v1113
        %v3770 = vunpack.c.l.b16 %v1114
        %v3771 = vunpack.c.l.b16 %v1115
        %v3772 = vunpack.c.l.b16 %v1116
        %v3773 = vunpack.c.l.b16 %v1117
        %v3774 = vunpack.c.l.b16 %v1118
        %v3775 = vpack.c.b16 %v3748, %v3747
        %v3776 = vpack.c.b16 %v3750, %v3749
        %v3777 = vpack.c.b16 %v3752, %v3751
        %v3778 = vpack.c.b16 %v3754, %v3753
        %v3779 = vpack.c.b16 %v3756, %v3755
        %v3780 = vpack.c.b16 %v3758, %v3757
        %v3781 = vpack.c.b16 %v3760, %v3759
        %v3782 = vpack.c.b16 %v3762, %v3761
        %v3783 = vpack.c.b16 %v3764, %v3763
        %v3784 = vpack.c.b16 %v3766, %v3765
        %v3785 = vpack.c.b16 %v3768, %v3767
        %v3786 = vpack.c.b16 %v3770, %v3769
        %v3787 = vpack.c.b16 %v3772, %v3771
        %v3788 = vpack.c.b16 %v3774, %v3773
        %3803 = vmatpush.bf16.msra.mxu0 %v2284
        %3804 = vmatpush.bf16.msra.mxu0 %v2283
        %3805 = vmatpush.bf16.msra.mxu0 %v2282
        %3806 = vmatpush.bf16.msra.mxu0 %v2281
        %3807 = vmatpush.bf16.msra.mxu0 %v2280
        %3808 = vmatpush.bf16.msra.mxu0 %v2279
        %3809 = vmatpush.bf16.msra.mxu0 %v2278
        %3810 = vmatpush.bf16.msra.mxu0 %v2277
        %3811 = vmatmul.bf16.gmra.mxu0 %v3775
        %v3812 = vpop.f32.mrf.mxu0
        %v3813 = vadd.f32 0.0, %v3812
        %v3814 = vpop.f32.mrf.mxu0
        %v3815 = vadd.f32 0.0, %v3814
        %3816 = vmatmul.bf16.gmra.mxu0 %v3776
        %v3817 = vpop.f32.mrf.mxu0
        %v3818 = vadd.f32 0.0, %v3817
        %v3819 = vpop.f32.mrf.mxu0
        %v3820 = vadd.f32 0.0, %v3819
        %3821 = vmatmul.bf16.gmra.mxu0 %v3777
        %v3822 = vpop.f32.mrf.mxu0
        %v3823 = vadd.f32 0.0, %v3822
        %v3824 = vpop.f32.mrf.mxu0
        %v3825 = vadd.f32 0.0, %v3824
        %3826 = vmatmul.bf16.gmra.mxu0 %v3778
        %v3827 = vpop.f32.mrf.mxu0
        %v3828 = vadd.f32 0.0, %v3827
        %v3829 = vpop.f32.mrf.mxu0
        %v3830 = vadd.f32 0.0, %v3829
        %3831 = vmatmul.bf16.gmra.mxu0 %v3779
        %v3832 = vpop.f32.mrf.mxu0
        %v3833 = vadd.f32 0.0, %v3832
        %v3834 = vpop.f32.mrf.mxu0
        %v3835 = vadd.f32 0.0, %v3834
        %3836 = vmatmul.bf16.gmra.mxu0 %v3780
        %v3837 = vpop.f32.mrf.mxu0
        %v3838 = vadd.f32 0.0, %v3837
        %v3839 = vpop.f32.mrf.mxu0
        %v3840 = vadd.f32 0.0, %v3839
        %3841 = vmatmul.bf16.gmra.mxu0 %v3781
        %v3842 = vpop.f32.mrf.mxu0
        %v3843 = vadd.f32 0.0, %v3842
        %v3844 = vpop.f32.mrf.mxu0
        %v3845 = vadd.f32 0.0, %v3844
        %3846 = vmatmul.bf16.gmra.mxu0 %v3782
        %v3847 = vpop.f32.mrf.mxu0
        %v3848 = vadd.f32 0.0, %v3847
        %v3849 = vpop.f32.mrf.mxu0
        %v3850 = vadd.f32 0.0, %v3849
        %3851 = vmatmul.bf16.gmra.mxu0 %v3783
        %v3852 = vpop.f32.mrf.mxu0
        %v3853 = vadd.f32 0.0, %v3852
        %v3854 = vpop.f32.mrf.mxu0
        %v3855 = vadd.f32 0.0, %v3854
        %3856 = vmatmul.bf16.gmra.mxu0 %v3784
        %v3857 = vpop.f32.mrf.mxu0
        %v3858 = vadd.f32 0.0, %v3857
        %v3859 = vpop.f32.mrf.mxu0
        %v3860 = vadd.f32 0.0, %v3859
        %3861 = vmatmul.bf16.gmra.mxu0 %v3785
        %v3862 = vpop.f32.mrf.mxu0
        %v3863 = vadd.f32 0.0, %v3862
        %v3864 = vpop.f32.mrf.mxu0
        %v3865 = vadd.f32 0.0, %v3864
        %3866 = vmatmul.bf16.gmra.mxu0 %v3786
        %v3867 = vpop.f32.mrf.mxu0
        %v3868 = vadd.f32 0.0, %v3867
        %v3869 = vpop.f32.mrf.mxu0
        %v3870 = vadd.f32 0.0, %v3869
        %3871 = vmatmul.bf16.gmra.mxu0 %v3787
        %v3872 = vpop.f32.mrf.mxu0
        %v3873 = vadd.f32 0.0, %v3872
        %v3874 = vpop.f32.mrf.mxu0
        %v3875 = vadd.f32 0.0, %v3874
        %3876 = vmatmul.bf16.gmra.mxu0 %v3788
        %v3877 = vpop.f32.mrf.mxu0
        %v3878 = vadd.f32 0.0, %v3877
        %v3879 = vpop.f32.mrf.mxu0
        %v3880 = vadd.f32 0.0, %v3879
        %3881 = vdwg.mxu0
        %v3882 = vadd.f32 %v3691, %v3813
        %v3883 = vadd.f32 %v3692, %v3815
        %v3884 = vadd.f32 %v3693, %v3818
        %v3885 = vadd.f32 %v3694, %v3820
        %v3886 = vadd.f32 %v3695, %v3823
        %v3887 = vadd.f32 %v3696, %v3825
        %v3888 = vadd.f32 %v3697, %v3828
        %v3889 = vadd.f32 %v3698, %v3830
        %v3890 = vadd.f32 %v3699, %v3833
        %v3891 = vadd.f32 %v3700, %v3835
        %v3892 = vadd.f32 %v3701, %v3838
        %v3893 = vadd.f32 %v3702, %v3840
        %v3894 = vadd.f32 %v3703, %v3843
        %v3895 = vadd.f32 %v3704, %v3845
        %v3896 = vadd.f32 %v3705, %v3848
        %v3897 = vadd.f32 %v3706, %v3850
        %v3898 = vadd.f32 %v3707, %v3853
        %v3899 = vadd.f32 %v3708, %v3855
        %v3900 = vadd.f32 %v3709, %v3858
        %v3901 = vadd.f32 %v3710, %v3860
        %v3902 = vadd.f32 %v3711, %v3863
        %v3903 = vadd.f32 %v3712, %v3865
        %v3904 = vadd.f32 %v3713, %v3868
        %v3905 = vadd.f32 %v3714, %v3870
        %v3906 = vadd.f32 %v3715, %v3873
        %v3907 = vadd.f32 %v3716, %v3875
        %v3908 = vadd.f32 %v3717, %v3878
        %v3909 = vadd.f32 %v3718, %v3880
        %v3910 = vadd.f32 %v3882, %v2401
        %v3911 = vadd.f32 %v3883, %v2401
        %v3912 = vadd.f32 %v3884, %v2401
        %v3913 = vadd.f32 %v3885, %v2401
        %v3914 = vadd.f32 %v3886, %v2401
        %v3915 = vadd.f32 %v3887, %v2401
        %v3916 = vadd.f32 %v3888, %v2401
        %v3917 = vadd.f32 %v3889, %v2401
        %v3918 = vadd.f32 %v3890, %v2401
        %v3919 = vadd.f32 %v3891, %v2401
        %v3920 = vadd.f32 %v3892, %v2401
        %v3921 = vadd.f32 %v3893, %v2401
        %v3922 = vadd.f32 %v3894, %v2401
        %v3923 = vadd.f32 %v3895, %v2401
        %v3924 = vadd.f32 %v3896, %v2401
        %v3925 = vadd.f32 %v3897, %v2401
        %v3926 = vadd.f32 %v3898, %v2401
        %v3927 = vadd.f32 %v3899, %v2401
        %v3928 = vadd.f32 %v3900, %v2401
        %v3929 = vadd.f32 %v3901, %v2401
        %v3930 = vadd.f32 %v3902, %v2401
        %v3931 = vadd.f32 %v3903, %v2401
        %v3932 = vadd.f32 %v3904, %v2401
        %v3933 = vadd.f32 %v3905, %v2401
        %v3934 = vadd.f32 %v3906, %v2401
        %v3935 = vadd.f32 %v3907, %v2401
        %v3936 = vadd.f32 %v3908, %v2401
        %v3937 = vadd.f32 %v3909, %v2401
        %v3938 = vmax.f32 %v3910, 0.0
        %v3939 = vmax.f32 %v3911, 0.0
        %v3940 = vmax.f32 %v3912, 0.0
        %v3941 = vmax.f32 %v3913, 0.0
        %v3942 = vmax.f32 %v3914, 0.0
        %v3943 = vmax.f32 %v3915, 0.0
        %v3944 = vmax.f32 %v3916, 0.0
        %v3945 = vmax.f32 %v3917, 0.0
        %v3946 = vmax.f32 %v3918, 0.0
        %v3947 = vmax.f32 %v3919, 0.0
        %v3948 = vmax.f32 %v3920, 0.0
        %v3949 = vmax.f32 %v3921, 0.0
        %v3950 = vmax.f32 %v3922, 0.0
        %v3951 = vmax.f32 %v3923, 0.0
        %v3952 = vmax.f32 %v3924, 0.0
        %v3953 = vmax.f32 %v3925, 0.0
        %v3954 = vmax.f32 %v3926, 0.0
        %v3955 = vmax.f32 %v3927, 0.0
        %v3956 = vmax.f32 %v3928, 0.0
        %v3957 = vmax.f32 %v3929, 0.0
        %v3958 = vmax.f32 %v3930, 0.0
        %v3959 = vmax.f32 %v3931, 0.0
        %v3960 = vmax.f32 %v3932, 0.0
        %v3961 = vmax.f32 %v3933, 0.0
        %v3962 = vmax.f32 %v3934, 0.0
        %v3963 = vmax.f32 %v3935, 0.0
        %v3964 = vmax.f32 %v3936, 0.0
        %v3965 = vmax.f32 %v3937, 0.0
        %v3966 = vmax.f32 %v3319, %v3938
        %v3967 = vmax.f32 %v3320, %v3939
        %v3968 = vmax.f32 %v3321, %v3940
        %v3969 = vmax.f32 %v3322, %v3941
        %v3970 = vmax.f32 %v3323, %v3942
        %v3971 = vmax.f32 %v3324, %v3943
        %v3972 = vmax.f32 %v3325, %v3944
        %v3973 = vmax.f32 %v3326, %v3945
        %v3974 = vmax.f32 %v3327, %v3946
        %v3975 = vmax.f32 %v3328, %v3947
        %v3976 = vmax.f32 %v3329, %v3948
        %v3977 = vmax.f32 %v3330, %v3949
        %v3978 = vmax.f32 %v3331, %v3950
        %v3979 = vmax.f32 %v3332, %v3951
        %v3980 = vmax.f32 %v3333, %v3952
        %v3981 = vmax.f32 %v3334, %v3953
        %v3982 = vmax.f32 %v3335, %v3954
        %v3983 = vmax.f32 %v3336, %v3955
        %v3984 = vmax.f32 %v3337, %v3956
        %v3985 = vmax.f32 %v3338, %v3957
        %v3986 = vmax.f32 %v3339, %v3958
        %v3987 = vmax.f32 %v3340, %v3959
        %v3988 = vmax.f32 %v3341, %v3960
        %v3989 = vmax.f32 %v3342, %v3961
        %v3990 = vmax.f32 %v3343, %v3962
        %v3991 = vmax.f32 %v3344, %v3963
        %v3992 = vmax.f32 %v3345, %v3964
        %v3993 = vmax.f32 %v3346, %v3965
        %3994 = vmatpush.bf16.msra.mxu0 %v2532
        %3995 = vmatpush.bf16.msra.mxu0 %v2531
        %3996 = vmatpush.bf16.msra.mxu0 %v2530
        %3997 = vmatpush.bf16.msra.mxu0 %v2529
        %3998 = vmatpush.bf16.msra.mxu0 %v2528
        %3999 = vmatpush.bf16.msra.mxu0 %v2527
        %4000 = vmatpush.bf16.msra.mxu0 %v2526
        %4001 = vmatpush.bf16.msra.mxu0 %v2525
        %4002 = vmatmul.bf16.gmra.mxu0 %v1705
        %v4003 = vpop.f32.mrf.mxu0
        %v4004 = vadd.f32 0.0, %v4003
        %v4005 = vpop.f32.mrf.mxu0
        %v4006 = vadd.f32 0.0, %v4005
        %4007 = vmatmul.bf16.gmra.mxu0 %v1706
        %v4008 = vpop.f32.mrf.mxu0
        %v4009 = vadd.f32 0.0, %v4008
        %v4010 = vpop.f32.mrf.mxu0
        %v4011 = vadd.f32 0.0, %v4010
        %4012 = vmatmul.bf16.gmra.mxu0 %v1707
        %v4013 = vpop.f32.mrf.mxu0
        %v4014 = vadd.f32 0.0, %v4013
        %v4015 = vpop.f32.mrf.mxu0
        %v4016 = vadd.f32 0.0, %v4015
        %4017 = vmatmul.bf16.gmra.mxu0 %v1708
        %v4018 = vpop.f32.mrf.mxu0
        %v4019 = vadd.f32 0.0, %v4018
        %v4020 = vpop.f32.mrf.mxu0
        %v4021 = vadd.f32 0.0, %v4020
        %4022 = vmatmul.bf16.gmra.mxu0 %v1709
        %v4023 = vpop.f32.mrf.mxu0
        %v4024 = vadd.f32 0.0, %v4023
        %v4025 = vpop.f32.mrf.mxu0
        %v4026 = vadd.f32 0.0, %v4025
        %4027 = vmatmul.bf16.gmra.mxu0 %v1710
        %v4028 = vpop.f32.mrf.mxu0
        %v4029 = vadd.f32 0.0, %v4028
        %v4030 = vpop.f32.mrf.mxu0
        %v4031 = vadd.f32 0.0, %v4030
        %4032 = vmatmul.bf16.gmra.mxu0 %v1711
        %v4033 = vpop.f32.mrf.mxu0
        %v4034 = vadd.f32 0.0, %v4033
        %v4035 = vpop.f32.mrf.mxu0
        %v4036 = vadd.f32 0.0, %v4035
        %4037 = vmatmul.bf16.gmra.mxu0 %v1712
        %v4038 = vpop.f32.mrf.mxu0
        %v4039 = vadd.f32 0.0, %v4038
        %v4040 = vpop.f32.mrf.mxu0
        %v4041 = vadd.f32 0.0, %v4040
        %4042 = vmatmul.bf16.gmra.mxu0 %v1713
        %v4043 = vpop.f32.mrf.mxu0
        %v4044 = vadd.f32 0.0, %v4043
        %v4045 = vpop.f32.mrf.mxu0
        %v4046 = vadd.f32 0.0, %v4045
        %4047 = vmatmul.bf16.gmra.mxu0 %v1714
        %v4048 = vpop.f32.mrf.mxu0
        %v4049 = vadd.f32 0.0, %v4048
        %v4050 = vpop.f32.mrf.mxu0
        %v4051 = vadd.f32 0.0, %v4050
        %4052 = vmatmul.bf16.gmra.mxu0 %v1715
        %v4053 = vpop.f32.mrf.mxu0
        %v4054 = vadd.f32 0.0, %v4053
        %v4055 = vpop.f32.mrf.mxu0
        %v4056 = vadd.f32 0.0, %v4055
        %4057 = vmatmul.bf16.gmra.mxu0 %v1716
        %v4058 = vpop.f32.mrf.mxu0
        %v4059 = vadd.f32 0.0, %v4058
        %v4060 = vpop.f32.mrf.mxu0
        %v4061 = vadd.f32 0.0, %v4060
        %4062 = vmatmul.bf16.gmra.mxu0 %v1717
        %v4063 = vpop.f32.mrf.mxu0
        %v4064 = vadd.f32 0.0, %v4063
        %v4065 = vpop.f32.mrf.mxu0
        %v4066 = vadd.f32 0.0, %v4065
        %4067 = vmatmul.bf16.gmra.mxu0 %v1718
        %v4068 = vpop.f32.mrf.mxu0
        %v4069 = vadd.f32 0.0, %v4068
        %v4070 = vpop.f32.mrf.mxu0
        %v4071 = vadd.f32 0.0, %v4070
        %4072 = vdwg.mxu0
        %4073 = vmatpush.bf16.msra.mxu0 %v2659
        %4074 = vmatpush.bf16.msra.mxu0 %v2658
        %4075 = vmatpush.bf16.msra.mxu0 %v2657
        %4076 = vmatpush.bf16.msra.mxu0 %v2656
        %4077 = vmatpush.bf16.msra.mxu0 %v2655
        %4078 = vmatpush.bf16.msra.mxu0 %v2654
        %4079 = vmatpush.bf16.msra.mxu0 %v2653
        %4080 = vmatpush.bf16.msra.mxu0 %v2652
        %4081 = vmatmul.bf16.gmra.mxu0 %v1266
        %v4082 = vpop.f32.mrf.mxu0
        %v4083 = vadd.f32 %v4004, %v4082
        %v4084 = vpop.f32.mrf.mxu0
        %v4085 = vadd.f32 %v4006, %v4084
        %4086 = vmatmul.bf16.gmra.mxu0 %v1267
        %v4087 = vpop.f32.mrf.mxu0
        %v4088 = vadd.f32 %v4009, %v4087
        %v4089 = vpop.f32.mrf.mxu0
        %v4090 = vadd.f32 %v4011, %v4089
        %4091 = vmatmul.bf16.gmra.mxu0 %v1268
        %v4092 = vpop.f32.mrf.mxu0
        %v4093 = vadd.f32 %v4014, %v4092
        %v4094 = vpop.f32.mrf.mxu0
        %v4095 = vadd.f32 %v4016, %v4094
        %4096 = vmatmul.bf16.gmra.mxu0 %v1269
        %v4097 = vpop.f32.mrf.mxu0
        %v4098 = vadd.f32 %v4019, %v4097
        %v4099 = vpop.f32.mrf.mxu0
        %v4100 = vadd.f32 %v4021, %v4099
        %4101 = vmatmul.bf16.gmra.mxu0 %v1270
        %v4102 = vpop.f32.mrf.mxu0
        %v4103 = vadd.f32 %v4024, %v4102
        %v4104 = vpop.f32.mrf.mxu0
        %v4105 = vadd.f32 %v4026, %v4104
        %4106 = vmatmul.bf16.gmra.mxu0 %v1271
        %v4107 = vpop.f32.mrf.mxu0
        %v4108 = vadd.f32 %v4029, %v4107
        %v4109 = vpop.f32.mrf.mxu0
        %v4110 = vadd.f32 %v4031, %v4109
        %4111 = vmatmul.bf16.gmra.mxu0 %v1272
        %v4112 = vpop.f32.mrf.mxu0
        %v4113 = vadd.f32 %v4034, %v4112
        %v4114 = vpop.f32.mrf.mxu0
        %v4115 = vadd.f32 %v4036, %v4114
        %4116 = vmatmul.bf16.gmra.mxu0 %v1273
        %v4117 = vpop.f32.mrf.mxu0
        %v4118 = vadd.f32 %v4039, %v4117
        %v4119 = vpop.f32.mrf.mxu0
        %v4120 = vadd.f32 %v4041, %v4119
        %4121 = vmatmul.bf16.gmra.mxu0 %v1274
        %v4122 = vpop.f32.mrf.mxu0
        %v4123 = vadd.f32 %v4044, %v4122
        %v4124 = vpop.f32.mrf.mxu0
        %v4125 = vadd.f32 %v4046, %v4124
        %4126 = vmatmul.bf16.gmra.mxu0 %v1275
        %v4127 = vpop.f32.mrf.mxu0
        %v4128 = vadd.f32 %v4049, %v4127
        %v4129 = vpop.f32.mrf.mxu0
        %v4130 = vadd.f32 %v4051, %v4129
        %4131 = vmatmul.bf16.gmra.mxu0 %v1276
        %v4132 = vpop.f32.mrf.mxu0
        %v4133 = vadd.f32 %v4054, %v4132
        %v4134 = vpop.f32.mrf.mxu0
        %v4135 = vadd.f32 %v4056, %v4134
        %4136 = vmatmul.bf16.gmra.mxu0 %v1277
        %v4137 = vpop.f32.mrf.mxu0
        %v4138 = vadd.f32 %v4059, %v4137
        %v4139 = vpop.f32.mrf.mxu0
        %v4140 = vadd.f32 %v4061, %v4139
        %4141 = vmatmul.bf16.gmra.mxu0 %v1278
        %v4142 = vpop.f32.mrf.mxu0
        %v4143 = vadd.f32 %v4064, %v4142
        %v4144 = vpop.f32.mrf.mxu0
        %v4145 = vadd.f32 %v4066, %v4144
        %4146 = vmatmul.bf16.gmra.mxu0 %v1279
        %v4147 = vpop.f32.mrf.mxu0
        %v4148 = vadd.f32 %v4069, %v4147
        %v4149 = vpop.f32.mrf.mxu0
        %v4150 = vadd.f32 %v4071, %v4149
        %4151 = vdwg.mxu0
        %4152 = vmatpush.bf16.msra.mxu0 %v2803
        %4153 = vmatpush.bf16.msra.mxu0 %v2802
        %4154 = vmatpush.bf16.msra.mxu0 %v2801
        %4155 = vmatpush.bf16.msra.mxu0 %v2800
        %4156 = vmatpush.bf16.msra.mxu0 %v2799
        %4157 = vmatpush.bf16.msra.mxu0 %v2798
        %4158 = vmatpush.bf16.msra.mxu0 %v2797
        %4159 = vmatpush.bf16.msra.mxu0 %v2796
        %4160 = vmatmul.bf16.gmra.mxu0 %v1961
        %v4161 = vpop.f32.mrf.mxu0
        %v4162 = vadd.f32 0.0, %v4161
        %v4163 = vpop.f32.mrf.mxu0
        %v4164 = vadd.f32 0.0, %v4163
        %4165 = vmatmul.bf16.gmra.mxu0 %v1962
        %v4166 = vpop.f32.mrf.mxu0
        %v4167 = vadd.f32 0.0, %v4166
        %v4168 = vpop.f32.mrf.mxu0
        %v4169 = vadd.f32 0.0, %v4168
        %4170 = vmatmul.bf16.gmra.mxu0 %v1963
        %v4171 = vpop.f32.mrf.mxu0
        %v4172 = vadd.f32 0.0, %v4171
        %v4173 = vpop.f32.mrf.mxu0
        %v4174 = vadd.f32 0.0, %v4173
        %4175 = vmatmul.bf16.gmra.mxu0 %v1964
        %v4176 = vpop.f32.mrf.mxu0
        %v4177 = vadd.f32 0.0, %v4176
        %v4178 = vpop.f32.mrf.mxu0
        %v4179 = vadd.f32 0.0, %v4178
        %4180 = vmatmul.bf16.gmra.mxu0 %v1965
        %v4181 = vpop.f32.mrf.mxu0
        %v4182 = vadd.f32 0.0, %v4181
        %v4183 = vpop.f32.mrf.mxu0
        %v4184 = vadd.f32 0.0, %v4183
        %4185 = vmatmul.bf16.gmra.mxu0 %v1966
        %v4186 = vpop.f32.mrf.mxu0
        %v4187 = vadd.f32 0.0, %v4186
        %v4188 = vpop.f32.mrf.mxu0
        %v4189 = vadd.f32 0.0, %v4188
        %4190 = vmatmul.bf16.gmra.mxu0 %v1967
        %v4191 = vpop.f32.mrf.mxu0
        %v4192 = vadd.f32 0.0, %v4191
        %v4193 = vpop.f32.mrf.mxu0
        %v4194 = vadd.f32 0.0, %v4193
        %4195 = vmatmul.bf16.gmra.mxu0 %v1968
        %v4196 = vpop.f32.mrf.mxu0
        %v4197 = vadd.f32 0.0, %v4196
        %v4198 = vpop.f32.mrf.mxu0
        %v4199 = vadd.f32 0.0, %v4198
        %4200 = vmatmul.bf16.gmra.mxu0 %v1969
        %v4201 = vpop.f32.mrf.mxu0
        %v4202 = vadd.f32 0.0, %v4201
        %v4203 = vpop.f32.mrf.mxu0
        %v4204 = vadd.f32 0.0, %v4203
        %4205 = vmatmul.bf16.gmra.mxu0 %v1970
        %v4206 = vpop.f32.mrf.mxu0
        %v4207 = vadd.f32 0.0, %v4206
        %v4208 = vpop.f32.mrf.mxu0
        %v4209 = vadd.f32 0.0, %v4208
        %4210 = vmatmul.bf16.gmra.mxu0 %v1971
        %v4211 = vpop.f32.mrf.mxu0
        %v4212 = vadd.f32 0.0, %v4211
        %v4213 = vpop.f32.mrf.mxu0
        %v4214 = vadd.f32 0.0, %v4213
        %4215 = vmatmul.bf16.gmra.mxu0 %v1972
        %v4216 = vpop.f32.mrf.mxu0
        %v4217 = vadd.f32 0.0, %v4216
        %v4218 = vpop.f32.mrf.mxu0
        %v4219 = vadd.f32 0.0, %v4218
        %4220 = vmatmul.bf16.gmra.mxu0 %v1973
        %v4221 = vpop.f32.mrf.mxu0
        %v4222 = vadd.f32 0.0, %v4221
        %v4223 = vpop.f32.mrf.mxu0
        %v4224 = vadd.f32 0.0, %v4223
        %4225 = vmatmul.bf16.gmra.mxu0 %v1974
        %v4226 = vpop.f32.mrf.mxu0
        %v4227 = vadd.f32 0.0, %v4226
        %v4228 = vpop.f32.mrf.mxu0
        %v4229 = vadd.f32 0.0, %v4228
        %4230 = vdwg.mxu0
        %v4231 = vadd.f32 %v4083, %v4162
        %v4232 = vadd.f32 %v4085, %v4164
        %v4233 = vadd.f32 %v4088, %v4167
        %v4234 = vadd.f32 %v4090, %v4169
        %v4235 = vadd.f32 %v4093, %v4172
        %v4236 = vadd.f32 %v4095, %v4174
        %v4237 = vadd.f32 %v4098, %v4177
        %v4238 = vadd.f32 %v4100, %v4179
        %v4239 = vadd.f32 %v4103, %v4182
        %v4240 = vadd.f32 %v4105, %v4184
        %v4241 = vadd.f32 %v4108, %v4187
        %v4242 = vadd.f32 %v4110, %v4189
        %v4243 = vadd.f32 %v4113, %v4192
        %v4244 = vadd.f32 %v4115, %v4194
        %v4245 = vadd.f32 %v4118, %v4197
        %v4246 = vadd.f32 %v4120, %v4199
        %v4247 = vadd.f32 %v4123, %v4202
        %v4248 = vadd.f32 %v4125, %v4204
        %v4249 = vadd.f32 %v4128, %v4207
        %v4250 = vadd.f32 %v4130, %v4209
        %v4251 = vadd.f32 %v4133, %v4212
        %v4252 = vadd.f32 %v4135, %v4214
        %v4253 = vadd.f32 %v4138, %v4217
        %v4254 = vadd.f32 %v4140, %v4219
        %v4255 = vadd.f32 %v4143, %v4222
        %v4256 = vadd.f32 %v4145, %v4224
        %v4257 = vadd.f32 %v4148, %v4227
        %v4258 = vadd.f32 %v4150, %v4229
        %4259 = vmatpush.bf16.msra.mxu0 %v2975
        %4260 = vmatpush.bf16.msra.mxu0 %v2974
        %4261 = vmatpush.bf16.msra.mxu0 %v2973
        %4262 = vmatpush.bf16.msra.mxu0 %v2972
        %4263 = vmatpush.bf16.msra.mxu0 %v2971
        %4264 = vmatpush.bf16.msra.mxu0 %v2970
        %4265 = vmatpush.bf16.msra.mxu0 %v2969
        %4266 = vmatpush.bf16.msra.mxu0 %v2968
        %4267 = vmatmul.bf16.gmra.mxu0 %v2217
        %v4268 = vpop.f32.mrf.mxu0
        %v4269 = vadd.f32 0.0, %v4268
        %v4270 = vpop.f32.mrf.mxu0
        %v4271 = vadd.f32 0.0, %v4270
        %4272 = vmatmul.bf16.gmra.mxu0 %v2218
        %v4273 = vpop.f32.mrf.mxu0
        %v4274 = vadd.f32 0.0, %v4273
        %v4275 = vpop.f32.mrf.mxu0
        %v4276 = vadd.f32 0.0, %v4275
        %4277 = vmatmul.bf16.gmra.mxu0 %v2219
        %v4278 = vpop.f32.mrf.mxu0
        %v4279 = vadd.f32 0.0, %v4278
        %v4280 = vpop.f32.mrf.mxu0
        %v4281 = vadd.f32 0.0, %v4280
        %4282 = vmatmul.bf16.gmra.mxu0 %v2220
        %v4283 = vpop.f32.mrf.mxu0
        %v4284 = vadd.f32 0.0, %v4283
        %v4285 = vpop.f32.mrf.mxu0
        %v4286 = vadd.f32 0.0, %v4285
        %4287 = vmatmul.bf16.gmra.mxu0 %v2221
        %v4288 = vpop.f32.mrf.mxu0
        %v4289 = vadd.f32 0.0, %v4288
        %v4290 = vpop.f32.mrf.mxu0
        %v4291 = vadd.f32 0.0, %v4290
        %4292 = vmatmul.bf16.gmra.mxu0 %v2222
        %v4293 = vpop.f32.mrf.mxu0
        %v4294 = vadd.f32 0.0, %v4293
        %v4295 = vpop.f32.mrf.mxu0
        %v4296 = vadd.f32 0.0, %v4295
        %4297 = vmatmul.bf16.gmra.mxu0 %v2223
        %v4298 = vpop.f32.mrf.mxu0
        %v4299 = vadd.f32 0.0, %v4298
        %v4300 = vpop.f32.mrf.mxu0
        %v4301 = vadd.f32 0.0, %v4300
        %4302 = vmatmul.bf16.gmra.mxu0 %v2224
        %v4303 = vpop.f32.mrf.mxu0
        %v4304 = vadd.f32 0.0, %v4303
        %v4305 = vpop.f32.mrf.mxu0
        %v4306 = vadd.f32 0.0, %v4305
        %4307 = vmatmul.bf16.gmra.mxu0 %v2225
        %v4308 = vpop.f32.mrf.mxu0
        %v4309 = vadd.f32 0.0, %v4308
        %v4310 = vpop.f32.mrf.mxu0
        %v4311 = vadd.f32 0.0, %v4310
        %4312 = vmatmul.bf16.gmra.mxu0 %v2226
        %v4313 = vpop.f32.mrf.mxu0
        %v4314 = vadd.f32 0.0, %v4313
        %v4315 = vpop.f32.mrf.mxu0
        %v4316 = vadd.f32 0.0, %v4315
        %4317 = vmatmul.bf16.gmra.mxu0 %v2227
        %v4318 = vpop.f32.mrf.mxu0
        %v4319 = vadd.f32 0.0, %v4318
        %v4320 = vpop.f32.mrf.mxu0
        %v4321 = vadd.f32 0.0, %v4320
        %4322 = vmatmul.bf16.gmra.mxu0 %v2228
        %v4323 = vpop.f32.mrf.mxu0
        %v4324 = vadd.f32 0.0, %v4323
        %v4325 = vpop.f32.mrf.mxu0
        %v4326 = vadd.f32 0.0, %v4325
        %4327 = vmatmul.bf16.gmra.mxu0 %v2229
        %v4328 = vpop.f32.mrf.mxu0
        %v4329 = vadd.f32 0.0, %v4328
        %v4330 = vpop.f32.mrf.mxu0
        %v4331 = vadd.f32 0.0, %v4330
        %4332 = vmatmul.bf16.gmra.mxu0 %v2230
        %v4333 = vpop.f32.mrf.mxu0
        %v4334 = vadd.f32 0.0, %v4333
        %v4335 = vpop.f32.mrf.mxu0
        %v4336 = vadd.f32 0.0, %v4335
        %4337 = vdwg.mxu0
        %v4338 = vadd.f32 %v4231, %v4269
        %v4339 = vadd.f32 %v4232, %v4271
        %v4340 = vadd.f32 %v4233, %v4274
        %v4341 = vadd.f32 %v4234, %v4276
        %v4342 = vadd.f32 %v4235, %v4279
        %v4343 = vadd.f32 %v4236, %v4281
        %v4344 = vadd.f32 %v4237, %v4284
        %v4345 = vadd.f32 %v4238, %v4286
        %v4346 = vadd.f32 %v4239, %v4289
        %v4347 = vadd.f32 %v4240, %v4291
        %v4348 = vadd.f32 %v4241, %v4294
        %v4349 = vadd.f32 %v4242, %v4296
        %v4350 = vadd.f32 %v4243, %v4299
        %v4351 = vadd.f32 %v4244, %v4301
        %v4352 = vadd.f32 %v4245, %v4304
        %v4353 = vadd.f32 %v4246, %v4306
        %v4354 = vadd.f32 %v4247, %v4309
        %v4355 = vadd.f32 %v4248, %v4311
        %v4356 = vadd.f32 %v4249, %v4314
        %v4357 = vadd.f32 %v4250, %v4316
        %v4358 = vadd.f32 %v4251, %v4319
        %v4359 = vadd.f32 %v4252, %v4321
        %v4360 = vadd.f32 %v4253, %v4324
        %v4361 = vadd.f32 %v4254, %v4326
        %v4362 = vadd.f32 %v4255, %v4329
        %v4363 = vadd.f32 %v4256, %v4331
        %v4364 = vadd.f32 %v4257, %v4334
        %v4365 = vadd.f32 %v4258, %v4336
        %4366 = vmatpush.bf16.msra.mxu0 %v3147
        %4367 = vmatpush.bf16.msra.mxu0 %v3146
        %4368 = vmatpush.bf16.msra.mxu0 %v3145
        %4369 = vmatpush.bf16.msra.mxu0 %v3144
        %4370 = vmatpush.bf16.msra.mxu0 %v3143
        %4371 = vmatpush.bf16.msra.mxu0 %v3142
        %4372 = vmatpush.bf16.msra.mxu0 %v3141
        %4373 = vmatpush.bf16.msra.mxu0 %v3140
        %4374 = vmatmul.bf16.gmra.mxu0 %v3775
        %v4375 = vpop.f32.mrf.mxu0
        %v4376 = vadd.f32 0.0, %v4375
        %v4377 = vpop.f32.mrf.mxu0
        %v4378 = vadd.f32 0.0, %v4377
        %4379 = vmatmul.bf16.gmra.mxu0 %v3776
        %v4380 = vpop.f32.mrf.mxu0
        %v4381 = vadd.f32 0.0, %v4380
        %v4382 = vpop.f32.mrf.mxu0
        %v4383 = vadd.f32 0.0, %v4382
        %4384 = vmatmul.bf16.gmra.mxu0 %v3777
        %v4385 = vpop.f32.mrf.mxu0
        %v4386 = vadd.f32 0.0, %v4385
        %v4387 = vpop.f32.mrf.mxu0
        %v4388 = vadd.f32 0.0, %v4387
        %4389 = vmatmul.bf16.gmra.mxu0 %v3778
        %v4390 = vpop.f32.mrf.mxu0
        %v4391 = vadd.f32 0.0, %v4390
        %v4392 = vpop.f32.mrf.mxu0
        %v4393 = vadd.f32 0.0, %v4392
        %4394 = vmatmul.bf16.gmra.mxu0 %v3779
        %v4395 = vpop.f32.mrf.mxu0
        %v4396 = vadd.f32 0.0, %v4395
        %v4397 = vpop.f32.mrf.mxu0
        %v4398 = vadd.f32 0.0, %v4397
        %4399 = vmatmul.bf16.gmra.mxu0 %v3780
        %v4400 = vpop.f32.mrf.mxu0
        %v4401 = vadd.f32 0.0, %v4400
        %v4402 = vpop.f32.mrf.mxu0
        %v4403 = vadd.f32 0.0, %v4402
        %4404 = vmatmul.bf16.gmra.mxu0 %v3781
        %v4405 = vpop.f32.mrf.mxu0
        %v4406 = vadd.f32 0.0, %v4405
        %v4407 = vpop.f32.mrf.mxu0
        %v4408 = vadd.f32 0.0, %v4407
        %4409 = vmatmul.bf16.gmra.mxu0 %v3782
        %v4410 = vpop.f32.mrf.mxu0
        %v4411 = vadd.f32 0.0, %v4410
        %v4412 = vpop.f32.mrf.mxu0
        %v4413 = vadd.f32 0.0, %v4412
        %4414 = vmatmul.bf16.gmra.mxu0 %v3783
        %v4415 = vpop.f32.mrf.mxu0
        %v4416 = vadd.f32 0.0, %v4415
        %v4417 = vpop.f32.mrf.mxu0
        %v4418 = vadd.f32 0.0, %v4417
        %4419 = vmatmul.bf16.gmra.mxu0 %v3784
        %v4420 = vpop.f32.mrf.mxu0
        %v4421 = vadd.f32 0.0, %v4420
        %v4422 = vpop.f32.mrf.mxu0
        %v4423 = vadd.f32 0.0, %v4422
        %4424 = vmatmul.bf16.gmra.mxu0 %v3785
        %v4425 = vpop.f32.mrf.mxu0
        %v4426 = vadd.f32 0.0, %v4425
        %v4427 = vpop.f32.mrf.mxu0
        %v4428 = vadd.f32 0.0, %v4427
        %4429 = vmatmul.bf16.gmra.mxu0 %v3786
        %v4430 = vpop.f32.mrf.mxu0
        %v4431 = vadd.f32 0.0, %v4430
        %v4432 = vpop.f32.mrf.mxu0
        %v4433 = vadd.f32 0.0, %v4432
        %4434 = vmatmul.bf16.gmra.mxu0 %v3787
        %v4435 = vpop.f32.mrf.mxu0
        %v4436 = vadd.f32 0.0, %v4435
        %v4437 = vpop.f32.mrf.mxu0
        %v4438 = vadd.f32 0.0, %v4437
        %4439 = vmatmul.bf16.gmra.mxu0 %v3788
        %v4440 = vpop.f32.mrf.mxu0
        %v4441 = vadd.f32 0.0, %v4440
        %v4442 = vpop.f32.mrf.mxu0
        %v4443 = vadd.f32 0.0, %v4442
        %4444 = vdwg.mxu0
        %v4445 = vadd.f32 %v4338, %v4376
        %v4446 = vadd.f32 %v4339, %v4378
        %v4447 = vadd.f32 %v4340, %v4381
        %v4448 = vadd.f32 %v4341, %v4383
        %v4449 = vadd.f32 %v4342, %v4386
        %v4450 = vadd.f32 %v4343, %v4388
        %v4451 = vadd.f32 %v4344, %v4391
        %v4452 = vadd.f32 %v4345, %v4393
        %v4453 = vadd.f32 %v4346, %v4396
        %v4454 = vadd.f32 %v4347, %v4398
        %v4455 = vadd.f32 %v4348, %v4401
        %v4456 = vadd.f32 %v4349, %v4403
        %v4457 = vadd.f32 %v4350, %v4406
        %v4458 = vadd.f32 %v4351, %v4408
        %v4459 = vadd.f32 %v4352, %v4411
        %v4460 = vadd.f32 %v4353, %v4413
        %v4461 = vadd.f32 %v4354, %v4416
        %v4462 = vadd.f32 %v4355, %v4418
        %v4463 = vadd.f32 %v4356, %v4421
        %v4464 = vadd.f32 %v4357, %v4423
        %v4465 = vadd.f32 %v4358, %v4426
        %v4466 = vadd.f32 %v4359, %v4428
        %v4467 = vadd.f32 %v4360, %v4431
        %v4468 = vadd.f32 %v4361, %v4433
        %v4469 = vadd.f32 %v4362, %v4436
        %v4470 = vadd.f32 %v4363, %v4438
        %v4471 = vadd.f32 %v4364, %v4441
        %v4472 = vadd.f32 %v4365, %v4443
        %v4473 = vadd.f32 %v4445, %v2401
        %v4474 = vadd.f32 %v4446, %v2401
        %v4475 = vadd.f32 %v4447, %v2401
        %v4476 = vadd.f32 %v4448, %v2401
        %v4477 = vadd.f32 %v4449, %v2401
        %v4478 = vadd.f32 %v4450, %v2401
        %v4479 = vadd.f32 %v4451, %v2401
        %v4480 = vadd.f32 %v4452, %v2401
        %v4481 = vadd.f32 %v4453, %v2401
        %v4482 = vadd.f32 %v4454, %v2401
        %v4483 = vadd.f32 %v4455, %v2401
        %v4484 = vadd.f32 %v4456, %v2401
        %v4485 = vadd.f32 %v4457, %v2401
        %v4486 = vadd.f32 %v4458, %v2401
        %v4487 = vadd.f32 %v4459, %v2401
        %v4488 = vadd.f32 %v4460, %v2401
        %v4489 = vadd.f32 %v4461, %v2401
        %v4490 = vadd.f32 %v4462, %v2401
        %v4491 = vadd.f32 %v4463, %v2401
        %v4492 = vadd.f32 %v4464, %v2401
        %v4493 = vadd.f32 %v4465, %v2401
        %v4494 = vadd.f32 %v4466, %v2401
        %v4495 = vadd.f32 %v4467, %v2401
        %v4496 = vadd.f32 %v4468, %v2401
        %v4497 = vadd.f32 %v4469, %v2401
        %v4498 = vadd.f32 %v4470, %v2401
        %v4499 = vadd.f32 %v4471, %v2401
        %v4500 = vadd.f32 %v4472, %v2401
        %v4501 = vmax.f32 %v4473, 0.0
        %v4502 = vmax.f32 %v4474, 0.0
        %v4503 = vmax.f32 %v4475, 0.0
        %v4504 = vmax.f32 %v4476, 0.0
        %v4505 = vmax.f32 %v4477, 0.0
        %v4506 = vmax.f32 %v4478, 0.0
        %v4507 = vmax.f32 %v4479, 0.0
        %v4508 = vmax.f32 %v4480, 0.0
        %v4509 = vmax.f32 %v4481, 0.0
        %v4510 = vmax.f32 %v4482, 0.0
        %v4511 = vmax.f32 %v4483, 0.0
        %v4512 = vmax.f32 %v4484, 0.0
        %v4513 = vmax.f32 %v4485, 0.0
        %v4514 = vmax.f32 %v4486, 0.0
        %v4515 = vmax.f32 %v4487, 0.0
        %v4516 = vmax.f32 %v4488, 0.0
        %v4517 = vmax.f32 %v4489, 0.0
        %v4518 = vmax.f32 %v4490, 0.0
        %v4519 = vmax.f32 %v4491, 0.0
        %v4520 = vmax.f32 %v4492, 0.0
        %v4521 = vmax.f32 %v4493, 0.0
        %v4522 = vmax.f32 %v4494, 0.0
        %v4523 = vmax.f32 %v4495, 0.0
        %v4524 = vmax.f32 %v4496, 0.0
        %v4525 = vmax.f32 %v4497, 0.0
        %v4526 = vmax.f32 %v4498, 0.0
        %v4527 = vmax.f32 %v4499, 0.0
        %v4528 = vmax.f32 %v4500, 0.0
        %v4529 = vmax.f32 %v3966, %v4501
        %v4530 = vmax.f32 %v3967, %v4502
        %v4531 = vmax.f32 %v3968, %v4503
        %v4532 = vmax.f32 %v3969, %v4504
        %v4533 = vmax.f32 %v3970, %v4505
        %v4534 = vmax.f32 %v3971, %v4506
        %v4535 = vmax.f32 %v3972, %v4507
        %v4536 = vmax.f32 %v3973, %v4508
        %v4537 = vmax.f32 %v3974, %v4509
        %v4538 = vmax.f32 %v3975, %v4510
        %v4539 = vmax.f32 %v3976, %v4511
        %v4540 = vmax.f32 %v3977, %v4512
        %v4541 = vmax.f32 %v3978, %v4513
        %v4542 = vmax.f32 %v3979, %v4514
        %v4543 = vmax.f32 %v3980, %v4515
        %v4544 = vmax.f32 %v3981, %v4516
        %v4545 = vmax.f32 %v3982, %v4517
        %v4546 = vmax.f32 %v3983, %v4518
        %v4547 = vmax.f32 %v3984, %v4519
        %v4548 = vmax.f32 %v3985, %v4520
        %v4549 = vmax.f32 %v3986, %v4521
        %v4550 = vmax.f32 %v3987, %v4522
        %v4551 = vmax.f32 %v3988, %v4523
        %v4552 = vmax.f32 %v3989, %v4524
        %v4553 = vmax.f32 %v3990, %v4525
        %v4554 = vmax.f32 %v3991, %v4526
        %v4555 = vmax.f32 %v3992, %v4527
        %v4556 = vmax.f32 %v3993, %v4528
        %v4557 = vpack.c.bf16 %v4529, %v4529
        %v4558 = vpack.c.bf16 %v4530, %v4530
        %v4559 = vpack.c.bf16 %v4531, %v4531
        %v4560 = vpack.c.bf16 %v4532, %v4532
        %v4561 = vpack.c.bf16 %v4533, %v4533
        %v4562 = vpack.c.bf16 %v4534, %v4534
        %v4563 = vpack.c.bf16 %v4535, %v4535
        %v4564 = vpack.c.bf16 %v4536, %v4536
        %v4565 = vpack.c.bf16 %v4537, %v4537
        %v4566 = vpack.c.bf16 %v4538, %v4538
        %v4567 = vpack.c.bf16 %v4539, %v4539
        %v4568 = vpack.c.bf16 %v4540, %v4540
        %v4569 = vpack.c.bf16 %v4541, %v4541
        %v4570 = vpack.c.bf16 %v4542, %v4542
        %v4571 = vpack.c.bf16 %v4543, %v4543
        %v4572 = vpack.c.bf16 %v4544, %v4544
        %v4573 = vpack.c.bf16 %v4545, %v4545
        %v4574 = vpack.c.bf16 %v4546, %v4546
        %v4575 = vpack.c.bf16 %v4547, %v4547
        %v4576 = vpack.c.bf16 %v4548, %v4548
        %v4577 = vpack.c.bf16 %v4549, %v4549
        %v4578 = vpack.c.bf16 %v4550, %v4550
        %v4579 = vpack.c.bf16 %v4551, %v4551
        %v4580 = vpack.c.bf16 %v4552, %v4552
        %v4581 = vpack.c.bf16 %v4553, %v4553
        %v4582 = vpack.c.bf16 %v4554, %v4554
        %v4583 = vpack.c.bf16 %v4555, %v4555
        %v4584 = vpack.c.bf16 %v4556, %v4556
        %4585 = vmatpush.bf16.msra.mxu0 %v1333
        %4586 = vmatpush.bf16.msra.mxu0 %v1332
        %4587 = vmatpush.bf16.msra.mxu0 %v1331
        %4588 = vmatpush.bf16.msra.mxu0 %v1330
        %4589 = vmatpush.bf16.msra.mxu0 %v1329
        %4590 = vmatpush.bf16.msra.mxu0 %v1328
        %4591 = vmatpush.bf16.msra.mxu0 %v1327
        %4592 = vmatpush.bf16.msra.mxu0 %v1326
        %4593 = vmatmul.bf16.gmra.mxu0 %v1961
        %v4594 = vpop.f32.mrf.mxu0
        %v4595 = vadd.f32 0.0, %v4594
        %v4596 = vpop.f32.mrf.mxu0
        %v4597 = vadd.f32 0.0, %v4596
        %4598 = vmatmul.bf16.gmra.mxu0 %v1962
        %v4599 = vpop.f32.mrf.mxu0
        %v4600 = vadd.f32 0.0, %v4599
        %v4601 = vpop.f32.mrf.mxu0
        %v4602 = vadd.f32 0.0, %v4601
        %4603 = vmatmul.bf16.gmra.mxu0 %v1963
        %v4604 = vpop.f32.mrf.mxu0
        %v4605 = vadd.f32 0.0, %v4604
        %v4606 = vpop.f32.mrf.mxu0
        %v4607 = vadd.f32 0.0, %v4606
        %4608 = vmatmul.bf16.gmra.mxu0 %v1964
        %v4609 = vpop.f32.mrf.mxu0
        %v4610 = vadd.f32 0.0, %v4609
        %v4611 = vpop.f32.mrf.mxu0
        %v4612 = vadd.f32 0.0, %v4611
        %4613 = vmatmul.bf16.gmra.mxu0 %v1965
        %v4614 = vpop.f32.mrf.mxu0
        %v4615 = vadd.f32 0.0, %v4614
        %v4616 = vpop.f32.mrf.mxu0
        %v4617 = vadd.f32 0.0, %v4616
        %4618 = vmatmul.bf16.gmra.mxu0 %v1966
        %v4619 = vpop.f32.mrf.mxu0
        %v4620 = vadd.f32 0.0, %v4619
        %v4621 = vpop.f32.mrf.mxu0
        %v4622 = vadd.f32 0.0, %v4621
        %4623 = vmatmul.bf16.gmra.mxu0 %v1967
        %v4624 = vpop.f32.mrf.mxu0
        %v4625 = vadd.f32 0.0, %v4624
        %v4626 = vpop.f32.mrf.mxu0
        %v4627 = vadd.f32 0.0, %v4626
        %4628 = vmatmul.bf16.gmra.mxu0 %v1968
        %v4629 = vpop.f32.mrf.mxu0
        %v4630 = vadd.f32 0.0, %v4629
        %v4631 = vpop.f32.mrf.mxu0
        %v4632 = vadd.f32 0.0, %v4631
        %4633 = vmatmul.bf16.gmra.mxu0 %v1969
        %v4634 = vpop.f32.mrf.mxu0
        %v4635 = vadd.f32 0.0, %v4634
        %v4636 = vpop.f32.mrf.mxu0
        %v4637 = vadd.f32 0.0, %v4636
        %4638 = vmatmul.bf16.gmra.mxu0 %v1970
        %v4639 = vpop.f32.mrf.mxu0
        %v4640 = vadd.f32 0.0, %v4639
        %v4641 = vpop.f32.mrf.mxu0
        %v4642 = vadd.f32 0.0, %v4641
        %4643 = vmatmul.bf16.gmra.mxu0 %v1971
        %v4644 = vpop.f32.mrf.mxu0
        %v4645 = vadd.f32 0.0, %v4644
        %v4646 = vpop.f32.mrf.mxu0
        %v4647 = vadd.f32 0.0, %v4646
        %4648 = vmatmul.bf16.gmra.mxu0 %v1972
        %v4649 = vpop.f32.mrf.mxu0
        %v4650 = vadd.f32 0.0, %v4649
        %v4651 = vpop.f32.mrf.mxu0
        %v4652 = vadd.f32 0.0, %v4651
        %4653 = vmatmul.bf16.gmra.mxu0 %v1973
        %v4654 = vpop.f32.mrf.mxu0
        %v4655 = vadd.f32 0.0, %v4654
        %v4656 = vpop.f32.mrf.mxu0
        %v4657 = vadd.f32 0.0, %v4656
        %4658 = vmatmul.bf16.gmra.mxu0 %v1974
        %v4659 = vpop.f32.mrf.mxu0
        %v4660 = vadd.f32 0.0, %v4659
        %v4661 = vpop.f32.mrf.mxu0
        %v4662 = vadd.f32 0.0, %v4661
        %4663 = vdwg.mxu0
        %4664 = vmatpush.bf16.msra.mxu0 %v1544
        %4665 = vmatpush.bf16.msra.mxu0 %v1543
        %4666 = vmatpush.bf16.msra.mxu0 %v1542
        %4667 = vmatpush.bf16.msra.mxu0 %v1541
        %4668 = vmatpush.bf16.msra.mxu0 %v1540
        %4669 = vmatpush.bf16.msra.mxu0 %v1539
        %4670 = vmatpush.bf16.msra.mxu0 %v1538
        %4671 = vmatpush.bf16.msra.mxu0 %v1537
        %4672 = vmatmul.bf16.gmra.mxu0 %v1705
        %v4673 = vpop.f32.mrf.mxu0
        %v4674 = vadd.f32 %v4595, %v4673
        %v4675 = vpop.f32.mrf.mxu0
        %v4676 = vadd.f32 %v4597, %v4675
        %4677 = vmatmul.bf16.gmra.mxu0 %v1706
        %v4678 = vpop.f32.mrf.mxu0
        %v4679 = vadd.f32 %v4600, %v4678
        %v4680 = vpop.f32.mrf.mxu0
        %v4681 = vadd.f32 %v4602, %v4680
        %4682 = vmatmul.bf16.gmra.mxu0 %v1707
        %v4683 = vpop.f32.mrf.mxu0
        %v4684 = vadd.f32 %v4605, %v4683
        %v4685 = vpop.f32.mrf.mxu0
        %v4686 = vadd.f32 %v4607, %v4685
        %4687 = vmatmul.bf16.gmra.mxu0 %v1708
        %v4688 = vpop.f32.mrf.mxu0
        %v4689 = vadd.f32 %v4610, %v4688
        %v4690 = vpop.f32.mrf.mxu0
        %v4691 = vadd.f32 %v4612, %v4690
        %4692 = vmatmul.bf16.gmra.mxu0 %v1709
        %v4693 = vpop.f32.mrf.mxu0
        %v4694 = vadd.f32 %v4615, %v4693
        %v4695 = vpop.f32.mrf.mxu0
        %v4696 = vadd.f32 %v4617, %v4695
        %4697 = vmatmul.bf16.gmra.mxu0 %v1710
        %v4698 = vpop.f32.mrf.mxu0
        %v4699 = vadd.f32 %v4620, %v4698
        %v4700 = vpop.f32.mrf.mxu0
        %v4701 = vadd.f32 %v4622, %v4700
        %4702 = vmatmul.bf16.gmra.mxu0 %v1711
        %v4703 = vpop.f32.mrf.mxu0
        %v4704 = vadd.f32 %v4625, %v4703
        %v4705 = vpop.f32.mrf.mxu0
        %v4706 = vadd.f32 %v4627, %v4705
        %4707 = vmatmul.bf16.gmra.mxu0 %v1712
        %v4708 = vpop.f32.mrf.mxu0
        %v4709 = vadd.f32 %v4630, %v4708
        %v4710 = vpop.f32.mrf.mxu0
        %v4711 = vadd.f32 %v4632, %v4710
        %4712 = vmatmul.bf16.gmra.mxu0 %v1713
        %v4713 = vpop.f32.mrf.mxu0
        %v4714 = vadd.f32 %v4635, %v4713
        %v4715 = vpop.f32.mrf.mxu0
        %v4716 = vadd.f32 %v4637, %v4715
        %4717 = vmatmul.bf16.gmra.mxu0 %v1714
        %v4718 = vpop.f32.mrf.mxu0
        %v4719 = vadd.f32 %v4640, %v4718
        %v4720 = vpop.f32.mrf.mxu0
        %v4721 = vadd.f32 %v4642, %v4720
        %4722 = vmatmul.bf16.gmra.mxu0 %v1715
        %v4723 = vpop.f32.mrf.mxu0
        %v4724 = vadd.f32 %v4645, %v4723
        %v4725 = vpop.f32.mrf.mxu0
        %v4726 = vadd.f32 %v4647, %v4725
        %4727 = vmatmul.bf16.gmra.mxu0 %v1716
        %v4728 = vpop.f32.mrf.mxu0
        %v4729 = vadd.f32 %v4650, %v4728
        %v4730 = vpop.f32.mrf.mxu0
        %v4731 = vadd.f32 %v4652, %v4730
        %4732 = vmatmul.bf16.gmra.mxu0 %v1717
        %v4733 = vpop.f32.mrf.mxu0
        %v4734 = vadd.f32 %v4655, %v4733
        %v4735 = vpop.f32.mrf.mxu0
        %v4736 = vadd.f32 %v4657, %v4735
        %4737 = vmatmul.bf16.gmra.mxu0 %v1718
        %v4738 = vpop.f32.mrf.mxu0
        %v4739 = vadd.f32 %v4660, %v4738
        %v4740 = vpop.f32.mrf.mxu0
        %v4741 = vadd.f32 %v4662, %v4740
        %4742 = vdwg.mxu0
        %4743 = vmatpush.bf16.msra.mxu0 %v1772
        %4744 = vmatpush.bf16.msra.mxu0 %v1771
        %4745 = vmatpush.bf16.msra.mxu0 %v1770
        %4746 = vmatpush.bf16.msra.mxu0 %v1769
        %4747 = vmatpush.bf16.msra.mxu0 %v1768
        %4748 = vmatpush.bf16.msra.mxu0 %v1767
        %4749 = vmatpush.bf16.msra.mxu0 %v1766
        %4750 = vmatpush.bf16.msra.mxu0 %v1765
        %4751 = vmatmul.bf16.gmra.mxu0 %v2217
        %v4752 = vpop.f32.mrf.mxu0
        %v4753 = vadd.f32 0.0, %v4752
        %v4754 = vpop.f32.mrf.mxu0
        %v4755 = vadd.f32 0.0, %v4754
        %4756 = vmatmul.bf16.gmra.mxu0 %v2218
        %v4757 = vpop.f32.mrf.mxu0
        %v4758 = vadd.f32 0.0, %v4757
        %v4759 = vpop.f32.mrf.mxu0
        %v4760 = vadd.f32 0.0, %v4759
        %4761 = vmatmul.bf16.gmra.mxu0 %v2219
        %v4762 = vpop.f32.mrf.mxu0
        %v4763 = vadd.f32 0.0, %v4762
        %v4764 = vpop.f32.mrf.mxu0
        %v4765 = vadd.f32 0.0, %v4764
        %4766 = vmatmul.bf16.gmra.mxu0 %v2220
        %v4767 = vpop.f32.mrf.mxu0
        %v4768 = vadd.f32 0.0, %v4767
        %v4769 = vpop.f32.mrf.mxu0
        %v4770 = vadd.f32 0.0, %v4769
        %4771 = vmatmul.bf16.gmra.mxu0 %v2221
        %v4772 = vpop.f32.mrf.mxu0
        %v4773 = vadd.f32 0.0, %v4772
        %v4774 = vpop.f32.mrf.mxu0
        %v4775 = vadd.f32 0.0, %v4774
        %4776 = vmatmul.bf16.gmra.mxu0 %v2222
        %v4777 = vpop.f32.mrf.mxu0
        %v4778 = vadd.f32 0.0, %v4777
        %v4779 = vpop.f32.mrf.mxu0
        %v4780 = vadd.f32 0.0, %v4779
        %4781 = vmatmul.bf16.gmra.mxu0 %v2223
        %v4782 = vpop.f32.mrf.mxu0
        %v4783 = vadd.f32 0.0, %v4782
        %v4784 = vpop.f32.mrf.mxu0
        %v4785 = vadd.f32 0.0, %v4784
        %4786 = vmatmul.bf16.gmra.mxu0 %v2224
        %v4787 = vpop.f32.mrf.mxu0
        %v4788 = vadd.f32 0.0, %v4787
        %v4789 = vpop.f32.mrf.mxu0
        %v4790 = vadd.f32 0.0, %v4789
        %4791 = vmatmul.bf16.gmra.mxu0 %v2225
        %v4792 = vpop.f32.mrf.mxu0
        %v4793 = vadd.f32 0.0, %v4792
        %v4794 = vpop.f32.mrf.mxu0
        %v4795 = vadd.f32 0.0, %v4794
        %4796 = vmatmul.bf16.gmra.mxu0 %v2226
        %v4797 = vpop.f32.mrf.mxu0
        %v4798 = vadd.f32 0.0, %v4797
        %v4799 = vpop.f32.mrf.mxu0
        %v4800 = vadd.f32 0.0, %v4799
        %4801 = vmatmul.bf16.gmra.mxu0 %v2227
        %v4802 = vpop.f32.mrf.mxu0
        %v4803 = vadd.f32 0.0, %v4802
        %v4804 = vpop.f32.mrf.mxu0
        %v4805 = vadd.f32 0.0, %v4804
        %4806 = vmatmul.bf16.gmra.mxu0 %v2228
        %v4807 = vpop.f32.mrf.mxu0
        %v4808 = vadd.f32 0.0, %v4807
        %v4809 = vpop.f32.mrf.mxu0
        %v4810 = vadd.f32 0.0, %v4809
        %4811 = vmatmul.bf16.gmra.mxu0 %v2229
        %v4812 = vpop.f32.mrf.mxu0
        %v4813 = vadd.f32 0.0, %v4812
        %v4814 = vpop.f32.mrf.mxu0
        %v4815 = vadd.f32 0.0, %v4814
        %4816 = vmatmul.bf16.gmra.mxu0 %v2230
        %v4817 = vpop.f32.mrf.mxu0
        %v4818 = vadd.f32 0.0, %v4817
        %v4819 = vpop.f32.mrf.mxu0
        %v4820 = vadd.f32 0.0, %v4819
        %4821 = vdwg.mxu0
        %v4822 = vadd.f32 %v4674, %v4753
        %v4823 = vadd.f32 %v4676, %v4755
        %v4824 = vadd.f32 %v4679, %v4758
        %v4825 = vadd.f32 %v4681, %v4760
        %v4826 = vadd.f32 %v4684, %v4763
        %v4827 = vadd.f32 %v4686, %v4765
        %v4828 = vadd.f32 %v4689, %v4768
        %v4829 = vadd.f32 %v4691, %v4770
        %v4830 = vadd.f32 %v4694, %v4773
        %v4831 = vadd.f32 %v4696, %v4775
        %v4832 = vadd.f32 %v4699, %v4778
        %v4833 = vadd.f32 %v4701, %v4780
        %v4834 = vadd.f32 %v4704, %v4783
        %v4835 = vadd.f32 %v4706, %v4785
        %v4836 = vadd.f32 %v4709, %v4788
        %v4837 = vadd.f32 %v4711, %v4790
        %v4838 = vadd.f32 %v4714, %v4793
        %v4839 = vadd.f32 %v4716, %v4795
        %v4840 = vadd.f32 %v4719, %v4798
        %v4841 = vadd.f32 %v4721, %v4800
        %v4842 = vadd.f32 %v4724, %v4803
        %v4843 = vadd.f32 %v4726, %v4805
        %v4844 = vadd.f32 %v4729, %v4808
        %v4845 = vadd.f32 %v4731, %v4810
        %v4846 = vadd.f32 %v4734, %v4813
        %v4847 = vadd.f32 %v4736, %v4815
        %v4848 = vadd.f32 %v4739, %v4818
        %v4849 = vadd.f32 %v4741, %v4820
        %4850 = vmatpush.bf16.msra.mxu0 %v2028
        %4851 = vmatpush.bf16.msra.mxu0 %v2027
        %4852 = vmatpush.bf16.msra.mxu0 %v2026
        %4853 = vmatpush.bf16.msra.mxu0 %v2025
        %4854 = vmatpush.bf16.msra.mxu0 %v2024
        %4855 = vmatpush.bf16.msra.mxu0 %v2023
        %4856 = vmatpush.bf16.msra.mxu0 %v2022
        %4857 = vmatpush.bf16.msra.mxu0 %v2021
        %4858 = vmatmul.bf16.gmra.mxu0 %v3775
        %v4859 = vpop.f32.mrf.mxu0
        %v4860 = vadd.f32 0.0, %v4859
        %v4861 = vpop.f32.mrf.mxu0
        %v4862 = vadd.f32 0.0, %v4861
        %4863 = vmatmul.bf16.gmra.mxu0 %v3776
        %v4864 = vpop.f32.mrf.mxu0
        %v4865 = vadd.f32 0.0, %v4864
        %v4866 = vpop.f32.mrf.mxu0
        %v4867 = vadd.f32 0.0, %v4866
        %4868 = vmatmul.bf16.gmra.mxu0 %v3777
        %v4869 = vpop.f32.mrf.mxu0
        %v4870 = vadd.f32 0.0, %v4869
        %v4871 = vpop.f32.mrf.mxu0
        %v4872 = vadd.f32 0.0, %v4871
        %4873 = vmatmul.bf16.gmra.mxu0 %v3778
        %v4874 = vpop.f32.mrf.mxu0
        %v4875 = vadd.f32 0.0, %v4874
        %v4876 = vpop.f32.mrf.mxu0
        %v4877 = vadd.f32 0.0, %v4876
        %4878 = vmatmul.bf16.gmra.mxu0 %v3779
        %v4879 = vpop.f32.mrf.mxu0
        %v4880 = vadd.f32 0.0, %v4879
        %v4881 = vpop.f32.mrf.mxu0
        %v4882 = vadd.f32 0.0, %v4881
        %4883 = vmatmul.bf16.gmra.mxu0 %v3780
        %v4884 = vpop.f32.mrf.mxu0
        %v4885 = vadd.f32 0.0, %v4884
        %v4886 = vpop.f32.mrf.mxu0
        %v4887 = vadd.f32 0.0, %v4886
        %4888 = vmatmul.bf16.gmra.mxu0 %v3781
        %v4889 = vpop.f32.mrf.mxu0
        %v4890 = vadd.f32 0.0, %v4889
        %v4891 = vpop.f32.mrf.mxu0
        %v4892 = vadd.f32 0.0, %v4891
        %4893 = vmatmul.bf16.gmra.mxu0 %v3782
        %v4894 = vpop.f32.mrf.mxu0
        %v4895 = vadd.f32 0.0, %v4894
        %v4896 = vpop.f32.mrf.mxu0
        %v4897 = vadd.f32 0.0, %v4896
        %4898 = vmatmul.bf16.gmra.mxu0 %v3783
        %v4899 = vpop.f32.mrf.mxu0
        %v4900 = vadd.f32 0.0, %v4899
        %v4901 = vpop.f32.mrf.mxu0
        %v4902 = vadd.f32 0.0, %v4901
        %4903 = vmatmul.bf16.gmra.mxu0 %v3784
        %v4904 = vpop.f32.mrf.mxu0
        %v4905 = vadd.f32 0.0, %v4904
        %v4906 = vpop.f32.mrf.mxu0
        %v4907 = vadd.f32 0.0, %v4906
        %4908 = vmatmul.bf16.gmra.mxu0 %v3785
        %v4909 = vpop.f32.mrf.mxu0
        %v4910 = vadd.f32 0.0, %v4909
        %v4911 = vpop.f32.mrf.mxu0
        %v4912 = vadd.f32 0.0, %v4911
        %4913 = vmatmul.bf16.gmra.mxu0 %v3786
        %v4914 = vpop.f32.mrf.mxu0
        %v4915 = vadd.f32 0.0, %v4914
        %v4916 = vpop.f32.mrf.mxu0
        %v4917 = vadd.f32 0.0, %v4916
        %4918 = vmatmul.bf16.gmra.mxu0 %v3787
        %v4919 = vpop.f32.mrf.mxu0
        %v4920 = vadd.f32 0.0, %v4919
        %v4921 = vpop.f32.mrf.mxu0
        %v4922 = vadd.f32 0.0, %v4921
        %4923 = vmatmul.bf16.gmra.mxu0 %v3788
        %v4924 = vpop.f32.mrf.mxu0
        %v4925 = vadd.f32 0.0, %v4924
        %v4926 = vpop.f32.mrf.mxu0
        %v4927 = vadd.f32 0.0, %v4926
        %4928 = vdwg.mxu0
        %v4929 = vadd.f32 %v4822, %v4860
        %v4930 = vadd.f32 %v4823, %v4862
        %v4931 = vadd.f32 %v4824, %v4865
        %v4932 = vadd.f32 %v4825, %v4867
        %v4933 = vadd.f32 %v4826, %v4870
        %v4934 = vadd.f32 %v4827, %v4872
        %v4935 = vadd.f32 %v4828, %v4875
        %v4936 = vadd.f32 %v4829, %v4877
        %v4937 = vadd.f32 %v4830, %v4880
        %v4938 = vadd.f32 %v4831, %v4882
        %v4939 = vadd.f32 %v4832, %v4885
        %v4940 = vadd.f32 %v4833, %v4887
        %v4941 = vadd.f32 %v4834, %v4890
        %v4942 = vadd.f32 %v4835, %v4892
        %v4943 = vadd.f32 %v4836, %v4895
        %v4944 = vadd.f32 %v4837, %v4897
        %v4945 = vadd.f32 %v4838, %v4900
        %v4946 = vadd.f32 %v4839, %v4902
        %v4947 = vadd.f32 %v4840, %v4905
        %v4948 = vadd.f32 %v4841, %v4907
        %v4949 = vadd.f32 %v4842, %v4910
        %v4950 = vadd.f32 %v4843, %v4912
        %v4951 = vadd.f32 %v4844, %v4915
        %v4952 = vadd.f32 %v4845, %v4917
        %v4953 = vadd.f32 %v4846, %v4920
        %v4954 = vadd.f32 %v4847, %v4922
        %v4955 = vadd.f32 %v4848, %v4925
        %v4956 = vadd.f32 %v4849, %v4927
        %v4985 = vunpack.c.l.b16 %v1120
        %v4986 = vunpack.c.l.b16 %v1121
        %v4987 = vunpack.c.l.b16 %v1122
        %v4988 = vunpack.c.l.b16 %v1123
        %v4989 = vunpack.c.l.b16 %v1124
        %v4990 = vunpack.c.l.b16 %v1125
        %v4991 = vunpack.c.l.b16 %v1126
        %v4992 = vunpack.c.l.b16 %v1127
        %v4993 = vunpack.c.l.b16 %v1128
        %v4994 = vunpack.c.l.b16 %v1129
        %v4995 = vunpack.c.l.b16 %v1130
        %v4996 = vunpack.c.l.b16 %v1131
        %v4997 = vunpack.c.l.b16 %v1132
        %v4998 = vunpack.c.l.b16 %v1133
        %v4999 = vunpack.c.l.b16 %v1134
        %v5000 = vunpack.c.l.b16 %v1135
        %v5001 = vunpack.c.l.b16 %v1136
        %v5002 = vunpack.c.l.b16 %v1137
        %v5003 = vunpack.c.l.b16 %v1138
        %v5004 = vunpack.c.l.b16 %v1139
        %v5005 = vunpack.c.l.b16 %v1140
        %v5006 = vunpack.c.l.b16 %v1141
        %v5007 = vunpack.c.l.b16 %v1142
        %v5008 = vunpack.c.l.b16 %v1143
        %v5009 = vunpack.c.l.b16 %v1144
        %v5010 = vunpack.c.l.b16 %v1145
        %v5011 = vunpack.c.l.b16 %v1146
        %v5012 = vunpack.c.l.b16 %v1147
        %v5013 = vpack.c.b16 %v4986, %v4985
        %v5014 = vpack.c.b16 %v4988, %v4987
        %v5015 = vpack.c.b16 %v4990, %v4989
        %v5016 = vpack.c.b16 %v4992, %v4991
        %v5017 = vpack.c.b16 %v4994, %v4993
        %v5018 = vpack.c.b16 %v4996, %v4995
        %v5019 = vpack.c.b16 %v4998, %v4997
        %v5020 = vpack.c.b16 %v5000, %v4999
        %v5021 = vpack.c.b16 %v5002, %v5001
        %v5022 = vpack.c.b16 %v5004, %v5003
        %v5023 = vpack.c.b16 %v5006, %v5005
        %v5024 = vpack.c.b16 %v5008, %v5007
        %v5025 = vpack.c.b16 %v5010, %v5009
        %v5026 = vpack.c.b16 %v5012, %v5011
        %5041 = vmatpush.bf16.msra.mxu0 %v2284
        %5042 = vmatpush.bf16.msra.mxu0 %v2283
        %5043 = vmatpush.bf16.msra.mxu0 %v2282
        %5044 = vmatpush.bf16.msra.mxu0 %v2281
        %5045 = vmatpush.bf16.msra.mxu0 %v2280
        %5046 = vmatpush.bf16.msra.mxu0 %v2279
        %5047 = vmatpush.bf16.msra.mxu0 %v2278
        %5048 = vmatpush.bf16.msra.mxu0 %v2277
        %5049 = vmatmul.bf16.gmra.mxu0 %v5013
        %v5050 = vpop.f32.mrf.mxu0
        %v5051 = vadd.f32 0.0, %v5050
        %v5052 = vpop.f32.mrf.mxu0
        %v5053 = vadd.f32 0.0, %v5052
        %5054 = vmatmul.bf16.gmra.mxu0 %v5014
        %v5055 = vpop.f32.mrf.mxu0
        %v5056 = vadd.f32 0.0, %v5055
        %v5057 = vpop.f32.mrf.mxu0
        %v5058 = vadd.f32 0.0, %v5057
        %5059 = vmatmul.bf16.gmra.mxu0 %v5015
        %v5060 = vpop.f32.mrf.mxu0
        %v5061 = vadd.f32 0.0, %v5060
        %v5062 = vpop.f32.mrf.mxu0
        %v5063 = vadd.f32 0.0, %v5062
        %5064 = vmatmul.bf16.gmra.mxu0 %v5016
        %v5065 = vpop.f32.mrf.mxu0
        %v5066 = vadd.f32 0.0, %v5065
        %v5067 = vpop.f32.mrf.mxu0
        %v5068 = vadd.f32 0.0, %v5067
        %5069 = vmatmul.bf16.gmra.mxu0 %v5017
        %v5070 = vpop.f32.mrf.mxu0
        %v5071 = vadd.f32 0.0, %v5070
        %v5072 = vpop.f32.mrf.mxu0
        %v5073 = vadd.f32 0.0, %v5072
        %5074 = vmatmul.bf16.gmra.mxu0 %v5018
        %v5075 = vpop.f32.mrf.mxu0
        %v5076 = vadd.f32 0.0, %v5075
        %v5077 = vpop.f32.mrf.mxu0
        %v5078 = vadd.f32 0.0, %v5077
        %5079 = vmatmul.bf16.gmra.mxu0 %v5019
        %v5080 = vpop.f32.mrf.mxu0
        %v5081 = vadd.f32 0.0, %v5080
        %v5082 = vpop.f32.mrf.mxu0
        %v5083 = vadd.f32 0.0, %v5082
        %5084 = vmatmul.bf16.gmra.mxu0 %v5020
        %v5085 = vpop.f32.mrf.mxu0
        %v5086 = vadd.f32 0.0, %v5085
        %v5087 = vpop.f32.mrf.mxu0
        %v5088 = vadd.f32 0.0, %v5087
        %5089 = vmatmul.bf16.gmra.mxu0 %v5021
        %v5090 = vpop.f32.mrf.mxu0
        %v5091 = vadd.f32 0.0, %v5090
        %v5092 = vpop.f32.mrf.mxu0
        %v5093 = vadd.f32 0.0, %v5092
        %5094 = vmatmul.bf16.gmra.mxu0 %v5022
        %v5095 = vpop.f32.mrf.mxu0
        %v5096 = vadd.f32 0.0, %v5095
        %v5097 = vpop.f32.mrf.mxu0
        %v5098 = vadd.f32 0.0, %v5097
        %5099 = vmatmul.bf16.gmra.mxu0 %v5023
        %v5100 = vpop.f32.mrf.mxu0
        %v5101 = vadd.f32 0.0, %v5100
        %v5102 = vpop.f32.mrf.mxu0
        %v5103 = vadd.f32 0.0, %v5102
        %5104 = vmatmul.bf16.gmra.mxu0 %v5024
        %v5105 = vpop.f32.mrf.mxu0
        %v5106 = vadd.f32 0.0, %v5105
        %v5107 = vpop.f32.mrf.mxu0
        %v5108 = vadd.f32 0.0, %v5107
        %5109 = vmatmul.bf16.gmra.mxu0 %v5025
        %v5110 = vpop.f32.mrf.mxu0
        %v5111 = vadd.f32 0.0, %v5110
        %v5112 = vpop.f32.mrf.mxu0
        %v5113 = vadd.f32 0.0, %v5112
        %5114 = vmatmul.bf16.gmra.mxu0 %v5026
        %v5115 = vpop.f32.mrf.mxu0
        %v5116 = vadd.f32 0.0, %v5115
        %v5117 = vpop.f32.mrf.mxu0
        %v5118 = vadd.f32 0.0, %v5117
        %5119 = vdwg.mxu0
        %v5120 = vadd.f32 %v4929, %v5051
        %v5121 = vadd.f32 %v4930, %v5053
        %v5122 = vadd.f32 %v4931, %v5056
        %v5123 = vadd.f32 %v4932, %v5058
        %v5124 = vadd.f32 %v4933, %v5061
        %v5125 = vadd.f32 %v4934, %v5063
        %v5126 = vadd.f32 %v4935, %v5066
        %v5127 = vadd.f32 %v4936, %v5068
        %v5128 = vadd.f32 %v4937, %v5071
        %v5129 = vadd.f32 %v4938, %v5073
        %v5130 = vadd.f32 %v4939, %v5076
        %v5131 = vadd.f32 %v4940, %v5078
        %v5132 = vadd.f32 %v4941, %v5081
        %v5133 = vadd.f32 %v4942, %v5083
        %v5134 = vadd.f32 %v4943, %v5086
        %v5135 = vadd.f32 %v4944, %v5088
        %v5136 = vadd.f32 %v4945, %v5091
        %v5137 = vadd.f32 %v4946, %v5093
        %v5138 = vadd.f32 %v4947, %v5096
        %v5139 = vadd.f32 %v4948, %v5098
        %v5140 = vadd.f32 %v4949, %v5101
        %v5141 = vadd.f32 %v4950, %v5103
        %v5142 = vadd.f32 %v4951, %v5106
        %v5143 = vadd.f32 %v4952, %v5108
        %v5144 = vadd.f32 %v4953, %v5111
        %v5145 = vadd.f32 %v4954, %v5113
        %v5146 = vadd.f32 %v4955, %v5116
        %v5147 = vadd.f32 %v4956, %v5118
        %v5148 = vadd.f32 %v5120, %v2401
        %v5149 = vadd.f32 %v5121, %v2401
        %v5150 = vadd.f32 %v5122, %v2401
        %v5151 = vadd.f32 %v5123, %v2401
        %v5152 = vadd.f32 %v5124, %v2401
        %v5153 = vadd.f32 %v5125, %v2401
        %v5154 = vadd.f32 %v5126, %v2401
        %v5155 = vadd.f32 %v5127, %v2401
        %v5156 = vadd.f32 %v5128, %v2401
        %v5157 = vadd.f32 %v5129, %v2401
        %v5158 = vadd.f32 %v5130, %v2401
        %v5159 = vadd.f32 %v5131, %v2401
        %v5160 = vadd.f32 %v5132, %v2401
        %v5161 = vadd.f32 %v5133, %v2401
        %v5162 = vadd.f32 %v5134, %v2401
        %v5163 = vadd.f32 %v5135, %v2401
        %v5164 = vadd.f32 %v5136, %v2401
        %v5165 = vadd.f32 %v5137, %v2401
        %v5166 = vadd.f32 %v5138, %v2401
        %v5167 = vadd.f32 %v5139, %v2401
        %v5168 = vadd.f32 %v5140, %v2401
        %v5169 = vadd.f32 %v5141, %v2401
        %v5170 = vadd.f32 %v5142, %v2401
        %v5171 = vadd.f32 %v5143, %v2401
        %v5172 = vadd.f32 %v5144, %v2401
        %v5173 = vadd.f32 %v5145, %v2401
        %v5174 = vadd.f32 %v5146, %v2401
        %v5175 = vadd.f32 %v5147, %v2401
        %v5176 = vmax.f32 %v5148, 0.0
        %v5177 = vmax.f32 %v5149, 0.0
        %v5178 = vmax.f32 %v5150, 0.0
        %v5179 = vmax.f32 %v5151, 0.0
        %v5180 = vmax.f32 %v5152, 0.0
        %v5181 = vmax.f32 %v5153, 0.0
        %v5182 = vmax.f32 %v5154, 0.0
        %v5183 = vmax.f32 %v5155, 0.0
        %v5184 = vmax.f32 %v5156, 0.0
        %v5185 = vmax.f32 %v5157, 0.0
        %v5186 = vmax.f32 %v5158, 0.0
        %v5187 = vmax.f32 %v5159, 0.0
        %v5188 = vmax.f32 %v5160, 0.0
        %v5189 = vmax.f32 %v5161, 0.0
        %v5190 = vmax.f32 %v5162, 0.0
        %v5191 = vmax.f32 %v5163, 0.0
        %v5192 = vmax.f32 %v5164, 0.0
        %v5193 = vmax.f32 %v5165, 0.0
        %v5194 = vmax.f32 %v5166, 0.0
        %v5195 = vmax.f32 %v5167, 0.0
        %v5196 = vmax.f32 %v5168, 0.0
        %v5197 = vmax.f32 %v5169, 0.0
        %v5198 = vmax.f32 %v5170, 0.0
        %v5199 = vmax.f32 %v5171, 0.0
        %v5200 = vmax.f32 %v5172, 0.0
        %v5201 = vmax.f32 %v5173, 0.0
        %v5202 = vmax.f32 %v5174, 0.0
        %v5203 = vmax.f32 %v5175, 0.0
        %5204 = vmatpush.bf16.msra.mxu0 %v2532
        %5205 = vmatpush.bf16.msra.mxu0 %v2531
        %5206 = vmatpush.bf16.msra.mxu0 %v2530
        %5207 = vmatpush.bf16.msra.mxu0 %v2529
        %5208 = vmatpush.bf16.msra.mxu0 %v2528
        %5209 = vmatpush.bf16.msra.mxu0 %v2527
        %5210 = vmatpush.bf16.msra.mxu0 %v2526
        %5211 = vmatpush.bf16.msra.mxu0 %v2525
        %5212 = vmatmul.bf16.gmra.mxu0 %v1961
        %v5213 = vpop.f32.mrf.mxu0
        %v5214 = vadd.f32 0.0, %v5213
        %v5215 = vpop.f32.mrf.mxu0
        %v5216 = vadd.f32 0.0, %v5215
        %5217 = vmatmul.bf16.gmra.mxu0 %v1962
        %v5218 = vpop.f32.mrf.mxu0
        %v5219 = vadd.f32 0.0, %v5218
        %v5220 = vpop.f32.mrf.mxu0
        %v5221 = vadd.f32 0.0, %v5220
        %5222 = vmatmul.bf16.gmra.mxu0 %v1963
        %v5223 = vpop.f32.mrf.mxu0
        %v5224 = vadd.f32 0.0, %v5223
        %v5225 = vpop.f32.mrf.mxu0
        %v5226 = vadd.f32 0.0, %v5225
        %5227 = vmatmul.bf16.gmra.mxu0 %v1964
        %v5228 = vpop.f32.mrf.mxu0
        %v5229 = vadd.f32 0.0, %v5228
        %v5230 = vpop.f32.mrf.mxu0
        %v5231 = vadd.f32 0.0, %v5230
        %5232 = vmatmul.bf16.gmra.mxu0 %v1965
        %v5233 = vpop.f32.mrf.mxu0
        %v5234 = vadd.f32 0.0, %v5233
        %v5235 = vpop.f32.mrf.mxu0
        %v5236 = vadd.f32 0.0, %v5235
        %5237 = vmatmul.bf16.gmra.mxu0 %v1966
        %v5238 = vpop.f32.mrf.mxu0
        %v5239 = vadd.f32 0.0, %v5238
        %v5240 = vpop.f32.mrf.mxu0
        %v5241 = vadd.f32 0.0, %v5240
        %5242 = vmatmul.bf16.gmra.mxu0 %v1967
        %v5243 = vpop.f32.mrf.mxu0
        %v5244 = vadd.f32 0.0, %v5243
        %v5245 = vpop.f32.mrf.mxu0
        %v5246 = vadd.f32 0.0, %v5245
        %5247 = vmatmul.bf16.gmra.mxu0 %v1968
        %v5248 = vpop.f32.mrf.mxu0
        %v5249 = vadd.f32 0.0, %v5248
        %v5250 = vpop.f32.mrf.mxu0
        %v5251 = vadd.f32 0.0, %v5250
        %5252 = vmatmul.bf16.gmra.mxu0 %v1969
        %v5253 = vpop.f32.mrf.mxu0
        %v5254 = vadd.f32 0.0, %v5253
        %v5255 = vpop.f32.mrf.mxu0
        %v5256 = vadd.f32 0.0, %v5255
        %5257 = vmatmul.bf16.gmra.mxu0 %v1970
        %v5258 = vpop.f32.mrf.mxu0
        %v5259 = vadd.f32 0.0, %v5258
        %v5260 = vpop.f32.mrf.mxu0
        %v5261 = vadd.f32 0.0, %v5260
        %5262 = vmatmul.bf16.gmra.mxu0 %v1971
        %v5263 = vpop.f32.mrf.mxu0
        %v5264 = vadd.f32 0.0, %v5263
        %v5265 = vpop.f32.mrf.mxu0
        %v5266 = vadd.f32 0.0, %v5265
        %5267 = vmatmul.bf16.gmra.mxu0 %v1972
        %v5268 = vpop.f32.mrf.mxu0
        %v5269 = vadd.f32 0.0, %v5268
        %v5270 = vpop.f32.mrf.mxu0
        %v5271 = vadd.f32 0.0, %v5270
        %5272 = vmatmul.bf16.gmra.mxu0 %v1973
        %v5273 = vpop.f32.mrf.mxu0
        %v5274 = vadd.f32 0.0, %v5273
        %v5275 = vpop.f32.mrf.mxu0
        %v5276 = vadd.f32 0.0, %v5275
        %5277 = vmatmul.bf16.gmra.mxu0 %v1974
        %v5278 = vpop.f32.mrf.mxu0
        %v5279 = vadd.f32 0.0, %v5278
        %v5280 = vpop.f32.mrf.mxu0
        %v5281 = vadd.f32 0.0, %v5280
        %5282 = vdwg.mxu0
        %5283 = vmatpush.bf16.msra.mxu0 %v2659
        %5284 = vmatpush.bf16.msra.mxu0 %v2658
        %5285 = vmatpush.bf16.msra.mxu0 %v2657
        %5286 = vmatpush.bf16.msra.mxu0 %v2656
        %5287 = vmatpush.bf16.msra.mxu0 %v2655
        %5288 = vmatpush.bf16.msra.mxu0 %v2654
        %5289 = vmatpush.bf16.msra.mxu0 %v2653
        %5290 = vmatpush.bf16.msra.mxu0 %v2652
        %5291 = vmatmul.bf16.gmra.mxu0 %v1705
        %v5292 = vpop.f32.mrf.mxu0
        %v5293 = vadd.f32 %v5214, %v5292
        %v5294 = vpop.f32.mrf.mxu0
        %v5295 = vadd.f32 %v5216, %v5294
        %5296 = vmatmul.bf16.gmra.mxu0 %v1706
        %v5297 = vpop.f32.mrf.mxu0
        %v5298 = vadd.f32 %v5219, %v5297
        %v5299 = vpop.f32.mrf.mxu0
        %v5300 = vadd.f32 %v5221, %v5299
        %5301 = vmatmul.bf16.gmra.mxu0 %v1707
        %v5302 = vpop.f32.mrf.mxu0
        %v5303 = vadd.f32 %v5224, %v5302
        %v5304 = vpop.f32.mrf.mxu0
        %v5305 = vadd.f32 %v5226, %v5304
        %5306 = vmatmul.bf16.gmra.mxu0 %v1708
        %v5307 = vpop.f32.mrf.mxu0
        %v5308 = vadd.f32 %v5229, %v5307
        %v5309 = vpop.f32.mrf.mxu0
        %v5310 = vadd.f32 %v5231, %v5309
        %5311 = vmatmul.bf16.gmra.mxu0 %v1709
        %v5312 = vpop.f32.mrf.mxu0
        %v5313 = vadd.f32 %v5234, %v5312
        %v5314 = vpop.f32.mrf.mxu0
        %v5315 = vadd.f32 %v5236, %v5314
        %5316 = vmatmul.bf16.gmra.mxu0 %v1710
        %v5317 = vpop.f32.mrf.mxu0
        %v5318 = vadd.f32 %v5239, %v5317
        %v5319 = vpop.f32.mrf.mxu0
        %v5320 = vadd.f32 %v5241, %v5319
        %5321 = vmatmul.bf16.gmra.mxu0 %v1711
        %v5322 = vpop.f32.mrf.mxu0
        %v5323 = vadd.f32 %v5244, %v5322
        %v5324 = vpop.f32.mrf.mxu0
        %v5325 = vadd.f32 %v5246, %v5324
        %5326 = vmatmul.bf16.gmra.mxu0 %v1712
        %v5327 = vpop.f32.mrf.mxu0
        %v5328 = vadd.f32 %v5249, %v5327
        %v5329 = vpop.f32.mrf.mxu0
        %v5330 = vadd.f32 %v5251, %v5329
        %5331 = vmatmul.bf16.gmra.mxu0 %v1713
        %v5332 = vpop.f32.mrf.mxu0
        %v5333 = vadd.f32 %v5254, %v5332
        %v5334 = vpop.f32.mrf.mxu0
        %v5335 = vadd.f32 %v5256, %v5334
        %5336 = vmatmul.bf16.gmra.mxu0 %v1714
        %v5337 = vpop.f32.mrf.mxu0
        %v5338 = vadd.f32 %v5259, %v5337
        %v5339 = vpop.f32.mrf.mxu0
        %v5340 = vadd.f32 %v5261, %v5339
        %5341 = vmatmul.bf16.gmra.mxu0 %v1715
        %v5342 = vpop.f32.mrf.mxu0
        %v5343 = vadd.f32 %v5264, %v5342
        %v5344 = vpop.f32.mrf.mxu0
        %v5345 = vadd.f32 %v5266, %v5344
        %5346 = vmatmul.bf16.gmra.mxu0 %v1716
        %v5347 = vpop.f32.mrf.mxu0
        %v5348 = vadd.f32 %v5269, %v5347
        %v5349 = vpop.f32.mrf.mxu0
        %v5350 = vadd.f32 %v5271, %v5349
        %5351 = vmatmul.bf16.gmra.mxu0 %v1717
        %v5352 = vpop.f32.mrf.mxu0
        %v5353 = vadd.f32 %v5274, %v5352
        %v5354 = vpop.f32.mrf.mxu0
        %v5355 = vadd.f32 %v5276, %v5354
        %5356 = vmatmul.bf16.gmra.mxu0 %v1718
        %v5357 = vpop.f32.mrf.mxu0
        %v5358 = vadd.f32 %v5279, %v5357
        %v5359 = vpop.f32.mrf.mxu0
        %v5360 = vadd.f32 %v5281, %v5359
        %5361 = vdwg.mxu0
        %5362 = vmatpush.bf16.msra.mxu0 %v2803
        %5363 = vmatpush.bf16.msra.mxu0 %v2802
        %5364 = vmatpush.bf16.msra.mxu0 %v2801
        %5365 = vmatpush.bf16.msra.mxu0 %v2800
        %5366 = vmatpush.bf16.msra.mxu0 %v2799
        %5367 = vmatpush.bf16.msra.mxu0 %v2798
        %5368 = vmatpush.bf16.msra.mxu0 %v2797
        %5369 = vmatpush.bf16.msra.mxu0 %v2796
        %5370 = vmatmul.bf16.gmra.mxu0 %v2217
        %v5371 = vpop.f32.mrf.mxu0
        %v5372 = vadd.f32 0.0, %v5371
        %v5373 = vpop.f32.mrf.mxu0
        %v5374 = vadd.f32 0.0, %v5373
        %5375 = vmatmul.bf16.gmra.mxu0 %v2218
        %v5376 = vpop.f32.mrf.mxu0
        %v5377 = vadd.f32 0.0, %v5376
        %v5378 = vpop.f32.mrf.mxu0
        %v5379 = vadd.f32 0.0, %v5378
        %5380 = vmatmul.bf16.gmra.mxu0 %v2219
        %v5381 = vpop.f32.mrf.mxu0
        %v5382 = vadd.f32 0.0, %v5381
        %v5383 = vpop.f32.mrf.mxu0
        %v5384 = vadd.f32 0.0, %v5383
        %5385 = vmatmul.bf16.gmra.mxu0 %v2220
        %v5386 = vpop.f32.mrf.mxu0
        %v5387 = vadd.f32 0.0, %v5386
        %v5388 = vpop.f32.mrf.mxu0
        %v5389 = vadd.f32 0.0, %v5388
        %5390 = vmatmul.bf16.gmra.mxu0 %v2221
        %v5391 = vpop.f32.mrf.mxu0
        %v5392 = vadd.f32 0.0, %v5391
        %v5393 = vpop.f32.mrf.mxu0
        %v5394 = vadd.f32 0.0, %v5393
        %5395 = vmatmul.bf16.gmra.mxu0 %v2222
        %v5396 = vpop.f32.mrf.mxu0
        %v5397 = vadd.f32 0.0, %v5396
        %v5398 = vpop.f32.mrf.mxu0
        %v5399 = vadd.f32 0.0, %v5398
        %5400 = vmatmul.bf16.gmra.mxu0 %v2223
        %v5401 = vpop.f32.mrf.mxu0
        %v5402 = vadd.f32 0.0, %v5401
        %v5403 = vpop.f32.mrf.mxu0
        %v5404 = vadd.f32 0.0, %v5403
        %5405 = vmatmul.bf16.gmra.mxu0 %v2224
        %v5406 = vpop.f32.mrf.mxu0
        %v5407 = vadd.f32 0.0, %v5406
        %v5408 = vpop.f32.mrf.mxu0
        %v5409 = vadd.f32 0.0, %v5408
        %5410 = vmatmul.bf16.gmra.mxu0 %v2225
        %v5411 = vpop.f32.mrf.mxu0
        %v5412 = vadd.f32 0.0, %v5411
        %v5413 = vpop.f32.mrf.mxu0
        %v5414 = vadd.f32 0.0, %v5413
        %5415 = vmatmul.bf16.gmra.mxu0 %v2226
        %v5416 = vpop.f32.mrf.mxu0
        %v5417 = vadd.f32 0.0, %v5416
        %v5418 = vpop.f32.mrf.mxu0
        %v5419 = vadd.f32 0.0, %v5418
        %5420 = vmatmul.bf16.gmra.mxu0 %v2227
        %v5421 = vpop.f32.mrf.mxu0
        %v5422 = vadd.f32 0.0, %v5421
        %v5423 = vpop.f32.mrf.mxu0
        %v5424 = vadd.f32 0.0, %v5423
        %5425 = vmatmul.bf16.gmra.mxu0 %v2228
        %v5426 = vpop.f32.mrf.mxu0
        %v5427 = vadd.f32 0.0, %v5426
        %v5428 = vpop.f32.mrf.mxu0
        %v5429 = vadd.f32 0.0, %v5428
        %5430 = vmatmul.bf16.gmra.mxu0 %v2229
        %v5431 = vpop.f32.mrf.mxu0
        %v5432 = vadd.f32 0.0, %v5431
        %v5433 = vpop.f32.mrf.mxu0
        %v5434 = vadd.f32 0.0, %v5433
        %5435 = vmatmul.bf16.gmra.mxu0 %v2230
        %v5436 = vpop.f32.mrf.mxu0
        %v5437 = vadd.f32 0.0, %v5436
        %v5438 = vpop.f32.mrf.mxu0
        %v5439 = vadd.f32 0.0, %v5438
        %5440 = vdwg.mxu0
        %v5441 = vadd.f32 %v5293, %v5372
        %v5442 = vadd.f32 %v5295, %v5374
        %v5443 = vadd.f32 %v5298, %v5377
        %v5444 = vadd.f32 %v5300, %v5379
        %v5445 = vadd.f32 %v5303, %v5382
        %v5446 = vadd.f32 %v5305, %v5384
        %v5447 = vadd.f32 %v5308, %v5387
        %v5448 = vadd.f32 %v5310, %v5389
        %v5449 = vadd.f32 %v5313, %v5392
        %v5450 = vadd.f32 %v5315, %v5394
        %v5451 = vadd.f32 %v5318, %v5397
        %v5452 = vadd.f32 %v5320, %v5399
        %v5453 = vadd.f32 %v5323, %v5402
        %v5454 = vadd.f32 %v5325, %v5404
        %v5455 = vadd.f32 %v5328, %v5407
        %v5456 = vadd.f32 %v5330, %v5409
        %v5457 = vadd.f32 %v5333, %v5412
        %v5458 = vadd.f32 %v5335, %v5414
        %v5459 = vadd.f32 %v5338, %v5417
        %v5460 = vadd.f32 %v5340, %v5419
        %v5461 = vadd.f32 %v5343, %v5422
        %v5462 = vadd.f32 %v5345, %v5424
        %v5463 = vadd.f32 %v5348, %v5427
        %v5464 = vadd.f32 %v5350, %v5429
        %v5465 = vadd.f32 %v5353, %v5432
        %v5466 = vadd.f32 %v5355, %v5434
        %v5467 = vadd.f32 %v5358, %v5437
        %v5468 = vadd.f32 %v5360, %v5439
        %5469 = vmatpush.bf16.msra.mxu0 %v2975
        %5470 = vmatpush.bf16.msra.mxu0 %v2974
        %5471 = vmatpush.bf16.msra.mxu0 %v2973
        %5472 = vmatpush.bf16.msra.mxu0 %v2972
        %5473 = vmatpush.bf16.msra.mxu0 %v2971
        %5474 = vmatpush.bf16.msra.mxu0 %v2970
        %5475 = vmatpush.bf16.msra.mxu0 %v2969
        %5476 = vmatpush.bf16.msra.mxu0 %v2968
        %5477 = vmatmul.bf16.gmra.mxu0 %v3775
        %v5478 = vpop.f32.mrf.mxu0
        %v5479 = vadd.f32 0.0, %v5478
        %v5480 = vpop.f32.mrf.mxu0
        %v5481 = vadd.f32 0.0, %v5480
        %5482 = vmatmul.bf16.gmra.mxu0 %v3776
        %v5483 = vpop.f32.mrf.mxu0
        %v5484 = vadd.f32 0.0, %v5483
        %v5485 = vpop.f32.mrf.mxu0
        %v5486 = vadd.f32 0.0, %v5485
        %5487 = vmatmul.bf16.gmra.mxu0 %v3777
        %v5488 = vpop.f32.mrf.mxu0
        %v5489 = vadd.f32 0.0, %v5488
        %v5490 = vpop.f32.mrf.mxu0
        %v5491 = vadd.f32 0.0, %v5490
        %5492 = vmatmul.bf16.gmra.mxu0 %v3778
        %v5493 = vpop.f32.mrf.mxu0
        %v5494 = vadd.f32 0.0, %v5493
        %v5495 = vpop.f32.mrf.mxu0
        %v5496 = vadd.f32 0.0, %v5495
        %5497 = vmatmul.bf16.gmra.mxu0 %v3779
        %v5498 = vpop.f32.mrf.mxu0
        %v5499 = vadd.f32 0.0, %v5498
        %v5500 = vpop.f32.mrf.mxu0
        %v5501 = vadd.f32 0.0, %v5500
        %5502 = vmatmul.bf16.gmra.mxu0 %v3780
        %v5503 = vpop.f32.mrf.mxu0
        %v5504 = vadd.f32 0.0, %v5503
        %v5505 = vpop.f32.mrf.mxu0
        %v5506 = vadd.f32 0.0, %v5505
        %5507 = vmatmul.bf16.gmra.mxu0 %v3781
        %v5508 = vpop.f32.mrf.mxu0
        %v5509 = vadd.f32 0.0, %v5508
        %v5510 = vpop.f32.mrf.mxu0
        %v5511 = vadd.f32 0.0, %v5510
        %5512 = vmatmul.bf16.gmra.mxu0 %v3782
        %v5513 = vpop.f32.mrf.mxu0
        %v5514 = vadd.f32 0.0, %v5513
        %v5515 = vpop.f32.mrf.mxu0
        %v5516 = vadd.f32 0.0, %v5515
        %5517 = vmatmul.bf16.gmra.mxu0 %v3783
        %v5518 = vpop.f32.mrf.mxu0
        %v5519 = vadd.f32 0.0, %v5518
        %v5520 = vpop.f32.mrf.mxu0
        %v5521 = vadd.f32 0.0, %v5520
        %5522 = vmatmul.bf16.gmra.mxu0 %v3784
        %v5523 = vpop.f32.mrf.mxu0
        %v5524 = vadd.f32 0.0, %v5523
        %v5525 = vpop.f32.mrf.mxu0
        %v5526 = vadd.f32 0.0, %v5525
        %5527 = vmatmul.bf16.gmra.mxu0 %v3785
        %v5528 = vpop.f32.mrf.mxu0
        %v5529 = vadd.f32 0.0, %v5528
        %v5530 = vpop.f32.mrf.mxu0
        %v5531 = vadd.f32 0.0, %v5530
        %5532 = vmatmul.bf16.gmra.mxu0 %v3786
        %v5533 = vpop.f32.mrf.mxu0
        %v5534 = vadd.f32 0.0, %v5533
        %v5535 = vpop.f32.mrf.mxu0
        %v5536 = vadd.f32 0.0, %v5535
        %5537 = vmatmul.bf16.gmra.mxu0 %v3787
        %v5538 = vpop.f32.mrf.mxu0
        %v5539 = vadd.f32 0.0, %v5538
        %v5540 = vpop.f32.mrf.mxu0
        %v5541 = vadd.f32 0.0, %v5540
        %5542 = vmatmul.bf16.gmra.mxu0 %v3788
        %v5543 = vpop.f32.mrf.mxu0
        %v5544 = vadd.f32 0.0, %v5543
        %v5545 = vpop.f32.mrf.mxu0
        %v5546 = vadd.f32 0.0, %v5545
        %5547 = vdwg.mxu0
        %v5548 = vadd.f32 %v5441, %v5479
        %v5549 = vadd.f32 %v5442, %v5481
        %v5550 = vadd.f32 %v5443, %v5484
        %v5551 = vadd.f32 %v5444, %v5486
        %v5552 = vadd.f32 %v5445, %v5489
        %v5553 = vadd.f32 %v5446, %v5491
        %v5554 = vadd.f32 %v5447, %v5494
        %v5555 = vadd.f32 %v5448, %v5496
        %v5556 = vadd.f32 %v5449, %v5499
        %v5557 = vadd.f32 %v5450, %v5501
        %v5558 = vadd.f32 %v5451, %v5504
        %v5559 = vadd.f32 %v5452, %v5506
        %v5560 = vadd.f32 %v5453, %v5509
        %v5561 = vadd.f32 %v5454, %v5511
        %v5562 = vadd.f32 %v5455, %v5514
        %v5563 = vadd.f32 %v5456, %v5516
        %v5564 = vadd.f32 %v5457, %v5519
        %v5565 = vadd.f32 %v5458, %v5521
        %v5566 = vadd.f32 %v5459, %v5524
        %v5567 = vadd.f32 %v5460, %v5526
        %v5568 = vadd.f32 %v5461, %v5529
        %v5569 = vadd.f32 %v5462, %v5531
        %v5570 = vadd.f32 %v5463, %v5534
        %v5571 = vadd.f32 %v5464, %v5536
        %v5572 = vadd.f32 %v5465, %v5539
        %v5573 = vadd.f32 %v5466, %v5541
        %v5574 = vadd.f32 %v5467, %v5544
        %v5575 = vadd.f32 %v5468, %v5546
        %5576 = vmatpush.bf16.msra.mxu0 %v3147
        %5577 = vmatpush.bf16.msra.mxu0 %v3146
        %5578 = vmatpush.bf16.msra.mxu0 %v3145
        %5579 = vmatpush.bf16.msra.mxu0 %v3144
        %5580 = vmatpush.bf16.msra.mxu0 %v3143
        %5581 = vmatpush.bf16.msra.mxu0 %v3142
        %5582 = vmatpush.bf16.msra.mxu0 %v3141
        %5583 = vmatpush.bf16.msra.mxu0 %v3140
        %5584 = vmatmul.bf16.gmra.mxu0 %v5013
        %v5585 = vpop.f32.mrf.mxu0
        %v5586 = vadd.f32 0.0, %v5585
        %v5587 = vpop.f32.mrf.mxu0
        %v5588 = vadd.f32 0.0, %v5587
        %5589 = vmatmul.bf16.gmra.mxu0 %v5014
        %v5590 = vpop.f32.mrf.mxu0
        %v5591 = vadd.f32 0.0, %v5590
        %v5592 = vpop.f32.mrf.mxu0
        %v5593 = vadd.f32 0.0, %v5592
        %5594 = vmatmul.bf16.gmra.mxu0 %v5015
        %v5595 = vpop.f32.mrf.mxu0
        %v5596 = vadd.f32 0.0, %v5595
        %v5597 = vpop.f32.mrf.mxu0
        %v5598 = vadd.f32 0.0, %v5597
        %5599 = vmatmul.bf16.gmra.mxu0 %v5016
        %v5600 = vpop.f32.mrf.mxu0
        %v5601 = vadd.f32 0.0, %v5600
        %v5602 = vpop.f32.mrf.mxu0
        %v5603 = vadd.f32 0.0, %v5602
        %5604 = vmatmul.bf16.gmra.mxu0 %v5017
        %v5605 = vpop.f32.mrf.mxu0
        %v5606 = vadd.f32 0.0, %v5605
        %v5607 = vpop.f32.mrf.mxu0
        %v5608 = vadd.f32 0.0, %v5607
        %5609 = vmatmul.bf16.gmra.mxu0 %v5018
        %v5610 = vpop.f32.mrf.mxu0
        %v5611 = vadd.f32 0.0, %v5610
        %v5612 = vpop.f32.mrf.mxu0
        %v5613 = vadd.f32 0.0, %v5612
        %5614 = vmatmul.bf16.gmra.mxu0 %v5019
        %v5615 = vpop.f32.mrf.mxu0
        %v5616 = vadd.f32 0.0, %v5615
        %v5617 = vpop.f32.mrf.mxu0
        %v5618 = vadd.f32 0.0, %v5617
        %5619 = vmatmul.bf16.gmra.mxu0 %v5020
        %v5620 = vpop.f32.mrf.mxu0
        %v5621 = vadd.f32 0.0, %v5620
        %v5622 = vpop.f32.mrf.mxu0
        %v5623 = vadd.f32 0.0, %v5622
        %5624 = vmatmul.bf16.gmra.mxu0 %v5021
        %v5625 = vpop.f32.mrf.mxu0
        %v5626 = vadd.f32 0.0, %v5625
        %v5627 = vpop.f32.mrf.mxu0
        %v5628 = vadd.f32 0.0, %v5627
        %5629 = vmatmul.bf16.gmra.mxu0 %v5022
        %v5630 = vpop.f32.mrf.mxu0
        %v5631 = vadd.f32 0.0, %v5630
        %v5632 = vpop.f32.mrf.mxu0
        %v5633 = vadd.f32 0.0, %v5632
        %5634 = vmatmul.bf16.gmra.mxu0 %v5023
        %v5635 = vpop.f32.mrf.mxu0
        %v5636 = vadd.f32 0.0, %v5635
        %v5637 = vpop.f32.mrf.mxu0
        %v5638 = vadd.f32 0.0, %v5637
        %5639 = vmatmul.bf16.gmra.mxu0 %v5024
        %v5640 = vpop.f32.mrf.mxu0
        %v5641 = vadd.f32 0.0, %v5640
        %v5642 = vpop.f32.mrf.mxu0
        %v5643 = vadd.f32 0.0, %v5642
        %5644 = vmatmul.bf16.gmra.mxu0 %v5025
        %v5645 = vpop.f32.mrf.mxu0
        %v5646 = vadd.f32 0.0, %v5645
        %v5647 = vpop.f32.mrf.mxu0
        %v5648 = vadd.f32 0.0, %v5647
        %5649 = vmatmul.bf16.gmra.mxu0 %v5026
        %v5650 = vpop.f32.mrf.mxu0
        %v5651 = vadd.f32 0.0, %v5650
        %v5652 = vpop.f32.mrf.mxu0
        %v5653 = vadd.f32 0.0, %v5652
        %5654 = vdwg.mxu0
        %v5655 = vadd.f32 %v5548, %v5586
        %v5656 = vadd.f32 %v5549, %v5588
        %v5657 = vadd.f32 %v5550, %v5591
        %v5658 = vadd.f32 %v5551, %v5593
        %v5659 = vadd.f32 %v5552, %v5596
        %v5660 = vadd.f32 %v5553, %v5598
        %v5661 = vadd.f32 %v5554, %v5601
        %v5662 = vadd.f32 %v5555, %v5603
        %v5663 = vadd.f32 %v5556, %v5606
        %v5664 = vadd.f32 %v5557, %v5608
        %v5665 = vadd.f32 %v5558, %v5611
        %v5666 = vadd.f32 %v5559, %v5613
        %v5667 = vadd.f32 %v5560, %v5616
        %v5668 = vadd.f32 %v5561, %v5618
        %v5669 = vadd.f32 %v5562, %v5621
        %v5670 = vadd.f32 %v5563, %v5623
        %v5671 = vadd.f32 %v5564, %v5626
        %v5672 = vadd.f32 %v5565, %v5628
        %v5673 = vadd.f32 %v5566, %v5631
        %v5674 = vadd.f32 %v5567, %v5633
        %v5675 = vadd.f32 %v5568, %v5636
        %v5676 = vadd.f32 %v5569, %v5638
        %v5677 = vadd.f32 %v5570, %v5641
        %v5678 = vadd.f32 %v5571, %v5643
        %v5679 = vadd.f32 %v5572, %v5646
        %v5680 = vadd.f32 %v5573, %v5648
        %v5681 = vadd.f32 %v5574, %v5651
        %v5682 = vadd.f32 %v5575, %v5653
        %v5683 = vadd.f32 %v5655, %v2401
        %v5684 = vadd.f32 %v5656, %v2401
        %v5685 = vadd.f32 %v5657, %v2401
        %v5686 = vadd.f32 %v5658, %v2401
        %v5687 = vadd.f32 %v5659, %v2401
        %v5688 = vadd.f32 %v5660, %v2401
        %v5689 = vadd.f32 %v5661, %v2401
        %v5690 = vadd.f32 %v5662, %v2401
        %v5691 = vadd.f32 %v5663, %v2401
        %v5692 = vadd.f32 %v5664, %v2401
        %v5693 = vadd.f32 %v5665, %v2401
        %v5694 = vadd.f32 %v5666, %v2401
        %v5695 = vadd.f32 %v5667, %v2401
        %v5696 = vadd.f32 %v5668, %v2401
        %v5697 = vadd.f32 %v5669, %v2401
        %v5698 = vadd.f32 %v5670, %v2401
        %v5699 = vadd.f32 %v5671, %v2401
        %v5700 = vadd.f32 %v5672, %v2401
        %v5701 = vadd.f32 %v5673, %v2401
        %v5702 = vadd.f32 %v5674, %v2401
        %v5703 = vadd.f32 %v5675, %v2401
        %v5704 = vadd.f32 %v5676, %v2401
        %v5705 = vadd.f32 %v5677, %v2401
        %v5706 = vadd.f32 %v5678, %v2401
        %v5707 = vadd.f32 %v5679, %v2401
        %v5708 = vadd.f32 %v5680, %v2401
        %v5709 = vadd.f32 %v5681, %v2401
        %v5710 = vadd.f32 %v5682, %v2401
        %v5711 = vmax.f32 %v5683, 0.0
        %v5712 = vmax.f32 %v5684, 0.0
        %v5713 = vmax.f32 %v5685, 0.0
        %v5714 = vmax.f32 %v5686, 0.0
        %v5715 = vmax.f32 %v5687, 0.0
        %v5716 = vmax.f32 %v5688, 0.0
        %v5717 = vmax.f32 %v5689, 0.0
        %v5718 = vmax.f32 %v5690, 0.0
        %v5719 = vmax.f32 %v5691, 0.0
        %v5720 = vmax.f32 %v5692, 0.0
        %v5721 = vmax.f32 %v5693, 0.0
        %v5722 = vmax.f32 %v5694, 0.0
        %v5723 = vmax.f32 %v5695, 0.0
        %v5724 = vmax.f32 %v5696, 0.0
        %v5725 = vmax.f32 %v5697, 0.0
        %v5726 = vmax.f32 %v5698, 0.0
        %v5727 = vmax.f32 %v5699, 0.0
        %v5728 = vmax.f32 %v5700, 0.0
        %v5729 = vmax.f32 %v5701, 0.0
        %v5730 = vmax.f32 %v5702, 0.0
        %v5731 = vmax.f32 %v5703, 0.0
        %v5732 = vmax.f32 %v5704, 0.0
        %v5733 = vmax.f32 %v5705, 0.0
        %v5734 = vmax.f32 %v5706, 0.0
        %v5735 = vmax.f32 %v5707, 0.0
        %v5736 = vmax.f32 %v5708, 0.0
        %v5737 = vmax.f32 %v5709, 0.0
        %v5738 = vmax.f32 %v5710, 0.0
        %v5739 = vmax.f32 %v5176, %v5711
        %v5740 = vmax.f32 %v5177, %v5712
        %v5741 = vmax.f32 %v5178, %v5713
        %v5742 = vmax.f32 %v5179, %v5714
        %v5743 = vmax.f32 %v5180, %v5715
        %v5744 = vmax.f32 %v5181, %v5716
        %v5745 = vmax.f32 %v5182, %v5717
        %v5746 = vmax.f32 %v5183, %v5718
        %v5747 = vmax.f32 %v5184, %v5719
        %v5748 = vmax.f32 %v5185, %v5720
        %v5749 = vmax.f32 %v5186, %v5721
        %v5750 = vmax.f32 %v5187, %v5722
        %v5751 = vmax.f32 %v5188, %v5723
        %v5752 = vmax.f32 %v5189, %v5724
        %v5753 = vmax.f32 %v5190, %v5725
        %v5754 = vmax.f32 %v5191, %v5726
        %v5755 = vmax.f32 %v5192, %v5727
        %v5756 = vmax.f32 %v5193, %v5728
        %v5757 = vmax.f32 %v5194, %v5729
        %v5758 = vmax.f32 %v5195, %v5730
        %v5759 = vmax.f32 %v5196, %v5731
        %v5760 = vmax.f32 %v5197, %v5732
        %v5761 = vmax.f32 %v5198, %v5733
        %v5762 = vmax.f32 %v5199, %v5734
        %v5763 = vmax.f32 %v5200, %v5735
        %v5764 = vmax.f32 %v5201, %v5736
        %v5765 = vmax.f32 %v5202, %v5737
        %v5766 = vmax.f32 %v5203, %v5738
        %5767 = vmatpush.bf16.msra.mxu0 %v1333
        %5768 = vmatpush.bf16.msra.mxu0 %v1332
        %5769 = vmatpush.bf16.msra.mxu0 %v1331
        %5770 = vmatpush.bf16.msra.mxu0 %v1330
        %5771 = vmatpush.bf16.msra.mxu0 %v1329
        %5772 = vmatpush.bf16.msra.mxu0 %v1328
        %5773 = vmatpush.bf16.msra.mxu0 %v1327
        %5774 = vmatpush.bf16.msra.mxu0 %v1326
        %5775 = vmatmul.bf16.gmra.mxu0 %v2217
        %v5776 = vpop.f32.mrf.mxu0
        %v5777 = vadd.f32 0.0, %v5776
        %v5778 = vpop.f32.mrf.mxu0
        %v5779 = vadd.f32 0.0, %v5778
        %5780 = vmatmul.bf16.gmra.mxu0 %v2218
        %v5781 = vpop.f32.mrf.mxu0
        %v5782 = vadd.f32 0.0, %v5781
        %v5783 = vpop.f32.mrf.mxu0
        %v5784 = vadd.f32 0.0, %v5783
        %5785 = vmatmul.bf16.gmra.mxu0 %v2219
        %v5786 = vpop.f32.mrf.mxu0
        %v5787 = vadd.f32 0.0, %v5786
        %v5788 = vpop.f32.mrf.mxu0
        %v5789 = vadd.f32 0.0, %v5788
        %5790 = vmatmul.bf16.gmra.mxu0 %v2220
        %v5791 = vpop.f32.mrf.mxu0
        %v5792 = vadd.f32 0.0, %v5791
        %v5793 = vpop.f32.mrf.mxu0
        %v5794 = vadd.f32 0.0, %v5793
        %5795 = vmatmul.bf16.gmra.mxu0 %v2221
        %v5796 = vpop.f32.mrf.mxu0
        %v5797 = vadd.f32 0.0, %v5796
        %v5798 = vpop.f32.mrf.mxu0
        %v5799 = vadd.f32 0.0, %v5798
        %5800 = vmatmul.bf16.gmra.mxu0 %v2222
        %v5801 = vpop.f32.mrf.mxu0
        %v5802 = vadd.f32 0.0, %v5801
        %v5803 = vpop.f32.mrf.mxu0
        %v5804 = vadd.f32 0.0, %v5803
        %5805 = vmatmul.bf16.gmra.mxu0 %v2223
        %v5806 = vpop.f32.mrf.mxu0
        %v5807 = vadd.f32 0.0, %v5806
        %v5808 = vpop.f32.mrf.mxu0
        %v5809 = vadd.f32 0.0, %v5808
        %5810 = vmatmul.bf16.gmra.mxu0 %v2224
        %v5811 = vpop.f32.mrf.mxu0
        %v5812 = vadd.f32 0.0, %v5811
        %v5813 = vpop.f32.mrf.mxu0
        %v5814 = vadd.f32 0.0, %v5813
        %5815 = vmatmul.bf16.gmra.mxu0 %v2225
        %v5816 = vpop.f32.mrf.mxu0
        %v5817 = vadd.f32 0.0, %v5816
        %v5818 = vpop.f32.mrf.mxu0
        %v5819 = vadd.f32 0.0, %v5818
        %5820 = vmatmul.bf16.gmra.mxu0 %v2226
        %v5821 = vpop.f32.mrf.mxu0
        %v5822 = vadd.f32 0.0, %v5821
        %v5823 = vpop.f32.mrf.mxu0
        %v5824 = vadd.f32 0.0, %v5823
        %5825 = vmatmul.bf16.gmra.mxu0 %v2227
        %v5826 = vpop.f32.mrf.mxu0
        %v5827 = vadd.f32 0.0, %v5826
        %v5828 = vpop.f32.mrf.mxu0
        %v5829 = vadd.f32 0.0, %v5828
        %5830 = vmatmul.bf16.gmra.mxu0 %v2228
        %v5831 = vpop.f32.mrf.mxu0
        %v5832 = vadd.f32 0.0, %v5831
        %v5833 = vpop.f32.mrf.mxu0
        %v5834 = vadd.f32 0.0, %v5833
        %5835 = vmatmul.bf16.gmra.mxu0 %v2229
        %v5836 = vpop.f32.mrf.mxu0
        %v5837 = vadd.f32 0.0, %v5836
        %v5838 = vpop.f32.mrf.mxu0
        %v5839 = vadd.f32 0.0, %v5838
        %5840 = vmatmul.bf16.gmra.mxu0 %v2230
        %v5841 = vpop.f32.mrf.mxu0
        %v5842 = vadd.f32 0.0, %v5841
        %v5843 = vpop.f32.mrf.mxu0
        %v5844 = vadd.f32 0.0, %v5843
        %5845 = vdwg.mxu0
        %5846 = vmatpush.bf16.msra.mxu0 %v1544
        %5847 = vmatpush.bf16.msra.mxu0 %v1543
        %5848 = vmatpush.bf16.msra.mxu0 %v1542
        %5849 = vmatpush.bf16.msra.mxu0 %v1541
        %5850 = vmatpush.bf16.msra.mxu0 %v1540
        %5851 = vmatpush.bf16.msra.mxu0 %v1539
        %5852 = vmatpush.bf16.msra.mxu0 %v1538
        %5853 = vmatpush.bf16.msra.mxu0 %v1537
        %5854 = vmatmul.bf16.gmra.mxu0 %v1961
        %v5855 = vpop.f32.mrf.mxu0
        %v5856 = vadd.f32 %v5777, %v5855
        %v5857 = vpop.f32.mrf.mxu0
        %v5858 = vadd.f32 %v5779, %v5857
        %5859 = vmatmul.bf16.gmra.mxu0 %v1962
        %v5860 = vpop.f32.mrf.mxu0
        %v5861 = vadd.f32 %v5782, %v5860
        %v5862 = vpop.f32.mrf.mxu0
        %v5863 = vadd.f32 %v5784, %v5862
        %5864 = vmatmul.bf16.gmra.mxu0 %v1963
        %v5865 = vpop.f32.mrf.mxu0
        %v5866 = vadd.f32 %v5787, %v5865
        %v5867 = vpop.f32.mrf.mxu0
        %v5868 = vadd.f32 %v5789, %v5867
        %5869 = vmatmul.bf16.gmra.mxu0 %v1964
        %v5870 = vpop.f32.mrf.mxu0
        %v5871 = vadd.f32 %v5792, %v5870
        %v5872 = vpop.f32.mrf.mxu0
        %v5873 = vadd.f32 %v5794, %v5872
        %5874 = vmatmul.bf16.gmra.mxu0 %v1965
        %v5875 = vpop.f32.mrf.mxu0
        %v5876 = vadd.f32 %v5797, %v5875
        %v5877 = vpop.f32.mrf.mxu0
        %v5878 = vadd.f32 %v5799, %v5877
        %5879 = vmatmul.bf16.gmra.mxu0 %v1966
        %v5880 = vpop.f32.mrf.mxu0
        %v5881 = vadd.f32 %v5802, %v5880
        %v5882 = vpop.f32.mrf.mxu0
        %v5883 = vadd.f32 %v5804, %v5882
        %5884 = vmatmul.bf16.gmra.mxu0 %v1967
        %v5885 = vpop.f32.mrf.mxu0
        %v5886 = vadd.f32 %v5807, %v5885
        %v5887 = vpop.f32.mrf.mxu0
        %v5888 = vadd.f32 %v5809, %v5887
        %5889 = vmatmul.bf16.gmra.mxu0 %v1968
        %v5890 = vpop.f32.mrf.mxu0
        %v5891 = vadd.f32 %v5812, %v5890
        %v5892 = vpop.f32.mrf.mxu0
        %v5893 = vadd.f32 %v5814, %v5892
        %5894 = vmatmul.bf16.gmra.mxu0 %v1969
        %v5895 = vpop.f32.mrf.mxu0
        %v5896 = vadd.f32 %v5817, %v5895
        %v5897 = vpop.f32.mrf.mxu0
        %v5898 = vadd.f32 %v5819, %v5897
        %5899 = vmatmul.bf16.gmra.mxu0 %v1970
        %v5900 = vpop.f32.mrf.mxu0
        %v5901 = vadd.f32 %v5822, %v5900
        %v5902 = vpop.f32.mrf.mxu0
        %v5903 = vadd.f32 %v5824, %v5902
        %5904 = vmatmul.bf16.gmra.mxu0 %v1971
        %v5905 = vpop.f32.mrf.mxu0
        %v5906 = vadd.f32 %v5827, %v5905
        %v5907 = vpop.f32.mrf.mxu0
        %v5908 = vadd.f32 %v5829, %v5907
        %5909 = vmatmul.bf16.gmra.mxu0 %v1972
        %v5910 = vpop.f32.mrf.mxu0
        %v5911 = vadd.f32 %v5832, %v5910
        %v5912 = vpop.f32.mrf.mxu0
        %v5913 = vadd.f32 %v5834, %v5912
        %5914 = vmatmul.bf16.gmra.mxu0 %v1973
        %v5915 = vpop.f32.mrf.mxu0
        %v5916 = vadd.f32 %v5837, %v5915
        %v5917 = vpop.f32.mrf.mxu0
        %v5918 = vadd.f32 %v5839, %v5917
        %5919 = vmatmul.bf16.gmra.mxu0 %v1974
        %v5920 = vpop.f32.mrf.mxu0
        %v5921 = vadd.f32 %v5842, %v5920
        %v5922 = vpop.f32.mrf.mxu0
        %v5923 = vadd.f32 %v5844, %v5922
        %5924 = vdwg.mxu0
        %5925 = vmatpush.bf16.msra.mxu0 %v1772
        %5926 = vmatpush.bf16.msra.mxu0 %v1771
        %5927 = vmatpush.bf16.msra.mxu0 %v1770
        %5928 = vmatpush.bf16.msra.mxu0 %v1769
        %5929 = vmatpush.bf16.msra.mxu0 %v1768
        %5930 = vmatpush.bf16.msra.mxu0 %v1767
        %5931 = vmatpush.bf16.msra.mxu0 %v1766
        %5932 = vmatpush.bf16.msra.mxu0 %v1765
        %5933 = vmatmul.bf16.gmra.mxu0 %v3775
        %v5934 = vpop.f32.mrf.mxu0
        %v5935 = vadd.f32 0.0, %v5934
        %v5936 = vpop.f32.mrf.mxu0
        %v5937 = vadd.f32 0.0, %v5936
        %5938 = vmatmul.bf16.gmra.mxu0 %v3776
        %v5939 = vpop.f32.mrf.mxu0
        %v5940 = vadd.f32 0.0, %v5939
        %v5941 = vpop.f32.mrf.mxu0
        %v5942 = vadd.f32 0.0, %v5941
        %5943 = vmatmul.bf16.gmra.mxu0 %v3777
        %v5944 = vpop.f32.mrf.mxu0
        %v5945 = vadd.f32 0.0, %v5944
        %v5946 = vpop.f32.mrf.mxu0
        %v5947 = vadd.f32 0.0, %v5946
        %5948 = vmatmul.bf16.gmra.mxu0 %v3778
        %v5949 = vpop.f32.mrf.mxu0
        %v5950 = vadd.f32 0.0, %v5949
        %v5951 = vpop.f32.mrf.mxu0
        %v5952 = vadd.f32 0.0, %v5951
        %5953 = vmatmul.bf16.gmra.mxu0 %v3779
        %v5954 = vpop.f32.mrf.mxu0
        %v5955 = vadd.f32 0.0, %v5954
        %v5956 = vpop.f32.mrf.mxu0
        %v5957 = vadd.f32 0.0, %v5956
        %5958 = vmatmul.bf16.gmra.mxu0 %v3780
        %v5959 = vpop.f32.mrf.mxu0
        %v5960 = vadd.f32 0.0, %v5959
        %v5961 = vpop.f32.mrf.mxu0
        %v5962 = vadd.f32 0.0, %v5961
        %5963 = vmatmul.bf16.gmra.mxu0 %v3781
        %v5964 = vpop.f32.mrf.mxu0
        %v5965 = vadd.f32 0.0, %v5964
        %v5966 = vpop.f32.mrf.mxu0
        %v5967 = vadd.f32 0.0, %v5966
        %5968 = vmatmul.bf16.gmra.mxu0 %v3782
        %v5969 = vpop.f32.mrf.mxu0
        %v5970 = vadd.f32 0.0, %v5969
        %v5971 = vpop.f32.mrf.mxu0
        %v5972 = vadd.f32 0.0, %v5971
        %5973 = vmatmul.bf16.gmra.mxu0 %v3783
        %v5974 = vpop.f32.mrf.mxu0
        %v5975 = vadd.f32 0.0, %v5974
        %v5976 = vpop.f32.mrf.mxu0
        %v5977 = vadd.f32 0.0, %v5976
        %5978 = vmatmul.bf16.gmra.mxu0 %v3784
        %v5979 = vpop.f32.mrf.mxu0
        %v5980 = vadd.f32 0.0, %v5979
        %v5981 = vpop.f32.mrf.mxu0
        %v5982 = vadd.f32 0.0, %v5981
        %5983 = vmatmul.bf16.gmra.mxu0 %v3785
        %v5984 = vpop.f32.mrf.mxu0
        %v5985 = vadd.f32 0.0, %v5984
        %v5986 = vpop.f32.mrf.mxu0
        %v5987 = vadd.f32 0.0, %v5986
        %5988 = vmatmul.bf16.gmra.mxu0 %v3786
        %v5989 = vpop.f32.mrf.mxu0
        %v5990 = vadd.f32 0.0, %v5989
        %v5991 = vpop.f32.mrf.mxu0
        %v5992 = vadd.f32 0.0, %v5991
        %5993 = vmatmul.bf16.gmra.mxu0 %v3787
        %v5994 = vpop.f32.mrf.mxu0
        %v5995 = vadd.f32 0.0, %v5994
        %v5996 = vpop.f32.mrf.mxu0
        %v5997 = vadd.f32 0.0, %v5996
        %5998 = vmatmul.bf16.gmra.mxu0 %v3788
        %v5999 = vpop.f32.mrf.mxu0
        %v6000 = vadd.f32 0.0, %v5999
        %v6001 = vpop.f32.mrf.mxu0
        %v6002 = vadd.f32 0.0, %v6001
        %6003 = vdwg.mxu0
        %v6004 = vadd.f32 %v5856, %v5935
        %v6005 = vadd.f32 %v5858, %v5937
        %v6006 = vadd.f32 %v5861, %v5940
        %v6007 = vadd.f32 %v5863, %v5942
        %v6008 = vadd.f32 %v5866, %v5945
        %v6009 = vadd.f32 %v5868, %v5947
        %v6010 = vadd.f32 %v5871, %v5950
        %v6011 = vadd.f32 %v5873, %v5952
        %v6012 = vadd.f32 %v5876, %v5955
        %v6013 = vadd.f32 %v5878, %v5957
        %v6014 = vadd.f32 %v5881, %v5960
        %v6015 = vadd.f32 %v5883, %v5962
        %v6016 = vadd.f32 %v5886, %v5965
        %v6017 = vadd.f32 %v5888, %v5967
        %v6018 = vadd.f32 %v5891, %v5970
        %v6019 = vadd.f32 %v5893, %v5972
        %v6020 = vadd.f32 %v5896, %v5975
        %v6021 = vadd.f32 %v5898, %v5977
        %v6022 = vadd.f32 %v5901, %v5980
        %v6023 = vadd.f32 %v5903, %v5982
        %v6024 = vadd.f32 %v5906, %v5985
        %v6025 = vadd.f32 %v5908, %v5987
        %v6026 = vadd.f32 %v5911, %v5990
        %v6027 = vadd.f32 %v5913, %v5992
        %v6028 = vadd.f32 %v5916, %v5995
        %v6029 = vadd.f32 %v5918, %v5997
        %v6030 = vadd.f32 %v5921, %v6000
        %v6031 = vadd.f32 %v5923, %v6002
        %6032 = vmatpush.bf16.msra.mxu0 %v2028
        %6033 = vmatpush.bf16.msra.mxu0 %v2027
        %6034 = vmatpush.bf16.msra.mxu0 %v2026
        %6035 = vmatpush.bf16.msra.mxu0 %v2025
        %6036 = vmatpush.bf16.msra.mxu0 %v2024
        %6037 = vmatpush.bf16.msra.mxu0 %v2023
        %6038 = vmatpush.bf16.msra.mxu0 %v2022
        %6039 = vmatpush.bf16.msra.mxu0 %v2021
        %6040 = vmatmul.bf16.gmra.mxu0 %v5013
        %v6041 = vpop.f32.mrf.mxu0
        %v6042 = vadd.f32 0.0, %v6041
        %v6043 = vpop.f32.mrf.mxu0
        %v6044 = vadd.f32 0.0, %v6043
        %6045 = vmatmul.bf16.gmra.mxu0 %v5014
        %v6046 = vpop.f32.mrf.mxu0
        %v6047 = vadd.f32 0.0, %v6046
        %v6048 = vpop.f32.mrf.mxu0
        %v6049 = vadd.f32 0.0, %v6048
        %6050 = vmatmul.bf16.gmra.mxu0 %v5015
        %v6051 = vpop.f32.mrf.mxu0
        %v6052 = vadd.f32 0.0, %v6051
        %v6053 = vpop.f32.mrf.mxu0
        %v6054 = vadd.f32 0.0, %v6053
        %6055 = vmatmul.bf16.gmra.mxu0 %v5016
        %v6056 = vpop.f32.mrf.mxu0
        %v6057 = vadd.f32 0.0, %v6056
        %v6058 = vpop.f32.mrf.mxu0
        %v6059 = vadd.f32 0.0, %v6058
        %6060 = vmatmul.bf16.gmra.mxu0 %v5017
        %v6061 = vpop.f32.mrf.mxu0
        %v6062 = vadd.f32 0.0, %v6061
        %v6063 = vpop.f32.mrf.mxu0
        %v6064 = vadd.f32 0.0, %v6063
        %6065 = vmatmul.bf16.gmra.mxu0 %v5018
        %v6066 = vpop.f32.mrf.mxu0
        %v6067 = vadd.f32 0.0, %v6066
        %v6068 = vpop.f32.mrf.mxu0
        %v6069 = vadd.f32 0.0, %v6068
        %6070 = vmatmul.bf16.gmra.mxu0 %v5019
        %v6071 = vpop.f32.mrf.mxu0
        %v6072 = vadd.f32 0.0, %v6071
        %v6073 = vpop.f32.mrf.mxu0
        %v6074 = vadd.f32 0.0, %v6073
        %6075 = vmatmul.bf16.gmra.mxu0 %v5020
        %v6076 = vpop.f32.mrf.mxu0
        %v6077 = vadd.f32 0.0, %v6076
        %v6078 = vpop.f32.mrf.mxu0
        %v6079 = vadd.f32 0.0, %v6078
        %6080 = vmatmul.bf16.gmra.mxu0 %v5021
        %v6081 = vpop.f32.mrf.mxu0
        %v6082 = vadd.f32 0.0, %v6081
        %v6083 = vpop.f32.mrf.mxu0
        %v6084 = vadd.f32 0.0, %v6083
        %6085 = vmatmul.bf16.gmra.mxu0 %v5022
        %v6086 = vpop.f32.mrf.mxu0
        %v6087 = vadd.f32 0.0, %v6086
        %v6088 = vpop.f32.mrf.mxu0
        %v6089 = vadd.f32 0.0, %v6088
        %6090 = vmatmul.bf16.gmra.mxu0 %v5023
        %v6091 = vpop.f32.mrf.mxu0
        %v6092 = vadd.f32 0.0, %v6091
        %v6093 = vpop.f32.mrf.mxu0
        %v6094 = vadd.f32 0.0, %v6093
        %6095 = vmatmul.bf16.gmra.mxu0 %v5024
        %v6096 = vpop.f32.mrf.mxu0
        %v6097 = vadd.f32 0.0, %v6096
        %v6098 = vpop.f32.mrf.mxu0
        %v6099 = vadd.f32 0.0, %v6098
        %6100 = vmatmul.bf16.gmra.mxu0 %v5025
        %v6101 = vpop.f32.mrf.mxu0
        %v6102 = vadd.f32 0.0, %v6101
        %v6103 = vpop.f32.mrf.mxu0
        %v6104 = vadd.f32 0.0, %v6103
        %6105 = vmatmul.bf16.gmra.mxu0 %v5026
        %v6106 = vpop.f32.mrf.mxu0
        %v6107 = vadd.f32 0.0, %v6106
        %v6108 = vpop.f32.mrf.mxu0
        %v6109 = vadd.f32 0.0, %v6108
        %6110 = vdwg.mxu0
        %v6111 = vadd.f32 %v6004, %v6042
        %v6112 = vadd.f32 %v6005, %v6044
        %v6113 = vadd.f32 %v6006, %v6047
        %v6114 = vadd.f32 %v6007, %v6049
        %v6115 = vadd.f32 %v6008, %v6052
        %v6116 = vadd.f32 %v6009, %v6054
        %v6117 = vadd.f32 %v6010, %v6057
        %v6118 = vadd.f32 %v6011, %v6059
        %v6119 = vadd.f32 %v6012, %v6062
        %v6120 = vadd.f32 %v6013, %v6064
        %v6121 = vadd.f32 %v6014, %v6067
        %v6122 = vadd.f32 %v6015, %v6069
        %v6123 = vadd.f32 %v6016, %v6072
        %v6124 = vadd.f32 %v6017, %v6074
        %v6125 = vadd.f32 %v6018, %v6077
        %v6126 = vadd.f32 %v6019, %v6079
        %v6127 = vadd.f32 %v6020, %v6082
        %v6128 = vadd.f32 %v6021, %v6084
        %v6129 = vadd.f32 %v6022, %v6087
        %v6130 = vadd.f32 %v6023, %v6089
        %v6131 = vadd.f32 %v6024, %v6092
        %v6132 = vadd.f32 %v6025, %v6094
        %v6133 = vadd.f32 %v6026, %v6097
        %v6134 = vadd.f32 %v6027, %v6099
        %v6135 = vadd.f32 %v6028, %v6102
        %v6136 = vadd.f32 %v6029, %v6104
        %v6137 = vadd.f32 %v6030, %v6107
        %v6138 = vadd.f32 %v6031, %v6109
        %v6167 = vunpack.c.l.b16 %v1149
        %v6168 = vunpack.c.l.b16 %v1150
        %v6169 = vunpack.c.l.b16 %v1151
        %v6170 = vunpack.c.l.b16 %v1152
        %v6171 = vunpack.c.l.b16 %v1153
        %v6172 = vunpack.c.l.b16 %v1154
        %v6173 = vunpack.c.l.b16 %v1155
        %v6174 = vunpack.c.l.b16 %v1156
        %v6175 = vunpack.c.l.b16 %v1157
        %v6176 = vunpack.c.l.b16 %v1158
        %v6177 = vunpack.c.l.b16 %v1159
        %v6178 = vunpack.c.l.b16 %v1160
        %v6179 = vunpack.c.l.b16 %v1161
        %v6180 = vunpack.c.l.b16 %v1162
        %v6181 = vunpack.c.l.b16 %v1163
        %v6182 = vunpack.c.l.b16 %v1164
        %v6183 = vunpack.c.l.b16 %v1165
        %v6184 = vunpack.c.l.b16 %v1166
        %v6185 = vunpack.c.l.b16 %v1167
        %v6186 = vunpack.c.l.b16 %v1168
        %v6187 = vunpack.c.l.b16 %v1169
        %v6188 = vunpack.c.l.b16 %v1170
        %v6189 = vunpack.c.l.b16 %v1171
        %v6190 = vunpack.c.l.b16 %v1172
        %v6191 = vunpack.c.l.b16 %v1173
        %v6192 = vunpack.c.l.b16 %v1174
        %v6193 = vunpack.c.l.b16 %v1175
        %v6194 = vunpack.c.l.b16 %v1176
        %v6195 = vpack.c.b16 %v6168, %v6167
        %v6196 = vpack.c.b16 %v6170, %v6169
        %v6197 = vpack.c.b16 %v6172, %v6171
        %v6198 = vpack.c.b16 %v6174, %v6173
        %v6199 = vpack.c.b16 %v6176, %v6175
        %v6200 = vpack.c.b16 %v6178, %v6177
        %v6201 = vpack.c.b16 %v6180, %v6179
        %v6202 = vpack.c.b16 %v6182, %v6181
        %v6203 = vpack.c.b16 %v6184, %v6183
        %v6204 = vpack.c.b16 %v6186, %v6185
        %v6205 = vpack.c.b16 %v6188, %v6187
        %v6206 = vpack.c.b16 %v6190, %v6189
        %v6207 = vpack.c.b16 %v6192, %v6191
        %v6208 = vpack.c.b16 %v6194, %v6193
        %6223 = vmatpush.bf16.msra.mxu0 %v2284
        %6224 = vmatpush.bf16.msra.mxu0 %v2283
        %6225 = vmatpush.bf16.msra.mxu0 %v2282
        %6226 = vmatpush.bf16.msra.mxu0 %v2281
        %6227 = vmatpush.bf16.msra.mxu0 %v2280
        %6228 = vmatpush.bf16.msra.mxu0 %v2279
        %6229 = vmatpush.bf16.msra.mxu0 %v2278
        %6230 = vmatpush.bf16.msra.mxu0 %v2277
        %6231 = vmatmul.bf16.gmra.mxu0 %v6195
        %v6232 = vpop.f32.mrf.mxu0
        %v6233 = vadd.f32 0.0, %v6232
        %v6234 = vpop.f32.mrf.mxu0
        %v6235 = vadd.f32 0.0, %v6234
        %6236 = vmatmul.bf16.gmra.mxu0 %v6196
        %v6237 = vpop.f32.mrf.mxu0
        %v6238 = vadd.f32 0.0, %v6237
        %v6239 = vpop.f32.mrf.mxu0
        %v6240 = vadd.f32 0.0, %v6239
        %6241 = vmatmul.bf16.gmra.mxu0 %v6197
        %v6242 = vpop.f32.mrf.mxu0
        %v6243 = vadd.f32 0.0, %v6242
        %v6244 = vpop.f32.mrf.mxu0
        %v6245 = vadd.f32 0.0, %v6244
        %6246 = vmatmul.bf16.gmra.mxu0 %v6198
        %v6247 = vpop.f32.mrf.mxu0
        %v6248 = vadd.f32 0.0, %v6247
        %v6249 = vpop.f32.mrf.mxu0
        %v6250 = vadd.f32 0.0, %v6249
        %6251 = vmatmul.bf16.gmra.mxu0 %v6199
        %v6252 = vpop.f32.mrf.mxu0
        %v6253 = vadd.f32 0.0, %v6252
        %v6254 = vpop.f32.mrf.mxu0
        %v6255 = vadd.f32 0.0, %v6254
        %6256 = vmatmul.bf16.gmra.mxu0 %v6200
        %v6257 = vpop.f32.mrf.mxu0
        %v6258 = vadd.f32 0.0, %v6257
        %v6259 = vpop.f32.mrf.mxu0
        %v6260 = vadd.f32 0.0, %v6259
        %6261 = vmatmul.bf16.gmra.mxu0 %v6201
        %v6262 = vpop.f32.mrf.mxu0
        %v6263 = vadd.f32 0.0, %v6262
        %v6264 = vpop.f32.mrf.mxu0
        %v6265 = vadd.f32 0.0, %v6264
        %6266 = vmatmul.bf16.gmra.mxu0 %v6202
        %v6267 = vpop.f32.mrf.mxu0
        %v6268 = vadd.f32 0.0, %v6267
        %v6269 = vpop.f32.mrf.mxu0
        %v6270 = vadd.f32 0.0, %v6269
        %6271 = vmatmul.bf16.gmra.mxu0 %v6203
        %v6272 = vpop.f32.mrf.mxu0
        %v6273 = vadd.f32 0.0, %v6272
        %v6274 = vpop.f32.mrf.mxu0
        %v6275 = vadd.f32 0.0, %v6274
        %6276 = vmatmul.bf16.gmra.mxu0 %v6204
        %v6277 = vpop.f32.mrf.mxu0
        %v6278 = vadd.f32 0.0, %v6277
        %v6279 = vpop.f32.mrf.mxu0
        %v6280 = vadd.f32 0.0, %v6279
        %6281 = vmatmul.bf16.gmra.mxu0 %v6205
        %v6282 = vpop.f32.mrf.mxu0
        %v6283 = vadd.f32 0.0, %v6282
        %v6284 = vpop.f32.mrf.mxu0
        %v6285 = vadd.f32 0.0, %v6284
        %6286 = vmatmul.bf16.gmra.mxu0 %v6206
        %v6287 = vpop.f32.mrf.mxu0
        %v6288 = vadd.f32 0.0, %v6287
        %v6289 = vpop.f32.mrf.mxu0
        %v6290 = vadd.f32 0.0, %v6289
        %6291 = vmatmul.bf16.gmra.mxu0 %v6207
        %v6292 = vpop.f32.mrf.mxu0
        %v6293 = vadd.f32 0.0, %v6292
        %v6294 = vpop.f32.mrf.mxu0
        %v6295 = vadd.f32 0.0, %v6294
        %6296 = vmatmul.bf16.gmra.mxu0 %v6208
        %v6297 = vpop.f32.mrf.mxu0
        %v6298 = vadd.f32 0.0, %v6297
        %v6299 = vpop.f32.mrf.mxu0
        %v6300 = vadd.f32 0.0, %v6299
        %6301 = vdwg.mxu0
        %v6302 = vadd.f32 %v6111, %v6233
        %v6303 = vadd.f32 %v6112, %v6235
        %v6304 = vadd.f32 %v6113, %v6238
        %v6305 = vadd.f32 %v6114, %v6240
        %v6306 = vadd.f32 %v6115, %v6243
        %v6307 = vadd.f32 %v6116, %v6245
        %v6308 = vadd.f32 %v6117, %v6248
        %v6309 = vadd.f32 %v6118, %v6250
        %v6310 = vadd.f32 %v6119, %v6253
        %v6311 = vadd.f32 %v6120, %v6255
        %v6312 = vadd.f32 %v6121, %v6258
        %v6313 = vadd.f32 %v6122, %v6260
        %v6314 = vadd.f32 %v6123, %v6263
        %v6315 = vadd.f32 %v6124, %v6265
        %v6316 = vadd.f32 %v6125, %v6268
        %v6317 = vadd.f32 %v6126, %v6270
        %v6318 = vadd.f32 %v6127, %v6273
        %v6319 = vadd.f32 %v6128, %v6275
        %v6320 = vadd.f32 %v6129, %v6278
        %v6321 = vadd.f32 %v6130, %v6280
        %v6322 = vadd.f32 %v6131, %v6283
        %v6323 = vadd.f32 %v6132, %v6285
        %v6324 = vadd.f32 %v6133, %v6288
        %v6325 = vadd.f32 %v6134, %v6290
        %v6326 = vadd.f32 %v6135, %v6293
        %v6327 = vadd.f32 %v6136, %v6295
        %v6328 = vadd.f32 %v6137, %v6298
        %v6329 = vadd.f32 %v6138, %v6300
        %v6330 = vadd.f32 %v6302, %v2401
        %v6331 = vadd.f32 %v6303, %v2401
        %v6332 = vadd.f32 %v6304, %v2401
        %v6333 = vadd.f32 %v6305, %v2401
        %v6334 = vadd.f32 %v6306, %v2401
        %v6335 = vadd.f32 %v6307, %v2401
        %v6336 = vadd.f32 %v6308, %v2401
        %v6337 = vadd.f32 %v6309, %v2401
        %v6338 = vadd.f32 %v6310, %v2401
        %v6339 = vadd.f32 %v6311, %v2401
        %v6340 = vadd.f32 %v6312, %v2401
        %v6341 = vadd.f32 %v6313, %v2401
        %v6342 = vadd.f32 %v6314, %v2401
        %v6343 = vadd.f32 %v6315, %v2401
        %v6344 = vadd.f32 %v6316, %v2401
        %v6345 = vadd.f32 %v6317, %v2401
        %v6346 = vadd.f32 %v6318, %v2401
        %v6347 = vadd.f32 %v6319, %v2401
        %v6348 = vadd.f32 %v6320, %v2401
        %v6349 = vadd.f32 %v6321, %v2401
        %v6350 = vadd.f32 %v6322, %v2401
        %v6351 = vadd.f32 %v6323, %v2401
        %v6352 = vadd.f32 %v6324, %v2401
        %v6353 = vadd.f32 %v6325, %v2401
        %v6354 = vadd.f32 %v6326, %v2401
        %v6355 = vadd.f32 %v6327, %v2401
        %v6356 = vadd.f32 %v6328, %v2401
        %v6357 = vadd.f32 %v6329, %v2401
        %v6358 = vmax.f32 %v6330, 0.0
        %v6359 = vmax.f32 %v6331, 0.0
        %v6360 = vmax.f32 %v6332, 0.0
        %v6361 = vmax.f32 %v6333, 0.0
        %v6362 = vmax.f32 %v6334, 0.0
        %v6363 = vmax.f32 %v6335, 0.0
        %v6364 = vmax.f32 %v6336, 0.0
        %v6365 = vmax.f32 %v6337, 0.0
        %v6366 = vmax.f32 %v6338, 0.0
        %v6367 = vmax.f32 %v6339, 0.0
        %v6368 = vmax.f32 %v6340, 0.0
        %v6369 = vmax.f32 %v6341, 0.0
        %v6370 = vmax.f32 %v6342, 0.0
        %v6371 = vmax.f32 %v6343, 0.0
        %v6372 = vmax.f32 %v6344, 0.0
        %v6373 = vmax.f32 %v6345, 0.0
        %v6374 = vmax.f32 %v6346, 0.0
        %v6375 = vmax.f32 %v6347, 0.0
        %v6376 = vmax.f32 %v6348, 0.0
        %v6377 = vmax.f32 %v6349, 0.0
        %v6378 = vmax.f32 %v6350, 0.0
        %v6379 = vmax.f32 %v6351, 0.0
        %v6380 = vmax.f32 %v6352, 0.0
        %v6381 = vmax.f32 %v6353, 0.0
        %v6382 = vmax.f32 %v6354, 0.0
        %v6383 = vmax.f32 %v6355, 0.0
        %v6384 = vmax.f32 %v6356, 0.0
        %v6385 = vmax.f32 %v6357, 0.0
        %v6386 = vmax.f32 %v5739, %v6358
        %v6387 = vmax.f32 %v5740, %v6359
        %v6388 = vmax.f32 %v5741, %v6360
        %v6389 = vmax.f32 %v5742, %v6361
        %v6390 = vmax.f32 %v5743, %v6362
        %v6391 = vmax.f32 %v5744, %v6363
        %v6392 = vmax.f32 %v5745, %v6364
        %v6393 = vmax.f32 %v5746, %v6365
        %v6394 = vmax.f32 %v5747, %v6366
        %v6395 = vmax.f32 %v5748, %v6367
        %v6396 = vmax.f32 %v5749, %v6368
        %v6397 = vmax.f32 %v5750, %v6369
        %v6398 = vmax.f32 %v5751, %v6370
        %v6399 = vmax.f32 %v5752, %v6371
        %v6400 = vmax.f32 %v5753, %v6372
        %v6401 = vmax.f32 %v5754, %v6373
        %v6402 = vmax.f32 %v5755, %v6374
        %v6403 = vmax.f32 %v5756, %v6375
        %v6404 = vmax.f32 %v5757, %v6376
        %v6405 = vmax.f32 %v5758, %v6377
        %v6406 = vmax.f32 %v5759, %v6378
        %v6407 = vmax.f32 %v5760, %v6379
        %v6408 = vmax.f32 %v5761, %v6380
        %v6409 = vmax.f32 %v5762, %v6381
        %v6410 = vmax.f32 %v5763, %v6382
        %v6411 = vmax.f32 %v5764, %v6383
        %v6412 = vmax.f32 %v5765, %v6384
        %v6413 = vmax.f32 %v5766, %v6385
        %6414 = vmatpush.bf16.msra.mxu0 %v2532
        %6415 = vmatpush.bf16.msra.mxu0 %v2531
        %6416 = vmatpush.bf16.msra.mxu0 %v2530
        %6417 = vmatpush.bf16.msra.mxu0 %v2529
        %6418 = vmatpush.bf16.msra.mxu0 %v2528
        %6419 = vmatpush.bf16.msra.mxu0 %v2527
        %6420 = vmatpush.bf16.msra.mxu0 %v2526
        %6421 = vmatpush.bf16.msra.mxu0 %v2525
        %6422 = vmatmul.bf16.gmra.mxu0 %v2217
        %v6423 = vpop.f32.mrf.mxu0
        %v6424 = vadd.f32 0.0, %v6423
        %v6425 = vpop.f32.mrf.mxu0
        %v6426 = vadd.f32 0.0, %v6425
        %6427 = vmatmul.bf16.gmra.mxu0 %v2218
        %v6428 = vpop.f32.mrf.mxu0
        %v6429 = vadd.f32 0.0, %v6428
        %v6430 = vpop.f32.mrf.mxu0
        %v6431 = vadd.f32 0.0, %v6430
        %6432 = vmatmul.bf16.gmra.mxu0 %v2219
        %v6433 = vpop.f32.mrf.mxu0
        %v6434 = vadd.f32 0.0, %v6433
        %v6435 = vpop.f32.mrf.mxu0
        %v6436 = vadd.f32 0.0, %v6435
        %6437 = vmatmul.bf16.gmra.mxu0 %v2220
        %v6438 = vpop.f32.mrf.mxu0
        %v6439 = vadd.f32 0.0, %v6438
        %v6440 = vpop.f32.mrf.mxu0
        %v6441 = vadd.f32 0.0, %v6440
        %6442 = vmatmul.bf16.gmra.mxu0 %v2221
        %v6443 = vpop.f32.mrf.mxu0
        %v6444 = vadd.f32 0.0, %v6443
        %v6445 = vpop.f32.mrf.mxu0
        %v6446 = vadd.f32 0.0, %v6445
        %6447 = vmatmul.bf16.gmra.mxu0 %v2222
        %v6448 = vpop.f32.mrf.mxu0
        %v6449 = vadd.f32 0.0, %v6448
        %v6450 = vpop.f32.mrf.mxu0
        %v6451 = vadd.f32 0.0, %v6450
        %6452 = vmatmul.bf16.gmra.mxu0 %v2223
        %v6453 = vpop.f32.mrf.mxu0
        %v6454 = vadd.f32 0.0, %v6453
        %v6455 = vpop.f32.mrf.mxu0
        %v6456 = vadd.f32 0.0, %v6455
        %6457 = vmatmul.bf16.gmra.mxu0 %v2224
        %v6458 = vpop.f32.mrf.mxu0
        %v6459 = vadd.f32 0.0, %v6458
        %v6460 = vpop.f32.mrf.mxu0
        %v6461 = vadd.f32 0.0, %v6460
        %6462 = vmatmul.bf16.gmra.mxu0 %v2225
        %v6463 = vpop.f32.mrf.mxu0
        %v6464 = vadd.f32 0.0, %v6463
        %v6465 = vpop.f32.mrf.mxu0
        %v6466 = vadd.f32 0.0, %v6465
        %6467 = vmatmul.bf16.gmra.mxu0 %v2226
        %v6468 = vpop.f32.mrf.mxu0
        %v6469 = vadd.f32 0.0, %v6468
        %v6470 = vpop.f32.mrf.mxu0
        %v6471 = vadd.f32 0.0, %v6470
        %6472 = vmatmul.bf16.gmra.mxu0 %v2227
        %v6473 = vpop.f32.mrf.mxu0
        %v6474 = vadd.f32 0.0, %v6473
        %v6475 = vpop.f32.mrf.mxu0
        %v6476 = vadd.f32 0.0, %v6475
        %6477 = vmatmul.bf16.gmra.mxu0 %v2228
        %v6478 = vpop.f32.mrf.mxu0
        %v6479 = vadd.f32 0.0, %v6478
        %v6480 = vpop.f32.mrf.mxu0
        %v6481 = vadd.f32 0.0, %v6480
        %6482 = vmatmul.bf16.gmra.mxu0 %v2229
        %v6483 = vpop.f32.mrf.mxu0
        %v6484 = vadd.f32 0.0, %v6483
        %v6485 = vpop.f32.mrf.mxu0
        %v6486 = vadd.f32 0.0, %v6485
        %6487 = vmatmul.bf16.gmra.mxu0 %v2230
        %v6488 = vpop.f32.mrf.mxu0
        %v6489 = vadd.f32 0.0, %v6488
        %v6490 = vpop.f32.mrf.mxu0
        %v6491 = vadd.f32 0.0, %v6490
        %6492 = vdwg.mxu0
        %6493 = vmatpush.bf16.msra.mxu0 %v2659
        %6494 = vmatpush.bf16.msra.mxu0 %v2658
        %6495 = vmatpush.bf16.msra.mxu0 %v2657
        %6496 = vmatpush.bf16.msra.mxu0 %v2656
        %6497 = vmatpush.bf16.msra.mxu0 %v2655
        %6498 = vmatpush.bf16.msra.mxu0 %v2654
        %6499 = vmatpush.bf16.msra.mxu0 %v2653
        %6500 = vmatpush.bf16.msra.mxu0 %v2652
        %6501 = vmatmul.bf16.gmra.mxu0 %v1961
        %v6502 = vpop.f32.mrf.mxu0
        %v6503 = vadd.f32 %v6424, %v6502
        %v6504 = vpop.f32.mrf.mxu0
        %v6505 = vadd.f32 %v6426, %v6504
        %6506 = vmatmul.bf16.gmra.mxu0 %v1962
        %v6507 = vpop.f32.mrf.mxu0
        %v6508 = vadd.f32 %v6429, %v6507
        %v6509 = vpop.f32.mrf.mxu0
        %v6510 = vadd.f32 %v6431, %v6509
        %6511 = vmatmul.bf16.gmra.mxu0 %v1963
        %v6512 = vpop.f32.mrf.mxu0
        %v6513 = vadd.f32 %v6434, %v6512
        %v6514 = vpop.f32.mrf.mxu0
        %v6515 = vadd.f32 %v6436, %v6514
        %6516 = vmatmul.bf16.gmra.mxu0 %v1964
        %v6517 = vpop.f32.mrf.mxu0
        %v6518 = vadd.f32 %v6439, %v6517
        %v6519 = vpop.f32.mrf.mxu0
        %v6520 = vadd.f32 %v6441, %v6519
        %6521 = vmatmul.bf16.gmra.mxu0 %v1965
        %v6522 = vpop.f32.mrf.mxu0
        %v6523 = vadd.f32 %v6444, %v6522
        %v6524 = vpop.f32.mrf.mxu0
        %v6525 = vadd.f32 %v6446, %v6524
        %6526 = vmatmul.bf16.gmra.mxu0 %v1966
        %v6527 = vpop.f32.mrf.mxu0
        %v6528 = vadd.f32 %v6449, %v6527
        %v6529 = vpop.f32.mrf.mxu0
        %v6530 = vadd.f32 %v6451, %v6529
        %6531 = vmatmul.bf16.gmra.mxu0 %v1967
        %v6532 = vpop.f32.mrf.mxu0
        %v6533 = vadd.f32 %v6454, %v6532
        %v6534 = vpop.f32.mrf.mxu0
        %v6535 = vadd.f32 %v6456, %v6534
        %6536 = vmatmul.bf16.gmra.mxu0 %v1968
        %v6537 = vpop.f32.mrf.mxu0
        %v6538 = vadd.f32 %v6459, %v6537
        %v6539 = vpop.f32.mrf.mxu0
        %v6540 = vadd.f32 %v6461, %v6539
        %6541 = vmatmul.bf16.gmra.mxu0 %v1969
        %v6542 = vpop.f32.mrf.mxu0
        %v6543 = vadd.f32 %v6464, %v6542
        %v6544 = vpop.f32.mrf.mxu0
        %v6545 = vadd.f32 %v6466, %v6544
        %6546 = vmatmul.bf16.gmra.mxu0 %v1970
        %v6547 = vpop.f32.mrf.mxu0
        %v6548 = vadd.f32 %v6469, %v6547
        %v6549 = vpop.f32.mrf.mxu0
        %v6550 = vadd.f32 %v6471, %v6549
        %6551 = vmatmul.bf16.gmra.mxu0 %v1971
        %v6552 = vpop.f32.mrf.mxu0
        %v6553 = vadd.f32 %v6474, %v6552
        %v6554 = vpop.f32.mrf.mxu0
        %v6555 = vadd.f32 %v6476, %v6554
        %6556 = vmatmul.bf16.gmra.mxu0 %v1972
        %v6557 = vpop.f32.mrf.mxu0
        %v6558 = vadd.f32 %v6479, %v6557
        %v6559 = vpop.f32.mrf.mxu0
        %v6560 = vadd.f32 %v6481, %v6559
        %6561 = vmatmul.bf16.gmra.mxu0 %v1973
        %v6562 = vpop.f32.mrf.mxu0
        %v6563 = vadd.f32 %v6484, %v6562
        %v6564 = vpop.f32.mrf.mxu0
        %v6565 = vadd.f32 %v6486, %v6564
        %6566 = vmatmul.bf16.gmra.mxu0 %v1974
        %v6567 = vpop.f32.mrf.mxu0
        %v6568 = vadd.f32 %v6489, %v6567
        %v6569 = vpop.f32.mrf.mxu0
        %v6570 = vadd.f32 %v6491, %v6569
        %6571 = vdwg.mxu0
        %6572 = vmatpush.bf16.msra.mxu0 %v2803
        %6573 = vmatpush.bf16.msra.mxu0 %v2802
        %6574 = vmatpush.bf16.msra.mxu0 %v2801
        %6575 = vmatpush.bf16.msra.mxu0 %v2800
        %6576 = vmatpush.bf16.msra.mxu0 %v2799
        %6577 = vmatpush.bf16.msra.mxu0 %v2798
        %6578 = vmatpush.bf16.msra.mxu0 %v2797
        %6579 = vmatpush.bf16.msra.mxu0 %v2796
        %6580 = vmatmul.bf16.gmra.mxu0 %v3775
        %v6581 = vpop.f32.mrf.mxu0
        %v6582 = vadd.f32 0.0, %v6581
        %v6583 = vpop.f32.mrf.mxu0
        %v6584 = vadd.f32 0.0, %v6583
        %6585 = vmatmul.bf16.gmra.mxu0 %v3776
        %v6586 = vpop.f32.mrf.mxu0
        %v6587 = vadd.f32 0.0, %v6586
        %v6588 = vpop.f32.mrf.mxu0
        %v6589 = vadd.f32 0.0, %v6588
        %6590 = vmatmul.bf16.gmra.mxu0 %v3777
        %v6591 = vpop.f32.mrf.mxu0
        %v6592 = vadd.f32 0.0, %v6591
        %v6593 = vpop.f32.mrf.mxu0
        %v6594 = vadd.f32 0.0, %v6593
        %6595 = vmatmul.bf16.gmra.mxu0 %v3778
        %v6596 = vpop.f32.mrf.mxu0
        %v6597 = vadd.f32 0.0, %v6596
        %v6598 = vpop.f32.mrf.mxu0
        %v6599 = vadd.f32 0.0, %v6598
        %6600 = vmatmul.bf16.gmra.mxu0 %v3779
        %v6601 = vpop.f32.mrf.mxu0
        %v6602 = vadd.f32 0.0, %v6601
        %v6603 = vpop.f32.mrf.mxu0
        %v6604 = vadd.f32 0.0, %v6603
        %6605 = vmatmul.bf16.gmra.mxu0 %v3780
        %v6606 = vpop.f32.mrf.mxu0
        %v6607 = vadd.f32 0.0, %v6606
        %v6608 = vpop.f32.mrf.mxu0
        %v6609 = vadd.f32 0.0, %v6608
        %6610 = vmatmul.bf16.gmra.mxu0 %v3781
        %v6611 = vpop.f32.mrf.mxu0
        %v6612 = vadd.f32 0.0, %v6611
        %v6613 = vpop.f32.mrf.mxu0
        %v6614 = vadd.f32 0.0, %v6613
        %6615 = vmatmul.bf16.gmra.mxu0 %v3782
        %v6616 = vpop.f32.mrf.mxu0
        %v6617 = vadd.f32 0.0, %v6616
        %v6618 = vpop.f32.mrf.mxu0
        %v6619 = vadd.f32 0.0, %v6618
        %6620 = vmatmul.bf16.gmra.mxu0 %v3783
        %v6621 = vpop.f32.mrf.mxu0
        %v6622 = vadd.f32 0.0, %v6621
        %v6623 = vpop.f32.mrf.mxu0
        %v6624 = vadd.f32 0.0, %v6623
        %6625 = vmatmul.bf16.gmra.mxu0 %v3784
        %v6626 = vpop.f32.mrf.mxu0
        %v6627 = vadd.f32 0.0, %v6626
        %v6628 = vpop.f32.mrf.mxu0
        %v6629 = vadd.f32 0.0, %v6628
        %6630 = vmatmul.bf16.gmra.mxu0 %v3785
        %v6631 = vpop.f32.mrf.mxu0
        %v6632 = vadd.f32 0.0, %v6631
        %v6633 = vpop.f32.mrf.mxu0
        %v6634 = vadd.f32 0.0, %v6633
        %6635 = vmatmul.bf16.gmra.mxu0 %v3786
        %v6636 = vpop.f32.mrf.mxu0
        %v6637 = vadd.f32 0.0, %v6636
        %v6638 = vpop.f32.mrf.mxu0
        %v6639 = vadd.f32 0.0, %v6638
        %6640 = vmatmul.bf16.gmra.mxu0 %v3787
        %v6641 = vpop.f32.mrf.mxu0
        %v6642 = vadd.f32 0.0, %v6641
        %v6643 = vpop.f32.mrf.mxu0
        %v6644 = vadd.f32 0.0, %v6643
        %6645 = vmatmul.bf16.gmra.mxu0 %v3788
        %v6646 = vpop.f32.mrf.mxu0
        %v6647 = vadd.f32 0.0, %v6646
        %v6648 = vpop.f32.mrf.mxu0
        %v6649 = vadd.f32 0.0, %v6648
        %6650 = vdwg.mxu0
        %v6651 = vadd.f32 %v6503, %v6582
        %v6652 = vadd.f32 %v6505, %v6584
        %v6653 = vadd.f32 %v6508, %v6587
        %v6654 = vadd.f32 %v6510, %v6589
        %v6655 = vadd.f32 %v6513, %v6592
        %v6656 = vadd.f32 %v6515, %v6594
        %v6657 = vadd.f32 %v6518, %v6597
        %v6658 = vadd.f32 %v6520, %v6599
        %v6659 = vadd.f32 %v6523, %v6602
        %v6660 = vadd.f32 %v6525, %v6604
        %v6661 = vadd.f32 %v6528, %v6607
        %v6662 = vadd.f32 %v6530, %v6609
        %v6663 = vadd.f32 %v6533, %v6612
        %v6664 = vadd.f32 %v6535, %v6614
        %v6665 = vadd.f32 %v6538, %v6617
        %v6666 = vadd.f32 %v6540, %v6619
        %v6667 = vadd.f32 %v6543, %v6622
        %v6668 = vadd.f32 %v6545, %v6624
        %v6669 = vadd.f32 %v6548, %v6627
        %v6670 = vadd.f32 %v6550, %v6629
        %v6671 = vadd.f32 %v6553, %v6632
        %v6672 = vadd.f32 %v6555, %v6634
        %v6673 = vadd.f32 %v6558, %v6637
        %v6674 = vadd.f32 %v6560, %v6639
        %v6675 = vadd.f32 %v6563, %v6642
        %v6676 = vadd.f32 %v6565, %v6644
        %v6677 = vadd.f32 %v6568, %v6647
        %v6678 = vadd.f32 %v6570, %v6649
        %6679 = vmatpush.bf16.msra.mxu0 %v2975
        %6680 = vmatpush.bf16.msra.mxu0 %v2974
        %6681 = vmatpush.bf16.msra.mxu0 %v2973
        %6682 = vmatpush.bf16.msra.mxu0 %v2972
        %6683 = vmatpush.bf16.msra.mxu0 %v2971
        %6684 = vmatpush.bf16.msra.mxu0 %v2970
        %6685 = vmatpush.bf16.msra.mxu0 %v2969
        %6686 = vmatpush.bf16.msra.mxu0 %v2968
        %6687 = vmatmul.bf16.gmra.mxu0 %v5013
        %v6688 = vpop.f32.mrf.mxu0
        %v6689 = vadd.f32 0.0, %v6688
        %v6690 = vpop.f32.mrf.mxu0
        %v6691 = vadd.f32 0.0, %v6690
        %6692 = vmatmul.bf16.gmra.mxu0 %v5014
        %v6693 = vpop.f32.mrf.mxu0
        %v6694 = vadd.f32 0.0, %v6693
        %v6695 = vpop.f32.mrf.mxu0
        %v6696 = vadd.f32 0.0, %v6695
        %6697 = vmatmul.bf16.gmra.mxu0 %v5015
        %v6698 = vpop.f32.mrf.mxu0
        %v6699 = vadd.f32 0.0, %v6698
        %v6700 = vpop.f32.mrf.mxu0
        %v6701 = vadd.f32 0.0, %v6700
        %6702 = vmatmul.bf16.gmra.mxu0 %v5016
        %v6703 = vpop.f32.mrf.mxu0
        %v6704 = vadd.f32 0.0, %v6703
        %v6705 = vpop.f32.mrf.mxu0
        %v6706 = vadd.f32 0.0, %v6705
        %6707 = vmatmul.bf16.gmra.mxu0 %v5017
        %v6708 = vpop.f32.mrf.mxu0
        %v6709 = vadd.f32 0.0, %v6708
        %v6710 = vpop.f32.mrf.mxu0
        %v6711 = vadd.f32 0.0, %v6710
        %6712 = vmatmul.bf16.gmra.mxu0 %v5018
        %v6713 = vpop.f32.mrf.mxu0
        %v6714 = vadd.f32 0.0, %v6713
        %v6715 = vpop.f32.mrf.mxu0
        %v6716 = vadd.f32 0.0, %v6715
        %6717 = vmatmul.bf16.gmra.mxu0 %v5019
        %v6718 = vpop.f32.mrf.mxu0
        %v6719 = vadd.f32 0.0, %v6718
        %v6720 = vpop.f32.mrf.mxu0
        %v6721 = vadd.f32 0.0, %v6720
        %6722 = vmatmul.bf16.gmra.mxu0 %v5020
        %v6723 = vpop.f32.mrf.mxu0
        %v6724 = vadd.f32 0.0, %v6723
        %v6725 = vpop.f32.mrf.mxu0
        %v6726 = vadd.f32 0.0, %v6725
        %6727 = vmatmul.bf16.gmra.mxu0 %v5021
        %v6728 = vpop.f32.mrf.mxu0
        %v6729 = vadd.f32 0.0, %v6728
        %v6730 = vpop.f32.mrf.mxu0
        %v6731 = vadd.f32 0.0, %v6730
        %6732 = vmatmul.bf16.gmra.mxu0 %v5022
        %v6733 = vpop.f32.mrf.mxu0
        %v6734 = vadd.f32 0.0, %v6733
        %v6735 = vpop.f32.mrf.mxu0
        %v6736 = vadd.f32 0.0, %v6735
        %6737 = vmatmul.bf16.gmra.mxu0 %v5023
        %v6738 = vpop.f32.mrf.mxu0
        %v6739 = vadd.f32 0.0, %v6738
        %v6740 = vpop.f32.mrf.mxu0
        %v6741 = vadd.f32 0.0, %v6740
        %6742 = vmatmul.bf16.gmra.mxu0 %v5024
        %v6743 = vpop.f32.mrf.mxu0
        %v6744 = vadd.f32 0.0, %v6743
        %v6745 = vpop.f32.mrf.mxu0
        %v6746 = vadd.f32 0.0, %v6745
        %6747 = vmatmul.bf16.gmra.mxu0 %v5025
        %v6748 = vpop.f32.mrf.mxu0
        %v6749 = vadd.f32 0.0, %v6748
        %v6750 = vpop.f32.mrf.mxu0
        %v6751 = vadd.f32 0.0, %v6750
        %6752 = vmatmul.bf16.gmra.mxu0 %v5026
        %v6753 = vpop.f32.mrf.mxu0
        %v6754 = vadd.f32 0.0, %v6753
        %v6755 = vpop.f32.mrf.mxu0
        %v6756 = vadd.f32 0.0, %v6755
        %6757 = vdwg.mxu0
        %v6758 = vadd.f32 %v6651, %v6689
        %v6759 = vadd.f32 %v6652, %v6691
        %v6760 = vadd.f32 %v6653, %v6694
        %v6761 = vadd.f32 %v6654, %v6696
        %v6762 = vadd.f32 %v6655, %v6699
        %v6763 = vadd.f32 %v6656, %v6701
        %v6764 = vadd.f32 %v6657, %v6704
        %v6765 = vadd.f32 %v6658, %v6706
        %v6766 = vadd.f32 %v6659, %v6709
        %v6767 = vadd.f32 %v6660, %v6711
        %v6768 = vadd.f32 %v6661, %v6714
        %v6769 = vadd.f32 %v6662, %v6716
        %v6770 = vadd.f32 %v6663, %v6719
        %v6771 = vadd.f32 %v6664, %v6721
        %v6772 = vadd.f32 %v6665, %v6724
        %v6773 = vadd.f32 %v6666, %v6726
        %v6774 = vadd.f32 %v6667, %v6729
        %v6775 = vadd.f32 %v6668, %v6731
        %v6776 = vadd.f32 %v6669, %v6734
        %v6777 = vadd.f32 %v6670, %v6736
        %v6778 = vadd.f32 %v6671, %v6739
        %v6779 = vadd.f32 %v6672, %v6741
        %v6780 = vadd.f32 %v6673, %v6744
        %v6781 = vadd.f32 %v6674, %v6746
        %v6782 = vadd.f32 %v6675, %v6749
        %v6783 = vadd.f32 %v6676, %v6751
        %v6784 = vadd.f32 %v6677, %v6754
        %v6785 = vadd.f32 %v6678, %v6756
        %6786 = vmatpush.bf16.msra.mxu0 %v3147
        %6787 = vmatpush.bf16.msra.mxu0 %v3146
        %6788 = vmatpush.bf16.msra.mxu0 %v3145
        %6789 = vmatpush.bf16.msra.mxu0 %v3144
        %6790 = vmatpush.bf16.msra.mxu0 %v3143
        %6791 = vmatpush.bf16.msra.mxu0 %v3142
        %6792 = vmatpush.bf16.msra.mxu0 %v3141
        %6793 = vmatpush.bf16.msra.mxu0 %v3140
        %6794 = vmatmul.bf16.gmra.mxu0 %v6195
        %v6795 = vpop.f32.mrf.mxu0
        %v6796 = vadd.f32 0.0, %v6795
        %v6797 = vpop.f32.mrf.mxu0
        %v6798 = vadd.f32 0.0, %v6797
        %6799 = vmatmul.bf16.gmra.mxu0 %v6196
        %v6800 = vpop.f32.mrf.mxu0
        %v6801 = vadd.f32 0.0, %v6800
        %v6802 = vpop.f32.mrf.mxu0
        %v6803 = vadd.f32 0.0, %v6802
        %6804 = vmatmul.bf16.gmra.mxu0 %v6197
        %v6805 = vpop.f32.mrf.mxu0
        %v6806 = vadd.f32 0.0, %v6805
        %v6807 = vpop.f32.mrf.mxu0
        %v6808 = vadd.f32 0.0, %v6807
        %6809 = vmatmul.bf16.gmra.mxu0 %v6198
        %v6810 = vpop.f32.mrf.mxu0
        %v6811 = vadd.f32 0.0, %v6810
        %v6812 = vpop.f32.mrf.mxu0
        %v6813 = vadd.f32 0.0, %v6812
        %6814 = vmatmul.bf16.gmra.mxu0 %v6199
        %v6815 = vpop.f32.mrf.mxu0
        %v6816 = vadd.f32 0.0, %v6815
        %v6817 = vpop.f32.mrf.mxu0
        %v6818 = vadd.f32 0.0, %v6817
        %6819 = vmatmul.bf16.gmra.mxu0 %v6200
        %v6820 = vpop.f32.mrf.mxu0
        %v6821 = vadd.f32 0.0, %v6820
        %v6822 = vpop.f32.mrf.mxu0
        %v6823 = vadd.f32 0.0, %v6822
        %6824 = vmatmul.bf16.gmra.mxu0 %v6201
        %v6825 = vpop.f32.mrf.mxu0
        %v6826 = vadd.f32 0.0, %v6825
        %v6827 = vpop.f32.mrf.mxu0
        %v6828 = vadd.f32 0.0, %v6827
        %6829 = vmatmul.bf16.gmra.mxu0 %v6202
        %v6830 = vpop.f32.mrf.mxu0
        %v6831 = vadd.f32 0.0, %v6830
        %v6832 = vpop.f32.mrf.mxu0
        %v6833 = vadd.f32 0.0, %v6832
        %6834 = vmatmul.bf16.gmra.mxu0 %v6203
        %v6835 = vpop.f32.mrf.mxu0
        %v6836 = vadd.f32 0.0, %v6835
        %v6837 = vpop.f32.mrf.mxu0
        %v6838 = vadd.f32 0.0, %v6837
        %6839 = vmatmul.bf16.gmra.mxu0 %v6204
        %v6840 = vpop.f32.mrf.mxu0
        %v6841 = vadd.f32 0.0, %v6840
        %v6842 = vpop.f32.mrf.mxu0
        %v6843 = vadd.f32 0.0, %v6842
        %6844 = vmatmul.bf16.gmra.mxu0 %v6205
        %v6845 = vpop.f32.mrf.mxu0
        %v6846 = vadd.f32 0.0, %v6845
        %v6847 = vpop.f32.mrf.mxu0
        %v6848 = vadd.f32 0.0, %v6847
        %6849 = vmatmul.bf16.gmra.mxu0 %v6206
        %v6850 = vpop.f32.mrf.mxu0
        %v6851 = vadd.f32 0.0, %v6850
        %v6852 = vpop.f32.mrf.mxu0
        %v6853 = vadd.f32 0.0, %v6852
        %6854 = vmatmul.bf16.gmra.mxu0 %v6207
        %v6855 = vpop.f32.mrf.mxu0
        %v6856 = vadd.f32 0.0, %v6855
        %v6857 = vpop.f32.mrf.mxu0
        %v6858 = vadd.f32 0.0, %v6857
        %6859 = vmatmul.bf16.gmra.mxu0 %v6208
        %v6860 = vpop.f32.mrf.mxu0
        %v6861 = vadd.f32 0.0, %v6860
        %v6862 = vpop.f32.mrf.mxu0
        %v6863 = vadd.f32 0.0, %v6862
        %6864 = vdwg.mxu0
        %v6865 = vadd.f32 %v6758, %v6796
        %v6866 = vadd.f32 %v6759, %v6798
        %v6867 = vadd.f32 %v6760, %v6801
        %v6868 = vadd.f32 %v6761, %v6803
        %v6869 = vadd.f32 %v6762, %v6806
        %v6870 = vadd.f32 %v6763, %v6808
        %v6871 = vadd.f32 %v6764, %v6811
        %v6872 = vadd.f32 %v6765, %v6813
        %v6873 = vadd.f32 %v6766, %v6816
        %v6874 = vadd.f32 %v6767, %v6818
        %v6875 = vadd.f32 %v6768, %v6821
        %v6876 = vadd.f32 %v6769, %v6823
        %v6877 = vadd.f32 %v6770, %v6826
        %v6878 = vadd.f32 %v6771, %v6828
        %v6879 = vadd.f32 %v6772, %v6831
        %v6880 = vadd.f32 %v6773, %v6833
        %v6881 = vadd.f32 %v6774, %v6836
        %v6882 = vadd.f32 %v6775, %v6838
        %v6883 = vadd.f32 %v6776, %v6841
        %v6884 = vadd.f32 %v6777, %v6843
        %v6885 = vadd.f32 %v6778, %v6846
        %v6886 = vadd.f32 %v6779, %v6848
        %v6887 = vadd.f32 %v6780, %v6851
        %v6888 = vadd.f32 %v6781, %v6853
        %v6889 = vadd.f32 %v6782, %v6856
        %v6890 = vadd.f32 %v6783, %v6858
        %v6891 = vadd.f32 %v6784, %v6861
        %v6892 = vadd.f32 %v6785, %v6863
        %v6893 = vadd.f32 %v6865, %v2401
        %v6894 = vadd.f32 %v6866, %v2401
        %v6895 = vadd.f32 %v6867, %v2401
        %v6896 = vadd.f32 %v6868, %v2401
        %v6897 = vadd.f32 %v6869, %v2401
        %v6898 = vadd.f32 %v6870, %v2401
        %v6899 = vadd.f32 %v6871, %v2401
        %v6900 = vadd.f32 %v6872, %v2401
        %v6901 = vadd.f32 %v6873, %v2401
        %v6902 = vadd.f32 %v6874, %v2401
        %v6903 = vadd.f32 %v6875, %v2401
        %v6904 = vadd.f32 %v6876, %v2401
        %v6905 = vadd.f32 %v6877, %v2401
        %v6906 = vadd.f32 %v6878, %v2401
        %v6907 = vadd.f32 %v6879, %v2401
        %v6908 = vadd.f32 %v6880, %v2401
        %v6909 = vadd.f32 %v6881, %v2401
        %v6910 = vadd.f32 %v6882, %v2401
        %v6911 = vadd.f32 %v6883, %v2401
        %v6912 = vadd.f32 %v6884, %v2401
        %v6913 = vadd.f32 %v6885, %v2401
        %v6914 = vadd.f32 %v6886, %v2401
        %v6915 = vadd.f32 %v6887, %v2401
        %v6916 = vadd.f32 %v6888, %v2401
        %v6917 = vadd.f32 %v6889, %v2401
        %v6918 = vadd.f32 %v6890, %v2401
        %v6919 = vadd.f32 %v6891, %v2401
        %v6920 = vadd.f32 %v6892, %v2401
        %v6921 = vmax.f32 %v6893, 0.0
        %v6922 = vmax.f32 %v6894, 0.0
        %v6923 = vmax.f32 %v6895, 0.0
        %v6924 = vmax.f32 %v6896, 0.0
        %v6925 = vmax.f32 %v6897, 0.0
        %v6926 = vmax.f32 %v6898, 0.0
        %v6927 = vmax.f32 %v6899, 0.0
        %v6928 = vmax.f32 %v6900, 0.0
        %v6929 = vmax.f32 %v6901, 0.0
        %v6930 = vmax.f32 %v6902, 0.0
        %v6931 = vmax.f32 %v6903, 0.0
        %v6932 = vmax.f32 %v6904, 0.0
        %v6933 = vmax.f32 %v6905, 0.0
        %v6934 = vmax.f32 %v6906, 0.0
        %v6935 = vmax.f32 %v6907, 0.0
        %v6936 = vmax.f32 %v6908, 0.0
        %v6937 = vmax.f32 %v6909, 0.0
        %v6938 = vmax.f32 %v6910, 0.0
        %v6939 = vmax.f32 %v6911, 0.0
        %v6940 = vmax.f32 %v6912, 0.0
        %v6941 = vmax.f32 %v6913, 0.0
        %v6942 = vmax.f32 %v6914, 0.0
        %v6943 = vmax.f32 %v6915, 0.0
        %v6944 = vmax.f32 %v6916, 0.0
        %v6945 = vmax.f32 %v6917, 0.0
        %v6946 = vmax.f32 %v6918, 0.0
        %v6947 = vmax.f32 %v6919, 0.0
        %v6948 = vmax.f32 %v6920, 0.0
        %v6949 = vmax.f32 %v6386, %v6921
        %v6950 = vmax.f32 %v6387, %v6922
        %v6951 = vmax.f32 %v6388, %v6923
        %v6952 = vmax.f32 %v6389, %v6924
        %v6953 = vmax.f32 %v6390, %v6925
        %v6954 = vmax.f32 %v6391, %v6926
        %v6955 = vmax.f32 %v6392, %v6927
        %v6956 = vmax.f32 %v6393, %v6928
        %v6957 = vmax.f32 %v6394, %v6929
        %v6958 = vmax.f32 %v6395, %v6930
        %v6959 = vmax.f32 %v6396, %v6931
        %v6960 = vmax.f32 %v6397, %v6932
        %v6961 = vmax.f32 %v6398, %v6933
        %v6962 = vmax.f32 %v6399, %v6934
        %v6963 = vmax.f32 %v6400, %v6935
        %v6964 = vmax.f32 %v6401, %v6936
        %v6965 = vmax.f32 %v6402, %v6937
        %v6966 = vmax.f32 %v6403, %v6938
        %v6967 = vmax.f32 %v6404, %v6939
        %v6968 = vmax.f32 %v6405, %v6940
        %v6969 = vmax.f32 %v6406, %v6941
        %v6970 = vmax.f32 %v6407, %v6942
        %v6971 = vmax.f32 %v6408, %v6943
        %v6972 = vmax.f32 %v6409, %v6944
        %v6973 = vmax.f32 %v6410, %v6945
        %v6974 = vmax.f32 %v6411, %v6946
        %v6975 = vmax.f32 %v6412, %v6947
        %v6976 = vmax.f32 %v6413, %v6948
        %v6977 = vpack.c.bf16 %v6949, %v6949
        %v6978 = vpack.c.bf16 %v6950, %v6950
        %v6979 = vpack.c.bf16 %v6951, %v6951
        %v6980 = vpack.c.bf16 %v6952, %v6952
        %v6981 = vpack.c.bf16 %v6953, %v6953
        %v6982 = vpack.c.bf16 %v6954, %v6954
        %v6983 = vpack.c.bf16 %v6955, %v6955
        %v6984 = vpack.c.bf16 %v6956, %v6956
        %v6985 = vpack.c.bf16 %v6957, %v6957
        %v6986 = vpack.c.bf16 %v6958, %v6958
        %v6987 = vpack.c.bf16 %v6959, %v6959
        %v6988 = vpack.c.bf16 %v6960, %v6960
        %v6989 = vpack.c.bf16 %v6961, %v6961
        %v6990 = vpack.c.bf16 %v6962, %v6962
        %v6991 = vpack.c.bf16 %v6963, %v6963
        %v6992 = vpack.c.bf16 %v6964, %v6964
        %v6993 = vpack.c.bf16 %v6965, %v6965
        %v6994 = vpack.c.bf16 %v6966, %v6966
        %v6995 = vpack.c.bf16 %v6967, %v6967
        %v6996 = vpack.c.bf16 %v6968, %v6968
        %v6997 = vpack.c.bf16 %v6969, %v6969
        %v6998 = vpack.c.bf16 %v6970, %v6970
        %v6999 = vpack.c.bf16 %v6971, %v6971
        %v7000 = vpack.c.bf16 %v6972, %v6972
        %v7001 = vpack.c.bf16 %v6973, %v6973
        %v7002 = vpack.c.bf16 %v6974, %v6974
        %v7003 = vpack.c.bf16 %v6975, %v6975
        %v7004 = vpack.c.bf16 %v6976, %v6976
        %v7005 = vld [vmem:[%s3] sm:$0xf]
        %v7006 = vld [vmem:[%s3 + $0x4] sm:$0xf]
        %v7007 = vld [vmem:[%s3 + $0x8] sm:$0xf]
        %v7008 = vld [vmem:[%s3 + $0xc] sm:$0xf]
        %v7009 = vld [vmem:[%s3 + $0x10] sm:$0xf]
        %v7010 = vld [vmem:[%s3 + $0x14] sm:$0xf]
        %v7011 = vld [vmem:[%s3 + $0x18] sm:$0xf]
        %v7012 = vld [vmem:[%s3 + $0x1c] sm:$0xf]
        %v7013 = vld [vmem:[%s3 + $0x20] sm:$0xf]
        %v7014 = vld [vmem:[%s3 + $0x24] sm:$0xf]
        %v7015 = vld [vmem:[%s3 + $0x28] sm:$0xf]
        %v7016 = vld [vmem:[%s3 + $0x2c] sm:$0xf]
        %v7017 = vld [vmem:[%s3 + $0x30] sm:$0xf]
        %v7018 = vld [vmem:[%s3 + $0x34] sm:$0xf]
        %v7019 = vld [vmem:[%s3 + $0x38] sm:$0xf]
        %v7020 = vld [vmem:[%s3 + $0x3c] sm:$0xf]
        %s7021 = scalar_lea.vmem %s3, 64
        %v7022 = vld [vmem:[%s7021] sm:$0xf]
        %v7023 = vld [vmem:[%s7021 + $0x4] sm:$0xf]
        %v7024 = vld [vmem:[%s7021 + $0x8] sm:$0xf]
        %v7025 = vld [vmem:[%s7021 + $0xc] sm:$0xf]
        %v7026 = vld [vmem:[%s7021 + $0x10] sm:$0xf]
        %v7027 = vld [vmem:[%s7021 + $0x14] sm:$0xf]
        %v7028 = vld [vmem:[%s7021 + $0x18] sm:$0xf]
        %v7029 = vld [vmem:[%s7021 + $0x1c] sm:$0xf]
        %v7030 = vld [vmem:[%s7021 + $0x20] sm:$0xf]
        %v7031 = vld [vmem:[%s7021 + $0x24] sm:$0xf]
        %v7032 = vld [vmem:[%s7021 + $0x28] sm:$0xf]
        %v7033 = vld [vmem:[%s7021 + $0x2c] sm:$0xf]
        %v7034 = vld [vmem:[%s7021 + $0x30] sm:$0xf]
        %v7035 = vld [vmem:[%s7021 + $0x34] sm:$0xf]
        %v7036 = vld [vmem:[%s7021 + $0x38] sm:$0xf]
        %v7037 = vld [vmem:[%s7021 + $0x3c] sm:$0xf]
        %v7058 = vunpack.c.l.b16 %v6977
        %v7059 = vunpack.c.l.b16 %v6978
        %v7060 = vunpack.c.l.b16 %v6979
        %v7061 = vunpack.c.l.b16 %v6980
        %v7062 = vunpack.c.l.b16 %v6981
        %v7063 = vunpack.c.l.b16 %v6982
        %v7064 = vunpack.c.l.b16 %v6983
        %v7065 = vunpack.c.l.b16 %v6984
        %v7066 = vunpack.c.l.b16 %v6985
        %v7067 = vunpack.c.l.b16 %v6986
        %v7068 = vunpack.c.l.b16 %v6987
        %v7069 = vunpack.c.l.b16 %v6988
        %v7070 = vunpack.c.l.b16 %v6989
        %v7071 = vunpack.c.l.b16 %v6990
        %v7072 = vunpack.c.l.b16 %v6991
        %v7073 = vunpack.c.l.b16 %v6992
        %v7074 = vunpack.c.l.b16 %v6993
        %v7075 = vunpack.c.l.b16 %v6994
        %v7076 = vunpack.c.l.b16 %v6995
        %v7077 = vunpack.c.l.b16 %v6996
        %v7078 = vpack.c.b16 %v7059, %v7058
        %v7079 = vpack.c.b16 %v7061, %v7060
        %v7080 = vpack.c.b16 %v7063, %v7062
        %v7081 = vpack.c.b16 %v7065, %v7064
        %v7082 = vpack.c.b16 %v7067, %v7066
        %v7083 = vpack.c.b16 %v7069, %v7068
        %v7084 = vpack.c.b16 %v7071, %v7070
        %v7085 = vpack.c.b16 %v7073, %v7072
        %v7086 = vpack.c.b16 %v7075, %v7074
        %v7087 = vpack.c.b16 %v7077, %v7076
        %v7114 = vunpack.c.l.b16 %v7022
        %v7115 = vunpack.c.l.b16 %v7023
        %v7116 = vunpack.c.l.b16 %v7024
        %v7117 = vunpack.c.l.b16 %v7025
        %v7118 = vunpack.c.l.b16 %v7026
        %v7119 = vunpack.c.l.b16 %v7027
        %v7120 = vunpack.c.l.b16 %v7028
        %v7121 = vunpack.c.l.b16 %v7029
        %v7122 = vunpack.c.l.b16 %v7030
        %v7123 = vunpack.c.l.b16 %v7031
        %v7124 = vunpack.c.l.b16 %v7032
        %v7125 = vunpack.c.l.b16 %v7033
        %v7126 = vunpack.c.l.b16 %v7034
        %v7127 = vunpack.c.l.b16 %v7035
        %v7128 = vunpack.c.l.b16 %v7036
        %v7129 = vunpack.c.l.b16 %v7037
        %v7130 = vpack.c.b16 %v7115, %v7114
        %v7131 = vpack.c.b16 %v7117, %v7116
        %v7132 = vpack.c.b16 %v7119, %v7118
        %v7133 = vpack.c.b16 %v7121, %v7120
        %v7134 = vpack.c.b16 %v7123, %v7122
        %v7135 = vpack.c.b16 %v7125, %v7124
        %v7136 = vpack.c.b16 %v7127, %v7126
        %v7137 = vpack.c.b16 %v7129, %v7128
        %7146 = vmatpush.bf16.msra.mxu0 %v7137
        %7147 = vmatpush.bf16.msra.mxu0 %v7136
        %7148 = vmatpush.bf16.msra.mxu0 %v7135
        %7149 = vmatpush.bf16.msra.mxu0 %v7134
        %7150 = vmatpush.bf16.msra.mxu0 %v7133
        %7151 = vmatpush.bf16.msra.mxu0 %v7132
        %7152 = vmatpush.bf16.msra.mxu0 %v7131
        %7153 = vmatpush.bf16.msra.mxu0 %v7130
        %7154 = vmatmul.bf16.gmra.mxu0 %v7078
        %v7155 = vpop.f32.mrf.mxu0
        %v7156 = vadd.f32 0.0, %v7155
        %v7157 = vpop.f32.mrf.mxu0
        %v7158 = vadd.f32 0.0, %v7157
        %7159 = vmatmul.bf16.gmra.mxu0 %v7079
        %v7160 = vpop.f32.mrf.mxu0
        %v7161 = vadd.f32 0.0, %v7160
        %v7162 = vpop.f32.mrf.mxu0
        %v7163 = vadd.f32 0.0, %v7162
        %7164 = vmatmul.bf16.gmra.mxu0 %v7080
        %v7165 = vpop.f32.mrf.mxu0
        %v7166 = vadd.f32 0.0, %v7165
        %v7167 = vpop.f32.mrf.mxu0
        %v7168 = vadd.f32 0.0, %v7167
        %7169 = vmatmul.bf16.gmra.mxu0 %v7081
        %v7170 = vpop.f32.mrf.mxu0
        %v7171 = vadd.f32 0.0, %v7170
        %v7172 = vpop.f32.mrf.mxu0
        %v7173 = vadd.f32 0.0, %v7172
        %7174 = vmatmul.bf16.gmra.mxu0 %v7082
        %v7175 = vpop.f32.mrf.mxu0
        %v7176 = vadd.f32 0.0, %v7175
        %v7177 = vpop.f32.mrf.mxu0
        %v7178 = vadd.f32 0.0, %v7177
        %7179 = vmatmul.bf16.gmra.mxu0 %v7083
        %v7180 = vpop.f32.mrf.mxu0
        %v7181 = vadd.f32 0.0, %v7180
        %v7182 = vpop.f32.mrf.mxu0
        %v7183 = vadd.f32 0.0, %v7182
        %7184 = vmatmul.bf16.gmra.mxu0 %v7084
        %v7185 = vpop.f32.mrf.mxu0
        %v7186 = vadd.f32 0.0, %v7185
        %v7187 = vpop.f32.mrf.mxu0
        %v7188 = vadd.f32 0.0, %v7187
        %7189 = vmatmul.bf16.gmra.mxu0 %v7085
        %v7190 = vpop.f32.mrf.mxu0
        %v7191 = vadd.f32 0.0, %v7190
        %v7192 = vpop.f32.mrf.mxu0
        %v7193 = vadd.f32 0.0, %v7192
        %7194 = vmatmul.bf16.gmra.mxu0 %v7086
        %v7195 = vpop.f32.mrf.mxu0
        %v7196 = vadd.f32 0.0, %v7195
        %v7197 = vpop.f32.mrf.mxu0
        %v7198 = vadd.f32 0.0, %v7197
        %7199 = vmatmul.bf16.gmra.mxu0 %v7087
        %v7200 = vpop.f32.mrf.mxu0
        %v7201 = vadd.f32 0.0, %v7200
        %v7202 = vpop.f32.mrf.mxu0
        %v7203 = vadd.f32 0.0, %v7202
        %7204 = vdwg.mxu0
        %v7225 = vunpack.c.l.b16 %v4557
        %v7226 = vunpack.c.l.b16 %v4558
        %v7227 = vunpack.c.l.b16 %v4559
        %v7228 = vunpack.c.l.b16 %v4560
        %v7229 = vunpack.c.l.b16 %v4561
        %v7230 = vunpack.c.l.b16 %v4562
        %v7231 = vunpack.c.l.b16 %v4563
        %v7232 = vunpack.c.l.b16 %v4564
        %v7233 = vunpack.c.l.b16 %v4565
        %v7234 = vunpack.c.l.b16 %v4566
        %v7235 = vunpack.c.l.b16 %v4567
        %v7236 = vunpack.c.l.b16 %v4568
        %v7237 = vunpack.c.l.b16 %v4569
        %v7238 = vunpack.c.l.b16 %v4570
        %v7239 = vunpack.c.l.b16 %v4571
        %v7240 = vunpack.c.l.b16 %v4572
        %v7241 = vunpack.c.l.b16 %v4573
        %v7242 = vunpack.c.l.b16 %v4574
        %v7243 = vunpack.c.l.b16 %v4575
        %v7244 = vunpack.c.l.b16 %v4576
        %v7245 = vpack.c.b16 %v7226, %v7225
        %v7246 = vpack.c.b16 %v7228, %v7227
        %v7247 = vpack.c.b16 %v7230, %v7229
        %v7248 = vpack.c.b16 %v7232, %v7231
        %v7249 = vpack.c.b16 %v7234, %v7233
        %v7250 = vpack.c.b16 %v7236, %v7235
        %v7251 = vpack.c.b16 %v7238, %v7237
        %v7252 = vpack.c.b16 %v7240, %v7239
        %v7253 = vpack.c.b16 %v7242, %v7241
        %v7254 = vpack.c.b16 %v7244, %v7243
        %v7281 = vunpack.c.l.b16 %v7005
        %v7282 = vunpack.c.l.b16 %v7006
        %v7283 = vunpack.c.l.b16 %v7007
        %v7284 = vunpack.c.l.b16 %v7008
        %v7285 = vunpack.c.l.b16 %v7009
        %v7286 = vunpack.c.l.b16 %v7010
        %v7287 = vunpack.c.l.b16 %v7011
        %v7288 = vunpack.c.l.b16 %v7012
        %v7289 = vunpack.c.l.b16 %v7013
        %v7290 = vunpack.c.l.b16 %v7014
        %v7291 = vunpack.c.l.b16 %v7015
        %v7292 = vunpack.c.l.b16 %v7016
        %v7293 = vunpack.c.l.b16 %v7017
        %v7294 = vunpack.c.l.b16 %v7018
        %v7295 = vunpack.c.l.b16 %v7019
        %v7296 = vunpack.c.l.b16 %v7020
        %v7297 = vpack.c.b16 %v7282, %v7281
        %v7298 = vpack.c.b16 %v7284, %v7283
        %v7299 = vpack.c.b16 %v7286, %v7285
        %v7300 = vpack.c.b16 %v7288, %v7287
        %v7301 = vpack.c.b16 %v7290, %v7289
        %v7302 = vpack.c.b16 %v7292, %v7291
        %v7303 = vpack.c.b16 %v7294, %v7293
        %v7304 = vpack.c.b16 %v7296, %v7295
        %7313 = vmatpush.bf16.msra.mxu0 %v7304
        %7314 = vmatpush.bf16.msra.mxu0 %v7303
        %7315 = vmatpush.bf16.msra.mxu0 %v7302
        %7316 = vmatpush.bf16.msra.mxu0 %v7301
        %7317 = vmatpush.bf16.msra.mxu0 %v7300
        %7318 = vmatpush.bf16.msra.mxu0 %v7299
        %7319 = vmatpush.bf16.msra.mxu0 %v7298
        %7320 = vmatpush.bf16.msra.mxu0 %v7297
        %7321 = vmatmul.bf16.gmra.mxu0 %v7245
        %v7322 = vpop.f32.mrf.mxu0
        %v7323 = vadd.f32 %v7156, %v7322
        %v7324 = vpop.f32.mrf.mxu0
        %v7325 = vadd.f32 %v7158, %v7324
        %7326 = vmatmul.bf16.gmra.mxu0 %v7246
        %v7327 = vpop.f32.mrf.mxu0
        %v7328 = vadd.f32 %v7161, %v7327
        %v7329 = vpop.f32.mrf.mxu0
        %v7330 = vadd.f32 %v7163, %v7329
        %7331 = vmatmul.bf16.gmra.mxu0 %v7247
        %v7332 = vpop.f32.mrf.mxu0
        %v7333 = vadd.f32 %v7166, %v7332
        %v7334 = vpop.f32.mrf.mxu0
        %v7335 = vadd.f32 %v7168, %v7334
        %7336 = vmatmul.bf16.gmra.mxu0 %v7248
        %v7337 = vpop.f32.mrf.mxu0
        %v7338 = vadd.f32 %v7171, %v7337
        %v7339 = vpop.f32.mrf.mxu0
        %v7340 = vadd.f32 %v7173, %v7339
        %7341 = vmatmul.bf16.gmra.mxu0 %v7249
        %v7342 = vpop.f32.mrf.mxu0
        %v7343 = vadd.f32 %v7176, %v7342
        %v7344 = vpop.f32.mrf.mxu0
        %v7345 = vadd.f32 %v7178, %v7344
        %7346 = vmatmul.bf16.gmra.mxu0 %v7250
        %v7347 = vpop.f32.mrf.mxu0
        %v7348 = vadd.f32 %v7181, %v7347
        %v7349 = vpop.f32.mrf.mxu0
        %v7350 = vadd.f32 %v7183, %v7349
        %7351 = vmatmul.bf16.gmra.mxu0 %v7251
        %v7352 = vpop.f32.mrf.mxu0
        %v7353 = vadd.f32 %v7186, %v7352
        %v7354 = vpop.f32.mrf.mxu0
        %v7355 = vadd.f32 %v7188, %v7354
        %7356 = vmatmul.bf16.gmra.mxu0 %v7252
        %v7357 = vpop.f32.mrf.mxu0
        %v7358 = vadd.f32 %v7191, %v7357
        %v7359 = vpop.f32.mrf.mxu0
        %v7360 = vadd.f32 %v7193, %v7359
        %7361 = vmatmul.bf16.gmra.mxu0 %v7253
        %v7362 = vpop.f32.mrf.mxu0
        %v7363 = vadd.f32 %v7196, %v7362
        %v7364 = vpop.f32.mrf.mxu0
        %v7365 = vadd.f32 %v7198, %v7364
        %7366 = vmatmul.bf16.gmra.mxu0 %v7254
        %v7367 = vpop.f32.mrf.mxu0
        %v7368 = vadd.f32 %v7201, %v7367
        %v7369 = vpop.f32.mrf.mxu0
        %v7370 = vadd.f32 %v7203, %v7369
        %7371 = vdwg.mxu0
        %s7372 = scalar_lea.vmem %s3, 128
        %v7373 = vld [vmem:[%s7372] sm:$0xf]
        %v7374 = vld [vmem:[%s7372 + $0x4] sm:$0xf]
        %v7375 = vld [vmem:[%s7372 + $0x8] sm:$0xf]
        %v7376 = vld [vmem:[%s7372 + $0xc] sm:$0xf]
        %v7377 = vld [vmem:[%s7372 + $0x10] sm:$0xf]
        %v7378 = vld [vmem:[%s7372 + $0x14] sm:$0xf]
        %v7379 = vld [vmem:[%s7372 + $0x18] sm:$0xf]
        %v7380 = vld [vmem:[%s7372 + $0x1c] sm:$0xf]
        %v7381 = vld [vmem:[%s7372 + $0x20] sm:$0xf]
        %v7382 = vld [vmem:[%s7372 + $0x24] sm:$0xf]
        %v7383 = vld [vmem:[%s7372 + $0x28] sm:$0xf]
        %v7384 = vld [vmem:[%s7372 + $0x2c] sm:$0xf]
        %v7385 = vld [vmem:[%s7372 + $0x30] sm:$0xf]
        %v7386 = vld [vmem:[%s7372 + $0x34] sm:$0xf]
        %v7387 = vld [vmem:[%s7372 + $0x38] sm:$0xf]
        %v7388 = vld [vmem:[%s7372 + $0x3c] sm:$0xf]
        %v7393 = vunpack.c.l.b16 %v4577
        %v7394 = vunpack.c.l.b16 %v4578
        %v7395 = vunpack.c.l.b16 %v4579
        %v7396 = vunpack.c.l.b16 %v4580
        %v7397 = vpack.c.b16 %v7394, %v7393
        %v7398 = vpack.c.b16 %v7396, %v7395
        %v7417 = vunpack.c.l.b16 %v7373
        %v7418 = vunpack.c.l.b16 %v7374
        %v7419 = vunpack.c.l.b16 %v7375
        %v7420 = vunpack.c.l.b16 %v7376
        %v7421 = vunpack.c.l.b16 %v7377
        %v7422 = vunpack.c.l.b16 %v7378
        %v7423 = vunpack.c.l.b16 %v7379
        %v7424 = vunpack.c.l.b16 %v7380
        %v7425 = vunpack.c.l.b16 %v7381
        %v7426 = vunpack.c.l.b16 %v7382
        %v7427 = vunpack.c.l.b16 %v7383
        %v7428 = vunpack.c.l.b16 %v7384
        %v7429 = vunpack.c.l.b16 %v7385
        %v7430 = vunpack.c.l.b16 %v7386
        %v7431 = vunpack.c.l.b16 %v7387
        %v7432 = vunpack.c.l.b16 %v7388
        %v7433 = vpack.c.b16 %v7418, %v7417
        %v7434 = vpack.c.b16 %v7420, %v7419
        %v7435 = vpack.c.b16 %v7422, %v7421
        %v7436 = vpack.c.b16 %v7424, %v7423
        %v7437 = vpack.c.b16 %v7426, %v7425
        %v7438 = vpack.c.b16 %v7428, %v7427
        %v7439 = vpack.c.b16 %v7430, %v7429
        %v7440 = vpack.c.b16 %v7432, %v7431
        %7449 = vmatpush.bf16.msra.mxu0 %v7440
        %7450 = vmatpush.bf16.msra.mxu0 %v7439
        %7451 = vmatpush.bf16.msra.mxu0 %v7438
        %7452 = vmatpush.bf16.msra.mxu0 %v7437
        %7453 = vmatpush.bf16.msra.mxu0 %v7436
        %7454 = vmatpush.bf16.msra.mxu0 %v7435
        %7455 = vmatpush.bf16.msra.mxu0 %v7434
        %7456 = vmatpush.bf16.msra.mxu0 %v7433
        %7457 = vmatmul.bf16.gmra.mxu0 %v7247
        %v7458 = vpop.f32.mrf.mxu0
        %v7459 = vadd.f32 0.0, %v7458
        %v7460 = vpop.f32.mrf.mxu0
        %v7461 = vadd.f32 0.0, %v7460
        %7462 = vmatmul.bf16.gmra.mxu0 %v7248
        %v7463 = vpop.f32.mrf.mxu0
        %v7464 = vadd.f32 0.0, %v7463
        %v7465 = vpop.f32.mrf.mxu0
        %v7466 = vadd.f32 0.0, %v7465
        %7467 = vmatmul.bf16.gmra.mxu0 %v7249
        %v7468 = vpop.f32.mrf.mxu0
        %v7469 = vadd.f32 0.0, %v7468
        %v7470 = vpop.f32.mrf.mxu0
        %v7471 = vadd.f32 0.0, %v7470
        %7472 = vmatmul.bf16.gmra.mxu0 %v7250
        %v7473 = vpop.f32.mrf.mxu0
        %v7474 = vadd.f32 0.0, %v7473
        %v7475 = vpop.f32.mrf.mxu0
        %v7476 = vadd.f32 0.0, %v7475
        %7477 = vmatmul.bf16.gmra.mxu0 %v7251
        %v7478 = vpop.f32.mrf.mxu0
        %v7479 = vadd.f32 0.0, %v7478
        %v7480 = vpop.f32.mrf.mxu0
        %v7481 = vadd.f32 0.0, %v7480
        %7482 = vmatmul.bf16.gmra.mxu0 %v7252
        %v7483 = vpop.f32.mrf.mxu0
        %v7484 = vadd.f32 0.0, %v7483
        %v7485 = vpop.f32.mrf.mxu0
        %v7486 = vadd.f32 0.0, %v7485
        %7487 = vmatmul.bf16.gmra.mxu0 %v7253
        %v7488 = vpop.f32.mrf.mxu0
        %v7489 = vadd.f32 0.0, %v7488
        %v7490 = vpop.f32.mrf.mxu0
        %v7491 = vadd.f32 0.0, %v7490
        %7492 = vmatmul.bf16.gmra.mxu0 %v7254
        %v7493 = vpop.f32.mrf.mxu0
        %v7494 = vadd.f32 0.0, %v7493
        %v7495 = vpop.f32.mrf.mxu0
        %v7496 = vadd.f32 0.0, %v7495
        %7497 = vmatmul.bf16.gmra.mxu0 %v7397
        %v7498 = vpop.f32.mrf.mxu0
        %v7499 = vadd.f32 0.0, %v7498
        %v7500 = vpop.f32.mrf.mxu0
        %v7501 = vadd.f32 0.0, %v7500
        %7502 = vmatmul.bf16.gmra.mxu0 %v7398
        %v7503 = vpop.f32.mrf.mxu0
        %v7504 = vadd.f32 0.0, %v7503
        %v7505 = vpop.f32.mrf.mxu0
        %v7506 = vadd.f32 0.0, %v7505
        %7507 = vdwg.mxu0
        %v7508 = vadd.f32 %v7323, %v7459
        %v7509 = vadd.f32 %v7325, %v7461
        %v7510 = vadd.f32 %v7328, %v7464
        %v7511 = vadd.f32 %v7330, %v7466
        %v7512 = vadd.f32 %v7333, %v7469
        %v7513 = vadd.f32 %v7335, %v7471
        %v7514 = vadd.f32 %v7338, %v7474
        %v7515 = vadd.f32 %v7340, %v7476
        %v7516 = vadd.f32 %v7343, %v7479
        %v7517 = vadd.f32 %v7345, %v7481
        %v7518 = vadd.f32 %v7348, %v7484
        %v7519 = vadd.f32 %v7350, %v7486
        %v7520 = vadd.f32 %v7353, %v7489
        %v7521 = vadd.f32 %v7355, %v7491
        %v7522 = vadd.f32 %v7358, %v7494
        %v7523 = vadd.f32 %v7360, %v7496
        %v7524 = vadd.f32 %v7363, %v7499
        %v7525 = vadd.f32 %v7365, %v7501
        %v7526 = vadd.f32 %v7368, %v7504
        %v7527 = vadd.f32 %v7370, %v7506
        %s7528 = scalar_lea.vmem %s3, 192
        %v7529 = vld [vmem:[%s7528] sm:$0xf]
        %v7530 = vld [vmem:[%s7528 + $0x4] sm:$0xf]
        %v7531 = vld [vmem:[%s7528 + $0x8] sm:$0xf]
        %v7532 = vld [vmem:[%s7528 + $0xc] sm:$0xf]
        %v7533 = vld [vmem:[%s7528 + $0x10] sm:$0xf]
        %v7534 = vld [vmem:[%s7528 + $0x14] sm:$0xf]
        %v7535 = vld [vmem:[%s7528 + $0x18] sm:$0xf]
        %v7536 = vld [vmem:[%s7528 + $0x1c] sm:$0xf]
        %v7537 = vld [vmem:[%s7528 + $0x20] sm:$0xf]
        %v7538 = vld [vmem:[%s7528 + $0x24] sm:$0xf]
        %v7539 = vld [vmem:[%s7528 + $0x28] sm:$0xf]
        %v7540 = vld [vmem:[%s7528 + $0x2c] sm:$0xf]
        %v7541 = vld [vmem:[%s7528 + $0x30] sm:$0xf]
        %v7542 = vld [vmem:[%s7528 + $0x34] sm:$0xf]
        %v7543 = vld [vmem:[%s7528 + $0x38] sm:$0xf]
        %v7544 = vld [vmem:[%s7528 + $0x3c] sm:$0xf]
        %v7549 = vunpack.c.l.b16 %v6997
        %v7550 = vunpack.c.l.b16 %v6998
        %v7551 = vunpack.c.l.b16 %v6999
        %v7552 = vunpack.c.l.b16 %v7000
        %v7553 = vpack.c.b16 %v7550, %v7549
        %v7554 = vpack.c.b16 %v7552, %v7551
        %v7573 = vunpack.c.l.b16 %v7529
        %v7574 = vunpack.c.l.b16 %v7530
        %v7575 = vunpack.c.l.b16 %v7531
        %v7576 = vunpack.c.l.b16 %v7532
        %v7577 = vunpack.c.l.b16 %v7533
        %v7578 = vunpack.c.l.b16 %v7534
        %v7579 = vunpack.c.l.b16 %v7535
        %v7580 = vunpack.c.l.b16 %v7536
        %v7581 = vunpack.c.l.b16 %v7537
        %v7582 = vunpack.c.l.b16 %v7538
        %v7583 = vunpack.c.l.b16 %v7539
        %v7584 = vunpack.c.l.b16 %v7540
        %v7585 = vunpack.c.l.b16 %v7541
        %v7586 = vunpack.c.l.b16 %v7542
        %v7587 = vunpack.c.l.b16 %v7543
        %v7588 = vunpack.c.l.b16 %v7544
        %v7589 = vpack.c.b16 %v7574, %v7573
        %v7590 = vpack.c.b16 %v7576, %v7575
        %v7591 = vpack.c.b16 %v7578, %v7577
        %v7592 = vpack.c.b16 %v7580, %v7579
        %v7593 = vpack.c.b16 %v7582, %v7581
        %v7594 = vpack.c.b16 %v7584, %v7583
        %v7595 = vpack.c.b16 %v7586, %v7585
        %v7596 = vpack.c.b16 %v7588, %v7587
        %7605 = vmatpush.bf16.msra.mxu0 %v7596
        %7606 = vmatpush.bf16.msra.mxu0 %v7595
        %7607 = vmatpush.bf16.msra.mxu0 %v7594
        %7608 = vmatpush.bf16.msra.mxu0 %v7593
        %7609 = vmatpush.bf16.msra.mxu0 %v7592
        %7610 = vmatpush.bf16.msra.mxu0 %v7591
        %7611 = vmatpush.bf16.msra.mxu0 %v7590
        %7612 = vmatpush.bf16.msra.mxu0 %v7589
        %7613 = vmatmul.bf16.gmra.mxu0 %v7080
        %v7614 = vpop.f32.mrf.mxu0
        %v7615 = vadd.f32 0.0, %v7614
        %v7616 = vpop.f32.mrf.mxu0
        %v7617 = vadd.f32 0.0, %v7616
        %7618 = vmatmul.bf16.gmra.mxu0 %v7081
        %v7619 = vpop.f32.mrf.mxu0
        %v7620 = vadd.f32 0.0, %v7619
        %v7621 = vpop.f32.mrf.mxu0
        %v7622 = vadd.f32 0.0, %v7621
        %7623 = vmatmul.bf16.gmra.mxu0 %v7082
        %v7624 = vpop.f32.mrf.mxu0
        %v7625 = vadd.f32 0.0, %v7624
        %v7626 = vpop.f32.mrf.mxu0
        %v7627 = vadd.f32 0.0, %v7626
        %7628 = vmatmul.bf16.gmra.mxu0 %v7083
        %v7629 = vpop.f32.mrf.mxu0
        %v7630 = vadd.f32 0.0, %v7629
        %v7631 = vpop.f32.mrf.mxu0
        %v7632 = vadd.f32 0.0, %v7631
        %7633 = vmatmul.bf16.gmra.mxu0 %v7084
        %v7634 = vpop.f32.mrf.mxu0
        %v7635 = vadd.f32 0.0, %v7634
        %v7636 = vpop.f32.mrf.mxu0
        %v7637 = vadd.f32 0.0, %v7636
        %7638 = vmatmul.bf16.gmra.mxu0 %v7085
        %v7639 = vpop.f32.mrf.mxu0
        %v7640 = vadd.f32 0.0, %v7639
        %v7641 = vpop.f32.mrf.mxu0
        %v7642 = vadd.f32 0.0, %v7641
        %7643 = vmatmul.bf16.gmra.mxu0 %v7086
        %v7644 = vpop.f32.mrf.mxu0
        %v7645 = vadd.f32 0.0, %v7644
        %v7646 = vpop.f32.mrf.mxu0
        %v7647 = vadd.f32 0.0, %v7646
        %7648 = vmatmul.bf16.gmra.mxu0 %v7087
        %v7649 = vpop.f32.mrf.mxu0
        %v7650 = vadd.f32 0.0, %v7649
        %v7651 = vpop.f32.mrf.mxu0
        %v7652 = vadd.f32 0.0, %v7651
        %7653 = vmatmul.bf16.gmra.mxu0 %v7553
        %v7654 = vpop.f32.mrf.mxu0
        %v7655 = vadd.f32 0.0, %v7654
        %v7656 = vpop.f32.mrf.mxu0
        %v7657 = vadd.f32 0.0, %v7656
        %7658 = vmatmul.bf16.gmra.mxu0 %v7554
        %v7659 = vpop.f32.mrf.mxu0
        %v7660 = vadd.f32 0.0, %v7659
        %v7661 = vpop.f32.mrf.mxu0
        %v7662 = vadd.f32 0.0, %v7661
        %7663 = vdwg.mxu0
        %v7664 = vadd.f32 %v7508, %v7615
        %v7665 = vadd.f32 %v7509, %v7617
        %v7666 = vadd.f32 %v7510, %v7620
        %v7667 = vadd.f32 %v7511, %v7622
        %v7668 = vadd.f32 %v7512, %v7625
        %v7669 = vadd.f32 %v7513, %v7627
        %v7670 = vadd.f32 %v7514, %v7630
        %v7671 = vadd.f32 %v7515, %v7632
        %v7672 = vadd.f32 %v7516, %v7635
        %v7673 = vadd.f32 %v7517, %v7637
        %v7674 = vadd.f32 %v7518, %v7640
        %v7675 = vadd.f32 %v7519, %v7642
        %v7676 = vadd.f32 %v7520, %v7645
        %v7677 = vadd.f32 %v7521, %v7647
        %v7678 = vadd.f32 %v7522, %v7650
        %v7679 = vadd.f32 %v7523, %v7652
        %v7680 = vadd.f32 %v7524, %v7655
        %v7681 = vadd.f32 %v7525, %v7657
        %v7682 = vadd.f32 %v7526, %v7660
        %v7683 = vadd.f32 %v7527, %v7662
        %s7684 = scalar_lea.vmem %s3, 256
        %v7685 = vld [vmem:[%s7684] sm:$0xf]
        %v7686 = vld [vmem:[%s7684 + $0x4] sm:$0xf]
        %v7687 = vld [vmem:[%s7684 + $0x8] sm:$0xf]
        %v7688 = vld [vmem:[%s7684 + $0xc] sm:$0xf]
        %v7689 = vld [vmem:[%s7684 + $0x10] sm:$0xf]
        %v7690 = vld [vmem:[%s7684 + $0x14] sm:$0xf]
        %v7691 = vld [vmem:[%s7684 + $0x18] sm:$0xf]
        %v7692 = vld [vmem:[%s7684 + $0x1c] sm:$0xf]
        %v7693 = vld [vmem:[%s7684 + $0x20] sm:$0xf]
        %v7694 = vld [vmem:[%s7684 + $0x24] sm:$0xf]
        %v7695 = vld [vmem:[%s7684 + $0x28] sm:$0xf]
        %v7696 = vld [vmem:[%s7684 + $0x2c] sm:$0xf]
        %v7697 = vld [vmem:[%s7684 + $0x30] sm:$0xf]
        %v7698 = vld [vmem:[%s7684 + $0x34] sm:$0xf]
        %v7699 = vld [vmem:[%s7684 + $0x38] sm:$0xf]
        %v7700 = vld [vmem:[%s7684 + $0x3c] sm:$0xf]
        %v7705 = vunpack.c.l.b16 %v4581
        %v7706 = vunpack.c.l.b16 %v4582
        %v7707 = vunpack.c.l.b16 %v4583
        %v7708 = vunpack.c.l.b16 %v4584
        %v7709 = vpack.c.b16 %v7706, %v7705
        %v7710 = vpack.c.b16 %v7708, %v7707
        %v7729 = vunpack.c.l.b16 %v7685
        %v7730 = vunpack.c.l.b16 %v7686
        %v7731 = vunpack.c.l.b16 %v7687
        %v7732 = vunpack.c.l.b16 %v7688
        %v7733 = vunpack.c.l.b16 %v7689
        %v7734 = vunpack.c.l.b16 %v7690
        %v7735 = vunpack.c.l.b16 %v7691
        %v7736 = vunpack.c.l.b16 %v7692
        %v7737 = vunpack.c.l.b16 %v7693
        %v7738 = vunpack.c.l.b16 %v7694
        %v7739 = vunpack.c.l.b16 %v7695
        %v7740 = vunpack.c.l.b16 %v7696
        %v7741 = vunpack.c.l.b16 %v7697
        %v7742 = vunpack.c.l.b16 %v7698
        %v7743 = vunpack.c.l.b16 %v7699
        %v7744 = vunpack.c.l.b16 %v7700
        %v7745 = vpack.c.b16 %v7730, %v7729
        %v7746 = vpack.c.b16 %v7732, %v7731
        %v7747 = vpack.c.b16 %v7734, %v7733
        %v7748 = vpack.c.b16 %v7736, %v7735
        %v7749 = vpack.c.b16 %v7738, %v7737
        %v7750 = vpack.c.b16 %v7740, %v7739
        %v7751 = vpack.c.b16 %v7742, %v7741
        %v7752 = vpack.c.b16 %v7744, %v7743
        %7761 = vmatpush.bf16.msra.mxu0 %v7752
        %7762 = vmatpush.bf16.msra.mxu0 %v7751
        %7763 = vmatpush.bf16.msra.mxu0 %v7750
        %7764 = vmatpush.bf16.msra.mxu0 %v7749
        %7765 = vmatpush.bf16.msra.mxu0 %v7748
        %7766 = vmatpush.bf16.msra.mxu0 %v7747
        %7767 = vmatpush.bf16.msra.mxu0 %v7746
        %7768 = vmatpush.bf16.msra.mxu0 %v7745
        %7769 = vmatmul.bf16.gmra.mxu0 %v7249
        %v7770 = vpop.f32.mrf.mxu0
        %v7771 = vadd.f32 0.0, %v7770
        %v7772 = vpop.f32.mrf.mxu0
        %v7773 = vadd.f32 0.0, %v7772
        %7774 = vmatmul.bf16.gmra.mxu0 %v7250
        %v7775 = vpop.f32.mrf.mxu0
        %v7776 = vadd.f32 0.0, %v7775
        %v7777 = vpop.f32.mrf.mxu0
        %v7778 = vadd.f32 0.0, %v7777
        %7779 = vmatmul.bf16.gmra.mxu0 %v7251
        %v7780 = vpop.f32.mrf.mxu0
        %v7781 = vadd.f32 0.0, %v7780
        %v7782 = vpop.f32.mrf.mxu0
        %v7783 = vadd.f32 0.0, %v7782
        %7784 = vmatmul.bf16.gmra.mxu0 %v7252
        %v7785 = vpop.f32.mrf.mxu0
        %v7786 = vadd.f32 0.0, %v7785
        %v7787 = vpop.f32.mrf.mxu0
        %v7788 = vadd.f32 0.0, %v7787
        %7789 = vmatmul.bf16.gmra.mxu0 %v7253
        %v7790 = vpop.f32.mrf.mxu0
        %v7791 = vadd.f32 0.0, %v7790
        %v7792 = vpop.f32.mrf.mxu0
        %v7793 = vadd.f32 0.0, %v7792
        %7794 = vmatmul.bf16.gmra.mxu0 %v7254
        %v7795 = vpop.f32.mrf.mxu0
        %v7796 = vadd.f32 0.0, %v7795
        %v7797 = vpop.f32.mrf.mxu0
        %v7798 = vadd.f32 0.0, %v7797
        %7799 = vmatmul.bf16.gmra.mxu0 %v7397
        %v7800 = vpop.f32.mrf.mxu0
        %v7801 = vadd.f32 0.0, %v7800
        %v7802 = vpop.f32.mrf.mxu0
        %v7803 = vadd.f32 0.0, %v7802
        %7804 = vmatmul.bf16.gmra.mxu0 %v7398
        %v7805 = vpop.f32.mrf.mxu0
        %v7806 = vadd.f32 0.0, %v7805
        %v7807 = vpop.f32.mrf.mxu0
        %v7808 = vadd.f32 0.0, %v7807
        %7809 = vmatmul.bf16.gmra.mxu0 %v7709
        %v7810 = vpop.f32.mrf.mxu0
        %v7811 = vadd.f32 0.0, %v7810
        %v7812 = vpop.f32.mrf.mxu0
        %v7813 = vadd.f32 0.0, %v7812
        %7814 = vmatmul.bf16.gmra.mxu0 %v7710
        %v7815 = vpop.f32.mrf.mxu0
        %v7816 = vadd.f32 0.0, %v7815
        %v7817 = vpop.f32.mrf.mxu0
        %v7818 = vadd.f32 0.0, %v7817
        %7819 = vdwg.mxu0
        %v7820 = vadd.f32 %v7664, %v7771
        %v7821 = vadd.f32 %v7665, %v7773
        %v7822 = vadd.f32 %v7666, %v7776
        %v7823 = vadd.f32 %v7667, %v7778
        %v7824 = vadd.f32 %v7668, %v7781
        %v7825 = vadd.f32 %v7669, %v7783
        %v7826 = vadd.f32 %v7670, %v7786
        %v7827 = vadd.f32 %v7671, %v7788
        %v7828 = vadd.f32 %v7672, %v7791
        %v7829 = vadd.f32 %v7673, %v7793
        %v7830 = vadd.f32 %v7674, %v7796
        %v7831 = vadd.f32 %v7675, %v7798
        %v7832 = vadd.f32 %v7676, %v7801
        %v7833 = vadd.f32 %v7677, %v7803
        %v7834 = vadd.f32 %v7678, %v7806
        %v7835 = vadd.f32 %v7679, %v7808
        %v7836 = vadd.f32 %v7680, %v7811
        %v7837 = vadd.f32 %v7681, %v7813
        %v7838 = vadd.f32 %v7682, %v7816
        %v7839 = vadd.f32 %v7683, %v7818
        %v7841 = vperm.slane %v942, 0
        %v7843 = vadd.f32 %v7820, %v7841
        %v7844 = vadd.f32 %v7821, %v7841
        %v7845 = vadd.f32 %v7822, %v7841
        %v7846 = vadd.f32 %v7823, %v7841
        %v7847 = vadd.f32 %v7824, %v7841
        %v7848 = vadd.f32 %v7825, %v7841
        %v7849 = vadd.f32 %v7826, %v7841
        %v7850 = vadd.f32 %v7827, %v7841
        %v7851 = vadd.f32 %v7828, %v7841
        %v7852 = vadd.f32 %v7829, %v7841
        %v7853 = vadd.f32 %v7830, %v7841
        %v7854 = vadd.f32 %v7831, %v7841
        %v7855 = vadd.f32 %v7832, %v7841
        %v7856 = vadd.f32 %v7833, %v7841
        %v7857 = vadd.f32 %v7834, %v7841
        %v7858 = vadd.f32 %v7835, %v7841
        %v7859 = vadd.f32 %v7836, %v7841
        %v7860 = vadd.f32 %v7837, %v7841
        %v7861 = vadd.f32 %v7838, %v7841
        %v7862 = vadd.f32 %v7839, %v7841
        %v7863 = vmax.f32 %v7843, 0.0
        %v7864 = vmax.f32 %v7844, 0.0
        %v7865 = vmax.f32 %v7845, 0.0
        %v7866 = vmax.f32 %v7846, 0.0
        %v7867 = vmax.f32 %v7847, 0.0
        %v7868 = vmax.f32 %v7848, 0.0
        %v7869 = vmax.f32 %v7849, 0.0
        %v7870 = vmax.f32 %v7850, 0.0
        %v7871 = vmax.f32 %v7851, 0.0
        %v7872 = vmax.f32 %v7852, 0.0
        %v7873 = vmax.f32 %v7853, 0.0
        %v7874 = vmax.f32 %v7854, 0.0
        %v7875 = vmax.f32 %v7855, 0.0
        %v7876 = vmax.f32 %v7856, 0.0
        %v7877 = vmax.f32 %v7857, 0.0
        %v7878 = vmax.f32 %v7858, 0.0
        %v7879 = vmax.f32 %v7859, 0.0
        %v7880 = vmax.f32 %v7860, 0.0
        %v7881 = vmax.f32 %v7861, 0.0
        %v7882 = vmax.f32 %v7862, 0.0
        %s7883 = scalar_lea.vmem %s3, 320
        %v7884 = vld [vmem:[%s7883] sm:$0xf]
        %v7885 = vld [vmem:[%s7883 + $0x4] sm:$0xf]
        %v7886 = vld [vmem:[%s7883 + $0x8] sm:$0xf]
        %v7887 = vld [vmem:[%s7883 + $0xc] sm:$0xf]
        %v7888 = vld [vmem:[%s7883 + $0x10] sm:$0xf]
        %v7889 = vld [vmem:[%s7883 + $0x14] sm:$0xf]
        %v7890 = vld [vmem:[%s7883 + $0x18] sm:$0xf]
        %v7891 = vld [vmem:[%s7883 + $0x1c] sm:$0xf]
        %v7892 = vld [vmem:[%s7883 + $0x20] sm:$0xf]
        %v7893 = vld [vmem:[%s7883 + $0x24] sm:$0xf]
        %v7894 = vld [vmem:[%s7883 + $0x28] sm:$0xf]
        %v7895 = vld [vmem:[%s7883 + $0x2c] sm:$0xf]
        %v7896 = vld [vmem:[%s7883 + $0x30] sm:$0xf]
        %v7897 = vld [vmem:[%s7883 + $0x34] sm:$0xf]
        %v7898 = vld [vmem:[%s7883 + $0x38] sm:$0xf]
        %v7899 = vld [vmem:[%s7883 + $0x3c] sm:$0xf]
        %s7900 = scalar_lea.vmem %s3, 384
        %v7901 = vld [vmem:[%s7900] sm:$0xf]
        %v7902 = vld [vmem:[%s7900 + $0x4] sm:$0xf]
        %v7903 = vld [vmem:[%s7900 + $0x8] sm:$0xf]
        %v7904 = vld [vmem:[%s7900 + $0xc] sm:$0xf]
        %v7905 = vld [vmem:[%s7900 + $0x10] sm:$0xf]
        %v7906 = vld [vmem:[%s7900 + $0x14] sm:$0xf]
        %v7907 = vld [vmem:[%s7900 + $0x18] sm:$0xf]
        %v7908 = vld [vmem:[%s7900 + $0x1c] sm:$0xf]
        %v7909 = vld [vmem:[%s7900 + $0x20] sm:$0xf]
        %v7910 = vld [vmem:[%s7900 + $0x24] sm:$0xf]
        %v7911 = vld [vmem:[%s7900 + $0x28] sm:$0xf]
        %v7912 = vld [vmem:[%s7900 + $0x2c] sm:$0xf]
        %v7913 = vld [vmem:[%s7900 + $0x30] sm:$0xf]
        %v7914 = vld [vmem:[%s7900 + $0x34] sm:$0xf]
        %v7915 = vld [vmem:[%s7900 + $0x38] sm:$0xf]
        %v7916 = vld [vmem:[%s7900 + $0x3c] sm:$0xf]
        %v7933 = vunpack.c.l.b16 %v7901
        %v7934 = vunpack.c.l.b16 %v7902
        %v7935 = vunpack.c.l.b16 %v7903
        %v7936 = vunpack.c.l.b16 %v7904
        %v7937 = vunpack.c.l.b16 %v7905
        %v7938 = vunpack.c.l.b16 %v7906
        %v7939 = vunpack.c.l.b16 %v7907
        %v7940 = vunpack.c.l.b16 %v7908
        %v7941 = vunpack.c.l.b16 %v7909
        %v7942 = vunpack.c.l.b16 %v7910
        %v7943 = vunpack.c.l.b16 %v7911
        %v7944 = vunpack.c.l.b16 %v7912
        %v7945 = vunpack.c.l.b16 %v7913
        %v7946 = vunpack.c.l.b16 %v7914
        %v7947 = vunpack.c.l.b16 %v7915
        %v7948 = vunpack.c.l.b16 %v7916
        %v7949 = vpack.c.b16 %v7934, %v7933
        %v7950 = vpack.c.b16 %v7936, %v7935
        %v7951 = vpack.c.b16 %v7938, %v7937
        %v7952 = vpack.c.b16 %v7940, %v7939
        %v7953 = vpack.c.b16 %v7942, %v7941
        %v7954 = vpack.c.b16 %v7944, %v7943
        %v7955 = vpack.c.b16 %v7946, %v7945
        %v7956 = vpack.c.b16 %v7948, %v7947
        %7965 = vmatpush.bf16.msra.mxu0 %v7956
        %7966 = vmatpush.bf16.msra.mxu0 %v7955
        %7967 = vmatpush.bf16.msra.mxu0 %v7954
        %7968 = vmatpush.bf16.msra.mxu0 %v7953
        %7969 = vmatpush.bf16.msra.mxu0 %v7952
        %7970 = vmatpush.bf16.msra.mxu0 %v7951
        %7971 = vmatpush.bf16.msra.mxu0 %v7950
        %7972 = vmatpush.bf16.msra.mxu0 %v7949
        %7973 = vmatmul.bf16.gmra.mxu0 %v7078
        %v7974 = vpop.f32.mrf.mxu0
        %v7975 = vadd.f32 0.0, %v7974
        %v7976 = vpop.f32.mrf.mxu0
        %v7977 = vadd.f32 0.0, %v7976
        %7978 = vmatmul.bf16.gmra.mxu0 %v7079
        %v7979 = vpop.f32.mrf.mxu0
        %v7980 = vadd.f32 0.0, %v7979
        %v7981 = vpop.f32.mrf.mxu0
        %v7982 = vadd.f32 0.0, %v7981
        %7983 = vmatmul.bf16.gmra.mxu0 %v7080
        %v7984 = vpop.f32.mrf.mxu0
        %v7985 = vadd.f32 0.0, %v7984
        %v7986 = vpop.f32.mrf.mxu0
        %v7987 = vadd.f32 0.0, %v7986
        %7988 = vmatmul.bf16.gmra.mxu0 %v7081
        %v7989 = vpop.f32.mrf.mxu0
        %v7990 = vadd.f32 0.0, %v7989
        %v7991 = vpop.f32.mrf.mxu0
        %v7992 = vadd.f32 0.0, %v7991
        %7993 = vmatmul.bf16.gmra.mxu0 %v7082
        %v7994 = vpop.f32.mrf.mxu0
        %v7995 = vadd.f32 0.0, %v7994
        %v7996 = vpop.f32.mrf.mxu0
        %v7997 = vadd.f32 0.0, %v7996
        %7998 = vmatmul.bf16.gmra.mxu0 %v7083
        %v7999 = vpop.f32.mrf.mxu0
        %v8000 = vadd.f32 0.0, %v7999
        %v8001 = vpop.f32.mrf.mxu0
        %v8002 = vadd.f32 0.0, %v8001
        %8003 = vmatmul.bf16.gmra.mxu0 %v7084
        %v8004 = vpop.f32.mrf.mxu0
        %v8005 = vadd.f32 0.0, %v8004
        %v8006 = vpop.f32.mrf.mxu0
        %v8007 = vadd.f32 0.0, %v8006
        %8008 = vmatmul.bf16.gmra.mxu0 %v7085
        %v8009 = vpop.f32.mrf.mxu0
        %v8010 = vadd.f32 0.0, %v8009
        %v8011 = vpop.f32.mrf.mxu0
        %v8012 = vadd.f32 0.0, %v8011
        %8013 = vmatmul.bf16.gmra.mxu0 %v7086
        %v8014 = vpop.f32.mrf.mxu0
        %v8015 = vadd.f32 0.0, %v8014
        %v8016 = vpop.f32.mrf.mxu0
        %v8017 = vadd.f32 0.0, %v8016
        %8018 = vmatmul.bf16.gmra.mxu0 %v7087
        %v8019 = vpop.f32.mrf.mxu0
        %v8020 = vadd.f32 0.0, %v8019
        %v8021 = vpop.f32.mrf.mxu0
        %v8022 = vadd.f32 0.0, %v8021
        %8023 = vdwg.mxu0
        %v8040 = vunpack.c.l.b16 %v7884
        %v8041 = vunpack.c.l.b16 %v7885
        %v8042 = vunpack.c.l.b16 %v7886
        %v8043 = vunpack.c.l.b16 %v7887
        %v8044 = vunpack.c.l.b16 %v7888
        %v8045 = vunpack.c.l.b16 %v7889
        %v8046 = vunpack.c.l.b16 %v7890
        %v8047 = vunpack.c.l.b16 %v7891
        %v8048 = vunpack.c.l.b16 %v7892
        %v8049 = vunpack.c.l.b16 %v7893
        %v8050 = vunpack.c.l.b16 %v7894
        %v8051 = vunpack.c.l.b16 %v7895
        %v8052 = vunpack.c.l.b16 %v7896
        %v8053 = vunpack.c.l.b16 %v7897
        %v8054 = vunpack.c.l.b16 %v7898
        %v8055 = vunpack.c.l.b16 %v7899
        %v8056 = vpack.c.b16 %v8041, %v8040
        %v8057 = vpack.c.b16 %v8043, %v8042
        %v8058 = vpack.c.b16 %v8045, %v8044
        %v8059 = vpack.c.b16 %v8047, %v8046
        %v8060 = vpack.c.b16 %v8049, %v8048
        %v8061 = vpack.c.b16 %v8051, %v8050
        %v8062 = vpack.c.b16 %v8053, %v8052
        %v8063 = vpack.c.b16 %v8055, %v8054
        %8072 = vmatpush.bf16.msra.mxu0 %v8063
        %8073 = vmatpush.bf16.msra.mxu0 %v8062
        %8074 = vmatpush.bf16.msra.mxu0 %v8061
        %8075 = vmatpush.bf16.msra.mxu0 %v8060
        %8076 = vmatpush.bf16.msra.mxu0 %v8059
        %8077 = vmatpush.bf16.msra.mxu0 %v8058
        %8078 = vmatpush.bf16.msra.mxu0 %v8057
        %8079 = vmatpush.bf16.msra.mxu0 %v8056
        %8080 = vmatmul.bf16.gmra.mxu0 %v7245
        %v8081 = vpop.f32.mrf.mxu0
        %v8082 = vadd.f32 %v7975, %v8081
        %v8083 = vpop.f32.mrf.mxu0
        %v8084 = vadd.f32 %v7977, %v8083
        %8085 = vmatmul.bf16.gmra.mxu0 %v7246
        %v8086 = vpop.f32.mrf.mxu0
        %v8087 = vadd.f32 %v7980, %v8086
        %v8088 = vpop.f32.mrf.mxu0
        %v8089 = vadd.f32 %v7982, %v8088
        %8090 = vmatmul.bf16.gmra.mxu0 %v7247
        %v8091 = vpop.f32.mrf.mxu0
        %v8092 = vadd.f32 %v7985, %v8091
        %v8093 = vpop.f32.mrf.mxu0
        %v8094 = vadd.f32 %v7987, %v8093
        %8095 = vmatmul.bf16.gmra.mxu0 %v7248
        %v8096 = vpop.f32.mrf.mxu0
        %v8097 = vadd.f32 %v7990, %v8096
        %v8098 = vpop.f32.mrf.mxu0
        %v8099 = vadd.f32 %v7992, %v8098
        %8100 = vmatmul.bf16.gmra.mxu0 %v7249
        %v8101 = vpop.f32.mrf.mxu0
        %v8102 = vadd.f32 %v7995, %v8101
        %v8103 = vpop.f32.mrf.mxu0
        %v8104 = vadd.f32 %v7997, %v8103
        %8105 = vmatmul.bf16.gmra.mxu0 %v7250
        %v8106 = vpop.f32.mrf.mxu0
        %v8107 = vadd.f32 %v8000, %v8106
        %v8108 = vpop.f32.mrf.mxu0
        %v8109 = vadd.f32 %v8002, %v8108
        %8110 = vmatmul.bf16.gmra.mxu0 %v7251
        %v8111 = vpop.f32.mrf.mxu0
        %v8112 = vadd.f32 %v8005, %v8111
        %v8113 = vpop.f32.mrf.mxu0
        %v8114 = vadd.f32 %v8007, %v8113
        %8115 = vmatmul.bf16.gmra.mxu0 %v7252
        %v8116 = vpop.f32.mrf.mxu0
        %v8117 = vadd.f32 %v8010, %v8116
        %v8118 = vpop.f32.mrf.mxu0
        %v8119 = vadd.f32 %v8012, %v8118
        %8120 = vmatmul.bf16.gmra.mxu0 %v7253
        %v8121 = vpop.f32.mrf.mxu0
        %v8122 = vadd.f32 %v8015, %v8121
        %v8123 = vpop.f32.mrf.mxu0
        %v8124 = vadd.f32 %v8017, %v8123
        %8125 = vmatmul.bf16.gmra.mxu0 %v7254
        %v8126 = vpop.f32.mrf.mxu0
        %v8127 = vadd.f32 %v8020, %v8126
        %v8128 = vpop.f32.mrf.mxu0
        %v8129 = vadd.f32 %v8022, %v8128
        %8130 = vdwg.mxu0
        %s8131 = scalar_lea.vmem %s3, 448
        %v8132 = vld [vmem:[%s8131] sm:$0xf]
        %v8133 = vld [vmem:[%s8131 + $0x4] sm:$0xf]
        %v8134 = vld [vmem:[%s8131 + $0x8] sm:$0xf]
        %v8135 = vld [vmem:[%s8131 + $0xc] sm:$0xf]
        %v8136 = vld [vmem:[%s8131 + $0x10] sm:$0xf]
        %v8137 = vld [vmem:[%s8131 + $0x14] sm:$0xf]
        %v8138 = vld [vmem:[%s8131 + $0x18] sm:$0xf]
        %v8139 = vld [vmem:[%s8131 + $0x1c] sm:$0xf]
        %v8140 = vld [vmem:[%s8131 + $0x20] sm:$0xf]
        %v8141 = vld [vmem:[%s8131 + $0x24] sm:$0xf]
        %v8142 = vld [vmem:[%s8131 + $0x28] sm:$0xf]
        %v8143 = vld [vmem:[%s8131 + $0x2c] sm:$0xf]
        %v8144 = vld [vmem:[%s8131 + $0x30] sm:$0xf]
        %v8145 = vld [vmem:[%s8131 + $0x34] sm:$0xf]
        %v8146 = vld [vmem:[%s8131 + $0x38] sm:$0xf]
        %v8147 = vld [vmem:[%s8131 + $0x3c] sm:$0xf]
        %v8164 = vunpack.c.l.b16 %v8132
        %v8165 = vunpack.c.l.b16 %v8133
        %v8166 = vunpack.c.l.b16 %v8134
        %v8167 = vunpack.c.l.b16 %v8135
        %v8168 = vunpack.c.l.b16 %v8136
        %v8169 = vunpack.c.l.b16 %v8137
        %v8170 = vunpack.c.l.b16 %v8138
        %v8171 = vunpack.c.l.b16 %v8139
        %v8172 = vunpack.c.l.b16 %v8140
        %v8173 = vunpack.c.l.b16 %v8141
        %v8174 = vunpack.c.l.b16 %v8142
        %v8175 = vunpack.c.l.b16 %v8143
        %v8176 = vunpack.c.l.b16 %v8144
        %v8177 = vunpack.c.l.b16 %v8145
        %v8178 = vunpack.c.l.b16 %v8146
        %v8179 = vunpack.c.l.b16 %v8147
        %v8180 = vpack.c.b16 %v8165, %v8164
        %v8181 = vpack.c.b16 %v8167, %v8166
        %v8182 = vpack.c.b16 %v8169, %v8168
        %v8183 = vpack.c.b16 %v8171, %v8170
        %v8184 = vpack.c.b16 %v8173, %v8172
        %v8185 = vpack.c.b16 %v8175, %v8174
        %v8186 = vpack.c.b16 %v8177, %v8176
        %v8187 = vpack.c.b16 %v8179, %v8178
        %8196 = vmatpush.bf16.msra.mxu0 %v8187
        %8197 = vmatpush.bf16.msra.mxu0 %v8186
        %8198 = vmatpush.bf16.msra.mxu0 %v8185
        %8199 = vmatpush.bf16.msra.mxu0 %v8184
        %8200 = vmatpush.bf16.msra.mxu0 %v8183
        %8201 = vmatpush.bf16.msra.mxu0 %v8182
        %8202 = vmatpush.bf16.msra.mxu0 %v8181
        %8203 = vmatpush.bf16.msra.mxu0 %v8180
        %8204 = vmatmul.bf16.gmra.mxu0 %v7247
        %v8205 = vpop.f32.mrf.mxu0
        %v8206 = vadd.f32 0.0, %v8205
        %v8207 = vpop.f32.mrf.mxu0
        %v8208 = vadd.f32 0.0, %v8207
        %8209 = vmatmul.bf16.gmra.mxu0 %v7248
        %v8210 = vpop.f32.mrf.mxu0
        %v8211 = vadd.f32 0.0, %v8210
        %v8212 = vpop.f32.mrf.mxu0
        %v8213 = vadd.f32 0.0, %v8212
        %8214 = vmatmul.bf16.gmra.mxu0 %v7249
        %v8215 = vpop.f32.mrf.mxu0
        %v8216 = vadd.f32 0.0, %v8215
        %v8217 = vpop.f32.mrf.mxu0
        %v8218 = vadd.f32 0.0, %v8217
        %8219 = vmatmul.bf16.gmra.mxu0 %v7250
        %v8220 = vpop.f32.mrf.mxu0
        %v8221 = vadd.f32 0.0, %v8220
        %v8222 = vpop.f32.mrf.mxu0
        %v8223 = vadd.f32 0.0, %v8222
        %8224 = vmatmul.bf16.gmra.mxu0 %v7251
        %v8225 = vpop.f32.mrf.mxu0
        %v8226 = vadd.f32 0.0, %v8225
        %v8227 = vpop.f32.mrf.mxu0
        %v8228 = vadd.f32 0.0, %v8227
        %8229 = vmatmul.bf16.gmra.mxu0 %v7252
        %v8230 = vpop.f32.mrf.mxu0
        %v8231 = vadd.f32 0.0, %v8230
        %v8232 = vpop.f32.mrf.mxu0
        %v8233 = vadd.f32 0.0, %v8232
        %8234 = vmatmul.bf16.gmra.mxu0 %v7253
        %v8235 = vpop.f32.mrf.mxu0
        %v8236 = vadd.f32 0.0, %v8235
        %v8237 = vpop.f32.mrf.mxu0
        %v8238 = vadd.f32 0.0, %v8237
        %8239 = vmatmul.bf16.gmra.mxu0 %v7254
        %v8240 = vpop.f32.mrf.mxu0
        %v8241 = vadd.f32 0.0, %v8240
        %v8242 = vpop.f32.mrf.mxu0
        %v8243 = vadd.f32 0.0, %v8242
        %8244 = vmatmul.bf16.gmra.mxu0 %v7397
        %v8245 = vpop.f32.mrf.mxu0
        %v8246 = vadd.f32 0.0, %v8245
        %v8247 = vpop.f32.mrf.mxu0
        %v8248 = vadd.f32 0.0, %v8247
        %8249 = vmatmul.bf16.gmra.mxu0 %v7398
        %v8250 = vpop.f32.mrf.mxu0
        %v8251 = vadd.f32 0.0, %v8250
        %v8252 = vpop.f32.mrf.mxu0
        %v8253 = vadd.f32 0.0, %v8252
        %8254 = vdwg.mxu0
        %v8255 = vadd.f32 %v8082, %v8206
        %v8256 = vadd.f32 %v8084, %v8208
        %v8257 = vadd.f32 %v8087, %v8211
        %v8258 = vadd.f32 %v8089, %v8213
        %v8259 = vadd.f32 %v8092, %v8216
        %v8260 = vadd.f32 %v8094, %v8218
        %v8261 = vadd.f32 %v8097, %v8221
        %v8262 = vadd.f32 %v8099, %v8223
        %v8263 = vadd.f32 %v8102, %v8226
        %v8264 = vadd.f32 %v8104, %v8228
        %v8265 = vadd.f32 %v8107, %v8231
        %v8266 = vadd.f32 %v8109, %v8233
        %v8267 = vadd.f32 %v8112, %v8236
        %v8268 = vadd.f32 %v8114, %v8238
        %v8269 = vadd.f32 %v8117, %v8241
        %v8270 = vadd.f32 %v8119, %v8243
        %v8271 = vadd.f32 %v8122, %v8246
        %v8272 = vadd.f32 %v8124, %v8248
        %v8273 = vadd.f32 %v8127, %v8251
        %v8274 = vadd.f32 %v8129, %v8253
        %s8275 = scalar_lea.vmem %s3, 512
        %v8276 = vld [vmem:[%s8275] sm:$0xf]
        %v8277 = vld [vmem:[%s8275 + $0x4] sm:$0xf]
        %v8278 = vld [vmem:[%s8275 + $0x8] sm:$0xf]
        %v8279 = vld [vmem:[%s8275 + $0xc] sm:$0xf]
        %v8280 = vld [vmem:[%s8275 + $0x10] sm:$0xf]
        %v8281 = vld [vmem:[%s8275 + $0x14] sm:$0xf]
        %v8282 = vld [vmem:[%s8275 + $0x18] sm:$0xf]
        %v8283 = vld [vmem:[%s8275 + $0x1c] sm:$0xf]
        %v8284 = vld [vmem:[%s8275 + $0x20] sm:$0xf]
        %v8285 = vld [vmem:[%s8275 + $0x24] sm:$0xf]
        %v8286 = vld [vmem:[%s8275 + $0x28] sm:$0xf]
        %v8287 = vld [vmem:[%s8275 + $0x2c] sm:$0xf]
        %v8288 = vld [vmem:[%s8275 + $0x30] sm:$0xf]
        %v8289 = vld [vmem:[%s8275 + $0x34] sm:$0xf]
        %v8290 = vld [vmem:[%s8275 + $0x38] sm:$0xf]
        %v8291 = vld [vmem:[%s8275 + $0x3c] sm:$0xf]
        %v8308 = vunpack.c.l.b16 %v8276
        %v8309 = vunpack.c.l.b16 %v8277
        %v8310 = vunpack.c.l.b16 %v8278
        %v8311 = vunpack.c.l.b16 %v8279
        %v8312 = vunpack.c.l.b16 %v8280
        %v8313 = vunpack.c.l.b16 %v8281
        %v8314 = vunpack.c.l.b16 %v8282
        %v8315 = vunpack.c.l.b16 %v8283
        %v8316 = vunpack.c.l.b16 %v8284
        %v8317 = vunpack.c.l.b16 %v8285
        %v8318 = vunpack.c.l.b16 %v8286
        %v8319 = vunpack.c.l.b16 %v8287
        %v8320 = vunpack.c.l.b16 %v8288
        %v8321 = vunpack.c.l.b16 %v8289
        %v8322 = vunpack.c.l.b16 %v8290
        %v8323 = vunpack.c.l.b16 %v8291
        %v8324 = vpack.c.b16 %v8309, %v8308
        %v8325 = vpack.c.b16 %v8311, %v8310
        %v8326 = vpack.c.b16 %v8313, %v8312
        %v8327 = vpack.c.b16 %v8315, %v8314
        %v8328 = vpack.c.b16 %v8317, %v8316
        %v8329 = vpack.c.b16 %v8319, %v8318
        %v8330 = vpack.c.b16 %v8321, %v8320
        %v8331 = vpack.c.b16 %v8323, %v8322
        %8340 = vmatpush.bf16.msra.mxu0 %v8331
        %8341 = vmatpush.bf16.msra.mxu0 %v8330
        %8342 = vmatpush.bf16.msra.mxu0 %v8329
        %8343 = vmatpush.bf16.msra.mxu0 %v8328
        %8344 = vmatpush.bf16.msra.mxu0 %v8327
        %8345 = vmatpush.bf16.msra.mxu0 %v8326
        %8346 = vmatpush.bf16.msra.mxu0 %v8325
        %8347 = vmatpush.bf16.msra.mxu0 %v8324
        %8348 = vmatmul.bf16.gmra.mxu0 %v7080
        %v8349 = vpop.f32.mrf.mxu0
        %v8350 = vadd.f32 0.0, %v8349
        %v8351 = vpop.f32.mrf.mxu0
        %v8352 = vadd.f32 0.0, %v8351
        %8353 = vmatmul.bf16.gmra.mxu0 %v7081
        %v8354 = vpop.f32.mrf.mxu0
        %v8355 = vadd.f32 0.0, %v8354
        %v8356 = vpop.f32.mrf.mxu0
        %v8357 = vadd.f32 0.0, %v8356
        %8358 = vmatmul.bf16.gmra.mxu0 %v7082
        %v8359 = vpop.f32.mrf.mxu0
        %v8360 = vadd.f32 0.0, %v8359
        %v8361 = vpop.f32.mrf.mxu0
        %v8362 = vadd.f32 0.0, %v8361
        %8363 = vmatmul.bf16.gmra.mxu0 %v7083
        %v8364 = vpop.f32.mrf.mxu0
        %v8365 = vadd.f32 0.0, %v8364
        %v8366 = vpop.f32.mrf.mxu0
        %v8367 = vadd.f32 0.0, %v8366
        %8368 = vmatmul.bf16.gmra.mxu0 %v7084
        %v8369 = vpop.f32.mrf.mxu0
        %v8370 = vadd.f32 0.0, %v8369
        %v8371 = vpop.f32.mrf.mxu0
        %v8372 = vadd.f32 0.0, %v8371
        %8373 = vmatmul.bf16.gmra.mxu0 %v7085
        %v8374 = vpop.f32.mrf.mxu0
        %v8375 = vadd.f32 0.0, %v8374
        %v8376 = vpop.f32.mrf.mxu0
        %v8377 = vadd.f32 0.0, %v8376
        %8378 = vmatmul.bf16.gmra.mxu0 %v7086
        %v8379 = vpop.f32.mrf.mxu0
        %v8380 = vadd.f32 0.0, %v8379
        %v8381 = vpop.f32.mrf.mxu0
        %v8382 = vadd.f32 0.0, %v8381
        %8383 = vmatmul.bf16.gmra.mxu0 %v7087
        %v8384 = vpop.f32.mrf.mxu0
        %v8385 = vadd.f32 0.0, %v8384
        %v8386 = vpop.f32.mrf.mxu0
        %v8387 = vadd.f32 0.0, %v8386
        %8388 = vmatmul.bf16.gmra.mxu0 %v7553
        %v8389 = vpop.f32.mrf.mxu0
        %v8390 = vadd.f32 0.0, %v8389
        %v8391 = vpop.f32.mrf.mxu0
        %v8392 = vadd.f32 0.0, %v8391
        %8393 = vmatmul.bf16.gmra.mxu0 %v7554
        %v8394 = vpop.f32.mrf.mxu0
        %v8395 = vadd.f32 0.0, %v8394
        %v8396 = vpop.f32.mrf.mxu0
        %v8397 = vadd.f32 0.0, %v8396
        %8398 = vdwg.mxu0
        %v8399 = vadd.f32 %v8255, %v8350
        %v8400 = vadd.f32 %v8256, %v8352
        %v8401 = vadd.f32 %v8257, %v8355
        %v8402 = vadd.f32 %v8258, %v8357
        %v8403 = vadd.f32 %v8259, %v8360
        %v8404 = vadd.f32 %v8260, %v8362
        %v8405 = vadd.f32 %v8261, %v8365
        %v8406 = vadd.f32 %v8262, %v8367
        %v8407 = vadd.f32 %v8263, %v8370
        %v8408 = vadd.f32 %v8264, %v8372
        %v8409 = vadd.f32 %v8265, %v8375
        %v8410 = vadd.f32 %v8266, %v8377
        %v8411 = vadd.f32 %v8267, %v8380
        %v8412 = vadd.f32 %v8268, %v8382
        %v8413 = vadd.f32 %v8269, %v8385
        %v8414 = vadd.f32 %v8270, %v8387
        %v8415 = vadd.f32 %v8271, %v8390
        %v8416 = vadd.f32 %v8272, %v8392
        %v8417 = vadd.f32 %v8273, %v8395
        %v8418 = vadd.f32 %v8274, %v8397
        %s8419 = scalar_lea.vmem %s3, 576
        %v8420 = vld [vmem:[%s8419] sm:$0xf]
        %v8421 = vld [vmem:[%s8419 + $0x4] sm:$0xf]
        %v8422 = vld [vmem:[%s8419 + $0x8] sm:$0xf]
        %v8423 = vld [vmem:[%s8419 + $0xc] sm:$0xf]
        %v8424 = vld [vmem:[%s8419 + $0x10] sm:$0xf]
        %v8425 = vld [vmem:[%s8419 + $0x14] sm:$0xf]
        %v8426 = vld [vmem:[%s8419 + $0x18] sm:$0xf]
        %v8427 = vld [vmem:[%s8419 + $0x1c] sm:$0xf]
        %v8428 = vld [vmem:[%s8419 + $0x20] sm:$0xf]
        %v8429 = vld [vmem:[%s8419 + $0x24] sm:$0xf]
        %v8430 = vld [vmem:[%s8419 + $0x28] sm:$0xf]
        %v8431 = vld [vmem:[%s8419 + $0x2c] sm:$0xf]
        %v8432 = vld [vmem:[%s8419 + $0x30] sm:$0xf]
        %v8433 = vld [vmem:[%s8419 + $0x34] sm:$0xf]
        %v8434 = vld [vmem:[%s8419 + $0x38] sm:$0xf]
        %v8435 = vld [vmem:[%s8419 + $0x3c] sm:$0xf]
        %v8452 = vunpack.c.l.b16 %v8420
        %v8453 = vunpack.c.l.b16 %v8421
        %v8454 = vunpack.c.l.b16 %v8422
        %v8455 = vunpack.c.l.b16 %v8423
        %v8456 = vunpack.c.l.b16 %v8424
        %v8457 = vunpack.c.l.b16 %v8425
        %v8458 = vunpack.c.l.b16 %v8426
        %v8459 = vunpack.c.l.b16 %v8427
        %v8460 = vunpack.c.l.b16 %v8428
        %v8461 = vunpack.c.l.b16 %v8429
        %v8462 = vunpack.c.l.b16 %v8430
        %v8463 = vunpack.c.l.b16 %v8431
        %v8464 = vunpack.c.l.b16 %v8432
        %v8465 = vunpack.c.l.b16 %v8433
        %v8466 = vunpack.c.l.b16 %v8434
        %v8467 = vunpack.c.l.b16 %v8435
        %v8468 = vpack.c.b16 %v8453, %v8452
        %v8469 = vpack.c.b16 %v8455, %v8454
        %v8470 = vpack.c.b16 %v8457, %v8456
        %v8471 = vpack.c.b16 %v8459, %v8458
        %v8472 = vpack.c.b16 %v8461, %v8460
        %v8473 = vpack.c.b16 %v8463, %v8462
        %v8474 = vpack.c.b16 %v8465, %v8464
        %v8475 = vpack.c.b16 %v8467, %v8466
        %8484 = vmatpush.bf16.msra.mxu0 %v8475
        %8485 = vmatpush.bf16.msra.mxu0 %v8474
        %8486 = vmatpush.bf16.msra.mxu0 %v8473
        %8487 = vmatpush.bf16.msra.mxu0 %v8472
        %8488 = vmatpush.bf16.msra.mxu0 %v8471
        %8489 = vmatpush.bf16.msra.mxu0 %v8470
        %8490 = vmatpush.bf16.msra.mxu0 %v8469
        %8491 = vmatpush.bf16.msra.mxu0 %v8468
        %8492 = vmatmul.bf16.gmra.mxu0 %v7249
        %v8493 = vpop.f32.mrf.mxu0
        %v8494 = vadd.f32 0.0, %v8493
        %v8495 = vpop.f32.mrf.mxu0
        %v8496 = vadd.f32 0.0, %v8495
        %8497 = vmatmul.bf16.gmra.mxu0 %v7250
        %v8498 = vpop.f32.mrf.mxu0
        %v8499 = vadd.f32 0.0, %v8498
        %v8500 = vpop.f32.mrf.mxu0
        %v8501 = vadd.f32 0.0, %v8500
        %8502 = vmatmul.bf16.gmra.mxu0 %v7251
        %v8503 = vpop.f32.mrf.mxu0
        %v8504 = vadd.f32 0.0, %v8503
        %v8505 = vpop.f32.mrf.mxu0
        %v8506 = vadd.f32 0.0, %v8505
        %8507 = vmatmul.bf16.gmra.mxu0 %v7252
        %v8508 = vpop.f32.mrf.mxu0
        %v8509 = vadd.f32 0.0, %v8508
        %v8510 = vpop.f32.mrf.mxu0
        %v8511 = vadd.f32 0.0, %v8510
        %8512 = vmatmul.bf16.gmra.mxu0 %v7253
        %v8513 = vpop.f32.mrf.mxu0
        %v8514 = vadd.f32 0.0, %v8513
        %v8515 = vpop.f32.mrf.mxu0
        %v8516 = vadd.f32 0.0, %v8515
        %8517 = vmatmul.bf16.gmra.mxu0 %v7254
        %v8518 = vpop.f32.mrf.mxu0
        %v8519 = vadd.f32 0.0, %v8518
        %v8520 = vpop.f32.mrf.mxu0
        %v8521 = vadd.f32 0.0, %v8520
        %8522 = vmatmul.bf16.gmra.mxu0 %v7397
        %v8523 = vpop.f32.mrf.mxu0
        %v8524 = vadd.f32 0.0, %v8523
        %v8525 = vpop.f32.mrf.mxu0
        %v8526 = vadd.f32 0.0, %v8525
        %8527 = vmatmul.bf16.gmra.mxu0 %v7398
        %v8528 = vpop.f32.mrf.mxu0
        %v8529 = vadd.f32 0.0, %v8528
        %v8530 = vpop.f32.mrf.mxu0
        %v8531 = vadd.f32 0.0, %v8530
        %8532 = vmatmul.bf16.gmra.mxu0 %v7709
        %v8533 = vpop.f32.mrf.mxu0
        %v8534 = vadd.f32 0.0, %v8533
        %v8535 = vpop.f32.mrf.mxu0
        %v8536 = vadd.f32 0.0, %v8535
        %8537 = vmatmul.bf16.gmra.mxu0 %v7710
        %v8538 = vpop.f32.mrf.mxu0
        %v8539 = vadd.f32 0.0, %v8538
        %v8540 = vpop.f32.mrf.mxu0
        %v8541 = vadd.f32 0.0, %v8540
        %8542 = vdwg.mxu0
        %v8543 = vadd.f32 %v8399, %v8494
        %v8544 = vadd.f32 %v8400, %v8496
        %v8545 = vadd.f32 %v8401, %v8499
        %v8546 = vadd.f32 %v8402, %v8501
        %v8547 = vadd.f32 %v8403, %v8504
        %v8548 = vadd.f32 %v8404, %v8506
        %v8549 = vadd.f32 %v8405, %v8509
        %v8550 = vadd.f32 %v8406, %v8511
        %v8551 = vadd.f32 %v8407, %v8514
        %v8552 = vadd.f32 %v8408, %v8516
        %v8553 = vadd.f32 %v8409, %v8519
        %v8554 = vadd.f32 %v8410, %v8521
        %v8555 = vadd.f32 %v8411, %v8524
        %v8556 = vadd.f32 %v8412, %v8526
        %v8557 = vadd.f32 %v8413, %v8529
        %v8558 = vadd.f32 %v8414, %v8531
        %v8559 = vadd.f32 %v8415, %v8534
        %v8560 = vadd.f32 %v8416, %v8536
        %v8561 = vadd.f32 %v8417, %v8539
        %v8562 = vadd.f32 %v8418, %v8541
        %v8563 = vadd.f32 %v8543, %v7841
        %v8564 = vadd.f32 %v8544, %v7841
        %v8565 = vadd.f32 %v8545, %v7841
        %v8566 = vadd.f32 %v8546, %v7841
        %v8567 = vadd.f32 %v8547, %v7841
        %v8568 = vadd.f32 %v8548, %v7841
        %v8569 = vadd.f32 %v8549, %v7841
        %v8570 = vadd.f32 %v8550, %v7841
        %v8571 = vadd.f32 %v8551, %v7841
        %v8572 = vadd.f32 %v8552, %v7841
        %v8573 = vadd.f32 %v8553, %v7841
        %v8574 = vadd.f32 %v8554, %v7841
        %v8575 = vadd.f32 %v8555, %v7841
        %v8576 = vadd.f32 %v8556, %v7841
        %v8577 = vadd.f32 %v8557, %v7841
        %v8578 = vadd.f32 %v8558, %v7841
        %v8579 = vadd.f32 %v8559, %v7841
        %v8580 = vadd.f32 %v8560, %v7841
        %v8581 = vadd.f32 %v8561, %v7841
        %v8582 = vadd.f32 %v8562, %v7841
        %v8583 = vmax.f32 %v8563, 0.0
        %v8584 = vmax.f32 %v8564, 0.0
        %v8585 = vmax.f32 %v8565, 0.0
        %v8586 = vmax.f32 %v8566, 0.0
        %v8587 = vmax.f32 %v8567, 0.0
        %v8588 = vmax.f32 %v8568, 0.0
        %v8589 = vmax.f32 %v8569, 0.0
        %v8590 = vmax.f32 %v8570, 0.0
        %v8591 = vmax.f32 %v8571, 0.0
        %v8592 = vmax.f32 %v8572, 0.0
        %v8593 = vmax.f32 %v8573, 0.0
        %v8594 = vmax.f32 %v8574, 0.0
        %v8595 = vmax.f32 %v8575, 0.0
        %v8596 = vmax.f32 %v8576, 0.0
        %v8597 = vmax.f32 %v8577, 0.0
        %v8598 = vmax.f32 %v8578, 0.0
        %v8599 = vmax.f32 %v8579, 0.0
        %v8600 = vmax.f32 %v8580, 0.0
        %v8601 = vmax.f32 %v8581, 0.0
        %v8602 = vmax.f32 %v8582, 0.0
        %v8603 = vmax.f32 %v7863, %v8583
        %v8604 = vmax.f32 %v7864, %v8584
        %v8605 = vmax.f32 %v7865, %v8585
        %v8606 = vmax.f32 %v7866, %v8586
        %v8607 = vmax.f32 %v7867, %v8587
        %v8608 = vmax.f32 %v7868, %v8588
        %v8609 = vmax.f32 %v7869, %v8589
        %v8610 = vmax.f32 %v7870, %v8590
        %v8611 = vmax.f32 %v7871, %v8591
        %v8612 = vmax.f32 %v7872, %v8592
        %v8613 = vmax.f32 %v7873, %v8593
        %v8614 = vmax.f32 %v7874, %v8594
        %v8615 = vmax.f32 %v7875, %v8595
        %v8616 = vmax.f32 %v7876, %v8596
        %v8617 = vmax.f32 %v7877, %v8597
        %v8618 = vmax.f32 %v7878, %v8598
        %v8619 = vmax.f32 %v7879, %v8599
        %v8620 = vmax.f32 %v7880, %v8600
        %v8621 = vmax.f32 %v7881, %v8601
        %v8622 = vmax.f32 %v7882, %v8602
        %8623 = vmatpush.bf16.msra.mxu0 %v7137
        %8624 = vmatpush.bf16.msra.mxu0 %v7136
        %8625 = vmatpush.bf16.msra.mxu0 %v7135
        %8626 = vmatpush.bf16.msra.mxu0 %v7134
        %8627 = vmatpush.bf16.msra.mxu0 %v7133
        %8628 = vmatpush.bf16.msra.mxu0 %v7132
        %8629 = vmatpush.bf16.msra.mxu0 %v7131
        %8630 = vmatpush.bf16.msra.mxu0 %v7130
        %8631 = vmatmul.bf16.gmra.mxu0 %v7247
        %v8632 = vpop.f32.mrf.mxu0
        %v8633 = vadd.f32 0.0, %v8632
        %v8634 = vpop.f32.mrf.mxu0
        %v8635 = vadd.f32 0.0, %v8634
        %8636 = vmatmul.bf16.gmra.mxu0 %v7248
        %v8637 = vpop.f32.mrf.mxu0
        %v8638 = vadd.f32 0.0, %v8637
        %v8639 = vpop.f32.mrf.mxu0
        %v8640 = vadd.f32 0.0, %v8639
        %8641 = vmatmul.bf16.gmra.mxu0 %v7249
        %v8642 = vpop.f32.mrf.mxu0
        %v8643 = vadd.f32 0.0, %v8642
        %v8644 = vpop.f32.mrf.mxu0
        %v8645 = vadd.f32 0.0, %v8644
        %8646 = vmatmul.bf16.gmra.mxu0 %v7250
        %v8647 = vpop.f32.mrf.mxu0
        %v8648 = vadd.f32 0.0, %v8647
        %v8649 = vpop.f32.mrf.mxu0
        %v8650 = vadd.f32 0.0, %v8649
        %8651 = vmatmul.bf16.gmra.mxu0 %v7251
        %v8652 = vpop.f32.mrf.mxu0
        %v8653 = vadd.f32 0.0, %v8652
        %v8654 = vpop.f32.mrf.mxu0
        %v8655 = vadd.f32 0.0, %v8654
        %8656 = vmatmul.bf16.gmra.mxu0 %v7252
        %v8657 = vpop.f32.mrf.mxu0
        %v8658 = vadd.f32 0.0, %v8657
        %v8659 = vpop.f32.mrf.mxu0
        %v8660 = vadd.f32 0.0, %v8659
        %8661 = vmatmul.bf16.gmra.mxu0 %v7253
        %v8662 = vpop.f32.mrf.mxu0
        %v8663 = vadd.f32 0.0, %v8662
        %v8664 = vpop.f32.mrf.mxu0
        %v8665 = vadd.f32 0.0, %v8664
        %8666 = vmatmul.bf16.gmra.mxu0 %v7254
        %v8667 = vpop.f32.mrf.mxu0
        %v8668 = vadd.f32 0.0, %v8667
        %v8669 = vpop.f32.mrf.mxu0
        %v8670 = vadd.f32 0.0, %v8669
        %8671 = vmatmul.bf16.gmra.mxu0 %v7397
        %v8672 = vpop.f32.mrf.mxu0
        %v8673 = vadd.f32 0.0, %v8672
        %v8674 = vpop.f32.mrf.mxu0
        %v8675 = vadd.f32 0.0, %v8674
        %8676 = vmatmul.bf16.gmra.mxu0 %v7398
        %v8677 = vpop.f32.mrf.mxu0
        %v8678 = vadd.f32 0.0, %v8677
        %v8679 = vpop.f32.mrf.mxu0
        %v8680 = vadd.f32 0.0, %v8679
        %8681 = vdwg.mxu0
        %8682 = vmatpush.bf16.msra.mxu0 %v7304
        %8683 = vmatpush.bf16.msra.mxu0 %v7303
        %8684 = vmatpush.bf16.msra.mxu0 %v7302
        %8685 = vmatpush.bf16.msra.mxu0 %v7301
        %8686 = vmatpush.bf16.msra.mxu0 %v7300
        %8687 = vmatpush.bf16.msra.mxu0 %v7299
        %8688 = vmatpush.bf16.msra.mxu0 %v7298
        %8689 = vmatpush.bf16.msra.mxu0 %v7297
        %8690 = vmatmul.bf16.gmra.mxu0 %v7078
        %v8691 = vpop.f32.mrf.mxu0
        %v8692 = vadd.f32 %v8633, %v8691
        %v8693 = vpop.f32.mrf.mxu0
        %v8694 = vadd.f32 %v8635, %v8693
        %8695 = vmatmul.bf16.gmra.mxu0 %v7079
        %v8696 = vpop.f32.mrf.mxu0
        %v8697 = vadd.f32 %v8638, %v8696
        %v8698 = vpop.f32.mrf.mxu0
        %v8699 = vadd.f32 %v8640, %v8698
        %8700 = vmatmul.bf16.gmra.mxu0 %v7080
        %v8701 = vpop.f32.mrf.mxu0
        %v8702 = vadd.f32 %v8643, %v8701
        %v8703 = vpop.f32.mrf.mxu0
        %v8704 = vadd.f32 %v8645, %v8703
        %8705 = vmatmul.bf16.gmra.mxu0 %v7081
        %v8706 = vpop.f32.mrf.mxu0
        %v8707 = vadd.f32 %v8648, %v8706
        %v8708 = vpop.f32.mrf.mxu0
        %v8709 = vadd.f32 %v8650, %v8708
        %8710 = vmatmul.bf16.gmra.mxu0 %v7082
        %v8711 = vpop.f32.mrf.mxu0
        %v8712 = vadd.f32 %v8653, %v8711
        %v8713 = vpop.f32.mrf.mxu0
        %v8714 = vadd.f32 %v8655, %v8713
        %8715 = vmatmul.bf16.gmra.mxu0 %v7083
        %v8716 = vpop.f32.mrf.mxu0
        %v8717 = vadd.f32 %v8658, %v8716
        %v8718 = vpop.f32.mrf.mxu0
        %v8719 = vadd.f32 %v8660, %v8718
        %8720 = vmatmul.bf16.gmra.mxu0 %v7084
        %v8721 = vpop.f32.mrf.mxu0
        %v8722 = vadd.f32 %v8663, %v8721
        %v8723 = vpop.f32.mrf.mxu0
        %v8724 = vadd.f32 %v8665, %v8723
        %8725 = vmatmul.bf16.gmra.mxu0 %v7085
        %v8726 = vpop.f32.mrf.mxu0
        %v8727 = vadd.f32 %v8668, %v8726
        %v8728 = vpop.f32.mrf.mxu0
        %v8729 = vadd.f32 %v8670, %v8728
        %8730 = vmatmul.bf16.gmra.mxu0 %v7086
        %v8731 = vpop.f32.mrf.mxu0
        %v8732 = vadd.f32 %v8673, %v8731
        %v8733 = vpop.f32.mrf.mxu0
        %v8734 = vadd.f32 %v8675, %v8733
        %8735 = vmatmul.bf16.gmra.mxu0 %v7087
        %v8736 = vpop.f32.mrf.mxu0
        %v8737 = vadd.f32 %v8678, %v8736
        %v8738 = vpop.f32.mrf.mxu0
        %v8739 = vadd.f32 %v8680, %v8738
        %8740 = vdwg.mxu0
        %8741 = vmatpush.bf16.msra.mxu0 %v7440
        %8742 = vmatpush.bf16.msra.mxu0 %v7439
        %8743 = vmatpush.bf16.msra.mxu0 %v7438
        %8744 = vmatpush.bf16.msra.mxu0 %v7437
        %8745 = vmatpush.bf16.msra.mxu0 %v7436
        %8746 = vmatpush.bf16.msra.mxu0 %v7435
        %8747 = vmatpush.bf16.msra.mxu0 %v7434
        %8748 = vmatpush.bf16.msra.mxu0 %v7433
        %8749 = vmatmul.bf16.gmra.mxu0 %v7080
        %v8750 = vpop.f32.mrf.mxu0
        %v8751 = vadd.f32 0.0, %v8750
        %v8752 = vpop.f32.mrf.mxu0
        %v8753 = vadd.f32 0.0, %v8752
        %8754 = vmatmul.bf16.gmra.mxu0 %v7081
        %v8755 = vpop.f32.mrf.mxu0
        %v8756 = vadd.f32 0.0, %v8755
        %v8757 = vpop.f32.mrf.mxu0
        %v8758 = vadd.f32 0.0, %v8757
        %8759 = vmatmul.bf16.gmra.mxu0 %v7082
        %v8760 = vpop.f32.mrf.mxu0
        %v8761 = vadd.f32 0.0, %v8760
        %v8762 = vpop.f32.mrf.mxu0
        %v8763 = vadd.f32 0.0, %v8762
        %8764 = vmatmul.bf16.gmra.mxu0 %v7083
        %v8765 = vpop.f32.mrf.mxu0
        %v8766 = vadd.f32 0.0, %v8765
        %v8767 = vpop.f32.mrf.mxu0
        %v8768 = vadd.f32 0.0, %v8767
        %8769 = vmatmul.bf16.gmra.mxu0 %v7084
        %v8770 = vpop.f32.mrf.mxu0
        %v8771 = vadd.f32 0.0, %v8770
        %v8772 = vpop.f32.mrf.mxu0
        %v8773 = vadd.f32 0.0, %v8772
        %8774 = vmatmul.bf16.gmra.mxu0 %v7085
        %v8775 = vpop.f32.mrf.mxu0
        %v8776 = vadd.f32 0.0, %v8775
        %v8777 = vpop.f32.mrf.mxu0
        %v8778 = vadd.f32 0.0, %v8777
        %8779 = vmatmul.bf16.gmra.mxu0 %v7086
        %v8780 = vpop.f32.mrf.mxu0
        %v8781 = vadd.f32 0.0, %v8780
        %v8782 = vpop.f32.mrf.mxu0
        %v8783 = vadd.f32 0.0, %v8782
        %8784 = vmatmul.bf16.gmra.mxu0 %v7087
        %v8785 = vpop.f32.mrf.mxu0
        %v8786 = vadd.f32 0.0, %v8785
        %v8787 = vpop.f32.mrf.mxu0
        %v8788 = vadd.f32 0.0, %v8787
        %8789 = vmatmul.bf16.gmra.mxu0 %v7553
        %v8790 = vpop.f32.mrf.mxu0
        %v8791 = vadd.f32 0.0, %v8790
        %v8792 = vpop.f32.mrf.mxu0
        %v8793 = vadd.f32 0.0, %v8792
        %8794 = vmatmul.bf16.gmra.mxu0 %v7554
        %v8795 = vpop.f32.mrf.mxu0
        %v8796 = vadd.f32 0.0, %v8795
        %v8797 = vpop.f32.mrf.mxu0
        %v8798 = vadd.f32 0.0, %v8797
        %8799 = vdwg.mxu0
        %v8800 = vadd.f32 %v8692, %v8751
        %v8801 = vadd.f32 %v8694, %v8753
        %v8802 = vadd.f32 %v8697, %v8756
        %v8803 = vadd.f32 %v8699, %v8758
        %v8804 = vadd.f32 %v8702, %v8761
        %v8805 = vadd.f32 %v8704, %v8763
        %v8806 = vadd.f32 %v8707, %v8766
        %v8807 = vadd.f32 %v8709, %v8768
        %v8808 = vadd.f32 %v8712, %v8771
        %v8809 = vadd.f32 %v8714, %v8773
        %v8810 = vadd.f32 %v8717, %v8776
        %v8811 = vadd.f32 %v8719, %v8778
        %v8812 = vadd.f32 %v8722, %v8781
        %v8813 = vadd.f32 %v8724, %v8783
        %v8814 = vadd.f32 %v8727, %v8786
        %v8815 = vadd.f32 %v8729, %v8788
        %v8816 = vadd.f32 %v8732, %v8791
        %v8817 = vadd.f32 %v8734, %v8793
        %v8818 = vadd.f32 %v8737, %v8796
        %v8819 = vadd.f32 %v8739, %v8798
        %8820 = vmatpush.bf16.msra.mxu0 %v7596
        %8821 = vmatpush.bf16.msra.mxu0 %v7595
        %8822 = vmatpush.bf16.msra.mxu0 %v7594
        %8823 = vmatpush.bf16.msra.mxu0 %v7593
        %8824 = vmatpush.bf16.msra.mxu0 %v7592
        %8825 = vmatpush.bf16.msra.mxu0 %v7591
        %8826 = vmatpush.bf16.msra.mxu0 %v7590
        %8827 = vmatpush.bf16.msra.mxu0 %v7589
        %8828 = vmatmul.bf16.gmra.mxu0 %v7249
        %v8829 = vpop.f32.mrf.mxu0
        %v8830 = vadd.f32 0.0, %v8829
        %v8831 = vpop.f32.mrf.mxu0
        %v8832 = vadd.f32 0.0, %v8831
        %8833 = vmatmul.bf16.gmra.mxu0 %v7250
        %v8834 = vpop.f32.mrf.mxu0
        %v8835 = vadd.f32 0.0, %v8834
        %v8836 = vpop.f32.mrf.mxu0
        %v8837 = vadd.f32 0.0, %v8836
        %8838 = vmatmul.bf16.gmra.mxu0 %v7251
        %v8839 = vpop.f32.mrf.mxu0
        %v8840 = vadd.f32 0.0, %v8839
        %v8841 = vpop.f32.mrf.mxu0
        %v8842 = vadd.f32 0.0, %v8841
        %8843 = vmatmul.bf16.gmra.mxu0 %v7252
        %v8844 = vpop.f32.mrf.mxu0
        %v8845 = vadd.f32 0.0, %v8844
        %v8846 = vpop.f32.mrf.mxu0
        %v8847 = vadd.f32 0.0, %v8846
        %8848 = vmatmul.bf16.gmra.mxu0 %v7253
        %v8849 = vpop.f32.mrf.mxu0
        %v8850 = vadd.f32 0.0, %v8849
        %v8851 = vpop.f32.mrf.mxu0
        %v8852 = vadd.f32 0.0, %v8851
        %8853 = vmatmul.bf16.gmra.mxu0 %v7254
        %v8854 = vpop.f32.mrf.mxu0
        %v8855 = vadd.f32 0.0, %v8854
        %v8856 = vpop.f32.mrf.mxu0
        %v8857 = vadd.f32 0.0, %v8856
        %8858 = vmatmul.bf16.gmra.mxu0 %v7397
        %v8859 = vpop.f32.mrf.mxu0
        %v8860 = vadd.f32 0.0, %v8859
        %v8861 = vpop.f32.mrf.mxu0
        %v8862 = vadd.f32 0.0, %v8861
        %8863 = vmatmul.bf16.gmra.mxu0 %v7398
        %v8864 = vpop.f32.mrf.mxu0
        %v8865 = vadd.f32 0.0, %v8864
        %v8866 = vpop.f32.mrf.mxu0
        %v8867 = vadd.f32 0.0, %v8866
        %8868 = vmatmul.bf16.gmra.mxu0 %v7709
        %v8869 = vpop.f32.mrf.mxu0
        %v8870 = vadd.f32 0.0, %v8869
        %v8871 = vpop.f32.mrf.mxu0
        %v8872 = vadd.f32 0.0, %v8871
        %8873 = vmatmul.bf16.gmra.mxu0 %v7710
        %v8874 = vpop.f32.mrf.mxu0
        %v8875 = vadd.f32 0.0, %v8874
        %v8876 = vpop.f32.mrf.mxu0
        %v8877 = vadd.f32 0.0, %v8876
        %8878 = vdwg.mxu0
        %v8879 = vadd.f32 %v8800, %v8830
        %v8880 = vadd.f32 %v8801, %v8832
        %v8881 = vadd.f32 %v8802, %v8835
        %v8882 = vadd.f32 %v8803, %v8837
        %v8883 = vadd.f32 %v8804, %v8840
        %v8884 = vadd.f32 %v8805, %v8842
        %v8885 = vadd.f32 %v8806, %v8845
        %v8886 = vadd.f32 %v8807, %v8847
        %v8887 = vadd.f32 %v8808, %v8850
        %v8888 = vadd.f32 %v8809, %v8852
        %v8889 = vadd.f32 %v8810, %v8855
        %v8890 = vadd.f32 %v8811, %v8857
        %v8891 = vadd.f32 %v8812, %v8860
        %v8892 = vadd.f32 %v8813, %v8862
        %v8893 = vadd.f32 %v8814, %v8865
        %v8894 = vadd.f32 %v8815, %v8867
        %v8895 = vadd.f32 %v8816, %v8870
        %v8896 = vadd.f32 %v8817, %v8872
        %v8897 = vadd.f32 %v8818, %v8875
        %v8898 = vadd.f32 %v8819, %v8877
        %v8903 = vunpack.c.l.b16 %v7001
        %v8904 = vunpack.c.l.b16 %v7002
        %v8905 = vunpack.c.l.b16 %v7003
        %v8906 = vunpack.c.l.b16 %v7004
        %v8907 = vpack.c.b16 %v8904, %v8903
        %v8908 = vpack.c.b16 %v8906, %v8905
        %8911 = vmatpush.bf16.msra.mxu0 %v7752
        %8912 = vmatpush.bf16.msra.mxu0 %v7751
        %8913 = vmatpush.bf16.msra.mxu0 %v7750
        %8914 = vmatpush.bf16.msra.mxu0 %v7749
        %8915 = vmatpush.bf16.msra.mxu0 %v7748
        %8916 = vmatpush.bf16.msra.mxu0 %v7747
        %8917 = vmatpush.bf16.msra.mxu0 %v7746
        %8918 = vmatpush.bf16.msra.mxu0 %v7745
        %8919 = vmatmul.bf16.gmra.mxu0 %v7082
        %v8920 = vpop.f32.mrf.mxu0
        %v8921 = vadd.f32 0.0, %v8920
        %v8922 = vpop.f32.mrf.mxu0
        %v8923 = vadd.f32 0.0, %v8922
        %8924 = vmatmul.bf16.gmra.mxu0 %v7083
        %v8925 = vpop.f32.mrf.mxu0
        %v8926 = vadd.f32 0.0, %v8925
        %v8927 = vpop.f32.mrf.mxu0
        %v8928 = vadd.f32 0.0, %v8927
        %8929 = vmatmul.bf16.gmra.mxu0 %v7084
        %v8930 = vpop.f32.mrf.mxu0
        %v8931 = vadd.f32 0.0, %v8930
        %v8932 = vpop.f32.mrf.mxu0
        %v8933 = vadd.f32 0.0, %v8932
        %8934 = vmatmul.bf16.gmra.mxu0 %v7085
        %v8935 = vpop.f32.mrf.mxu0
        %v8936 = vadd.f32 0.0, %v8935
        %v8937 = vpop.f32.mrf.mxu0
        %v8938 = vadd.f32 0.0, %v8937
        %8939 = vmatmul.bf16.gmra.mxu0 %v7086
        %v8940 = vpop.f32.mrf.mxu0
        %v8941 = vadd.f32 0.0, %v8940
        %v8942 = vpop.f32.mrf.mxu0
        %v8943 = vadd.f32 0.0, %v8942
        %8944 = vmatmul.bf16.gmra.mxu0 %v7087
        %v8945 = vpop.f32.mrf.mxu0
        %v8946 = vadd.f32 0.0, %v8945
        %v8947 = vpop.f32.mrf.mxu0
        %v8948 = vadd.f32 0.0, %v8947
        %8949 = vmatmul.bf16.gmra.mxu0 %v7553
        %v8950 = vpop.f32.mrf.mxu0
        %v8951 = vadd.f32 0.0, %v8950
        %v8952 = vpop.f32.mrf.mxu0
        %v8953 = vadd.f32 0.0, %v8952
        %8954 = vmatmul.bf16.gmra.mxu0 %v7554
        %v8955 = vpop.f32.mrf.mxu0
        %v8956 = vadd.f32 0.0, %v8955
        %v8957 = vpop.f32.mrf.mxu0
        %v8958 = vadd.f32 0.0, %v8957
        %8959 = vmatmul.bf16.gmra.mxu0 %v8907
        %v8960 = vpop.f32.mrf.mxu0
        %v8961 = vadd.f32 0.0, %v8960
        %v8962 = vpop.f32.mrf.mxu0
        %v8963 = vadd.f32 0.0, %v8962
        %8964 = vmatmul.bf16.gmra.mxu0 %v8908
        %v8965 = vpop.f32.mrf.mxu0
        %v8966 = vadd.f32 0.0, %v8965
        %v8967 = vpop.f32.mrf.mxu0
        %v8968 = vadd.f32 0.0, %v8967
        %8969 = vdwg.mxu0
        %v8970 = vadd.f32 %v8879, %v8921
        %v8971 = vadd.f32 %v8880, %v8923
        %v8972 = vadd.f32 %v8881, %v8926
        %v8973 = vadd.f32 %v8882, %v8928
        %v8974 = vadd.f32 %v8883, %v8931
        %v8975 = vadd.f32 %v8884, %v8933
        %v8976 = vadd.f32 %v8885, %v8936
        %v8977 = vadd.f32 %v8886, %v8938
        %v8978 = vadd.f32 %v8887, %v8941
        %v8979 = vadd.f32 %v8888, %v8943
        %v8980 = vadd.f32 %v8889, %v8946
        %v8981 = vadd.f32 %v8890, %v8948
        %v8982 = vadd.f32 %v8891, %v8951
        %v8983 = vadd.f32 %v8892, %v8953
        %v8984 = vadd.f32 %v8893, %v8956
        %v8985 = vadd.f32 %v8894, %v8958
        %v8986 = vadd.f32 %v8895, %v8961
        %v8987 = vadd.f32 %v8896, %v8963
        %v8988 = vadd.f32 %v8897, %v8966
        %v8989 = vadd.f32 %v8898, %v8968
        %v8990 = vadd.f32 %v8970, %v7841
        %v8991 = vadd.f32 %v8971, %v7841
        %v8992 = vadd.f32 %v8972, %v7841
        %v8993 = vadd.f32 %v8973, %v7841
        %v8994 = vadd.f32 %v8974, %v7841
        %v8995 = vadd.f32 %v8975, %v7841
        %v8996 = vadd.f32 %v8976, %v7841
        %v8997 = vadd.f32 %v8977, %v7841
        %v8998 = vadd.f32 %v8978, %v7841
        %v8999 = vadd.f32 %v8979, %v7841
        %v9000 = vadd.f32 %v8980, %v7841
        %v9001 = vadd.f32 %v8981, %v7841
        %v9002 = vadd.f32 %v8982, %v7841
        %v9003 = vadd.f32 %v8983, %v7841
        %v9004 = vadd.f32 %v8984, %v7841
        %v9005 = vadd.f32 %v8985, %v7841
        %v9006 = vadd.f32 %v8986, %v7841
        %v9007 = vadd.f32 %v8987, %v7841
        %v9008 = vadd.f32 %v8988, %v7841
        %v9009 = vadd.f32 %v8989, %v7841
        %v9010 = vmax.f32 %v8990, 0.0
        %v9011 = vmax.f32 %v8991, 0.0
        %v9012 = vmax.f32 %v8992, 0.0
        %v9013 = vmax.f32 %v8993, 0.0
        %v9014 = vmax.f32 %v8994, 0.0
        %v9015 = vmax.f32 %v8995, 0.0
        %v9016 = vmax.f32 %v8996, 0.0
        %v9017 = vmax.f32 %v8997, 0.0
        %v9018 = vmax.f32 %v8998, 0.0
        %v9019 = vmax.f32 %v8999, 0.0
        %v9020 = vmax.f32 %v9000, 0.0
        %v9021 = vmax.f32 %v9001, 0.0
        %v9022 = vmax.f32 %v9002, 0.0
        %v9023 = vmax.f32 %v9003, 0.0
        %v9024 = vmax.f32 %v9004, 0.0
        %v9025 = vmax.f32 %v9005, 0.0
        %v9026 = vmax.f32 %v9006, 0.0
        %v9027 = vmax.f32 %v9007, 0.0
        %v9028 = vmax.f32 %v9008, 0.0
        %v9029 = vmax.f32 %v9009, 0.0
        %v9030 = vmax.f32 %v8603, %v9010
        %v9031 = vmax.f32 %v8604, %v9011
        %v9032 = vmax.f32 %v8605, %v9012
        %v9033 = vmax.f32 %v8606, %v9013
        %v9034 = vmax.f32 %v8607, %v9014
        %v9035 = vmax.f32 %v8608, %v9015
        %v9036 = vmax.f32 %v8609, %v9016
        %v9037 = vmax.f32 %v8610, %v9017
        %v9038 = vmax.f32 %v8611, %v9018
        %v9039 = vmax.f32 %v8612, %v9019
        %v9040 = vmax.f32 %v8613, %v9020
        %v9041 = vmax.f32 %v8614, %v9021
        %v9042 = vmax.f32 %v8615, %v9022
        %v9043 = vmax.f32 %v8616, %v9023
        %v9044 = vmax.f32 %v8617, %v9024
        %v9045 = vmax.f32 %v8618, %v9025
        %v9046 = vmax.f32 %v8619, %v9026
        %v9047 = vmax.f32 %v8620, %v9027
        %v9048 = vmax.f32 %v8621, %v9028
        %v9049 = vmax.f32 %v8622, %v9029
        %9050 = vmatpush.bf16.msra.mxu0 %v7956
        %9051 = vmatpush.bf16.msra.mxu0 %v7955
        %9052 = vmatpush.bf16.msra.mxu0 %v7954
        %9053 = vmatpush.bf16.msra.mxu0 %v7953
        %9054 = vmatpush.bf16.msra.mxu0 %v7952
        %9055 = vmatpush.bf16.msra.mxu0 %v7951
        %9056 = vmatpush.bf16.msra.mxu0 %v7950
        %9057 = vmatpush.bf16.msra.mxu0 %v7949
        %9058 = vmatmul.bf16.gmra.mxu0 %v7247
        %v9059 = vpop.f32.mrf.mxu0
        %v9060 = vadd.f32 0.0, %v9059
        %v9061 = vpop.f32.mrf.mxu0
        %v9062 = vadd.f32 0.0, %v9061
        %9063 = vmatmul.bf16.gmra.mxu0 %v7248
        %v9064 = vpop.f32.mrf.mxu0
        %v9065 = vadd.f32 0.0, %v9064
        %v9066 = vpop.f32.mrf.mxu0
        %v9067 = vadd.f32 0.0, %v9066
        %9068 = vmatmul.bf16.gmra.mxu0 %v7249
        %v9069 = vpop.f32.mrf.mxu0
        %v9070 = vadd.f32 0.0, %v9069
        %v9071 = vpop.f32.mrf.mxu0
        %v9072 = vadd.f32 0.0, %v9071
        %9073 = vmatmul.bf16.gmra.mxu0 %v7250
        %v9074 = vpop.f32.mrf.mxu0
        %v9075 = vadd.f32 0.0, %v9074
        %v9076 = vpop.f32.mrf.mxu0
        %v9077 = vadd.f32 0.0, %v9076
        %9078 = vmatmul.bf16.gmra.mxu0 %v7251
        %v9079 = vpop.f32.mrf.mxu0
        %v9080 = vadd.f32 0.0, %v9079
        %v9081 = vpop.f32.mrf.mxu0
        %v9082 = vadd.f32 0.0, %v9081
        %9083 = vmatmul.bf16.gmra.mxu0 %v7252
        %v9084 = vpop.f32.mrf.mxu0
        %v9085 = vadd.f32 0.0, %v9084
        %v9086 = vpop.f32.mrf.mxu0
        %v9087 = vadd.f32 0.0, %v9086
        %9088 = vmatmul.bf16.gmra.mxu0 %v7253
        %v9089 = vpop.f32.mrf.mxu0
        %v9090 = vadd.f32 0.0, %v9089
        %v9091 = vpop.f32.mrf.mxu0
        %v9092 = vadd.f32 0.0, %v9091
        %9093 = vmatmul.bf16.gmra.mxu0 %v7254
        %v9094 = vpop.f32.mrf.mxu0
        %v9095 = vadd.f32 0.0, %v9094
        %v9096 = vpop.f32.mrf.mxu0
        %v9097 = vadd.f32 0.0, %v9096
        %9098 = vmatmul.bf16.gmra.mxu0 %v7397
        %v9099 = vpop.f32.mrf.mxu0
        %v9100 = vadd.f32 0.0, %v9099
        %v9101 = vpop.f32.mrf.mxu0
        %v9102 = vadd.f32 0.0, %v9101
        %9103 = vmatmul.bf16.gmra.mxu0 %v7398
        %v9104 = vpop.f32.mrf.mxu0
        %v9105 = vadd.f32 0.0, %v9104
        %v9106 = vpop.f32.mrf.mxu0
        %v9107 = vadd.f32 0.0, %v9106
        %9108 = vdwg.mxu0
        %9109 = vmatpush.bf16.msra.mxu0 %v8063
        %9110 = vmatpush.bf16.msra.mxu0 %v8062
        %9111 = vmatpush.bf16.msra.mxu0 %v8061
        %9112 = vmatpush.bf16.msra.mxu0 %v8060
        %9113 = vmatpush.bf16.msra.mxu0 %v8059
        %9114 = vmatpush.bf16.msra.mxu0 %v8058
        %9115 = vmatpush.bf16.msra.mxu0 %v8057
        %9116 = vmatpush.bf16.msra.mxu0 %v8056
        %9117 = vmatmul.bf16.gmra.mxu0 %v7078
        %v9118 = vpop.f32.mrf.mxu0
        %v9119 = vadd.f32 %v9060, %v9118
        %v9120 = vpop.f32.mrf.mxu0
        %v9121 = vadd.f32 %v9062, %v9120
        %9122 = vmatmul.bf16.gmra.mxu0 %v7079
        %v9123 = vpop.f32.mrf.mxu0
        %v9124 = vadd.f32 %v9065, %v9123
        %v9125 = vpop.f32.mrf.mxu0
        %v9126 = vadd.f32 %v9067, %v9125
        %9127 = vmatmul.bf16.gmra.mxu0 %v7080
        %v9128 = vpop.f32.mrf.mxu0
        %v9129 = vadd.f32 %v9070, %v9128
        %v9130 = vpop.f32.mrf.mxu0
        %v9131 = vadd.f32 %v9072, %v9130
        %9132 = vmatmul.bf16.gmra.mxu0 %v7081
        %v9133 = vpop.f32.mrf.mxu0
        %v9134 = vadd.f32 %v9075, %v9133
        %v9135 = vpop.f32.mrf.mxu0
        %v9136 = vadd.f32 %v9077, %v9135
        %9137 = vmatmul.bf16.gmra.mxu0 %v7082
        %v9138 = vpop.f32.mrf.mxu0
        %v9139 = vadd.f32 %v9080, %v9138
        %v9140 = vpop.f32.mrf.mxu0
        %v9141 = vadd.f32 %v9082, %v9140
        %9142 = vmatmul.bf16.gmra.mxu0 %v7083
        %v9143 = vpop.f32.mrf.mxu0
        %v9144 = vadd.f32 %v9085, %v9143
        %v9145 = vpop.f32.mrf.mxu0
        %v9146 = vadd.f32 %v9087, %v9145
        %9147 = vmatmul.bf16.gmra.mxu0 %v7084
        %v9148 = vpop.f32.mrf.mxu0
        %v9149 = vadd.f32 %v9090, %v9148
        %v9150 = vpop.f32.mrf.mxu0
        %v9151 = vadd.f32 %v9092, %v9150
        %9152 = vmatmul.bf16.gmra.mxu0 %v7085
        %v9153 = vpop.f32.mrf.mxu0
        %v9154 = vadd.f32 %v9095, %v9153
        %v9155 = vpop.f32.mrf.mxu0
        %v9156 = vadd.f32 %v9097, %v9155
        %9157 = vmatmul.bf16.gmra.mxu0 %v7086
        %v9158 = vpop.f32.mrf.mxu0
        %v9159 = vadd.f32 %v9100, %v9158
        %v9160 = vpop.f32.mrf.mxu0
        %v9161 = vadd.f32 %v9102, %v9160
        %9162 = vmatmul.bf16.gmra.mxu0 %v7087
        %v9163 = vpop.f32.mrf.mxu0
        %v9164 = vadd.f32 %v9105, %v9163
        %v9165 = vpop.f32.mrf.mxu0
        %v9166 = vadd.f32 %v9107, %v9165
        %9167 = vdwg.mxu0
        %9168 = vmatpush.bf16.msra.mxu0 %v8187
        %9169 = vmatpush.bf16.msra.mxu0 %v8186
        %9170 = vmatpush.bf16.msra.mxu0 %v8185
        %9171 = vmatpush.bf16.msra.mxu0 %v8184
        %9172 = vmatpush.bf16.msra.mxu0 %v8183
        %9173 = vmatpush.bf16.msra.mxu0 %v8182
        %9174 = vmatpush.bf16.msra.mxu0 %v8181
        %9175 = vmatpush.bf16.msra.mxu0 %v8180
        %9176 = vmatmul.bf16.gmra.mxu0 %v7080
        %v9177 = vpop.f32.mrf.mxu0
        %v9178 = vadd.f32 0.0, %v9177
        %v9179 = vpop.f32.mrf.mxu0
        %v9180 = vadd.f32 0.0, %v9179
        %9181 = vmatmul.bf16.gmra.mxu0 %v7081
        %v9182 = vpop.f32.mrf.mxu0
        %v9183 = vadd.f32 0.0, %v9182
        %v9184 = vpop.f32.mrf.mxu0
        %v9185 = vadd.f32 0.0, %v9184
        %9186 = vmatmul.bf16.gmra.mxu0 %v7082
        %v9187 = vpop.f32.mrf.mxu0
        %v9188 = vadd.f32 0.0, %v9187
        %v9189 = vpop.f32.mrf.mxu0
        %v9190 = vadd.f32 0.0, %v9189
        %9191 = vmatmul.bf16.gmra.mxu0 %v7083
        %v9192 = vpop.f32.mrf.mxu0
        %v9193 = vadd.f32 0.0, %v9192
        %v9194 = vpop.f32.mrf.mxu0
        %v9195 = vadd.f32 0.0, %v9194
        %9196 = vmatmul.bf16.gmra.mxu0 %v7084
        %v9197 = vpop.f32.mrf.mxu0
        %v9198 = vadd.f32 0.0, %v9197
        %v9199 = vpop.f32.mrf.mxu0
        %v9200 = vadd.f32 0.0, %v9199
        %9201 = vmatmul.bf16.gmra.mxu0 %v7085
        %v9202 = vpop.f32.mrf.mxu0
        %v9203 = vadd.f32 0.0, %v9202
        %v9204 = vpop.f32.mrf.mxu0
        %v9205 = vadd.f32 0.0, %v9204
        %9206 = vmatmul.bf16.gmra.mxu0 %v7086
        %v9207 = vpop.f32.mrf.mxu0
        %v9208 = vadd.f32 0.0, %v9207
        %v9209 = vpop.f32.mrf.mxu0
        %v9210 = vadd.f32 0.0, %v9209
        %9211 = vmatmul.bf16.gmra.mxu0 %v7087
        %v9212 = vpop.f32.mrf.mxu0
        %v9213 = vadd.f32 0.0, %v9212
        %v9214 = vpop.f32.mrf.mxu0
        %v9215 = vadd.f32 0.0, %v9214
        %9216 = vmatmul.bf16.gmra.mxu0 %v7553
        %v9217 = vpop.f32.mrf.mxu0
        %v9218 = vadd.f32 0.0, %v9217
        %v9219 = vpop.f32.mrf.mxu0
        %v9220 = vadd.f32 0.0, %v9219
        %9221 = vmatmul.bf16.gmra.mxu0 %v7554
        %v9222 = vpop.f32.mrf.mxu0
        %v9223 = vadd.f32 0.0, %v9222
        %v9224 = vpop.f32.mrf.mxu0
        %v9225 = vadd.f32 0.0, %v9224
        %9226 = vdwg.mxu0
        %v9227 = vadd.f32 %v9119, %v9178
        %v9228 = vadd.f32 %v9121, %v9180
        %v9229 = vadd.f32 %v9124, %v9183
        %v9230 = vadd.f32 %v9126, %v9185
        %v9231 = vadd.f32 %v9129, %v9188
        %v9232 = vadd.f32 %v9131, %v9190
        %v9233 = vadd.f32 %v9134, %v9193
        %v9234 = vadd.f32 %v9136, %v9195
        %v9235 = vadd.f32 %v9139, %v9198
        %v9236 = vadd.f32 %v9141, %v9200
        %v9237 = vadd.f32 %v9144, %v9203
        %v9238 = vadd.f32 %v9146, %v9205
        %v9239 = vadd.f32 %v9149, %v9208
        %v9240 = vadd.f32 %v9151, %v9210
        %v9241 = vadd.f32 %v9154, %v9213
        %v9242 = vadd.f32 %v9156, %v9215
        %v9243 = vadd.f32 %v9159, %v9218
        %v9244 = vadd.f32 %v9161, %v9220
        %v9245 = vadd.f32 %v9164, %v9223
        %v9246 = vadd.f32 %v9166, %v9225
        %9247 = vmatpush.bf16.msra.mxu0 %v8331
        %9248 = vmatpush.bf16.msra.mxu0 %v8330
        %9249 = vmatpush.bf16.msra.mxu0 %v8329
        %9250 = vmatpush.bf16.msra.mxu0 %v8328
        %9251 = vmatpush.bf16.msra.mxu0 %v8327
        %9252 = vmatpush.bf16.msra.mxu0 %v8326
        %9253 = vmatpush.bf16.msra.mxu0 %v8325
        %9254 = vmatpush.bf16.msra.mxu0 %v8324
        %9255 = vmatmul.bf16.gmra.mxu0 %v7249
        %v9256 = vpop.f32.mrf.mxu0
        %v9257 = vadd.f32 0.0, %v9256
        %v9258 = vpop.f32.mrf.mxu0
        %v9259 = vadd.f32 0.0, %v9258
        %9260 = vmatmul.bf16.gmra.mxu0 %v7250
        %v9261 = vpop.f32.mrf.mxu0
        %v9262 = vadd.f32 0.0, %v9261
        %v9263 = vpop.f32.mrf.mxu0
        %v9264 = vadd.f32 0.0, %v9263
        %9265 = vmatmul.bf16.gmra.mxu0 %v7251
        %v9266 = vpop.f32.mrf.mxu0
        %v9267 = vadd.f32 0.0, %v9266
        %v9268 = vpop.f32.mrf.mxu0
        %v9269 = vadd.f32 0.0, %v9268
        %9270 = vmatmul.bf16.gmra.mxu0 %v7252
        %v9271 = vpop.f32.mrf.mxu0
        %v9272 = vadd.f32 0.0, %v9271
        %v9273 = vpop.f32.mrf.mxu0
        %v9274 = vadd.f32 0.0, %v9273
        %9275 = vmatmul.bf16.gmra.mxu0 %v7253
        %v9276 = vpop.f32.mrf.mxu0
        %v9277 = vadd.f32 0.0, %v9276
        %v9278 = vpop.f32.mrf.mxu0
        %v9279 = vadd.f32 0.0, %v9278
        %9280 = vmatmul.bf16.gmra.mxu0 %v7254
        %v9281 = vpop.f32.mrf.mxu0
        %v9282 = vadd.f32 0.0, %v9281
        %v9283 = vpop.f32.mrf.mxu0
        %v9284 = vadd.f32 0.0, %v9283
        %9285 = vmatmul.bf16.gmra.mxu0 %v7397
        %v9286 = vpop.f32.mrf.mxu0
        %v9287 = vadd.f32 0.0, %v9286
        %v9288 = vpop.f32.mrf.mxu0
        %v9289 = vadd.f32 0.0, %v9288
        %9290 = vmatmul.bf16.gmra.mxu0 %v7398
        %v9291 = vpop.f32.mrf.mxu0
        %v9292 = vadd.f32 0.0, %v9291
        %v9293 = vpop.f32.mrf.mxu0
        %v9294 = vadd.f32 0.0, %v9293
        %9295 = vmatmul.bf16.gmra.mxu0 %v7709
        %v9296 = vpop.f32.mrf.mxu0
        %v9297 = vadd.f32 0.0, %v9296
        %v9298 = vpop.f32.mrf.mxu0
        %v9299 = vadd.f32 0.0, %v9298
        %9300 = vmatmul.bf16.gmra.mxu0 %v7710
        %v9301 = vpop.f32.mrf.mxu0
        %v9302 = vadd.f32 0.0, %v9301
        %v9303 = vpop.f32.mrf.mxu0
        %v9304 = vadd.f32 0.0, %v9303
        %9305 = vdwg.mxu0
        %v9306 = vadd.f32 %v9227, %v9257
        %v9307 = vadd.f32 %v9228, %v9259
        %v9308 = vadd.f32 %v9229, %v9262
        %v9309 = vadd.f32 %v9230, %v9264
        %v9310 = vadd.f32 %v9231, %v9267
        %v9311 = vadd.f32 %v9232, %v9269
        %v9312 = vadd.f32 %v9233, %v9272
        %v9313 = vadd.f32 %v9234, %v9274
        %v9314 = vadd.f32 %v9235, %v9277
        %v9315 = vadd.f32 %v9236, %v9279
        %v9316 = vadd.f32 %v9237, %v9282
        %v9317 = vadd.f32 %v9238, %v9284
        %v9318 = vadd.f32 %v9239, %v9287
        %v9319 = vadd.f32 %v9240, %v9289
        %v9320 = vadd.f32 %v9241, %v9292
        %v9321 = vadd.f32 %v9242, %v9294
        %v9322 = vadd.f32 %v9243, %v9297
        %v9323 = vadd.f32 %v9244, %v9299
        %v9324 = vadd.f32 %v9245, %v9302
        %v9325 = vadd.f32 %v9246, %v9304
        %9326 = vmatpush.bf16.msra.mxu0 %v8475
        %9327 = vmatpush.bf16.msra.mxu0 %v8474
        %9328 = vmatpush.bf16.msra.mxu0 %v8473
        %9329 = vmatpush.bf16.msra.mxu0 %v8472
        %9330 = vmatpush.bf16.msra.mxu0 %v8471
        %9331 = vmatpush.bf16.msra.mxu0 %v8470
        %9332 = vmatpush.bf16.msra.mxu0 %v8469
        %9333 = vmatpush.bf16.msra.mxu0 %v8468
        %9334 = vmatmul.bf16.gmra.mxu0 %v7082
        %v9335 = vpop.f32.mrf.mxu0
        %v9336 = vadd.f32 0.0, %v9335
        %v9337 = vpop.f32.mrf.mxu0
        %v9338 = vadd.f32 0.0, %v9337
        %9339 = vmatmul.bf16.gmra.mxu0 %v7083
        %v9340 = vpop.f32.mrf.mxu0
        %v9341 = vadd.f32 0.0, %v9340
        %v9342 = vpop.f32.mrf.mxu0
        %v9343 = vadd.f32 0.0, %v9342
        %9344 = vmatmul.bf16.gmra.mxu0 %v7084
        %v9345 = vpop.f32.mrf.mxu0
        %v9346 = vadd.f32 0.0, %v9345
        %v9347 = vpop.f32.mrf.mxu0
        %v9348 = vadd.f32 0.0, %v9347
        %9349 = vmatmul.bf16.gmra.mxu0 %v7085
        %v9350 = vpop.f32.mrf.mxu0
        %v9351 = vadd.f32 0.0, %v9350
        %v9352 = vpop.f32.mrf.mxu0
        %v9353 = vadd.f32 0.0, %v9352
        %9354 = vmatmul.bf16.gmra.mxu0 %v7086
        %v9355 = vpop.f32.mrf.mxu0
        %v9356 = vadd.f32 0.0, %v9355
        %v9357 = vpop.f32.mrf.mxu0
        %v9358 = vadd.f32 0.0, %v9357
        %9359 = vmatmul.bf16.gmra.mxu0 %v7087
        %v9360 = vpop.f32.mrf.mxu0
        %v9361 = vadd.f32 0.0, %v9360
        %v9362 = vpop.f32.mrf.mxu0
        %v9363 = vadd.f32 0.0, %v9362
        %9364 = vmatmul.bf16.gmra.mxu0 %v7553
        %v9365 = vpop.f32.mrf.mxu0
        %v9366 = vadd.f32 0.0, %v9365
        %v9367 = vpop.f32.mrf.mxu0
        %v9368 = vadd.f32 0.0, %v9367
        %9369 = vmatmul.bf16.gmra.mxu0 %v7554
        %v9370 = vpop.f32.mrf.mxu0
        %v9371 = vadd.f32 0.0, %v9370
        %v9372 = vpop.f32.mrf.mxu0
        %v9373 = vadd.f32 0.0, %v9372
        %9374 = vmatmul.bf16.gmra.mxu0 %v8907
        %v9375 = vpop.f32.mrf.mxu0
        %v9376 = vadd.f32 0.0, %v9375
        %v9377 = vpop.f32.mrf.mxu0
        %v9378 = vadd.f32 0.0, %v9377
        %9379 = vmatmul.bf16.gmra.mxu0 %v8908
        %v9380 = vpop.f32.mrf.mxu0
        %v9381 = vadd.f32 0.0, %v9380
        %v9382 = vpop.f32.mrf.mxu0
        %v9383 = vadd.f32 0.0, %v9382
        %9384 = vdwg.mxu0
        %v9385 = vadd.f32 %v9306, %v9336
        %v9386 = vadd.f32 %v9307, %v9338
        %v9387 = vadd.f32 %v9308, %v9341
        %v9388 = vadd.f32 %v9309, %v9343
        %v9389 = vadd.f32 %v9310, %v9346
        %v9390 = vadd.f32 %v9311, %v9348
        %v9391 = vadd.f32 %v9312, %v9351
        %v9392 = vadd.f32 %v9313, %v9353
        %v9393 = vadd.f32 %v9314, %v9356
        %v9394 = vadd.f32 %v9315, %v9358
        %v9395 = vadd.f32 %v9316, %v9361
        %v9396 = vadd.f32 %v9317, %v9363
        %v9397 = vadd.f32 %v9318, %v9366
        %v9398 = vadd.f32 %v9319, %v9368
        %v9399 = vadd.f32 %v9320, %v9371
        %v9400 = vadd.f32 %v9321, %v9373
        %v9401 = vadd.f32 %v9322, %v9376
        %v9402 = vadd.f32 %v9323, %v9378
        %v9403 = vadd.f32 %v9324, %v9381
        %v9404 = vadd.f32 %v9325, %v9383
        %v9405 = vadd.f32 %v9385, %v7841
        %v9406 = vadd.f32 %v9386, %v7841
        %v9407 = vadd.f32 %v9387, %v7841
        %v9408 = vadd.f32 %v9388, %v7841
        %v9409 = vadd.f32 %v9389, %v7841
        %v9410 = vadd.f32 %v9390, %v7841
        %v9411 = vadd.f32 %v9391, %v7841
        %v9412 = vadd.f32 %v9392, %v7841
        %v9413 = vadd.f32 %v9393, %v7841
        %v9414 = vadd.f32 %v9394, %v7841
        %v9415 = vadd.f32 %v9395, %v7841
        %v9416 = vadd.f32 %v9396, %v7841
        %v9417 = vadd.f32 %v9397, %v7841
        %v9418 = vadd.f32 %v9398, %v7841
        %v9419 = vadd.f32 %v9399, %v7841
        %v9420 = vadd.f32 %v9400, %v7841
        %v9421 = vadd.f32 %v9401, %v7841
        %v9422 = vadd.f32 %v9402, %v7841
        %v9423 = vadd.f32 %v9403, %v7841
        %v9424 = vadd.f32 %v9404, %v7841
        %v9425 = vmax.f32 %v9405, 0.0
        %v9426 = vmax.f32 %v9406, 0.0
        %v9427 = vmax.f32 %v9407, 0.0
        %v9428 = vmax.f32 %v9408, 0.0
        %v9429 = vmax.f32 %v9409, 0.0
        %v9430 = vmax.f32 %v9410, 0.0
        %v9431 = vmax.f32 %v9411, 0.0
        %v9432 = vmax.f32 %v9412, 0.0
        %v9433 = vmax.f32 %v9413, 0.0
        %v9434 = vmax.f32 %v9414, 0.0
        %v9435 = vmax.f32 %v9415, 0.0
        %v9436 = vmax.f32 %v9416, 0.0
        %v9437 = vmax.f32 %v9417, 0.0
        %v9438 = vmax.f32 %v9418, 0.0
        %v9439 = vmax.f32 %v9419, 0.0
        %v9440 = vmax.f32 %v9420, 0.0
        %v9441 = vmax.f32 %v9421, 0.0
        %v9442 = vmax.f32 %v9422, 0.0
        %v9443 = vmax.f32 %v9423, 0.0
        %v9444 = vmax.f32 %v9424, 0.0
        %v9445 = vmax.f32 %v9030, %v9425
        %v9446 = vmax.f32 %v9031, %v9426
        %v9447 = vmax.f32 %v9032, %v9427
        %v9448 = vmax.f32 %v9033, %v9428
        %v9449 = vmax.f32 %v9034, %v9429
        %v9450 = vmax.f32 %v9035, %v9430
        %v9451 = vmax.f32 %v9036, %v9431
        %v9452 = vmax.f32 %v9037, %v9432
        %v9453 = vmax.f32 %v9038, %v9433
        %v9454 = vmax.f32 %v9039, %v9434
        %v9455 = vmax.f32 %v9040, %v9435
        %v9456 = vmax.f32 %v9041, %v9436
        %v9457 = vmax.f32 %v9042, %v9437
        %v9458 = vmax.f32 %v9043, %v9438
        %v9459 = vmax.f32 %v9044, %v9439
        %v9460 = vmax.f32 %v9045, %v9440
        %v9461 = vmax.f32 %v9046, %v9441
        %v9462 = vmax.f32 %v9047, %v9442
        %v9463 = vmax.f32 %v9048, %v9443
        %v9464 = vmax.f32 %v9049, %v9444
        %v9465 = vpack.c.bf16 %v9445, %v9445
        %v9466 = vpack.c.bf16 %v9446, %v9446
        %v9467 = vpack.c.bf16 %v9447, %v9447
        %v9468 = vpack.c.bf16 %v9448, %v9448
        %v9469 = vpack.c.bf16 %v9449, %v9449
        %v9470 = vpack.c.bf16 %v9450, %v9450
        %v9471 = vpack.c.bf16 %v9451, %v9451
        %v9472 = vpack.c.bf16 %v9452, %v9452
        %v9473 = vpack.c.bf16 %v9453, %v9453
        %v9474 = vpack.c.bf16 %v9454, %v9454
        %v9475 = vpack.c.bf16 %v9455, %v9455
        %v9476 = vpack.c.bf16 %v9456, %v9456
        %v9477 = vpack.c.bf16 %v9457, %v9457
        %v9478 = vpack.c.bf16 %v9458, %v9458
        %v9479 = vpack.c.bf16 %v9459, %v9459
        %v9480 = vpack.c.bf16 %v9460, %v9460
        %v9481 = vpack.c.bf16 %v9461, %v9461
        %v9482 = vpack.c.bf16 %v9462, %v9462
        %v9483 = vpack.c.bf16 %v9463, %v9463
        %v9484 = vpack.c.bf16 %v9464, %v9464
        %v9485 = vld [vmem:[%s5] sm:$0xf]
        %v9486 = vld [vmem:[%s5 + $0x4] sm:$0xf]
        %v9487 = vld [vmem:[%s5 + $0x8] sm:$0xf]
        %v9488 = vld [vmem:[%s5 + $0xc] sm:$0xf]
        %v9489 = vld [vmem:[%s5 + $0x10] sm:$0xf]
        %v9490 = vld [vmem:[%s5 + $0x14] sm:$0xf]
        %v9491 = vld [vmem:[%s5 + $0x18] sm:$0xf]
        %v9492 = vld [vmem:[%s5 + $0x1c] sm:$0xf]
        %v9493 = vld [vmem:[%s5 + $0x20] sm:$0xf]
        %v9494 = vld [vmem:[%s5 + $0x24] sm:$0xf]
        %v9495 = vld [vmem:[%s5 + $0x28] sm:$0xf]
        %v9496 = vld [vmem:[%s5 + $0x2c] sm:$0xf]
        %v9497 = vld [vmem:[%s5 + $0x30] sm:$0xf]
        %v9498 = vld [vmem:[%s5 + $0x34] sm:$0xf]
        %v9499 = vld [vmem:[%s5 + $0x38] sm:$0xf]
        %v9500 = vld [vmem:[%s5 + $0x3c] sm:$0xf]
        %s9501 = scalar_lea.vmem %s5, 64
        %v9502 = vld [vmem:[%s9501] sm:$0xf]
        %v9503 = vld [vmem:[%s9501 + $0x4] sm:$0xf]
        %v9504 = vld [vmem:[%s9501 + $0x8] sm:$0xf]
        %v9505 = vld [vmem:[%s9501 + $0xc] sm:$0xf]
        %v9506 = vld [vmem:[%s9501 + $0x10] sm:$0xf]
        %v9507 = vld [vmem:[%s9501 + $0x14] sm:$0xf]
        %v9508 = vld [vmem:[%s9501 + $0x18] sm:$0xf]
        %v9509 = vld [vmem:[%s9501 + $0x1c] sm:$0xf]
        %v9510 = vld [vmem:[%s9501 + $0x20] sm:$0xf]
        %v9511 = vld [vmem:[%s9501 + $0x24] sm:$0xf]
        %v9512 = vld [vmem:[%s9501 + $0x28] sm:$0xf]
        %v9513 = vld [vmem:[%s9501 + $0x2c] sm:$0xf]
        %v9514 = vld [vmem:[%s9501 + $0x30] sm:$0xf]
        %v9515 = vld [vmem:[%s9501 + $0x34] sm:$0xf]
        %v9516 = vld [vmem:[%s9501 + $0x38] sm:$0xf]
        %v9517 = vld [vmem:[%s9501 + $0x3c] sm:$0xf]
        %v9522 = vunpack.c.l.b16 %v9469
        %v9523 = vunpack.c.l.b16 %v9470
        %v9524 = vunpack.c.l.b16 %v9471
        %v9525 = vunpack.c.l.b16 %v9472
        %v9526 = vpack.c.b16 %v9523, %v9522
        %v9527 = vpack.c.b16 %v9525, %v9524
        %v9546 = vunpack.c.l.b16 %v9502
        %v9547 = vunpack.c.l.b16 %v9503
        %v9548 = vunpack.c.l.b16 %v9504
        %v9549 = vunpack.c.l.b16 %v9505
        %v9550 = vunpack.c.l.b16 %v9506
        %v9551 = vunpack.c.l.b16 %v9507
        %v9552 = vunpack.c.l.b16 %v9508
        %v9553 = vunpack.c.l.b16 %v9509
        %v9554 = vunpack.c.l.b16 %v9510
        %v9555 = vunpack.c.l.b16 %v9511
        %v9556 = vunpack.c.l.b16 %v9512
        %v9557 = vunpack.c.l.b16 %v9513
        %v9558 = vunpack.c.l.b16 %v9514
        %v9559 = vunpack.c.l.b16 %v9515
        %v9560 = vunpack.c.l.b16 %v9516
        %v9561 = vunpack.c.l.b16 %v9517
        %v9562 = vpack.c.b16 %v9547, %v9546
        %v9563 = vpack.c.b16 %v9549, %v9548
        %v9564 = vpack.c.b16 %v9551, %v9550
        %v9565 = vpack.c.b16 %v9553, %v9552
        %v9566 = vpack.c.b16 %v9555, %v9554
        %v9567 = vpack.c.b16 %v9557, %v9556
        %v9568 = vpack.c.b16 %v9559, %v9558
        %v9569 = vpack.c.b16 %v9561, %v9560
        %9578 = vmatpush.bf16.msra.mxu0 %v9569
        %9579 = vmatpush.bf16.msra.mxu0 %v9568
        %9580 = vmatpush.bf16.msra.mxu0 %v9567
        %9581 = vmatpush.bf16.msra.mxu0 %v9566
        %9582 = vmatpush.bf16.msra.mxu0 %v9565
        %9583 = vmatpush.bf16.msra.mxu0 %v9564
        %9584 = vmatpush.bf16.msra.mxu0 %v9563
        %9585 = vmatpush.bf16.msra.mxu0 %v9562
        %9586 = vmatmul.bf16.gmra.mxu0 %v9526
        %v9587 = vpop.f32.mrf.mxu0
        %v9588 = vadd.f32 0.0, %v9587
        %v9589 = vpop.f32.mrf.mxu0
        %v9590 = vadd.f32 0.0, %v9589
        %9591 = vmatmul.bf16.gmra.mxu0 %v9527
        %v9592 = vpop.f32.mrf.mxu0
        %v9593 = vadd.f32 0.0, %v9592
        %v9594 = vpop.f32.mrf.mxu0
        %v9595 = vadd.f32 0.0, %v9594
        %9596 = vdwg.mxu0
        %v9601 = vunpack.c.l.b16 %v9465
        %v9602 = vunpack.c.l.b16 %v9466
        %v9603 = vunpack.c.l.b16 %v9467
        %v9604 = vunpack.c.l.b16 %v9468
        %v9605 = vpack.c.b16 %v9602, %v9601
        %v9606 = vpack.c.b16 %v9604, %v9603
        %v9625 = vunpack.c.l.b16 %v9485
        %v9626 = vunpack.c.l.b16 %v9486
        %v9627 = vunpack.c.l.b16 %v9487
        %v9628 = vunpack.c.l.b16 %v9488
        %v9629 = vunpack.c.l.b16 %v9489
        %v9630 = vunpack.c.l.b16 %v9490
        %v9631 = vunpack.c.l.b16 %v9491
        %v9632 = vunpack.c.l.b16 %v9492
        %v9633 = vunpack.c.l.b16 %v9493
        %v9634 = vunpack.c.l.b16 %v9494
        %v9635 = vunpack.c.l.b16 %v9495
        %v9636 = vunpack.c.l.b16 %v9496
        %v9637 = vunpack.c.l.b16 %v9497
        %v9638 = vunpack.c.l.b16 %v9498
        %v9639 = vunpack.c.l.b16 %v9499
        %v9640 = vunpack.c.l.b16 %v9500
        %v9641 = vpack.c.b16 %v9626, %v9625
        %v9642 = vpack.c.b16 %v9628, %v9627
        %v9643 = vpack.c.b16 %v9630, %v9629
        %v9644 = vpack.c.b16 %v9632, %v9631
        %v9645 = vpack.c.b16 %v9634, %v9633
        %v9646 = vpack.c.b16 %v9636, %v9635
        %v9647 = vpack.c.b16 %v9638, %v9637
        %v9648 = vpack.c.b16 %v9640, %v9639
        %9657 = vmatpush.bf16.msra.mxu0 %v9648
        %9658 = vmatpush.bf16.msra.mxu0 %v9647
        %9659 = vmatpush.bf16.msra.mxu0 %v9646
        %9660 = vmatpush.bf16.msra.mxu0 %v9645
        %9661 = vmatpush.bf16.msra.mxu0 %v9644
        %9662 = vmatpush.bf16.msra.mxu0 %v9643
        %9663 = vmatpush.bf16.msra.mxu0 %v9642
        %9664 = vmatpush.bf16.msra.mxu0 %v9641
        %9665 = vmatmul.bf16.gmra.mxu0 %v9605
        %v9666 = vpop.f32.mrf.mxu0
        %v9667 = vadd.f32 %v9588, %v9666
        %v9668 = vpop.f32.mrf.mxu0
        %v9669 = vadd.f32 %v9590, %v9668
        %9670 = vmatmul.bf16.gmra.mxu0 %v9606
        %v9671 = vpop.f32.mrf.mxu0
        %v9672 = vadd.f32 %v9593, %v9671
        %v9673 = vpop.f32.mrf.mxu0
        %v9674 = vadd.f32 %v9595, %v9673
        %9675 = vdwg.mxu0
        %s9676 = scalar_lea.vmem %s5, 128
        %v9677 = vld [vmem:[%s9676] sm:$0xf]
        %v9678 = vld [vmem:[%s9676 + $0x4] sm:$0xf]
        %v9679 = vld [vmem:[%s9676 + $0x8] sm:$0xf]
        %v9680 = vld [vmem:[%s9676 + $0xc] sm:$0xf]
        %v9681 = vld [vmem:[%s9676 + $0x10] sm:$0xf]
        %v9682 = vld [vmem:[%s9676 + $0x14] sm:$0xf]
        %v9683 = vld [vmem:[%s9676 + $0x18] sm:$0xf]
        %v9684 = vld [vmem:[%s9676 + $0x1c] sm:$0xf]
        %v9685 = vld [vmem:[%s9676 + $0x20] sm:$0xf]
        %v9686 = vld [vmem:[%s9676 + $0x24] sm:$0xf]
        %v9687 = vld [vmem:[%s9676 + $0x28] sm:$0xf]
        %v9688 = vld [vmem:[%s9676 + $0x2c] sm:$0xf]
        %v9689 = vld [vmem:[%s9676 + $0x30] sm:$0xf]
        %v9690 = vld [vmem:[%s9676 + $0x34] sm:$0xf]
        %v9691 = vld [vmem:[%s9676 + $0x38] sm:$0xf]
        %v9692 = vld [vmem:[%s9676 + $0x3c] sm:$0xf]
        %v9697 = vunpack.c.l.b16 %v9473
        %v9698 = vunpack.c.l.b16 %v9474
        %v9699 = vunpack.c.l.b16 %v9475
        %v9700 = vunpack.c.l.b16 %v9476
        %v9701 = vpack.c.b16 %v9698, %v9697
        %v9702 = vpack.c.b16 %v9700, %v9699
        %v9721 = vunpack.c.l.b16 %v9677
        %v9722 = vunpack.c.l.b16 %v9678
        %v9723 = vunpack.c.l.b16 %v9679
        %v9724 = vunpack.c.l.b16 %v9680
        %v9725 = vunpack.c.l.b16 %v9681
        %v9726 = vunpack.c.l.b16 %v9682
        %v9727 = vunpack.c.l.b16 %v9683
        %v9728 = vunpack.c.l.b16 %v9684
        %v9729 = vunpack.c.l.b16 %v9685
        %v9730 = vunpack.c.l.b16 %v9686
        %v9731 = vunpack.c.l.b16 %v9687
        %v9732 = vunpack.c.l.b16 %v9688
        %v9733 = vunpack.c.l.b16 %v9689
        %v9734 = vunpack.c.l.b16 %v9690
        %v9735 = vunpack.c.l.b16 %v9691
        %v9736 = vunpack.c.l.b16 %v9692
        %v9737 = vpack.c.b16 %v9722, %v9721
        %v9738 = vpack.c.b16 %v9724, %v9723
        %v9739 = vpack.c.b16 %v9726, %v9725
        %v9740 = vpack.c.b16 %v9728, %v9727
        %v9741 = vpack.c.b16 %v9730, %v9729
        %v9742 = vpack.c.b16 %v9732, %v9731
        %v9743 = vpack.c.b16 %v9734, %v9733
        %v9744 = vpack.c.b16 %v9736, %v9735
        %9753 = vmatpush.bf16.msra.mxu0 %v9744
        %9754 = vmatpush.bf16.msra.mxu0 %v9743
        %9755 = vmatpush.bf16.msra.mxu0 %v9742
        %9756 = vmatpush.bf16.msra.mxu0 %v9741
        %9757 = vmatpush.bf16.msra.mxu0 %v9740
        %9758 = vmatpush.bf16.msra.mxu0 %v9739
        %9759 = vmatpush.bf16.msra.mxu0 %v9738
        %9760 = vmatpush.bf16.msra.mxu0 %v9737
        %9761 = vmatmul.bf16.gmra.mxu0 %v9701
        %v9762 = vpop.f32.mrf.mxu0
        %v9763 = vadd.f32 0.0, %v9762
        %v9764 = vpop.f32.mrf.mxu0
        %v9765 = vadd.f32 0.0, %v9764
        %9766 = vmatmul.bf16.gmra.mxu0 %v9702
        %v9767 = vpop.f32.mrf.mxu0
        %v9768 = vadd.f32 0.0, %v9767
        %v9769 = vpop.f32.mrf.mxu0
        %v9770 = vadd.f32 0.0, %v9769
        %9771 = vdwg.mxu0
        %v9772 = vadd.f32 %v9667, %v9763
        %v9773 = vadd.f32 %v9669, %v9765
        %v9774 = vadd.f32 %v9672, %v9768
        %v9775 = vadd.f32 %v9674, %v9770
        %s9776 = scalar_lea.vmem %s5, 192
        %v9777 = vld [vmem:[%s9776] sm:$0xf]
        %v9778 = vld [vmem:[%s9776 + $0x4] sm:$0xf]
        %v9779 = vld [vmem:[%s9776 + $0x8] sm:$0xf]
        %v9780 = vld [vmem:[%s9776 + $0xc] sm:$0xf]
        %v9781 = vld [vmem:[%s9776 + $0x10] sm:$0xf]
        %v9782 = vld [vmem:[%s9776 + $0x14] sm:$0xf]
        %v9783 = vld [vmem:[%s9776 + $0x18] sm:$0xf]
        %v9784 = vld [vmem:[%s9776 + $0x1c] sm:$0xf]
        %v9785 = vld [vmem:[%s9776 + $0x20] sm:$0xf]
        %v9786 = vld [vmem:[%s9776 + $0x24] sm:$0xf]
        %v9787 = vld [vmem:[%s9776 + $0x28] sm:$0xf]
        %v9788 = vld [vmem:[%s9776 + $0x2c] sm:$0xf]
        %v9789 = vld [vmem:[%s9776 + $0x30] sm:$0xf]
        %v9790 = vld [vmem:[%s9776 + $0x34] sm:$0xf]
        %v9791 = vld [vmem:[%s9776 + $0x38] sm:$0xf]
        %v9792 = vld [vmem:[%s9776 + $0x3c] sm:$0xf]
        %v9797 = vunpack.c.l.b16 %v9477
        %v9798 = vunpack.c.l.b16 %v9478
        %v9799 = vunpack.c.l.b16 %v9479
        %v9800 = vunpack.c.l.b16 %v9480
        %v9801 = vpack.c.b16 %v9798, %v9797
        %v9802 = vpack.c.b16 %v9800, %v9799
        %v9821 = vunpack.c.l.b16 %v9777
        %v9822 = vunpack.c.l.b16 %v9778
        %v9823 = vunpack.c.l.b16 %v9779
        %v9824 = vunpack.c.l.b16 %v9780
        %v9825 = vunpack.c.l.b16 %v9781
        %v9826 = vunpack.c.l.b16 %v9782
        %v9827 = vunpack.c.l.b16 %v9783
        %v9828 = vunpack.c.l.b16 %v9784
        %v9829 = vunpack.c.l.b16 %v9785
        %v9830 = vunpack.c.l.b16 %v9786
        %v9831 = vunpack.c.l.b16 %v9787
        %v9832 = vunpack.c.l.b16 %v9788
        %v9833 = vunpack.c.l.b16 %v9789
        %v9834 = vunpack.c.l.b16 %v9790
        %v9835 = vunpack.c.l.b16 %v9791
        %v9836 = vunpack.c.l.b16 %v9792
        %v9837 = vpack.c.b16 %v9822, %v9821
        %v9838 = vpack.c.b16 %v9824, %v9823
        %v9839 = vpack.c.b16 %v9826, %v9825
        %v9840 = vpack.c.b16 %v9828, %v9827
        %v9841 = vpack.c.b16 %v9830, %v9829
        %v9842 = vpack.c.b16 %v9832, %v9831
        %v9843 = vpack.c.b16 %v9834, %v9833
        %v9844 = vpack.c.b16 %v9836, %v9835
        %9853 = vmatpush.bf16.msra.mxu0 %v9844
        %9854 = vmatpush.bf16.msra.mxu0 %v9843
        %9855 = vmatpush.bf16.msra.mxu0 %v9842
        %9856 = vmatpush.bf16.msra.mxu0 %v9841
        %9857 = vmatpush.bf16.msra.mxu0 %v9840
        %9858 = vmatpush.bf16.msra.mxu0 %v9839
        %9859 = vmatpush.bf16.msra.mxu0 %v9838
        %9860 = vmatpush.bf16.msra.mxu0 %v9837
        %9861 = vmatmul.bf16.gmra.mxu0 %v9801
        %v9862 = vpop.f32.mrf.mxu0
        %v9863 = vadd.f32 0.0, %v9862
        %v9864 = vpop.f32.mrf.mxu0
        %v9865 = vadd.f32 0.0, %v9864
        %9866 = vmatmul.bf16.gmra.mxu0 %v9802
        %v9867 = vpop.f32.mrf.mxu0
        %v9868 = vadd.f32 0.0, %v9867
        %v9869 = vpop.f32.mrf.mxu0
        %v9870 = vadd.f32 0.0, %v9869
        %9871 = vdwg.mxu0
        %v9872 = vadd.f32 %v9772, %v9863
        %v9873 = vadd.f32 %v9773, %v9865
        %v9874 = vadd.f32 %v9774, %v9868
        %v9875 = vadd.f32 %v9775, %v9870
        %s9876 = scalar_lea.vmem %s5, 256
        %v9877 = vld [vmem:[%s9876] sm:$0xf]
        %v9878 = vld [vmem:[%s9876 + $0x4] sm:$0xf]
        %v9879 = vld [vmem:[%s9876 + $0x8] sm:$0xf]
        %v9880 = vld [vmem:[%s9876 + $0xc] sm:$0xf]
        %v9881 = vld [vmem:[%s9876 + $0x10] sm:$0xf]
        %v9882 = vld [vmem:[%s9876 + $0x14] sm:$0xf]
        %v9883 = vld [vmem:[%s9876 + $0x18] sm:$0xf]
        %v9884 = vld [vmem:[%s9876 + $0x1c] sm:$0xf]
        %v9885 = vld [vmem:[%s9876 + $0x20] sm:$0xf]
        %v9886 = vld [vmem:[%s9876 + $0x24] sm:$0xf]
        %v9887 = vld [vmem:[%s9876 + $0x28] sm:$0xf]
        %v9888 = vld [vmem:[%s9876 + $0x2c] sm:$0xf]
        %v9889 = vld [vmem:[%s9876 + $0x30] sm:$0xf]
        %v9890 = vld [vmem:[%s9876 + $0x34] sm:$0xf]
        %v9891 = vld [vmem:[%s9876 + $0x38] sm:$0xf]
        %v9892 = vld [vmem:[%s9876 + $0x3c] sm:$0xf]
        %v9897 = vunpack.c.l.b16 %v9481
        %v9898 = vunpack.c.l.b16 %v9482
        %v9899 = vunpack.c.l.b16 %v9483
        %v9900 = vunpack.c.l.b16 %v9484
        %v9901 = vpack.c.b16 %v9898, %v9897
        %v9902 = vpack.c.b16 %v9900, %v9899
        %v9921 = vunpack.c.l.b16 %v9877
        %v9922 = vunpack.c.l.b16 %v9878
        %v9923 = vunpack.c.l.b16 %v9879
        %v9924 = vunpack.c.l.b16 %v9880
        %v9925 = vunpack.c.l.b16 %v9881
        %v9926 = vunpack.c.l.b16 %v9882
        %v9927 = vunpack.c.l.b16 %v9883
        %v9928 = vunpack.c.l.b16 %v9884
        %v9929 = vunpack.c.l.b16 %v9885
        %v9930 = vunpack.c.l.b16 %v9886
        %v9931 = vunpack.c.l.b16 %v9887
        %v9932 = vunpack.c.l.b16 %v9888
        %v9933 = vunpack.c.l.b16 %v9889
        %v9934 = vunpack.c.l.b16 %v9890
        %v9935 = vunpack.c.l.b16 %v9891
        %v9936 = vunpack.c.l.b16 %v9892
        %v9937 = vpack.c.b16 %v9922, %v9921
        %v9938 = vpack.c.b16 %v9924, %v9923
        %v9939 = vpack.c.b16 %v9926, %v9925
        %v9940 = vpack.c.b16 %v9928, %v9927
        %v9941 = vpack.c.b16 %v9930, %v9929
        %v9942 = vpack.c.b16 %v9932, %v9931
        %v9943 = vpack.c.b16 %v9934, %v9933
        %v9944 = vpack.c.b16 %v9936, %v9935
        %9953 = vmatpush.bf16.msra.mxu0 %v9944
        %9954 = vmatpush.bf16.msra.mxu0 %v9943
        %9955 = vmatpush.bf16.msra.mxu0 %v9942
        %9956 = vmatpush.bf16.msra.mxu0 %v9941
        %9957 = vmatpush.bf16.msra.mxu0 %v9940
        %9958 = vmatpush.bf16.msra.mxu0 %v9939
        %9959 = vmatpush.bf16.msra.mxu0 %v9938
        %9960 = vmatpush.bf16.msra.mxu0 %v9937
        %9961 = vmatmul.bf16.gmra.mxu0 %v9901
        %v9962 = vpop.f32.mrf.mxu0
        %v9963 = vadd.f32 0.0, %v9962
        %v9964 = vpop.f32.mrf.mxu0
        %v9965 = vadd.f32 0.0, %v9964
        %9966 = vmatmul.bf16.gmra.mxu0 %v9902
        %v9967 = vpop.f32.mrf.mxu0
        %v9968 = vadd.f32 0.0, %v9967
        %v9969 = vpop.f32.mrf.mxu0
        %v9970 = vadd.f32 0.0, %v9969
        %9971 = vdwg.mxu0
        %v9972 = vadd.f32 %v9872, %v9963
        %v9973 = vadd.f32 %v9873, %v9965
        %v9974 = vadd.f32 %v9874, %v9968
        %v9975 = vadd.f32 %v9875, %v9970
        %v9977 = vperm.slane %v943, 0
        %v9979 = vadd.f32 %v9972, %v9977
        %v9980 = vadd.f32 %v9973, %v9977
        %v9981 = vadd.f32 %v9974, %v9977
        %v9982 = vadd.f32 %v9975, %v9977
        %v9983 = vmax.f32 %v9979, 0.0
        %v9984 = vmax.f32 %v9980, 0.0
        %v9985 = vmax.f32 %v9981, 0.0
        %v9986 = vmax.f32 %v9982, 0.0
        %v9987 = vpack.c.bf16 %v9984, %v9983
        %v9988 = vpack.c.bf16 %v9986, %v9985
        %v9989 = vld [vmem:[%s7] sm:$0xf]
        %v9990 = vld [vmem:[%s7 + $0x4] sm:$0xf]
        %v9991 = vld [vmem:[%s7 + $0x8] sm:$0xf]
        %v9992 = vld [vmem:[%s7 + $0xc] sm:$0xf]
        %v9993 = vld [vmem:[%s7 + $0x10] sm:$0xf]
        %v9994 = vld [vmem:[%s7 + $0x14] sm:$0xf]
        %v9995 = vld [vmem:[%s7 + $0x18] sm:$0xf]
        %v9996 = vld [vmem:[%s7 + $0x1c] sm:$0xf]
        %v9997 = vld [vmem:[%s7 + $0x20] sm:$0xf]
        %v9998 = vld [vmem:[%s7 + $0x24] sm:$0xf]
        %v9999 = vld [vmem:[%s7 + $0x28] sm:$0xf]
        %v10000 = vld [vmem:[%s7 + $0x2c] sm:$0xf]
        %v10001 = vld [vmem:[%s7 + $0x30] sm:$0xf]
        %v10002 = vld [vmem:[%s7 + $0x34] sm:$0xf]
        %v10003 = vld [vmem:[%s7 + $0x38] sm:$0xf]
        %v10004 = vld [vmem:[%s7 + $0x3c] sm:$0xf]
        %v10006 = vperm.slane %v944, 0
        %v10024 = vunpack.c.l.b16 %v9989
        %v10025 = vunpack.c.l.b16 %v9990
        %v10026 = vunpack.c.l.b16 %v9991
        %v10027 = vunpack.c.l.b16 %v9992
        %v10028 = vunpack.c.l.b16 %v9993
        %v10029 = vunpack.c.l.b16 %v9994
        %v10030 = vunpack.c.l.b16 %v9995
        %v10031 = vunpack.c.l.b16 %v9996
        %v10032 = vunpack.c.l.b16 %v9997
        %v10033 = vunpack.c.l.b16 %v9998
        %v10034 = vunpack.c.l.b16 %v9999
        %v10035 = vunpack.c.l.b16 %v10000
        %v10036 = vunpack.c.l.b16 %v10001
        %v10037 = vunpack.c.l.b16 %v10002
        %v10038 = vunpack.c.l.b16 %v10003
        %v10039 = vunpack.c.l.b16 %v10004
        %v10040 = vpack.c.b16 %v10025, %v10024
        %v10041 = vpack.c.b16 %v10027, %v10026
        %v10042 = vpack.c.b16 %v10029, %v10028
        %v10043 = vpack.c.b16 %v10031, %v10030
        %v10044 = vpack.c.b16 %v10033, %v10032
        %v10045 = vpack.c.b16 %v10035, %v10034
        %v10046 = vpack.c.b16 %v10037, %v10036
        %v10047 = vpack.c.b16 %v10039, %v10038
        %10056 = vmatpush.bf16.msra.mxu0 %v10047
        %10057 = vmatpush.bf16.msra.mxu0 %v10046
        %10058 = vmatpush.bf16.msra.mxu0 %v10045
        %10059 = vmatpush.bf16.msra.mxu0 %v10044
        %10060 = vmatpush.bf16.msra.mxu0 %v10043
        %10061 = vmatpush.bf16.msra.mxu0 %v10042
        %10062 = vmatpush.bf16.msra.mxu0 %v10041
        %10063 = vmatpush.bf16.msra.mxu0 %v10040
        %10064 = vmatmul.bf16.gmra.mxu0 %v9987
        %v10065 = vpop.f32.mrf.mxu0
        %v10066 = vadd.f32 %v10006, %v10065
        %v10067 = vpop.f32.mrf.mxu0
        %v10068 = vadd.f32 %v10006, %v10067
        %10069 = vmatmul.bf16.gmra.mxu0 %v9988
        %v10070 = vpop.f32.mrf.mxu0
        %v10071 = vadd.f32 %v10006, %v10070
        %v10072 = vpop.f32.mrf.mxu0
        %v10073 = vadd.f32 %v10006, %v10072
        %10074 = vdwg.mxu0
        %v10075 = vmax.f32 %v10066, 0.0
        %v10076 = vmax.f32 %v10068, 0.0
        %v10077 = vmax.f32 %v10071, 0.0
        %v10078 = vmax.f32 %v10073, 0.0
        %v10079 = vpack.c.bf16 %v10076, %v10075
        %v10080 = vpack.c.bf16 %v10078, %v10077
        %v10081 = vld [vmem:[%s9] sm:$0xf]
        %v10082 = vld [vmem:[%s9 + $0x4] sm:$0xf]
        %v10083 = vld [vmem:[%s9 + $0x8] sm:$0xf]
        %v10084 = vld [vmem:[%s9 + $0xc] sm:$0xf]
        %v10085 = vld [vmem:[%s9 + $0x10] sm:$0xf]
        %v10086 = vld [vmem:[%s9 + $0x14] sm:$0xf]
        %v10087 = vld [vmem:[%s9 + $0x18] sm:$0xf]
        %v10088 = vld [vmem:[%s9 + $0x1c] sm:$0xf]
        %v10089 = vld [vmem:[%s9 + $0x20] sm:$0xf]
        %v10090 = vld [vmem:[%s9 + $0x24] sm:$0xf]
        %v10091 = vld [vmem:[%s9 + $0x28] sm:$0xf]
        %v10092 = vld [vmem:[%s9 + $0x2c] sm:$0xf]
        %v10093 = vld [vmem:[%s9 + $0x30] sm:$0xf]
        %v10094 = vld [vmem:[%s9 + $0x34] sm:$0xf]
        %v10095 = vld [vmem:[%s9 + $0x38] sm:$0xf]
        %v10096 = vld [vmem:[%s9 + $0x3c] sm:$0xf]
        %v10098 = vperm.slane %v945, 0
        %v10116 = vunpack.c.l.b16 %v10081
        %v10117 = vunpack.c.l.b16 %v10082
        %v10118 = vunpack.c.l.b16 %v10083
        %v10119 = vunpack.c.l.b16 %v10084
        %v10120 = vunpack.c.l.b16 %v10085
        %v10121 = vunpack.c.l.b16 %v10086
        %v10122 = vunpack.c.l.b16 %v10087
        %v10123 = vunpack.c.l.b16 %v10088
        %v10124 = vunpack.c.l.b16 %v10089
        %v10125 = vunpack.c.l.b16 %v10090
        %v10126 = vunpack.c.l.b16 %v10091
        %v10127 = vunpack.c.l.b16 %v10092
        %v10128 = vunpack.c.l.b16 %v10093
        %v10129 = vunpack.c.l.b16 %v10094
        %v10130 = vunpack.c.l.b16 %v10095
        %v10131 = vunpack.c.l.b16 %v10096
        %v10132 = vpack.c.b16 %v10117, %v10116
        %v10133 = vpack.c.b16 %v10119, %v10118
        %v10134 = vpack.c.b16 %v10121, %v10120
        %v10135 = vpack.c.b16 %v10123, %v10122
        %v10136 = vpack.c.b16 %v10125, %v10124
        %v10137 = vpack.c.b16 %v10127, %v10126
        %v10138 = vpack.c.b16 %v10129, %v10128
        %v10139 = vpack.c.b16 %v10131, %v10130
        %10148 = vmatpush.bf16.msra.mxu0 %v10139
        %10149 = vmatpush.bf16.msra.mxu0 %v10138
        %10150 = vmatpush.bf16.msra.mxu0 %v10137
        %10151 = vmatpush.bf16.msra.mxu0 %v10136
        %10152 = vmatpush.bf16.msra.mxu0 %v10135
        %10153 = vmatpush.bf16.msra.mxu0 %v10134
        %10154 = vmatpush.bf16.msra.mxu0 %v10133
        %10155 = vmatpush.bf16.msra.mxu0 %v10132
        %10156 = vmatmul.bf16.gmra.mxu0 %v10079
        %v10157 = vpop.f32.mrf.mxu0
        %v10158 = vadd.f32 %v10098, %v10157
        %v10159 = vpop.f32.mrf.mxu0
        %v10160 = vadd.f32 %v10098, %v10159
        %10161 = vmatmul.bf16.gmra.mxu0 %v10080
        %v10162 = vpop.f32.mrf.mxu0
        %v10163 = vadd.f32 %v10098, %v10162
        %v10164 = vpop.f32.mrf.mxu0
        %v10165 = vadd.f32 %v10098, %v10164
        %10166 = vdwg.mxu0
        %10167 = vst [vmem:[%s939] sm:$0xff] %v10158
        %10168 = vst [vmem:[%s939 + $0x8] sm:$0xff] %v10160
        %10169 = vst [vmem:[%s939 + $0x10] sm:$0xff] %v10163
        %10170 = vst [vmem:[%s939 + $0x18] sm:$0xff] %v10165
        %s10171 = smul.u32 4, %s22
        %p10172 = scmp.lt.s32.totalorder %s10171, 7
        %s10173 = scalar_select %p10172, %s10171, 7
        %s10174 = smul.addr %s10173, 8
        %s10175 = scalar_lea.vmem %s11, %s10174
        // Predicated region
        $region106: #{medium_net_forward.1} parent=100 // pred_check
          %p10176 = pneg %p276
        $region107: #{medium_net_forward.1} parent=100 // pred_check_branch
          %10178 = sbr.rel (%p10176) target = $region109
        $region108: #{medium_net_forward.1} parent=100 // pred_region
          %s10179 = smul.u32 4, %s22
        $region109: #{medium_net_forward.1} parent=100 // pred_fallthru
          _
      $region101: #{medium_net_forward.1} parent=5 // pred_fallthru
        _
      %p10180 = scmp.le.s32.totalorder 2, %s17
      // Predicated region
      $region110: #{medium_net_forward.1} parent=5 // pred_check
        %p10181 = pneg %p10180
      $region111: #{medium_net_forward.1} parent=5 // pred_check_branch
        %10183 = sbr.rel (%p10181) target = $region113
      $region112: #{medium_net_forward.1} parent=5 // pred_region
        %s10184 = ssub.s32 %s17, 2
        // Predicated region
        $region114: #{medium_net_forward.1} parent=112 // pred_check
          %p10185 = pneg %p282
        $region115: #{medium_net_forward.1} parent=112 // pred_check_branch
          %10187 = sbr.rel (%p10185) target = $region117
        $region116: #{medium_net_forward.1} parent=112 // pred_region
          %s10188 = smul.u32 4, %s23
          %p10189 = scmp.lt.s32.totalorder %s10188, 7
          %s10190 = scalar_select %p10189, %s10188, 7
          %s10191 = smul.addr %s10190, 8
          %s10192 = scalar_lea.vmem %s11, %s10191
        $region117: #{medium_net_forward.1} parent=112 // pred_fallthru
          _
      $region113: #{medium_net_forward.1} parent=5 // pred_fallthru
        _
    $region6: #{medium_net_forward.1} parent=1 // loop_footer
      %s21 = sadd.s32 1, %s17
    $region7: #{medium_net_forward.1} parent=1 // loop_footer_branch
      %16 = sbr.rel target = $region3
    $region8: #{medium_net_forward.1} parent=1 // loop_exit
      _

</llo_original>
